<compile_context>
chip_gen: v5e
topology: v5e:2x2
jax: 0.10.0
libtpu: 0.0.40
codegen_flags: <defaults>
</compile_context>

<pallas_src>
import math

import jax
import jax.numpy as jnp
from jax.experimental import pallas as pl
from jax.experimental.pallas import tpu as pltpu

# ----------------------------- config (small) -------------------------------
B = 4          # batch
T = 8          # sequence length
V = 50         # length_num (vocab)
E = 16         # length_dim (embedding dim)
H = 32         # hidden
C = 10         # class_num
REC_LOSS_W = 0.1

_VMEM = pltpu.MemorySpace.VMEM


# --------------------------- fused forward kernel ---------------------------
def fsnet_kernel(*refs):
    (ids_ref, mcat_ref, lbl_ref, embw_ref,
     e0_wih, e0_whh, e0_bih, e0_bhh,
     e1_wih, e1_whh, e1_bih, e1_bhh,
     d0_wih, d0_whh, d0_bih, d0_bhh,
     d1_wih, d1_whh, d1_bih, d1_bhh,
     rec_w, rec_b, gw_ref, gb_ref, uw_ref, ub_ref,
     cw_ref, cb_ref, kw_ref, kb_ref,
     logits_ref, loss_ref) = refs

    f32 = jnp.float32
    TB = T * B
    H2, H3, H6 = 2 * H, 3 * H, 6 * H

    # Per-step direction-fused masks, shared by all four bi-GRU layers.
    # Row block i: [:,:H] = mask(time i), [:,H:] = mask(time T-1-i).
    mcat = mcat_ref[...]                                     # (T*B, 2H)
    m_step = [mcat[i * B:(i + 1) * B, :] for i in range(T)]

    # ---- fused bidirectional recurrent scan (one matmul / step) ------------
    def run_bigru(gi_fn, whh, bhh):
        h = jnp.zeros((B, H2), f32)                          # [h_f | h_b]
        outs = []
        for i in range(T):                                   # fully unrolled
            gf, gb = gi_fn(i)    # (B,6H): fwd gates @ t=i, bwd gates @ t=T-1-i
            gh = jnp.dot(h, whh, preferred_element_type=f32) + bhh  # (B,6H) [rf rb zf zb nf nb]
            gi_r = jnp.concatenate([gf[:, 0:H], gb[:, H3:H3 + H]], axis=-1)
            gi_z = jnp.concatenate([gf[:, H:H2], gb[:, H3 + H:H3 + H2]], axis=-1)
            gi_n = jnp.concatenate([gf[:, H2:H3], gb[:, H3 + H2:H6]], axis=-1)
            r = jax.nn.sigmoid(gi_r + gh[:, 0:H2])
            z = jax.nn.sigmoid(gi_z + gh[:, H2:2 * H2])
            n = jnp.tanh(gi_n + r * gh[:, 2 * H2:3 * H2])
            hc = (1.0 - z) * n + z * h
            m = m_step[i]
            o = m * hc                                       # padded steps emit zeros
            outs.append(o)
            h = o + (1.0 - m) * h                            # freeze state past seq_len
        # Bulk-assemble time-major (T*B, 2H): fwd half of step t, bwd half of step T-1-t.
        out_flat = jnp.concatenate(
            [jnp.concatenate([outs[i][:, 0:H], outs[T - 1 - i][:, H:H2]], axis=-1)
             for i in range(T)], axis=0)
        return out_flat, h                                   # h = [h_f_final | h_b_final]

    def bigru_layer(x_flat, wih, bih, whh, bhh):
        # Hoisted input-gate matmul: whole sequence, both directions at once.
        gi_all = jnp.dot(x_flat, wih[...], preferred_element_type=f32) + bih[...]  # (T*B, 6H)
        gi_rows = [gi_all[i * B:(i + 1) * B, :] for i in range(T)]
        return run_bigru(lambda i: (gi_rows[i], gi_rows[T - 1 - i]),
                         whh[...], bhh[...])

    # ---- embedding via fused table ------------------------------------------
    ids = ids_ref[...]                                       # (T*B, 1) int32, time-major
    onehot = (jax.lax.broadcasted_iota(jnp.int32, (TB, V), 1) == ids).astype(f32)
    x0 = jnp.dot(onehot, embw_ref[...], preferred_element_type=f32)     # (T*B, H)

    # ---- encoder (stacked bi-GRU, is_cat=True) ------------------------------
    e0_out, e0_h = bigru_layer(x0, e0_wih, e0_bih, e0_whh, e0_bhh)
    e1_out, e1_h = bigru_layer(e0_out, e1_wih, e1_bih, e1_whh, e1_bhh)
    e_fea = jnp.concatenate([e0_h, e1_h], axis=-1)           # (B, 4H)

    # ---- decoder: layer-0 input is e_fea broadcast over time ---------------
    # Its input-gate term is time-invariant -> compute once.
    gi_const = jnp.dot(e_fea, d0_wih[...], preferred_element_type=f32) + d0_bih[...]
    d0_out, d0_h = run_bigru(lambda i: (gi_const, gi_const), d0_whh[...], d0_bhh[...])
    d1_out, d1_h = bigru_layer(d0_out, d1_wih, d1_bih, d1_whh, d1_bhh)
    d_fea = jnp.concatenate([d0_h, d1_h], axis=-1)           # (B, 4H)
    l_out = jnp.concatenate([d0_out, d1_out], axis=-1)       # (T*B, 4H)

    # ---- reconstruction loss (masked CE over flow != 0) ---------------------
    rl = jnp.dot(l_out, rec_w[...], preferred_element_type=f32) + rec_b[...]   # (T*B, V)
    oneh_v = (jax.lax.broadcasted_iota(jnp.int32, (TB, V), 1) == ids).astype(f32)
    mx = jnp.max(rl, axis=-1, keepdims=True)
    lse = jnp.log(jnp.sum(jnp.exp(rl - mx), axis=-1, keepdims=True)) + mx
    tgt = jnp.sum(rl * oneh_v, axis=-1, keepdims=True)
    wgt = (ids != 0).astype(f32)                             # (T*B, 1)
    wsum = jnp.maximum(jnp.sum(wgt, keepdims=True), 1.0)     # divide-by-zero guard
    rec_loss = (jnp.sum((lse - tgt) * wgt, keepdims=True)
                * pl.reciprocal(wsum, approx=True))          # (1, 1)

    # ---- fusion gate/update + compress + classifier + classification CE ----
    fea = jnp.concatenate([e_fea, d_fea, e_fea * d_fea], axis=-1)       # (B, 12H)
    g = jax.nn.sigmoid(jnp.dot(fea, gw_ref[...], preferred_element_type=f32) + gb_ref[...])
    u = jnp.tanh(jnp.dot(fea, uw_ref[...], preferred_element_type=f32) + ub_ref[...])
    fused = e_fea * g + (1.0 - g) * u                        # (B, 4H)
    hcmp = jnp.dot(fused, cw_ref[...], preferred_element_type=f32) + cb_ref[...]
    scale = 1.0507009873554805
    alpha = 1.6732632423543772
    hcmp = scale * jnp.where(hcmp > 0.0, hcmp,
                             alpha * (jnp.exp(jnp.minimum(hcmp, 0.0)) - 1.0))  # SELU
    logits = jnp.dot(hcmp, kw_ref[...], preferred_element_type=f32) + kb_ref[...]
    logits_ref[...] = logits

    lbl = lbl_ref[...]                                       # (B, 1) int32
    oneh_c = (jax.lax.broadcasted_iota(jnp.int32, (B, C), 1) == lbl).astype(f32)
    cmx = jnp.max(logits, axis=-1, keepdims=True)
    clse = jnp.log(jnp.sum(jnp.exp(logits - cmx), axis=-1, keepdims=True)) + cmx
    ctgt = jnp.sum(logits * oneh_c, axis=-1, keepdims=True)
    c_loss = jnp.sum(clse - ctgt, keepdims=True) * (1.0 / B)            # (1, 1)

    loss_ref[...] = c_loss + REC_LOSS_W * rec_loss


# ------------------------------ parameters ----------------------------------
def _uniform(key, shape, s):
    return jax.random.uniform(key, shape, jnp.float32, -s, s)


def init_gru_layer(key, din, h):
    ks = jax.random.split(key, 8)
    s = 1.0 / math.sqrt(h)
    return dict(
        wih_f=_uniform(ks[0], (din, 3 * h), s),
        whh_f=_uniform(ks[1], (h, 3 * h), s),
        bih_f=_uniform(ks[2], (1, 3 * h), s),
        bhh_f=_uniform(ks[3], (1, 3 * h), s),
        wih_b=_uniform(ks[4], (din, 3 * h), s),
        whh_b=_uniform(ks[5], (h, 3 * h), s),
        bih_b=_uniform(ks[6], (1, 3 * h), s),
        bhh_b=_uniform(ks[7], (1, 3 * h), s),
    )


def init_params(key):
    ks = jax.random.split(key, 17)
    p = {}
    p["emb"] = _uniform(ks[0], (V, E), 1.0)
    p["proj_w"] = _uniform(ks[1], (E, H), 1.0 / math.sqrt(E))
    p["proj_b"] = _uniform(ks[2], (1, H), 1.0 / math.sqrt(E))
    # encoder: layer0 in=H, layer1 in=2H
    p["enc"] = [init_gru_layer(ks[3], H, H), init_gru_layer(ks[4], 2 * H, H)]
    # decoder: layer0 in=4H (repeated encoder state), layer1 in=2H
    p["dec"] = [init_gru_layer(ks[5], 4 * H, H), init_gru_layer(ks[6], 2 * H, H)]
    p["rec_w"] = _uniform(ks[7], (4 * H, V), 1.0 / math.sqrt(4 * H))
    p["rec_b"] = _uniform(ks[8], (1, V), 1.0 / math.sqrt(4 * H))
    p["gate_w"] = _uniform(ks[9], (12 * H, 4 * H), 1.0 / math.sqrt(12 * H))
    p["gate_b"] = _uniform(ks[10], (1, 4 * H), 1.0 / math.sqrt(12 * H))
    p["upd_w"] = _uniform(ks[11], (12 * H, 4 * H), 1.0 / math.sqrt(12 * H))
    p["upd_b"] = _uniform(ks[12], (1, 4 * H), 1.0 / math.sqrt(12 * H))
    p["cmp_w"] = _uniform(ks[13], (4 * H, 2 * H), 1.0 / math.sqrt(4 * H))
    p["cmp_b"] = _uniform(ks[14], (1, 2 * H), 1.0 / math.sqrt(4 * H))
    p["cls_w"] = _uniform(ks[15], (2 * H, C), 1.0 / math.sqrt(2 * H))
    p["cls_b"] = _uniform(ks[16], (1, C), 1.0 / math.sqrt(2 * H))
    return p


def _pack_gru_layer(lp, h):
    """Pack one bi-GRU layer into direction-fused weight layout."""
    # Input-gate weights: [Wih_f | Wih_b]  -> gate columns [rf zf nf | rb zb nb]
    wih = jnp.concatenate([lp["wih_f"], lp["wih_b"]], axis=1)        # (Din, 6H)
    bih = jnp.concatenate([lp["bih_f"], lp["bih_b"]], axis=1)        # (1, 6H)
    # Recurrent weights: block-diagonal, gate-grouped columns [rf rb zf zb nf nb]
    z = jnp.zeros((h, h), jnp.float32)
    wf, wb = lp["whh_f"], lp["whh_b"]
    top = jnp.concatenate([wf[:, 0:h], z, wf[:, h:2 * h], z, wf[:, 2 * h:3 * h], z], axis=1)
    bot = jnp.concatenate([z, wb[:, 0:h], z, wb[:, h:2 * h], z, wb[:, 2 * h:3 * h]], axis=1)
    whh = jnp.concatenate([top, bot], axis=0)                        # (2H, 6H)
    bf, bb = lp["bhh_f"], lp["bhh_b"]
    bhh = jnp.concatenate([bf[:, 0:h], bb[:, 0:h], bf[:, h:2 * h], bb[:, h:2 * h],
                           bf[:, 2 * h:3 * h], bb[:, 2 * h:3 * h]], axis=1)   # (1, 6H)
    return [wih, whh, bih, bhh]


def pack_params(p):
    """One-time packing (outside the jit'ed forward)."""
    # Fused embedding table: emb @ proj_w + proj_b  (one-hot matmul picks a row).
    embw = jnp.dot(p["emb"], p["proj_w"]) + p["proj_b"]              # (V, H)
    packed = [embw]
    for lp in p["enc"] + p["dec"]:
        packed += _pack_gru_layer(lp, H)
    packed += [p["rec_w"], p["rec_b"], p["gate_w"], p["gate_b"],
               p["upd_w"], p["upd_b"], p["cmp_w"], p["cmp_b"],
               p["cls_w"], p["cls_b"]]
    return packed


# ------------------------------ forward (glue) -------------------------------
@jax.jit
def fsnet_forward(packed, flow, seq_len, label):
    b, t = flow.shape

    # Tiny input prep (time-major ids, per-step direction-fused validity mask).
    ids_tm = jnp.transpose(flow, (1, 0)).reshape(t * b, 1).astype(jnp.int32)
    tmask = (jnp.arange(t)[:, None] < seq_len[None, :]).astype(jnp.float32)   # (T, B)
    m_f = jnp.broadcast_to(tmask[:, :, None], (t, b, H))
    m_b = jnp.broadcast_to(tmask[::-1, :, None], (t, b, H))
    mcat = jnp.concatenate([m_f, m_b], axis=-1).reshape(t * b, 2 * H)
    lbl = label.reshape(b, 1).astype(jnp.int32)

    args = [ids_tm, mcat, lbl] + list(packed)
    out_shapes = (jax.ShapeDtypeStruct((b, C), jnp.float32),
                  jax.ShapeDtypeStruct((1, 1), jnp.float32))
    logits, loss = pl.pallas_call(
        fsnet_kernel,
        out_shape=out_shapes,
        in_specs=[pl.BlockSpec(memory_space=_VMEM)] * len(args),
        out_specs=(pl.BlockSpec(memory_space=_VMEM),
                   pl.BlockSpec(memory_space=_VMEM)),
    )(*args)

    pred = jnp.argmax(logits, axis=1)
    return loss[0, 0], pred


# ------------------------------------ main -----------------------------------
if __name__ == "__main__":
    key = jax.random.PRNGKey(0)
    k_par, k_flow, k_len, k_lbl = jax.random.split(key, 4)

    params = init_params(k_par)
    packed = pack_params(params)          # packed once, outside the jit'ed forward

    flow = jax.random.randint(k_flow, (B, T), 0, V, dtype=jnp.int32)
    seq_len = jax.random.randint(k_len, (B,), 3, T + 1, dtype=jnp.int32)
    label = jax.random.randint(k_lbl, (B,), 0, C, dtype=jnp.int32)

    loss, pred = fsnet_forward(packed, flow, seq_len, label)
    loss = jax.block_until_ready(loss)
    pred = jax.block_until_ready(pred)

    assert pred.shape == (B,)
    assert jnp.isfinite(loss)
    print("KERNEL_OK")
</pallas_src>

<mosaic_0001>
module attributes {stable_mosaic.version = 11 : i64} {
  func.func @fsnet_kernel(%arg0: memref<32x1xi32, #tpu.memory_space<vmem>>, %arg1: memref<32x64xf32, #tpu.memory_space<vmem>>, %arg2: memref<4x1xi32, #tpu.memory_space<vmem>>, %arg3: memref<50x32xf32, #tpu.memory_space<vmem>>, %arg4: memref<32x192xf32, #tpu.memory_space<vmem>>, %arg5: memref<64x192xf32, #tpu.memory_space<vmem>>, %arg6: memref<1x192xf32, #tpu.memory_space<vmem>>, %arg7: memref<1x192xf32, #tpu.memory_space<vmem>>, %arg8: memref<64x192xf32, #tpu.memory_space<vmem>>, %arg9: memref<64x192xf32, #tpu.memory_space<vmem>>, %arg10: memref<1x192xf32, #tpu.memory_space<vmem>>, %arg11: memref<1x192xf32, #tpu.memory_space<vmem>>, %arg12: memref<128x192xf32, #tpu.memory_space<vmem>>, %arg13: memref<64x192xf32, #tpu.memory_space<vmem>>, %arg14: memref<1x192xf32, #tpu.memory_space<vmem>>, %arg15: memref<1x192xf32, #tpu.memory_space<vmem>>, %arg16: memref<64x192xf32, #tpu.memory_space<vmem>>, %arg17: memref<64x192xf32, #tpu.memory_space<vmem>>, %arg18: memref<1x192xf32, #tpu.memory_space<vmem>>, %arg19: memref<1x192xf32, #tpu.memory_space<vmem>>, %arg20: memref<128x50xf32, #tpu.memory_space<vmem>>, %arg21: memref<1x50xf32, #tpu.memory_space<vmem>>, %arg22: memref<384x128xf32, #tpu.memory_space<vmem>>, %arg23: memref<1x128xf32, #tpu.memory_space<vmem>>, %arg24: memref<384x128xf32, #tpu.memory_space<vmem>>, %arg25: memref<1x128xf32, #tpu.memory_space<vmem>>, %arg26: memref<128x64xf32, #tpu.memory_space<vmem>>, %arg27: memref<1x64xf32, #tpu.memory_space<vmem>>, %arg28: memref<64x10xf32, #tpu.memory_space<vmem>>, %arg29: memref<1x10xf32, #tpu.memory_space<vmem>>, %arg30: memref<4x10xf32, #tpu.memory_space<vmem>>, %arg31: memref<1x1xf32, #tpu.memory_space<vmem>>) attributes {dimension_semantics = [], scalar_prefetch = 0 : i64, scratch_operands = 0 : i64, tpu.core_type = #tpu.core_type<tc>} {
    %c0 = arith.constant 0 : index
    %c0_0 = arith.constant 0 : index
    %0 = vector.load %arg1[%c0, %c0_0] : memref<32x64xf32, #tpu.memory_space<vmem>>, vector<32x64xf32>
    %1 = vector.extract_strided_slice %0 {offsets = [0, 0], sizes = [4, 64], strides = [1, 1]} : vector<32x64xf32> to vector<4x64xf32>
    %2 = vector.extract_strided_slice %0 {offsets = [4, 0], sizes = [4, 64], strides = [1, 1]} : vector<32x64xf32> to vector<4x64xf32>
    %3 = vector.extract_strided_slice %0 {offsets = [8, 0], sizes = [4, 64], strides = [1, 1]} : vector<32x64xf32> to vector<4x64xf32>
    %4 = vector.extract_strided_slice %0 {offsets = [12, 0], sizes = [4, 64], strides = [1, 1]} : vector<32x64xf32> to vector<4x64xf32>
    %5 = vector.extract_strided_slice %0 {offsets = [16, 0], sizes = [4, 64], strides = [1, 1]} : vector<32x64xf32> to vector<4x64xf32>
    %6 = vector.extract_strided_slice %0 {offsets = [20, 0], sizes = [4, 64], strides = [1, 1]} : vector<32x64xf32> to vector<4x64xf32>
    %7 = vector.extract_strided_slice %0 {offsets = [24, 0], sizes = [4, 64], strides = [1, 1]} : vector<32x64xf32> to vector<4x64xf32>
    %8 = vector.extract_strided_slice %0 {offsets = [28, 0], sizes = [4, 64], strides = [1, 1]} : vector<32x64xf32> to vector<4x64xf32>
    %c0_1 = arith.constant 0 : index
    %c0_2 = arith.constant 0 : index
    %9 = vector.load %arg0[%c0_1, %c0_2] : memref<32x1xi32, #tpu.memory_space<vmem>>, vector<32x1xi32>
    %10 = tpu.iota {dimensions = array<i32: 1>} : vector<32x50xi32>
    %11 = vector.broadcast %9 : vector<32x1xi32> to vector<32x50xi32>
    %12 = arith.cmpi eq, %10, %11 : vector<32x50xi32>
    %13 = arith.extui %12 : vector<32x50xi1> to vector<32x50xi32>
    %14 = arith.sitofp %13 : vector<32x50xi32> to vector<32x50xf32>
    %c0_3 = arith.constant 0 : index
    %c0_4 = arith.constant 0 : index
    %15 = vector.load %arg3[%c0_3, %c0_4] : memref<50x32xf32, #tpu.memory_space<vmem>>, vector<50x32xf32>
    %cst = arith.constant dense<0.000000e+00> : vector<32x32xf32>
    %16 = tpu.matmul %14, %15, %cst {dimension_numbers = #tpu.dot_dimension_numbers<[1], [0], [0], [1], [0, 0, 1, 1], [], []>} : vector<32x50xf32>, vector<50x32xf32>, vector<32x32xf32> -> vector<32x32xf32>
    %c0_5 = arith.constant 0 : index
    %c0_6 = arith.constant 0 : index
    %17 = vector.load %arg4[%c0_5, %c0_6] : memref<32x192xf32, #tpu.memory_space<vmem>>, vector<32x192xf32>
    %cst_7 = arith.constant dense<0.000000e+00> : vector<32x192xf32>
    %18 = tpu.matmul %16, %17, %cst_7 {dimension_numbers = #tpu.dot_dimension_numbers<[1], [0], [0], [1], [0, 0, 1, 1], [], []>} : vector<32x32xf32>, vector<32x192xf32>, vector<32x192xf32> -> vector<32x192xf32>
    %c0_8 = arith.constant 0 : index
    %c0_9 = arith.constant 0 : index
    %19 = vector.load %arg6[%c0_8, %c0_9] : memref<1x192xf32, #tpu.memory_space<vmem>>, vector<1x192xf32>
    %20 = vector.broadcast %19 : vector<1x192xf32> to vector<32x192xf32>
    %21 = arith.addf %18, %20 : vector<32x192xf32>
    %22 = vector.extract_strided_slice %21 {offsets = [0, 0], sizes = [4, 192], strides = [1, 1]} : vector<32x192xf32> to vector<4x192xf32>
    %23 = vector.extract_strided_slice %21 {offsets = [4, 0], sizes = [4, 192], strides = [1, 1]} : vector<32x192xf32> to vector<4x192xf32>
    %24 = vector.extract_strided_slice %21 {offsets = [8, 0], sizes = [4, 192], strides = [1, 1]} : vector<32x192xf32> to vector<4x192xf32>
    %25 = vector.extract_strided_slice %21 {offsets = [12, 0], sizes = [4, 192], strides = [1, 1]} : vector<32x192xf32> to vector<4x192xf32>
    %26 = vector.extract_strided_slice %21 {offsets = [16, 0], sizes = [4, 192], strides = [1, 1]} : vector<32x192xf32> to vector<4x192xf32>
    %27 = vector.extract_strided_slice %21 {offsets = [20, 0], sizes = [4, 192], strides = [1, 1]} : vector<32x192xf32> to vector<4x192xf32>
    %28 = vector.extract_strided_slice %21 {offsets = [24, 0], sizes = [4, 192], strides = [1, 1]} : vector<32x192xf32> to vector<4x192xf32>
    %29 = vector.extract_strided_slice %21 {offsets = [28, 0], sizes = [4, 192], strides = [1, 1]} : vector<32x192xf32> to vector<4x192xf32>
    %c0_10 = arith.constant 0 : index
    %c0_11 = arith.constant 0 : index
    %30 = vector.load %arg5[%c0_10, %c0_11] : memref<64x192xf32, #tpu.memory_space<vmem>>, vector<64x192xf32>
    %c0_12 = arith.constant 0 : index
    %c0_13 = arith.constant 0 : index
    %31 = vector.load %arg7[%c0_12, %c0_13] : memref<1x192xf32, #tpu.memory_space<vmem>>, vector<1x192xf32>
    %cst_14 = arith.constant 0.000000e+00 : f32
    %32 = vector.broadcast %cst_14 : f32 to vector<4x64xf32>
    %cst_15 = arith.constant dense<0.000000e+00> : vector<4x192xf32>
    %33 = tpu.matmul %32, %30, %cst_15 {dimension_numbers = #tpu.dot_dimension_numbers<[1], [0], [0], [1], [0, 0, 1, 1], [], []>} : vector<4x64xf32>, vector<64x192xf32>, vector<4x192xf32> -> vector<4x192xf32>
    %34 = vector.broadcast %31 : vector<1x192xf32> to vector<4x192xf32>
    %35 = arith.addf %33, %34 : vector<4x192xf32>
    %36 = vector.extract_strided_slice %22 {offsets = [0, 0], sizes = [4, 32], strides = [1, 1]} : vector<4x192xf32> to vector<4x32xf32>
    %37 = vector.extract_strided_slice %29 {offsets = [0, 96], sizes = [4, 32], strides = [1, 1]} : vector<4x192xf32> to vector<4x32xf32>
    %38 = tpu.concatenate %36, %37 in 1 : vector<4x32xf32>, vector<4x32xf32> -> vector<4x64xf32>
    %39 = vector.extract_strided_slice %22 {offsets = [0, 32], sizes = [4, 32], strides = [1, 1]} : vector<4x192xf32> to vector<4x32xf32>
    %40 = vector.extract_strided_slice %29 {offsets = [0, 128], sizes = [4, 32], strides = [1, 1]} : vector<4x192xf32> to vector<4x32xf32>
    %41 = tpu.concatenate %39, %40 in 1 : vector<4x32xf32>, vector<4x32xf32> -> vector<4x64xf32>
    %42 = vector.extract_strided_slice %22 {offsets = [0, 64], sizes = [4, 32], strides = [1, 1]} : vector<4x192xf32> to vector<4x32xf32>
    %43 = vector.extract_strided_slice %29 {offsets = [0, 160], sizes = [4, 32], strides = [1, 1]} : vector<4x192xf32> to vector<4x32xf32>
    %44 = tpu.concatenate %42, %43 in 1 : vector<4x32xf32>, vector<4x32xf32> -> vector<4x64xf32>
    %45 = vector.extract_strided_slice %35 {offsets = [0, 0], sizes = [4, 64], strides = [1, 1]} : vector<4x192xf32> to vector<4x64xf32>
    %46 = arith.addf %38, %45 : vector<4x64xf32>
    %47 = arith.negf %46 : vector<4x64xf32>
    %48 = math.exp %47 : vector<4x64xf32>
    %cst_16 = arith.constant 1.000000e+00 : f32
    %49 = vector.broadcast %cst_16 : f32 to vector<4x64xf32>
    %50 = arith.addf %49, %48 : vector<4x64xf32>
    %51 = arith.divf %49, %50 : vector<4x64xf32>
    %52 = vector.extract_strided_slice %35 {offsets = [0, 64], sizes = [4, 64], strides = [1, 1]} : vector<4x192xf32> to vector<4x64xf32>
    %53 = arith.addf %41, %52 : vector<4x64xf32>
    %54 = arith.negf %53 : vector<4x64xf32>
    %55 = math.exp %54 : vector<4x64xf32>
    %cst_17 = arith.constant 1.000000e+00 : f32
    %56 = vector.broadcast %cst_17 : f32 to vector<4x64xf32>
    %57 = arith.addf %56, %55 : vector<4x64xf32>
    %58 = arith.divf %56, %57 : vector<4x64xf32>
    %59 = vector.extract_strided_slice %35 {offsets = [0, 128], sizes = [4, 64], strides = [1, 1]} : vector<4x192xf32> to vector<4x64xf32>
    %60 = arith.mulf %51, %59 : vector<4x64xf32>
    %61 = arith.addf %44, %60 : vector<4x64xf32>
    %62 = math.tanh %61 : vector<4x64xf32>
    %cst_18 = arith.constant 1.000000e+00 : f32
    %63 = vector.broadcast %cst_18 : f32 to vector<4x64xf32>
    %64 = arith.subf %63, %58 : vector<4x64xf32>
    %65 = arith.mulf %64, %62 : vector<4x64xf32>
    %66 = arith.mulf %58, %32 : vector<4x64xf32>
    %67 = arith.addf %65, %66 : vector<4x64xf32>
    %68 = arith.mulf %1, %67 : vector<4x64xf32>
    %cst_19 = arith.constant 1.000000e+00 : f32
    %69 = vector.broadcast %cst_19 : f32 to vector<4x64xf32>
    %70 = arith.subf %69, %1 : vector<4x64xf32>
    %71 = arith.mulf %70, %32 : vector<4x64xf32>
    %72 = arith.addf %68, %71 : vector<4x64xf32>
    %cst_20 = arith.constant dense<0.000000e+00> : vector<4x192xf32>
    %73 = tpu.matmul %72, %30, %cst_20 {dimension_numbers = #tpu.dot_dimension_numbers<[1], [0], [0], [1], [0, 0, 1, 1], [], []>} : vector<4x64xf32>, vector<64x192xf32>, vector<4x192xf32> -> vector<4x192xf32>
    %74 = vector.broadcast %31 : vector<1x192xf32> to vector<4x192xf32>
    %75 = arith.addf %73, %74 : vector<4x192xf32>
    %76 = vector.extract_strided_slice %23 {offsets = [0, 0], sizes = [4, 32], strides = [1, 1]} : vector<4x192xf32> to vector<4x32xf32>
    %77 = vector.extract_strided_slice %28 {offsets = [0, 96], sizes = [4, 32], strides = [1, 1]} : vector<4x192xf32> to vector<4x32xf32>
    %78 = tpu.concatenate %76, %77 in 1 : vector<4x32xf32>, vector<4x32xf32> -> vector<4x64xf32>
    %79 = vector.extract_strided_slice %23 {offsets = [0, 32], sizes = [4, 32], strides = [1, 1]} : vector<4x192xf32> to vector<4x32xf32>
    %80 = vector.extract_strided_slice %28 {offsets = [0, 128], sizes = [4, 32], strides = [1, 1]} : vector<4x192xf32> to vector<4x32xf32>
    %81 = tpu.concatenate %79, %80 in 1 : vector<4x32xf32>, vector<4x32xf32> -> vector<4x64xf32>
    %82 = vector.extract_strided_slice %23 {offsets = [0, 64], sizes = [4, 32], strides = [1, 1]} : vector<4x192xf32> to vector<4x32xf32>
    %83 = vector.extract_strided_slice %28 {offsets = [0, 160], sizes = [4, 32], strides = [1, 1]} : vector<4x192xf32> to vector<4x32xf32>
    %84 = tpu.concatenate %82, %83 in 1 : vector<4x32xf32>, vector<4x32xf32> -> vector<4x64xf32>
    %85 = vector.extract_strided_slice %75 {offsets = [0, 0], sizes = [4, 64], strides = [1, 1]} : vector<4x192xf32> to vector<4x64xf32>
    %86 = arith.addf %78, %85 : vector<4x64xf32>
    %87 = arith.negf %86 : vector<4x64xf32>
    %88 = math.exp %87 : vector<4x64xf32>
    %cst_21 = arith.constant 1.000000e+00 : f32
    %89 = vector.broadcast %cst_21 : f32 to vector<4x64xf32>
    %90 = arith.addf %89, %88 : vector<4x64xf32>
    %91 = arith.divf %89, %90 : vector<4x64xf32>
    %92 = vector.extract_strided_slice %75 {offsets = [0, 64], sizes = [4, 64], strides = [1, 1]} : vector<4x192xf32> to vector<4x64xf32>
    %93 = arith.addf %81, %92 : vector<4x64xf32>
    %94 = arith.negf %93 : vector<4x64xf32>
    %95 = math.exp %94 : vector<4x64xf32>
    %cst_22 = arith.constant 1.000000e+00 : f32
    %96 = vector.broadcast %cst_22 : f32 to vector<4x64xf32>
    %97 = arith.addf %96, %95 : vector<4x64xf32>
    %98 = arith.divf %96, %97 : vector<4x64xf32>
    %99 = vector.extract_strided_slice %75 {offsets = [0, 128], sizes = [4, 64], strides = [1, 1]} : vector<4x192xf32> to vector<4x64xf32>
    %100 = arith.mulf %91, %99 : vector<4x64xf32>
    %101 = arith.addf %84, %100 : vector<4x64xf32>
    %102 = math.tanh %101 : vector<4x64xf32>
    %cst_23 = arith.constant 1.000000e+00 : f32
    %103 = vector.broadcast %cst_23 : f32 to vector<4x64xf32>
    %104 = arith.subf %103, %98 : vector<4x64xf32>
    %105 = arith.mulf %104, %102 : vector<4x64xf32>
    %106 = arith.mulf %98, %72 : vector<4x64xf32>
    %107 = arith.addf %105, %106 : vector<4x64xf32>
    %108 = arith.mulf %2, %107 : vector<4x64xf32>
    %cst_24 = arith.constant 1.000000e+00 : f32
    %109 = vector.broadcast %cst_24 : f32 to vector<4x64xf32>
    %110 = arith.subf %109, %2 : vector<4x64xf32>
    %111 = arith.mulf %110, %72 : vector<4x64xf32>
    %112 = arith.addf %108, %111 : vector<4x64xf32>
    %cst_25 = arith.constant dense<0.000000e+00> : vector<4x192xf32>
    %113 = tpu.matmul %112, %30, %cst_25 {dimension_numbers = #tpu.dot_dimension_numbers<[1], [0], [0], [1], [0, 0, 1, 1], [], []>} : vector<4x64xf32>, vector<64x192xf32>, vector<4x192xf32> -> vector<4x192xf32>
    %114 = vector.broadcast %31 : vector<1x192xf32> to vector<4x192xf32>
    %115 = arith.addf %113, %114 : vector<4x192xf32>
    %116 = vector.extract_strided_slice %24 {offsets = [0, 0], sizes = [4, 32], strides = [1, 1]} : vector<4x192xf32> to vector<4x32xf32>
    %117 = vector.extract_strided_slice %27 {offsets = [0, 96], sizes = [4, 32], strides = [1, 1]} : vector<4x192xf32> to vector<4x32xf32>
    %118 = tpu.concatenate %116, %117 in 1 : vector<4x32xf32>, vector<4x32xf32> -> vector<4x64xf32>
    %119 = vector.extract_strided_slice %24 {offsets = [0, 32], sizes = [4, 32], strides = [1, 1]} : vector<4x192xf32> to vector<4x32xf32>
    %120 = vector.extract_strided_slice %27 {offsets = [0, 128], sizes = [4, 32], strides = [1, 1]} : vector<4x192xf32> to vector<4x32xf32>
    %121 = tpu.concatenate %119, %120 in 1 : vector<4x32xf32>, vector<4x32xf32> -> vector<4x64xf32>
    %122 = vector.extract_strided_slice %24 {offsets = [0, 64], sizes = [4, 32], strides = [1, 1]} : vector<4x192xf32> to vector<4x32xf32>
    %123 = vector.extract_strided_slice %27 {offsets = [0, 160], sizes = [4, 32], strides = [1, 1]} : vector<4x192xf32> to vector<4x32xf32>
    %124 = tpu.concatenate %122, %123 in 1 : vector<4x32xf32>, vector<4x32xf32> -> vector<4x64xf32>
    %125 = vector.extract_strided_slice %115 {offsets = [0, 0], sizes = [4, 64], strides = [1, 1]} : vector<4x192xf32> to vector<4x64xf32>
    %126 = arith.addf %118, %125 : vector<4x64xf32>
    %127 = arith.negf %126 : vector<4x64xf32>
    %128 = math.exp %127 : vector<4x64xf32>
    %cst_26 = arith.constant 1.000000e+00 : f32
    %129 = vector.broadcast %cst_26 : f32 to vector<4x64xf32>
    %130 = arith.addf %129, %128 : vector<4x64xf32>
    %131 = arith.divf %129, %130 : vector<4x64xf32>
    %132 = vector.extract_strided_slice %115 {offsets = [0, 64], sizes = [4, 64], strides = [1, 1]} : vector<4x192xf32> to vector<4x64xf32>
    %133 = arith.addf %121, %132 : vector<4x64xf32>
    %134 = arith.negf %133 : vector<4x64xf32>
    %135 = math.exp %134 : vector<4x64xf32>
    %cst_27 = arith.constant 1.000000e+00 : f32
    %136 = vector.broadcast %cst_27 : f32 to vector<4x64xf32>
    %137 = arith.addf %136, %135 : vector<4x64xf32>
    %138 = arith.divf %136, %137 : vector<4x64xf32>
    %139 = vector.extract_strided_slice %115 {offsets = [0, 128], sizes = [4, 64], strides = [1, 1]} : vector<4x192xf32> to vector<4x64xf32>
    %140 = arith.mulf %131, %139 : vector<4x64xf32>
    %141 = arith.addf %124, %140 : vector<4x64xf32>
    %142 = math.tanh %141 : vector<4x64xf32>
    %cst_28 = arith.constant 1.000000e+00 : f32
    %143 = vector.broadcast %cst_28 : f32 to vector<4x64xf32>
    %144 = arith.subf %143, %138 : vector<4x64xf32>
    %145 = arith.mulf %144, %142 : vector<4x64xf32>
    %146 = arith.mulf %138, %112 : vector<4x64xf32>
    %147 = arith.addf %145, %146 : vector<4x64xf32>
    %148 = arith.mulf %3, %147 : vector<4x64xf32>
    %cst_29 = arith.constant 1.000000e+00 : f32
    %149 = vector.broadcast %cst_29 : f32 to vector<4x64xf32>
    %150 = arith.subf %149, %3 : vector<4x64xf32>
    %151 = arith.mulf %150, %112 : vector<4x64xf32>
    %152 = arith.addf %148, %151 : vector<4x64xf32>
    %cst_30 = arith.constant dense<0.000000e+00> : vector<4x192xf32>
    %153 = tpu.matmul %152, %30, %cst_30 {dimension_numbers = #tpu.dot_dimension_numbers<[1], [0], [0], [1], [0, 0, 1, 1], [], []>} : vector<4x64xf32>, vector<64x192xf32>, vector<4x192xf32> -> vector<4x192xf32>
    %154 = vector.broadcast %31 : vector<1x192xf32> to vector<4x192xf32>
    %155 = arith.addf %153, %154 : vector<4x192xf32>
    %156 = vector.extract_strided_slice %25 {offsets = [0, 0], sizes = [4, 32], strides = [1, 1]} : vector<4x192xf32> to vector<4x32xf32>
    %157 = vector.extract_strided_slice %26 {offsets = [0, 96], sizes = [4, 32], strides = [1, 1]} : vector<4x192xf32> to vector<4x32xf32>
    %158 = tpu.concatenate %156, %157 in 1 : vector<4x32xf32>, vector<4x32xf32> -> vector<4x64xf32>
    %159 = vector.extract_strided_slice %25 {offsets = [0, 32], sizes = [4, 32], strides = [1, 1]} : vector<4x192xf32> to vector<4x32xf32>
    %160 = vector.extract_strided_slice %26 {offsets = [0, 128], sizes = [4, 32], strides = [1, 1]} : vector<4x192xf32> to vector<4x32xf32>
    %161 = tpu.concatenate %159, %160 in 1 : vector<4x32xf32>, vector<4x32xf32> -> vector<4x64xf32>
    %162 = vector.extract_strided_slice %25 {offsets = [0, 64], sizes = [4, 32], strides = [1, 1]} : vector<4x192xf32> to vector<4x32xf32>
    %163 = vector.extract_strided_slice %26 {offsets = [0, 160], sizes = [4, 32], strides = [1, 1]} : vector<4x192xf32> to vector<4x32xf32>
    %164 = tpu.concatenate %162, %163 in 1 : vector<4x32xf32>, vector<4x32xf32> -> vector<4x64xf32>
    %165 = vector.extract_strided_slice %155 {offsets = [0, 0], sizes = [4, 64], strides = [1, 1]} : vector<4x192xf32> to vector<4x64xf32>
    %166 = arith.addf %158, %165 : vector<4x64xf32>
    %167 = arith.negf %166 : vector<4x64xf32>
    %168 = math.exp %167 : vector<4x64xf32>
    %cst_31 = arith.constant 1.000000e+00 : f32
    %169 = vector.broadcast %cst_31 : f32 to vector<4x64xf32>
    %170 = arith.addf %169, %168 : vector<4x64xf32>
    %171 = arith.divf %169, %170 : vector<4x64xf32>
    %172 = vector.extract_strided_slice %155 {offsets = [0, 64], sizes = [4, 64], strides = [1, 1]} : vector<4x192xf32> to vector<4x64xf32>
    %173 = arith.addf %161, %172 : vector<4x64xf32>
    %174 = arith.negf %173 : vector<4x64xf32>
    %175 = math.exp %174 : vector<4x64xf32>
    %cst_32 = arith.constant 1.000000e+00 : f32
    %176 = vector.broadcast %cst_32 : f32 to vector<4x64xf32>
    %177 = arith.addf %176, %175 : vector<4x64xf32>
    %178 = arith.divf %176, %177 : vector<4x64xf32>
    %179 = vector.extract_strided_slice %155 {offsets = [0, 128], sizes = [4, 64], strides = [1, 1]} : vector<4x192xf32> to vector<4x64xf32>
    %180 = arith.mulf %171, %179 : vector<4x64xf32>
    %181 = arith.addf %164, %180 : vector<4x64xf32>
    %182 = math.tanh %181 : vector<4x64xf32>
    %cst_33 = arith.constant 1.000000e+00 : f32
    %183 = vector.broadcast %cst_33 : f32 to vector<4x64xf32>
    %184 = arith.subf %183, %178 : vector<4x64xf32>
    %185 = arith.mulf %184, %182 : vector<4x64xf32>
    %186 = arith.mulf %178, %152 : vector<4x64xf32>
    %187 = arith.addf %185, %186 : vector<4x64xf32>
    %188 = arith.mulf %4, %187 : vector<4x64xf32>
    %cst_34 = arith.constant 1.000000e+00 : f32
    %189 = vector.broadcast %cst_34 : f32 to vector<4x64xf32>
    %190 = arith.subf %189, %4 : vector<4x64xf32>
    %191 = arith.mulf %190, %152 : vector<4x64xf32>
    %192 = arith.addf %188, %191 : vector<4x64xf32>
    %cst_35 = arith.constant dense<0.000000e+00> : vector<4x192xf32>
    %193 = tpu.matmul %192, %30, %cst_35 {dimension_numbers = #tpu.dot_dimension_numbers<[1], [0], [0], [1], [0, 0, 1, 1], [], []>} : vector<4x64xf32>, vector<64x192xf32>, vector<4x192xf32> -> vector<4x192xf32>
    %194 = vector.broadcast %31 : vector<1x192xf32> to vector<4x192xf32>
    %195 = arith.addf %193, %194 : vector<4x192xf32>
    %196 = vector.extract_strided_slice %26 {offsets = [0, 0], sizes = [4, 32], strides = [1, 1]} : vector<4x192xf32> to vector<4x32xf32>
    %197 = vector.extract_strided_slice %25 {offsets = [0, 96], sizes = [4, 32], strides = [1, 1]} : vector<4x192xf32> to vector<4x32xf32>
    %198 = tpu.concatenate %196, %197 in 1 : vector<4x32xf32>, vector<4x32xf32> -> vector<4x64xf32>
    %199 = vector.extract_strided_slice %26 {offsets = [0, 32], sizes = [4, 32], strides = [1, 1]} : vector<4x192xf32> to vector<4x32xf32>
    %200 = vector.extract_strided_slice %25 {offsets = [0, 128], sizes = [4, 32], strides = [1, 1]} : vector<4x192xf32> to vector<4x32xf32>
    %201 = tpu.concatenate %199, %200 in 1 : vector<4x32xf32>, vector<4x32xf32> -> vector<4x64xf32>
    %202 = vector.extract_strided_slice %26 {offsets = [0, 64], sizes = [4, 32], strides = [1, 1]} : vector<4x192xf32> to vector<4x32xf32>
    %203 = vector.extract_strided_slice %25 {offsets = [0, 160], sizes = [4, 32], strides = [1, 1]} : vector<4x192xf32> to vector<4x32xf32>
    %204 = tpu.concatenate %202, %203 in 1 : vector<4x32xf32>, vector<4x32xf32> -> vector<4x64xf32>
    %205 = vector.extract_strided_slice %195 {offsets = [0, 0], sizes = [4, 64], strides = [1, 1]} : vector<4x192xf32> to vector<4x64xf32>
    %206 = arith.addf %198, %205 : vector<4x64xf32>
    %207 = arith.negf %206 : vector<4x64xf32>
    %208 = math.exp %207 : vector<4x64xf32>
    %cst_36 = arith.constant 1.000000e+00 : f32
    %209 = vector.broadcast %cst_36 : f32 to vector<4x64xf32>
    %210 = arith.addf %209, %208 : vector<4x64xf32>
    %211 = arith.divf %209, %210 : vector<4x64xf32>
    %212 = vector.extract_strided_slice %195 {offsets = [0, 64], sizes = [4, 64], strides = [1, 1]} : vector<4x192xf32> to vector<4x64xf32>
    %213 = arith.addf %201, %212 : vector<4x64xf32>
    %214 = arith.negf %213 : vector<4x64xf32>
    %215 = math.exp %214 : vector<4x64xf32>
    %cst_37 = arith.constant 1.000000e+00 : f32
    %216 = vector.broadcast %cst_37 : f32 to vector<4x64xf32>
    %217 = arith.addf %216, %215 : vector<4x64xf32>
    %218 = arith.divf %216, %217 : vector<4x64xf32>
    %219 = vector.extract_strided_slice %195 {offsets = [0, 128], sizes = [4, 64], strides = [1, 1]} : vector<4x192xf32> to vector<4x64xf32>
    %220 = arith.mulf %211, %219 : vector<4x64xf32>
    %221 = arith.addf %204, %220 : vector<4x64xf32>
    %222 = math.tanh %221 : vector<4x64xf32>
    %cst_38 = arith.constant 1.000000e+00 : f32
    %223 = vector.broadcast %cst_38 : f32 to vector<4x64xf32>
    %224 = arith.subf %223, %218 : vector<4x64xf32>
    %225 = arith.mulf %224, %222 : vector<4x64xf32>
    %226 = arith.mulf %218, %192 : vector<4x64xf32>
    %227 = arith.addf %225, %226 : vector<4x64xf32>
    %228 = arith.mulf %5, %227 : vector<4x64xf32>
    %cst_39 = arith.constant 1.000000e+00 : f32
    %229 = vector.broadcast %cst_39 : f32 to vector<4x64xf32>
    %230 = arith.subf %229, %5 : vector<4x64xf32>
    %231 = arith.mulf %230, %192 : vector<4x64xf32>
    %232 = arith.addf %228, %231 : vector<4x64xf32>
    %cst_40 = arith.constant dense<0.000000e+00> : vector<4x192xf32>
    %233 = tpu.matmul %232, %30, %cst_40 {dimension_numbers = #tpu.dot_dimension_numbers<[1], [0], [0], [1], [0, 0, 1, 1], [], []>} : vector<4x64xf32>, vector<64x192xf32>, vector<4x192xf32> -> vector<4x192xf32>
    %234 = vector.broadcast %31 : vector<1x192xf32> to vector<4x192xf32>
    %235 = arith.addf %233, %234 : vector<4x192xf32>
    %236 = vector.extract_strided_slice %27 {offsets = [0, 0], sizes = [4, 32], strides = [1, 1]} : vector<4x192xf32> to vector<4x32xf32>
    %237 = vector.extract_strided_slice %24 {offsets = [0, 96], sizes = [4, 32], strides = [1, 1]} : vector<4x192xf32> to vector<4x32xf32>
    %238 = tpu.concatenate %236, %237 in 1 : vector<4x32xf32>, vector<4x32xf32> -> vector<4x64xf32>
    %239 = vector.extract_strided_slice %27 {offsets = [0, 32], sizes = [4, 32], strides = [1, 1]} : vector<4x192xf32> to vector<4x32xf32>
    %240 = vector.extract_strided_slice %24 {offsets = [0, 128], sizes = [4, 32], strides = [1, 1]} : vector<4x192xf32> to vector<4x32xf32>
    %241 = tpu.concatenate %239, %240 in 1 : vector<4x32xf32>, vector<4x32xf32> -> vector<4x64xf32>
    %242 = vector.extract_strided_slice %27 {offsets = [0, 64], sizes = [4, 32], strides = [1, 1]} : vector<4x192xf32> to vector<4x32xf32>
    %243 = vector.extract_strided_slice %24 {offsets = [0, 160], sizes = [4, 32], strides = [1, 1]} : vector<4x192xf32> to vector<4x32xf32>
    %244 = tpu.concatenate %242, %243 in 1 : vector<4x32xf32>, vector<4x32xf32> -> vector<4x64xf32>
    %245 = vector.extract_strided_slice %235 {offsets = [0, 0], sizes = [4, 64], strides = [1, 1]} : vector<4x192xf32> to vector<4x64xf32>
    %246 = arith.addf %238, %245 : vector<4x64xf32>
    %247 = arith.negf %246 : vector<4x64xf32>
    %248 = math.exp %247 : vector<4x64xf32>
    %cst_41 = arith.constant 1.000000e+00 : f32
    %249 = vector.broadcast %cst_41 : f32 to vector<4x64xf32>
    %250 = arith.addf %249, %248 : vector<4x64xf32>
    %251 = arith.divf %249, %250 : vector<4x64xf32>
    %252 = vector.extract_strided_slice %235 {offsets = [0, 64], sizes = [4, 64], strides = [1, 1]} : vector<4x192xf32> to vector<4x64xf32>
    %253 = arith.addf %241, %252 : vector<4x64xf32>
    %254 = arith.negf %253 : vector<4x64xf32>
    %255 = math.exp %254 : vector<4x64xf32>
    %cst_42 = arith.constant 1.000000e+00 : f32
    %256 = vector.broadcast %cst_42 : f32 to vector<4x64xf32>
    %257 = arith.addf %256, %255 : vector<4x64xf32>
    %258 = arith.divf %256, %257 : vector<4x64xf32>
    %259 = vector.extract_strided_slice %235 {offsets = [0, 128], sizes = [4, 64], strides = [1, 1]} : vector<4x192xf32> to vector<4x64xf32>
    %260 = arith.mulf %251, %259 : vector<4x64xf32>
    %261 = arith.addf %244, %260 : vector<4x64xf32>
    %262 = math.tanh %261 : vector<4x64xf32>
    %cst_43 = arith.constant 1.000000e+00 : f32
    %263 = vector.broadcast %cst_43 : f32 to vector<4x64xf32>
    %264 = arith.subf %263, %258 : vector<4x64xf32>
    %265 = arith.mulf %264, %262 : vector<4x64xf32>
    %266 = arith.mulf %258, %232 : vector<4x64xf32>
    %267 = arith.addf %265, %266 : vector<4x64xf32>
    %268 = arith.mulf %6, %267 : vector<4x64xf32>
    %cst_44 = arith.constant 1.000000e+00 : f32
    %269 = vector.broadcast %cst_44 : f32 to vector<4x64xf32>
    %270 = arith.subf %269, %6 : vector<4x64xf32>
    %271 = arith.mulf %270, %232 : vector<4x64xf32>
    %272 = arith.addf %268, %271 : vector<4x64xf32>
    %cst_45 = arith.constant dense<0.000000e+00> : vector<4x192xf32>
    %273 = tpu.matmul %272, %30, %cst_45 {dimension_numbers = #tpu.dot_dimension_numbers<[1], [0], [0], [1], [0, 0, 1, 1], [], []>} : vector<4x64xf32>, vector<64x192xf32>, vector<4x192xf32> -> vector<4x192xf32>
    %274 = vector.broadcast %31 : vector<1x192xf32> to vector<4x192xf32>
    %275 = arith.addf %273, %274 : vector<4x192xf32>
    %276 = vector.extract_strided_slice %28 {offsets = [0, 0], sizes = [4, 32], strides = [1, 1]} : vector<4x192xf32> to vector<4x32xf32>
    %277 = vector.extract_strided_slice %23 {offsets = [0, 96], sizes = [4, 32], strides = [1, 1]} : vector<4x192xf32> to vector<4x32xf32>
    %278 = tpu.concatenate %276, %277 in 1 : vector<4x32xf32>, vector<4x32xf32> -> vector<4x64xf32>
    %279 = vector.extract_strided_slice %28 {offsets = [0, 32], sizes = [4, 32], strides = [1, 1]} : vector<4x192xf32> to vector<4x32xf32>
    %280 = vector.extract_strided_slice %23 {offsets = [0, 128], sizes = [4, 32], strides = [1, 1]} : vector<4x192xf32> to vector<4x32xf32>
    %281 = tpu.concatenate %279, %280 in 1 : vector<4x32xf32>, vector<4x32xf32> -> vector<4x64xf32>
    %282 = vector.extract_strided_slice %28 {offsets = [0, 64], sizes = [4, 32], strides = [1, 1]} : vector<4x192xf32> to vector<4x32xf32>
    %283 = vector.extract_strided_slice %23 {offsets = [0, 160], sizes = [4, 32], strides = [1, 1]} : vector<4x192xf32> to vector<4x32xf32>
    %284 = tpu.concatenate %282, %283 in 1 : vector<4x32xf32>, vector<4x32xf32> -> vector<4x64xf32>
    %285 = vector.extract_strided_slice %275 {offsets = [0, 0], sizes = [4, 64], strides = [1, 1]} : vector<4x192xf32> to vector<4x64xf32>
    %286 = arith.addf %278, %285 : vector<4x64xf32>
    %287 = arith.negf %286 : vector<4x64xf32>
    %288 = math.exp %287 : vector<4x64xf32>
    %cst_46 = arith.constant 1.000000e+00 : f32
    %289 = vector.broadcast %cst_46 : f32 to vector<4x64xf32>
    %290 = arith.addf %289, %288 : vector<4x64xf32>
    %291 = arith.divf %289, %290 : vector<4x64xf32>
    %292 = vector.extract_strided_slice %275 {offsets = [0, 64], sizes = [4, 64], strides = [1, 1]} : vector<4x192xf32> to vector<4x64xf32>
    %293 = arith.addf %281, %292 : vector<4x64xf32>
    %294 = arith.negf %293 : vector<4x64xf32>
    %295 = math.exp %294 : vector<4x64xf32>
    %cst_47 = arith.constant 1.000000e+00 : f32
    %296 = vector.broadcast %cst_47 : f32 to vector<4x64xf32>
    %297 = arith.addf %296, %295 : vector<4x64xf32>
    %298 = arith.divf %296, %297 : vector<4x64xf32>
    %299 = vector.extract_strided_slice %275 {offsets = [0, 128], sizes = [4, 64], strides = [1, 1]} : vector<4x192xf32> to vector<4x64xf32>
    %300 = arith.mulf %291, %299 : vector<4x64xf32>
    %301 = arith.addf %284, %300 : vector<4x64xf32>
    %302 = math.tanh %301 : vector<4x64xf32>
    %cst_48 = arith.constant 1.000000e+00 : f32
    %303 = vector.broadcast %cst_48 : f32 to vector<4x64xf32>
    %304 = arith.subf %303, %298 : vector<4x64xf32>
    %305 = arith.mulf %304, %302 : vector<4x64xf32>
    %306 = arith.mulf %298, %272 : vector<4x64xf32>
    %307 = arith.addf %305, %306 : vector<4x64xf32>
    %308 = arith.mulf %7, %307 : vector<4x64xf32>
    %cst_49 = arith.constant 1.000000e+00 : f32
    %309 = vector.broadcast %cst_49 : f32 to vector<4x64xf32>
    %310 = arith.subf %309, %7 : vector<4x64xf32>
    %311 = arith.mulf %310, %272 : vector<4x64xf32>
    %312 = arith.addf %308, %311 : vector<4x64xf32>
    %cst_50 = arith.constant dense<0.000000e+00> : vector<4x192xf32>
    %313 = tpu.matmul %312, %30, %cst_50 {dimension_numbers = #tpu.dot_dimension_numbers<[1], [0], [0], [1], [0, 0, 1, 1], [], []>} : vector<4x64xf32>, vector<64x192xf32>, vector<4x192xf32> -> vector<4x192xf32>
    %314 = vector.broadcast %31 : vector<1x192xf32> to vector<4x192xf32>
    %315 = arith.addf %313, %314 : vector<4x192xf32>
    %316 = vector.extract_strided_slice %29 {offsets = [0, 0], sizes = [4, 32], strides = [1, 1]} : vector<4x192xf32> to vector<4x32xf32>
    %317 = vector.extract_strided_slice %22 {offsets = [0, 96], sizes = [4, 32], strides = [1, 1]} : vector<4x192xf32> to vector<4x32xf32>
    %318 = tpu.concatenate %316, %317 in 1 : vector<4x32xf32>, vector<4x32xf32> -> vector<4x64xf32>
    %319 = vector.extract_strided_slice %29 {offsets = [0, 32], sizes = [4, 32], strides = [1, 1]} : vector<4x192xf32> to vector<4x32xf32>
    %320 = vector.extract_strided_slice %22 {offsets = [0, 128], sizes = [4, 32], strides = [1, 1]} : vector<4x192xf32> to vector<4x32xf32>
    %321 = tpu.concatenate %319, %320 in 1 : vector<4x32xf32>, vector<4x32xf32> -> vector<4x64xf32>
    %322 = vector.extract_strided_slice %29 {offsets = [0, 64], sizes = [4, 32], strides = [1, 1]} : vector<4x192xf32> to vector<4x32xf32>
    %323 = vector.extract_strided_slice %22 {offsets = [0, 160], sizes = [4, 32], strides = [1, 1]} : vector<4x192xf32> to vector<4x32xf32>
    %324 = tpu.concatenate %322, %323 in 1 : vector<4x32xf32>, vector<4x32xf32> -> vector<4x64xf32>
    %325 = vector.extract_strided_slice %315 {offsets = [0, 0], sizes = [4, 64], strides = [1, 1]} : vector<4x192xf32> to vector<4x64xf32>
    %326 = arith.addf %318, %325 : vector<4x64xf32>
    %327 = arith.negf %326 : vector<4x64xf32>
    %328 = math.exp %327 : vector<4x64xf32>
    %cst_51 = arith.constant 1.000000e+00 : f32
    %329 = vector.broadcast %cst_51 : f32 to vector<4x64xf32>
    %330 = arith.addf %329, %328 : vector<4x64xf32>
    %331 = arith.divf %329, %330 : vector<4x64xf32>
    %332 = vector.extract_strided_slice %315 {offsets = [0, 64], sizes = [4, 64], strides = [1, 1]} : vector<4x192xf32> to vector<4x64xf32>
    %333 = arith.addf %321, %332 : vector<4x64xf32>
    %334 = arith.negf %333 : vector<4x64xf32>
    %335 = math.exp %334 : vector<4x64xf32>
    %cst_52 = arith.constant 1.000000e+00 : f32
    %336 = vector.broadcast %cst_52 : f32 to vector<4x64xf32>
    %337 = arith.addf %336, %335 : vector<4x64xf32>
    %338 = arith.divf %336, %337 : vector<4x64xf32>
    %339 = vector.extract_strided_slice %315 {offsets = [0, 128], sizes = [4, 64], strides = [1, 1]} : vector<4x192xf32> to vector<4x64xf32>
    %340 = arith.mulf %331, %339 : vector<4x64xf32>
    %341 = arith.addf %324, %340 : vector<4x64xf32>
    %342 = math.tanh %341 : vector<4x64xf32>
    %cst_53 = arith.constant 1.000000e+00 : f32
    %343 = vector.broadcast %cst_53 : f32 to vector<4x64xf32>
    %344 = arith.subf %343, %338 : vector<4x64xf32>
    %345 = arith.mulf %344, %342 : vector<4x64xf32>
    %346 = arith.mulf %338, %312 : vector<4x64xf32>
    %347 = arith.addf %345, %346 : vector<4x64xf32>
    %348 = arith.mulf %8, %347 : vector<4x64xf32>
    %cst_54 = arith.constant 1.000000e+00 : f32
    %349 = vector.broadcast %cst_54 : f32 to vector<4x64xf32>
    %350 = arith.subf %349, %8 : vector<4x64xf32>
    %351 = arith.mulf %350, %312 : vector<4x64xf32>
    %352 = arith.addf %348, %351 : vector<4x64xf32>
    %353 = vector.extract_strided_slice %68 {offsets = [0, 0], sizes = [4, 32], strides = [1, 1]} : vector<4x64xf32> to vector<4x32xf32>
    %354 = vector.extract_strided_slice %348 {offsets = [0, 32], sizes = [4, 32], strides = [1, 1]} : vector<4x64xf32> to vector<4x32xf32>
    %355 = tpu.concatenate %353, %354 in 1 : vector<4x32xf32>, vector<4x32xf32> -> vector<4x64xf32>
    %356 = vector.extract_strided_slice %108 {offsets = [0, 0], sizes = [4, 32], strides = [1, 1]} : vector<4x64xf32> to vector<4x32xf32>
    %357 = vector.extract_strided_slice %308 {offsets = [0, 32], sizes = [4, 32], strides = [1, 1]} : vector<4x64xf32> to vector<4x32xf32>
    %358 = tpu.concatenate %356, %357 in 1 : vector<4x32xf32>, vector<4x32xf32> -> vector<4x64xf32>
    %359 = vector.extract_strided_slice %148 {offsets = [0, 0], sizes = [4, 32], strides = [1, 1]} : vector<4x64xf32> to vector<4x32xf32>
    %360 = vector.extract_strided_slice %268 {offsets = [0, 32], sizes = [4, 32], strides = [1, 1]} : vector<4x64xf32> to vector<4x32xf32>
    %361 = tpu.concatenate %359, %360 in 1 : vector<4x32xf32>, vector<4x32xf32> -> vector<4x64xf32>
    %362 = vector.extract_strided_slice %188 {offsets = [0, 0], sizes = [4, 32], strides = [1, 1]} : vector<4x64xf32> to vector<4x32xf32>
    %363 = vector.extract_strided_slice %228 {offsets = [0, 32], sizes = [4, 32], strides = [1, 1]} : vector<4x64xf32> to vector<4x32xf32>
    %364 = tpu.concatenate %362, %363 in 1 : vector<4x32xf32>, vector<4x32xf32> -> vector<4x64xf32>
    %365 = vector.extract_strided_slice %228 {offsets = [0, 0], sizes = [4, 32], strides = [1, 1]} : vector<4x64xf32> to vector<4x32xf32>
    %366 = vector.extract_strided_slice %188 {offsets = [0, 32], sizes = [4, 32], strides = [1, 1]} : vector<4x64xf32> to vector<4x32xf32>
    %367 = tpu.concatenate %365, %366 in 1 : vector<4x32xf32>, vector<4x32xf32> -> vector<4x64xf32>
    %368 = vector.extract_strided_slice %268 {offsets = [0, 0], sizes = [4, 32], strides = [1, 1]} : vector<4x64xf32> to vector<4x32xf32>
    %369 = vector.extract_strided_slice %148 {offsets = [0, 32], sizes = [4, 32], strides = [1, 1]} : vector<4x64xf32> to vector<4x32xf32>
    %370 = tpu.concatenate %368, %369 in 1 : vector<4x32xf32>, vector<4x32xf32> -> vector<4x64xf32>
    %371 = vector.extract_strided_slice %308 {offsets = [0, 0], sizes = [4, 32], strides = [1, 1]} : vector<4x64xf32> to vector<4x32xf32>
    %372 = vector.extract_strided_slice %108 {offsets = [0, 32], sizes = [4, 32], strides = [1, 1]} : vector<4x64xf32> to vector<4x32xf32>
    %373 = tpu.concatenate %371, %372 in 1 : vector<4x32xf32>, vector<4x32xf32> -> vector<4x64xf32>
    %374 = vector.extract_strided_slice %348 {offsets = [0, 0], sizes = [4, 32], strides = [1, 1]} : vector<4x64xf32> to vector<4x32xf32>
    %375 = vector.extract_strided_slice %68 {offsets = [0, 32], sizes = [4, 32], strides = [1, 1]} : vector<4x64xf32> to vector<4x32xf32>
    %376 = tpu.concatenate %374, %375 in 1 : vector<4x32xf32>, vector<4x32xf32> -> vector<4x64xf32>
    %377 = tpu.concatenate %355, %358, %361, %364, %367, %370, %373, %376 in 0 : vector<4x64xf32>, vector<4x64xf32>, vector<4x64xf32>, vector<4x64xf32>, vector<4x64xf32>, vector<4x64xf32>, vector<4x64xf32>, vector<4x64xf32> -> vector<32x64xf32>
    %c0_55 = arith.constant 0 : index
    %c0_56 = arith.constant 0 : index
    %378 = vector.load %arg8[%c0_55, %c0_56] : memref<64x192xf32, #tpu.memory_space<vmem>>, vector<64x192xf32>
    %cst_57 = arith.constant dense<0.000000e+00> : vector<32x192xf32>
    %379 = tpu.matmul %377, %378, %cst_57 {dimension_numbers = #tpu.dot_dimension_numbers<[1], [0], [0], [1], [0, 0, 1, 1], [], []>} : vector<32x64xf32>, vector<64x192xf32>, vector<32x192xf32> -> vector<32x192xf32>
    %c0_58 = arith.constant 0 : index
    %c0_59 = arith.constant 0 : index
    %380 = vector.load %arg10[%c0_58, %c0_59] : memref<1x192xf32, #tpu.memory_space<vmem>>, vector<1x192xf32>
    %381 = vector.broadcast %380 : vector<1x192xf32> to vector<32x192xf32>
    %382 = arith.addf %379, %381 : vector<32x192xf32>
    %383 = vector.extract_strided_slice %382 {offsets = [0, 0], sizes = [4, 192], strides = [1, 1]} : vector<32x192xf32> to vector<4x192xf32>
    %384 = vector.extract_strided_slice %382 {offsets = [4, 0], sizes = [4, 192], strides = [1, 1]} : vector<32x192xf32> to vector<4x192xf32>
    %385 = vector.extract_strided_slice %382 {offsets = [8, 0], sizes = [4, 192], strides = [1, 1]} : vector<32x192xf32> to vector<4x192xf32>
    %386 = vector.extract_strided_slice %382 {offsets = [12, 0], sizes = [4, 192], strides = [1, 1]} : vector<32x192xf32> to vector<4x192xf32>
    %387 = vector.extract_strided_slice %382 {offsets = [16, 0], sizes = [4, 192], strides = [1, 1]} : vector<32x192xf32> to vector<4x192xf32>
    %388 = vector.extract_strided_slice %382 {offsets = [20, 0], sizes = [4, 192], strides = [1, 1]} : vector<32x192xf32> to vector<4x192xf32>
    %389 = vector.extract_strided_slice %382 {offsets = [24, 0], sizes = [4, 192], strides = [1, 1]} : vector<32x192xf32> to vector<4x192xf32>
    %390 = vector.extract_strided_slice %382 {offsets = [28, 0], sizes = [4, 192], strides = [1, 1]} : vector<32x192xf32> to vector<4x192xf32>
    %c0_60 = arith.constant 0 : index
    %c0_61 = arith.constant 0 : index
    %391 = vector.load %arg9[%c0_60, %c0_61] : memref<64x192xf32, #tpu.memory_space<vmem>>, vector<64x192xf32>
    %c0_62 = arith.constant 0 : index
    %c0_63 = arith.constant 0 : index
    %392 = vector.load %arg11[%c0_62, %c0_63] : memref<1x192xf32, #tpu.memory_space<vmem>>, vector<1x192xf32>
    %cst_64 = arith.constant 0.000000e+00 : f32
    %393 = vector.broadcast %cst_64 : f32 to vector<4x64xf32>
    %cst_65 = arith.constant dense<0.000000e+00> : vector<4x192xf32>
    %394 = tpu.matmul %393, %391, %cst_65 {dimension_numbers = #tpu.dot_dimension_numbers<[1], [0], [0], [1], [0, 0, 1, 1], [], []>} : vector<4x64xf32>, vector<64x192xf32>, vector<4x192xf32> -> vector<4x192xf32>
    %395 = vector.broadcast %392 : vector<1x192xf32> to vector<4x192xf32>
    %396 = arith.addf %394, %395 : vector<4x192xf32>
    %397 = vector.extract_strided_slice %383 {offsets = [0, 0], sizes = [4, 32], strides = [1, 1]} : vector<4x192xf32> to vector<4x32xf32>
    %398 = vector.extract_strided_slice %390 {offsets = [0, 96], sizes = [4, 32], strides = [1, 1]} : vector<4x192xf32> to vector<4x32xf32>
    %399 = tpu.concatenate %397, %398 in 1 : vector<4x32xf32>, vector<4x32xf32> -> vector<4x64xf32>
    %400 = vector.extract_strided_slice %383 {offsets = [0, 32], sizes = [4, 32], strides = [1, 1]} : vector<4x192xf32> to vector<4x32xf32>
    %401 = vector.extract_strided_slice %390 {offsets = [0, 128], sizes = [4, 32], strides = [1, 1]} : vector<4x192xf32> to vector<4x32xf32>
    %402 = tpu.concatenate %400, %401 in 1 : vector<4x32xf32>, vector<4x32xf32> -> vector<4x64xf32>
    %403 = vector.extract_strided_slice %383 {offsets = [0, 64], sizes = [4, 32], strides = [1, 1]} : vector<4x192xf32> to vector<4x32xf32>
    %404 = vector.extract_strided_slice %390 {offsets = [0, 160], sizes = [4, 32], strides = [1, 1]} : vector<4x192xf32> to vector<4x32xf32>
    %405 = tpu.concatenate %403, %404 in 1 : vector<4x32xf32>, vector<4x32xf32> -> vector<4x64xf32>
    %406 = vector.extract_strided_slice %396 {offsets = [0, 0], sizes = [4, 64], strides = [1, 1]} : vector<4x192xf32> to vector<4x64xf32>
    %407 = arith.addf %399, %406 : vector<4x64xf32>
    %408 = arith.negf %407 : vector<4x64xf32>
    %409 = math.exp %408 : vector<4x64xf32>
    %cst_66 = arith.constant 1.000000e+00 : f32
    %410 = vector.broadcast %cst_66 : f32 to vector<4x64xf32>
    %411 = arith.addf %410, %409 : vector<4x64xf32>
    %412 = arith.divf %410, %411 : vector<4x64xf32>
    %413 = vector.extract_strided_slice %396 {offsets = [0, 64], sizes = [4, 64], strides = [1, 1]} : vector<4x192xf32> to vector<4x64xf32>
    %414 = arith.addf %402, %413 : vector<4x64xf32>
    %415 = arith.negf %414 : vector<4x64xf32>
    %416 = math.exp %415 : vector<4x64xf32>
    %cst_67 = arith.constant 1.000000e+00 : f32
    %417 = vector.broadcast %cst_67 : f32 to vector<4x64xf32>
    %418 = arith.addf %417, %416 : vector<4x64xf32>
    %419 = arith.divf %417, %418 : vector<4x64xf32>
    %420 = vector.extract_strided_slice %396 {offsets = [0, 128], sizes = [4, 64], strides = [1, 1]} : vector<4x192xf32> to vector<4x64xf32>
    %421 = arith.mulf %412, %420 : vector<4x64xf32>
    %422 = arith.addf %405, %421 : vector<4x64xf32>
    %423 = math.tanh %422 : vector<4x64xf32>
    %cst_68 = arith.constant 1.000000e+00 : f32
    %424 = vector.broadcast %cst_68 : f32 to vector<4x64xf32>
    %425 = arith.subf %424, %419 : vector<4x64xf32>
    %426 = arith.mulf %425, %423 : vector<4x64xf32>
    %427 = arith.mulf %419, %393 : vector<4x64xf32>
    %428 = arith.addf %426, %427 : vector<4x64xf32>
    %429 = arith.mulf %1, %428 : vector<4x64xf32>
    %cst_69 = arith.constant 1.000000e+00 : f32
    %430 = vector.broadcast %cst_69 : f32 to vector<4x64xf32>
    %431 = arith.subf %430, %1 : vector<4x64xf32>
    %432 = arith.mulf %431, %393 : vector<4x64xf32>
    %433 = arith.addf %429, %432 : vector<4x64xf32>
    %cst_70 = arith.constant dense<0.000000e+00> : vector<4x192xf32>
    %434 = tpu.matmul %433, %391, %cst_70 {dimension_numbers = #tpu.dot_dimension_numbers<[1], [0], [0], [1], [0, 0, 1, 1], [], []>} : vector<4x64xf32>, vector<64x192xf32>, vector<4x192xf32> -> vector<4x192xf32>
    %435 = vector.broadcast %392 : vector<1x192xf32> to vector<4x192xf32>
    %436 = arith.addf %434, %435 : vector<4x192xf32>
    %437 = vector.extract_strided_slice %384 {offsets = [0, 0], sizes = [4, 32], strides = [1, 1]} : vector<4x192xf32> to vector<4x32xf32>
    %438 = vector.extract_strided_slice %389 {offsets = [0, 96], sizes = [4, 32], strides = [1, 1]} : vector<4x192xf32> to vector<4x32xf32>
    %439 = tpu.concatenate %437, %438 in 1 : vector<4x32xf32>, vector<4x32xf32> -> vector<4x64xf32>
    %440 = vector.extract_strided_slice %384 {offsets = [0, 32], sizes = [4, 32], strides = [1, 1]} : vector<4x192xf32> to vector<4x32xf32>
    %441 = vector.extract_strided_slice %389 {offsets = [0, 128], sizes = [4, 32], strides = [1, 1]} : vector<4x192xf32> to vector<4x32xf32>
    %442 = tpu.concatenate %440, %441 in 1 : vector<4x32xf32>, vector<4x32xf32> -> vector<4x64xf32>
    %443 = vector.extract_strided_slice %384 {offsets = [0, 64], sizes = [4, 32], strides = [1, 1]} : vector<4x192xf32> to vector<4x32xf32>
    %444 = vector.extract_strided_slice %389 {offsets = [0, 160], sizes = [4, 32], strides = [1, 1]} : vector<4x192xf32> to vector<4x32xf32>
    %445 = tpu.concatenate %443, %444 in 1 : vector<4x32xf32>, vector<4x32xf32> -> vector<4x64xf32>
    %446 = vector.extract_strided_slice %436 {offsets = [0, 0], sizes = [4, 64], strides = [1, 1]} : vector<4x192xf32> to vector<4x64xf32>
    %447 = arith.addf %439, %446 : vector<4x64xf32>
    %448 = arith.negf %447 : vector<4x64xf32>
    %449 = math.exp %448 : vector<4x64xf32>
    %cst_71 = arith.constant 1.000000e+00 : f32
    %450 = vector.broadcast %cst_71 : f32 to vector<4x64xf32>
    %451 = arith.addf %450, %449 : vector<4x64xf32>
    %452 = arith.divf %450, %451 : vector<4x64xf32>
    %453 = vector.extract_strided_slice %436 {offsets = [0, 64], sizes = [4, 64], strides = [1, 1]} : vector<4x192xf32> to vector<4x64xf32>
    %454 = arith.addf %442, %453 : vector<4x64xf32>
    %455 = arith.negf %454 : vector<4x64xf32>
    %456 = math.exp %455 : vector<4x64xf32>
    %cst_72 = arith.constant 1.000000e+00 : f32
    %457 = vector.broadcast %cst_72 : f32 to vector<4x64xf32>
    %458 = arith.addf %457, %456 : vector<4x64xf32>
    %459 = arith.divf %457, %458 : vector<4x64xf32>
    %460 = vector.extract_strided_slice %436 {offsets = [0, 128], sizes = [4, 64], strides = [1, 1]} : vector<4x192xf32> to vector<4x64xf32>
    %461 = arith.mulf %452, %460 : vector<4x64xf32>
    %462 = arith.addf %445, %461 : vector<4x64xf32>
    %463 = math.tanh %462 : vector<4x64xf32>
    %cst_73 = arith.constant 1.000000e+00 : f32
    %464 = vector.broadcast %cst_73 : f32 to vector<4x64xf32>
    %465 = arith.subf %464, %459 : vector<4x64xf32>
    %466 = arith.mulf %465, %463 : vector<4x64xf32>
    %467 = arith.mulf %459, %433 : vector<4x64xf32>
    %468 = arith.addf %466, %467 : vector<4x64xf32>
    %469 = arith.mulf %2, %468 : vector<4x64xf32>
    %cst_74 = arith.constant 1.000000e+00 : f32
    %470 = vector.broadcast %cst_74 : f32 to vector<4x64xf32>
    %471 = arith.subf %470, %2 : vector<4x64xf32>
    %472 = arith.mulf %471, %433 : vector<4x64xf32>
    %473 = arith.addf %469, %472 : vector<4x64xf32>
    %cst_75 = arith.constant dense<0.000000e+00> : vector<4x192xf32>
    %474 = tpu.matmul %473, %391, %cst_75 {dimension_numbers = #tpu.dot_dimension_numbers<[1], [0], [0], [1], [0, 0, 1, 1], [], []>} : vector<4x64xf32>, vector<64x192xf32>, vector<4x192xf32> -> vector<4x192xf32>
    %475 = vector.broadcast %392 : vector<1x192xf32> to vector<4x192xf32>
    %476 = arith.addf %474, %475 : vector<4x192xf32>
    %477 = vector.extract_strided_slice %385 {offsets = [0, 0], sizes = [4, 32], strides = [1, 1]} : vector<4x192xf32> to vector<4x32xf32>
    %478 = vector.extract_strided_slice %388 {offsets = [0, 96], sizes = [4, 32], strides = [1, 1]} : vector<4x192xf32> to vector<4x32xf32>
    %479 = tpu.concatenate %477, %478 in 1 : vector<4x32xf32>, vector<4x32xf32> -> vector<4x64xf32>
    %480 = vector.extract_strided_slice %385 {offsets = [0, 32], sizes = [4, 32], strides = [1, 1]} : vector<4x192xf32> to vector<4x32xf32>
    %481 = vector.extract_strided_slice %388 {offsets = [0, 128], sizes = [4, 32], strides = [1, 1]} : vector<4x192xf32> to vector<4x32xf32>
    %482 = tpu.concatenate %480, %481 in 1 : vector<4x32xf32>, vector<4x32xf32> -> vector<4x64xf32>
    %483 = vector.extract_strided_slice %385 {offsets = [0, 64], sizes = [4, 32], strides = [1, 1]} : vector<4x192xf32> to vector<4x32xf32>
    %484 = vector.extract_strided_slice %388 {offsets = [0, 160], sizes = [4, 32], strides = [1, 1]} : vector<4x192xf32> to vector<4x32xf32>
    %485 = tpu.concatenate %483, %484 in 1 : vector<4x32xf32>, vector<4x32xf32> -> vector<4x64xf32>
    %486 = vector.extract_strided_slice %476 {offsets = [0, 0], sizes = [4, 64], strides = [1, 1]} : vector<4x192xf32> to vector<4x64xf32>
    %487 = arith.addf %479, %486 : vector<4x64xf32>
    %488 = arith.negf %487 : vector<4x64xf32>
    %489 = math.exp %488 : vector<4x64xf32>
    %cst_76 = arith.constant 1.000000e+00 : f32
    %490 = vector.broadcast %cst_76 : f32 to vector<4x64xf32>
    %491 = arith.addf %490, %489 : vector<4x64xf32>
    %492 = arith.divf %490, %491 : vector<4x64xf32>
    %493 = vector.extract_strided_slice %476 {offsets = [0, 64], sizes = [4, 64], strides = [1, 1]} : vector<4x192xf32> to vector<4x64xf32>
    %494 = arith.addf %482, %493 : vector<4x64xf32>
    %495 = arith.negf %494 : vector<4x64xf32>
    %496 = math.exp %495 : vector<4x64xf32>
    %cst_77 = arith.constant 1.000000e+00 : f32
    %497 = vector.broadcast %cst_77 : f32 to vector<4x64xf32>
    %498 = arith.addf %497, %496 : vector<4x64xf32>
    %499 = arith.divf %497, %498 : vector<4x64xf32>
    %500 = vector.extract_strided_slice %476 {offsets = [0, 128], sizes = [4, 64], strides = [1, 1]} : vector<4x192xf32> to vector<4x64xf32>
    %501 = arith.mulf %492, %500 : vector<4x64xf32>
    %502 = arith.addf %485, %501 : vector<4x64xf32>
    %503 = math.tanh %502 : vector<4x64xf32>
    %cst_78 = arith.constant 1.000000e+00 : f32
    %504 = vector.broadcast %cst_78 : f32 to vector<4x64xf32>
    %505 = arith.subf %504, %499 : vector<4x64xf32>
    %506 = arith.mulf %505, %503 : vector<4x64xf32>
    %507 = arith.mulf %499, %473 : vector<4x64xf32>
    %508 = arith.addf %506, %507 : vector<4x64xf32>
    %509 = arith.mulf %3, %508 : vector<4x64xf32>
    %cst_79 = arith.constant 1.000000e+00 : f32
    %510 = vector.broadcast %cst_79 : f32 to vector<4x64xf32>
    %511 = arith.subf %510, %3 : vector<4x64xf32>
    %512 = arith.mulf %511, %473 : vector<4x64xf32>
    %513 = arith.addf %509, %512 : vector<4x64xf32>
    %cst_80 = arith.constant dense<0.000000e+00> : vector<4x192xf32>
    %514 = tpu.matmul %513, %391, %cst_80 {dimension_numbers = #tpu.dot_dimension_numbers<[1], [0], [0], [1], [0, 0, 1, 1], [], []>} : vector<4x64xf32>, vector<64x192xf32>, vector<4x192xf32> -> vector<4x192xf32>
    %515 = vector.broadcast %392 : vector<1x192xf32> to vector<4x192xf32>
    %516 = arith.addf %514, %515 : vector<4x192xf32>
    %517 = vector.extract_strided_slice %386 {offsets = [0, 0], sizes = [4, 32], strides = [1, 1]} : vector<4x192xf32> to vector<4x32xf32>
    %518 = vector.extract_strided_slice %387 {offsets = [0, 96], sizes = [4, 32], strides = [1, 1]} : vector<4x192xf32> to vector<4x32xf32>
    %519 = tpu.concatenate %517, %518 in 1 : vector<4x32xf32>, vector<4x32xf32> -> vector<4x64xf32>
    %520 = vector.extract_strided_slice %386 {offsets = [0, 32], sizes = [4, 32], strides = [1, 1]} : vector<4x192xf32> to vector<4x32xf32>
    %521 = vector.extract_strided_slice %387 {offsets = [0, 128], sizes = [4, 32], strides = [1, 1]} : vector<4x192xf32> to vector<4x32xf32>
    %522 = tpu.concatenate %520, %521 in 1 : vector<4x32xf32>, vector<4x32xf32> -> vector<4x64xf32>
    %523 = vector.extract_strided_slice %386 {offsets = [0, 64], sizes = [4, 32], strides = [1, 1]} : vector<4x192xf32> to vector<4x32xf32>
    %524 = vector.extract_strided_slice %387 {offsets = [0, 160], sizes = [4, 32], strides = [1, 1]} : vector<4x192xf32> to vector<4x32xf32>
    %525 = tpu.concatenate %523, %524 in 1 : vector<4x32xf32>, vector<4x32xf32> -> vector<4x64xf32>
    %526 = vector.extract_strided_slice %516 {offsets = [0, 0], sizes = [4, 64], strides = [1, 1]} : vector<4x192xf32> to vector<4x64xf32>
    %527 = arith.addf %519, %526 : vector<4x64xf32>
    %528 = arith.negf %527 : vector<4x64xf32>
    %529 = math.exp %528 : vector<4x64xf32>
    %cst_81 = arith.constant 1.000000e+00 : f32
    %530 = vector.broadcast %cst_81 : f32 to vector<4x64xf32>
    %531 = arith.addf %530, %529 : vector<4x64xf32>
    %532 = arith.divf %530, %531 : vector<4x64xf32>
    %533 = vector.extract_strided_slice %516 {offsets = [0, 64], sizes = [4, 64], strides = [1, 1]} : vector<4x192xf32> to vector<4x64xf32>
    %534 = arith.addf %522, %533 : vector<4x64xf32>
    %535 = arith.negf %534 : vector<4x64xf32>
    %536 = math.exp %535 : vector<4x64xf32>
    %cst_82 = arith.constant 1.000000e+00 : f32
    %537 = vector.broadcast %cst_82 : f32 to vector<4x64xf32>
    %538 = arith.addf %537, %536 : vector<4x64xf32>
    %539 = arith.divf %537, %538 : vector<4x64xf32>
    %540 = vector.extract_strided_slice %516 {offsets = [0, 128], sizes = [4, 64], strides = [1, 1]} : vector<4x192xf32> to vector<4x64xf32>
    %541 = arith.mulf %532, %540 : vector<4x64xf32>
    %542 = arith.addf %525, %541 : vector<4x64xf32>
    %543 = math.tanh %542 : vector<4x64xf32>
    %cst_83 = arith.constant 1.000000e+00 : f32
    %544 = vector.broadcast %cst_83 : f32 to vector<4x64xf32>
    %545 = arith.subf %544, %539 : vector<4x64xf32>
    %546 = arith.mulf %545, %543 : vector<4x64xf32>
    %547 = arith.mulf %539, %513 : vector<4x64xf32>
    %548 = arith.addf %546, %547 : vector<4x64xf32>
    %549 = arith.mulf %4, %548 : vector<4x64xf32>
    %cst_84 = arith.constant 1.000000e+00 : f32
    %550 = vector.broadcast %cst_84 : f32 to vector<4x64xf32>
    %551 = arith.subf %550, %4 : vector<4x64xf32>
    %552 = arith.mulf %551, %513 : vector<4x64xf32>
    %553 = arith.addf %549, %552 : vector<4x64xf32>
    %cst_85 = arith.constant dense<0.000000e+00> : vector<4x192xf32>
    %554 = tpu.matmul %553, %391, %cst_85 {dimension_numbers = #tpu.dot_dimension_numbers<[1], [0], [0], [1], [0, 0, 1, 1], [], []>} : vector<4x64xf32>, vector<64x192xf32>, vector<4x192xf32> -> vector<4x192xf32>
    %555 = vector.broadcast %392 : vector<1x192xf32> to vector<4x192xf32>
    %556 = arith.addf %554, %555 : vector<4x192xf32>
    %557 = vector.extract_strided_slice %387 {offsets = [0, 0], sizes = [4, 32], strides = [1, 1]} : vector<4x192xf32> to vector<4x32xf32>
    %558 = vector.extract_strided_slice %386 {offsets = [0, 96], sizes = [4, 32], strides = [1, 1]} : vector<4x192xf32> to vector<4x32xf32>
    %559 = tpu.concatenate %557, %558 in 1 : vector<4x32xf32>, vector<4x32xf32> -> vector<4x64xf32>
    %560 = vector.extract_strided_slice %387 {offsets = [0, 32], sizes = [4, 32], strides = [1, 1]} : vector<4x192xf32> to vector<4x32xf32>
    %561 = vector.extract_strided_slice %386 {offsets = [0, 128], sizes = [4, 32], strides = [1, 1]} : vector<4x192xf32> to vector<4x32xf32>
    %562 = tpu.concatenate %560, %561 in 1 : vector<4x32xf32>, vector<4x32xf32> -> vector<4x64xf32>
    %563 = vector.extract_strided_slice %387 {offsets = [0, 64], sizes = [4, 32], strides = [1, 1]} : vector<4x192xf32> to vector<4x32xf32>
    %564 = vector.extract_strided_slice %386 {offsets = [0, 160], sizes = [4, 32], strides = [1, 1]} : vector<4x192xf32> to vector<4x32xf32>
    %565 = tpu.concatenate %563, %564 in 1 : vector<4x32xf32>, vector<4x32xf32> -> vector<4x64xf32>
    %566 = vector.extract_strided_slice %556 {offsets = [0, 0], sizes = [4, 64], strides = [1, 1]} : vector<4x192xf32> to vector<4x64xf32>
    %567 = arith.addf %559, %566 : vector<4x64xf32>
    %568 = arith.negf %567 : vector<4x64xf32>
    %569 = math.exp %568 : vector<4x64xf32>
    %cst_86 = arith.constant 1.000000e+00 : f32
    %570 = vector.broadcast %cst_86 : f32 to vector<4x64xf32>
    %571 = arith.addf %570, %569 : vector<4x64xf32>
    %572 = arith.divf %570, %571 : vector<4x64xf32>
    %573 = vector.extract_strided_slice %556 {offsets = [0, 64], sizes = [4, 64], strides = [1, 1]} : vector<4x192xf32> to vector<4x64xf32>
    %574 = arith.addf %562, %573 : vector<4x64xf32>
    %575 = arith.negf %574 : vector<4x64xf32>
    %576 = math.exp %575 : vector<4x64xf32>
    %cst_87 = arith.constant 1.000000e+00 : f32
    %577 = vector.broadcast %cst_87 : f32 to vector<4x64xf32>
    %578 = arith.addf %577, %576 : vector<4x64xf32>
    %579 = arith.divf %577, %578 : vector<4x64xf32>
    %580 = vector.extract_strided_slice %556 {offsets = [0, 128], sizes = [4, 64], strides = [1, 1]} : vector<4x192xf32> to vector<4x64xf32>
    %581 = arith.mulf %572, %580 : vector<4x64xf32>
    %582 = arith.addf %565, %581 : vector<4x64xf32>
    %583 = math.tanh %582 : vector<4x64xf32>
    %cst_88 = arith.constant 1.000000e+00 : f32
    %584 = vector.broadcast %cst_88 : f32 to vector<4x64xf32>
    %585 = arith.subf %584, %579 : vector<4x64xf32>
    %586 = arith.mulf %585, %583 : vector<4x64xf32>
    %587 = arith.mulf %579, %553 : vector<4x64xf32>
    %588 = arith.addf %586, %587 : vector<4x64xf32>
    %589 = arith.mulf %5, %588 : vector<4x64xf32>
    %cst_89 = arith.constant 1.000000e+00 : f32
    %590 = vector.broadcast %cst_89 : f32 to vector<4x64xf32>
    %591 = arith.subf %590, %5 : vector<4x64xf32>
    %592 = arith.mulf %591, %553 : vector<4x64xf32>
    %593 = arith.addf %589, %592 : vector<4x64xf32>
    %cst_90 = arith.constant dense<0.000000e+00> : vector<4x192xf32>
    %594 = tpu.matmul %593, %391, %cst_90 {dimension_numbers = #tpu.dot_dimension_numbers<[1], [0], [0], [1], [0, 0, 1, 1], [], []>} : vector<4x64xf32>, vector<64x192xf32>, vector<4x192xf32> -> vector<4x192xf32>
    %595 = vector.broadcast %392 : vector<1x192xf32> to vector<4x192xf32>
    %596 = arith.addf %594, %595 : vector<4x192xf32>
    %597 = vector.extract_strided_slice %388 {offsets = [0, 0], sizes = [4, 32], strides = [1, 1]} : vector<4x192xf32> to vector<4x32xf32>
    %598 = vector.extract_strided_slice %385 {offsets = [0, 96], sizes = [4, 32], strides = [1, 1]} : vector<4x192xf32> to vector<4x32xf32>
    %599 = tpu.concatenate %597, %598 in 1 : vector<4x32xf32>, vector<4x32xf32> -> vector<4x64xf32>
    %600 = vector.extract_strided_slice %388 {offsets = [0, 32], sizes = [4, 32], strides = [1, 1]} : vector<4x192xf32> to vector<4x32xf32>
    %601 = vector.extract_strided_slice %385 {offsets = [0, 128], sizes = [4, 32], strides = [1, 1]} : vector<4x192xf32> to vector<4x32xf32>
    %602 = tpu.concatenate %600, %601 in 1 : vector<4x32xf32>, vector<4x32xf32> -> vector<4x64xf32>
    %603 = vector.extract_strided_slice %388 {offsets = [0, 64], sizes = [4, 32], strides = [1, 1]} : vector<4x192xf32> to vector<4x32xf32>
    %604 = vector.extract_strided_slice %385 {offsets = [0, 160], sizes = [4, 32], strides = [1, 1]} : vector<4x192xf32> to vector<4x32xf32>
    %605 = tpu.concatenate %603, %604 in 1 : vector<4x32xf32>, vector<4x32xf32> -> vector<4x64xf32>
    %606 = vector.extract_strided_slice %596 {offsets = [0, 0], sizes = [4, 64], strides = [1, 1]} : vector<4x192xf32> to vector<4x64xf32>
    %607 = arith.addf %599, %606 : vector<4x64xf32>
    %608 = arith.negf %607 : vector<4x64xf32>
    %609 = math.exp %608 : vector<4x64xf32>
    %cst_91 = arith.constant 1.000000e+00 : f32
    %610 = vector.broadcast %cst_91 : f32 to vector<4x64xf32>
    %611 = arith.addf %610, %609 : vector<4x64xf32>
    %612 = arith.divf %610, %611 : vector<4x64xf32>
    %613 = vector.extract_strided_slice %596 {offsets = [0, 64], sizes = [4, 64], strides = [1, 1]} : vector<4x192xf32> to vector<4x64xf32>
    %614 = arith.addf %602, %613 : vector<4x64xf32>
    %615 = arith.negf %614 : vector<4x64xf32>
    %616 = math.exp %615 : vector<4x64xf32>
    %cst_92 = arith.constant 1.000000e+00 : f32
    %617 = vector.broadcast %cst_92 : f32 to vector<4x64xf32>
    %618 = arith.addf %617, %616 : vector<4x64xf32>
    %619 = arith.divf %617, %618 : vector<4x64xf32>
    %620 = vector.extract_strided_slice %596 {offsets = [0, 128], sizes = [4, 64], strides = [1, 1]} : vector<4x192xf32> to vector<4x64xf32>
    %621 = arith.mulf %612, %620 : vector<4x64xf32>
    %622 = arith.addf %605, %621 : vector<4x64xf32>
    %623 = math.tanh %622 : vector<4x64xf32>
    %cst_93 = arith.constant 1.000000e+00 : f32
    %624 = vector.broadcast %cst_93 : f32 to vector<4x64xf32>
    %625 = arith.subf %624, %619 : vector<4x64xf32>
    %626 = arith.mulf %625, %623 : vector<4x64xf32>
    %627 = arith.mulf %619, %593 : vector<4x64xf32>
    %628 = arith.addf %626, %627 : vector<4x64xf32>
    %629 = arith.mulf %6, %628 : vector<4x64xf32>
    %cst_94 = arith.constant 1.000000e+00 : f32
    %630 = vector.broadcast %cst_94 : f32 to vector<4x64xf32>
    %631 = arith.subf %630, %6 : vector<4x64xf32>
    %632 = arith.mulf %631, %593 : vector<4x64xf32>
    %633 = arith.addf %629, %632 : vector<4x64xf32>
    %cst_95 = arith.constant dense<0.000000e+00> : vector<4x192xf32>
    %634 = tpu.matmul %633, %391, %cst_95 {dimension_numbers = #tpu.dot_dimension_numbers<[1], [0], [0], [1], [0, 0, 1, 1], [], []>} : vector<4x64xf32>, vector<64x192xf32>, vector<4x192xf32> -> vector<4x192xf32>
    %635 = vector.broadcast %392 : vector<1x192xf32> to vector<4x192xf32>
    %636 = arith.addf %634, %635 : vector<4x192xf32>
    %637 = vector.extract_strided_slice %389 {offsets = [0, 0], sizes = [4, 32], strides = [1, 1]} : vector<4x192xf32> to vector<4x32xf32>
    %638 = vector.extract_strided_slice %384 {offsets = [0, 96], sizes = [4, 32], strides = [1, 1]} : vector<4x192xf32> to vector<4x32xf32>
    %639 = tpu.concatenate %637, %638 in 1 : vector<4x32xf32>, vector<4x32xf32> -> vector<4x64xf32>
    %640 = vector.extract_strided_slice %389 {offsets = [0, 32], sizes = [4, 32], strides = [1, 1]} : vector<4x192xf32> to vector<4x32xf32>
    %641 = vector.extract_strided_slice %384 {offsets = [0, 128], sizes = [4, 32], strides = [1, 1]} : vector<4x192xf32> to vector<4x32xf32>
    %642 = tpu.concatenate %640, %641 in 1 : vector<4x32xf32>, vector<4x32xf32> -> vector<4x64xf32>
    %643 = vector.extract_strided_slice %389 {offsets = [0, 64], sizes = [4, 32], strides = [1, 1]} : vector<4x192xf32> to vector<4x32xf32>
    %644 = vector.extract_strided_slice %384 {offsets = [0, 160], sizes = [4, 32], strides = [1, 1]} : vector<4x192xf32> to vector<4x32xf32>
    %645 = tpu.concatenate %643, %644 in 1 : vector<4x32xf32>, vector<4x32xf32> -> vector<4x64xf32>
    %646 = vector.extract_strided_slice %636 {offsets = [0, 0], sizes = [4, 64], strides = [1, 1]} : vector<4x192xf32> to vector<4x64xf32>
    %647 = arith.addf %639, %646 : vector<4x64xf32>
    %648 = arith.negf %647 : vector<4x64xf32>
    %649 = math.exp %648 : vector<4x64xf32>
    %cst_96 = arith.constant 1.000000e+00 : f32
    %650 = vector.broadcast %cst_96 : f32 to vector<4x64xf32>
    %651 = arith.addf %650, %649 : vector<4x64xf32>
    %652 = arith.divf %650, %651 : vector<4x64xf32>
    %653 = vector.extract_strided_slice %636 {offsets = [0, 64], sizes = [4, 64], strides = [1, 1]} : vector<4x192xf32> to vector<4x64xf32>
    %654 = arith.addf %642, %653 : vector<4x64xf32>
    %655 = arith.negf %654 : vector<4x64xf32>
    %656 = math.exp %655 : vector<4x64xf32>
    %cst_97 = arith.constant 1.000000e+00 : f32
    %657 = vector.broadcast %cst_97 : f32 to vector<4x64xf32>
    %658 = arith.addf %657, %656 : vector<4x64xf32>
    %659 = arith.divf %657, %658 : vector<4x64xf32>
    %660 = vector.extract_strided_slice %636 {offsets = [0, 128], sizes = [4, 64], strides = [1, 1]} : vector<4x192xf32> to vector<4x64xf32>
    %661 = arith.mulf %652, %660 : vector<4x64xf32>
    %662 = arith.addf %645, %661 : vector<4x64xf32>
    %663 = math.tanh %662 : vector<4x64xf32>
    %cst_98 = arith.constant 1.000000e+00 : f32
    %664 = vector.broadcast %cst_98 : f32 to vector<4x64xf32>
    %665 = arith.subf %664, %659 : vector<4x64xf32>
    %666 = arith.mulf %665, %663 : vector<4x64xf32>
    %667 = arith.mulf %659, %633 : vector<4x64xf32>
    %668 = arith.addf %666, %667 : vector<4x64xf32>
    %669 = arith.mulf %7, %668 : vector<4x64xf32>
    %cst_99 = arith.constant 1.000000e+00 : f32
    %670 = vector.broadcast %cst_99 : f32 to vector<4x64xf32>
    %671 = arith.subf %670, %7 : vector<4x64xf32>
    %672 = arith.mulf %671, %633 : vector<4x64xf32>
    %673 = arith.addf %669, %672 : vector<4x64xf32>
    %cst_100 = arith.constant dense<0.000000e+00> : vector<4x192xf32>
    %674 = tpu.matmul %673, %391, %cst_100 {dimension_numbers = #tpu.dot_dimension_numbers<[1], [0], [0], [1], [0, 0, 1, 1], [], []>} : vector<4x64xf32>, vector<64x192xf32>, vector<4x192xf32> -> vector<4x192xf32>
    %675 = vector.broadcast %392 : vector<1x192xf32> to vector<4x192xf32>
    %676 = arith.addf %674, %675 : vector<4x192xf32>
    %677 = vector.extract_strided_slice %390 {offsets = [0, 0], sizes = [4, 32], strides = [1, 1]} : vector<4x192xf32> to vector<4x32xf32>
    %678 = vector.extract_strided_slice %383 {offsets = [0, 96], sizes = [4, 32], strides = [1, 1]} : vector<4x192xf32> to vector<4x32xf32>
    %679 = tpu.concatenate %677, %678 in 1 : vector<4x32xf32>, vector<4x32xf32> -> vector<4x64xf32>
    %680 = vector.extract_strided_slice %390 {offsets = [0, 32], sizes = [4, 32], strides = [1, 1]} : vector<4x192xf32> to vector<4x32xf32>
    %681 = vector.extract_strided_slice %383 {offsets = [0, 128], sizes = [4, 32], strides = [1, 1]} : vector<4x192xf32> to vector<4x32xf32>
    %682 = tpu.concatenate %680, %681 in 1 : vector<4x32xf32>, vector<4x32xf32> -> vector<4x64xf32>
    %683 = vector.extract_strided_slice %390 {offsets = [0, 64], sizes = [4, 32], strides = [1, 1]} : vector<4x192xf32> to vector<4x32xf32>
    %684 = vector.extract_strided_slice %383 {offsets = [0, 160], sizes = [4, 32], strides = [1, 1]} : vector<4x192xf32> to vector<4x32xf32>
    %685 = tpu.concatenate %683, %684 in 1 : vector<4x32xf32>, vector<4x32xf32> -> vector<4x64xf32>
    %686 = vector.extract_strided_slice %676 {offsets = [0, 0], sizes = [4, 64], strides = [1, 1]} : vector<4x192xf32> to vector<4x64xf32>
    %687 = arith.addf %679, %686 : vector<4x64xf32>
    %688 = arith.negf %687 : vector<4x64xf32>
    %689 = math.exp %688 : vector<4x64xf32>
    %cst_101 = arith.constant 1.000000e+00 : f32
    %690 = vector.broadcast %cst_101 : f32 to vector<4x64xf32>
    %691 = arith.addf %690, %689 : vector<4x64xf32>
    %692 = arith.divf %690, %691 : vector<4x64xf32>
    %693 = vector.extract_strided_slice %676 {offsets = [0, 64], sizes = [4, 64], strides = [1, 1]} : vector<4x192xf32> to vector<4x64xf32>
    %694 = arith.addf %682, %693 : vector<4x64xf32>
    %695 = arith.negf %694 : vector<4x64xf32>
    %696 = math.exp %695 : vector<4x64xf32>
    %cst_102 = arith.constant 1.000000e+00 : f32
    %697 = vector.broadcast %cst_102 : f32 to vector<4x64xf32>
    %698 = arith.addf %697, %696 : vector<4x64xf32>
    %699 = arith.divf %697, %698 : vector<4x64xf32>
    %700 = vector.extract_strided_slice %676 {offsets = [0, 128], sizes = [4, 64], strides = [1, 1]} : vector<4x192xf32> to vector<4x64xf32>
    %701 = arith.mulf %692, %700 : vector<4x64xf32>
    %702 = arith.addf %685, %701 : vector<4x64xf32>
    %703 = math.tanh %702 : vector<4x64xf32>
    %cst_103 = arith.constant 1.000000e+00 : f32
    %704 = vector.broadcast %cst_103 : f32 to vector<4x64xf32>
    %705 = arith.subf %704, %699 : vector<4x64xf32>
    %706 = arith.mulf %705, %703 : vector<4x64xf32>
    %707 = arith.mulf %699, %673 : vector<4x64xf32>
    %708 = arith.addf %706, %707 : vector<4x64xf32>
    %709 = arith.mulf %8, %708 : vector<4x64xf32>
    %cst_104 = arith.constant 1.000000e+00 : f32
    %710 = vector.broadcast %cst_104 : f32 to vector<4x64xf32>
    %711 = arith.subf %710, %8 : vector<4x64xf32>
    %712 = arith.mulf %711, %673 : vector<4x64xf32>
    %713 = arith.addf %709, %712 : vector<4x64xf32>
    %714 = tpu.concatenate %352, %713 in 1 : vector<4x64xf32>, vector<4x64xf32> -> vector<4x128xf32>
    %c0_105 = arith.constant 0 : index
    %c0_106 = arith.constant 0 : index
    %715 = vector.load %arg12[%c0_105, %c0_106] : memref<128x192xf32, #tpu.memory_space<vmem>>, vector<128x192xf32>
    %cst_107 = arith.constant dense<0.000000e+00> : vector<4x192xf32>
    %716 = tpu.matmul %714, %715, %cst_107 {dimension_numbers = #tpu.dot_dimension_numbers<[1], [0], [0], [1], [0, 0, 1, 1], [], []>} : vector<4x128xf32>, vector<128x192xf32>, vector<4x192xf32> -> vector<4x192xf32>
    %c0_108 = arith.constant 0 : index
    %c0_109 = arith.constant 0 : index
    %717 = vector.load %arg14[%c0_108, %c0_109] : memref<1x192xf32, #tpu.memory_space<vmem>>, vector<1x192xf32>
    %718 = vector.broadcast %717 : vector<1x192xf32> to vector<4x192xf32>
    %719 = arith.addf %716, %718 : vector<4x192xf32>
    %c0_110 = arith.constant 0 : index
    %c0_111 = arith.constant 0 : index
    %720 = vector.load %arg13[%c0_110, %c0_111] : memref<64x192xf32, #tpu.memory_space<vmem>>, vector<64x192xf32>
    %c0_112 = arith.constant 0 : index
    %c0_113 = arith.constant 0 : index
    %721 = vector.load %arg15[%c0_112, %c0_113] : memref<1x192xf32, #tpu.memory_space<vmem>>, vector<1x192xf32>
    %cst_114 = arith.constant 0.000000e+00 : f32
    %722 = vector.broadcast %cst_114 : f32 to vector<4x64xf32>
    %cst_115 = arith.constant dense<0.000000e+00> : vector<4x192xf32>
    %723 = tpu.matmul %722, %720, %cst_115 {dimension_numbers = #tpu.dot_dimension_numbers<[1], [0], [0], [1], [0, 0, 1, 1], [], []>} : vector<4x64xf32>, vector<64x192xf32>, vector<4x192xf32> -> vector<4x192xf32>
    %724 = vector.broadcast %721 : vector<1x192xf32> to vector<4x192xf32>
    %725 = arith.addf %723, %724 : vector<4x192xf32>
    %726 = vector.extract_strided_slice %719 {offsets = [0, 0], sizes = [4, 32], strides = [1, 1]} : vector<4x192xf32> to vector<4x32xf32>
    %727 = vector.extract_strided_slice %719 {offsets = [0, 96], sizes = [4, 32], strides = [1, 1]} : vector<4x192xf32> to vector<4x32xf32>
    %728 = tpu.concatenate %726, %727 in 1 : vector<4x32xf32>, vector<4x32xf32> -> vector<4x64xf32>
    %729 = vector.extract_strided_slice %719 {offsets = [0, 32], sizes = [4, 32], strides = [1, 1]} : vector<4x192xf32> to vector<4x32xf32>
    %730 = vector.extract_strided_slice %719 {offsets = [0, 128], sizes = [4, 32], strides = [1, 1]} : vector<4x192xf32> to vector<4x32xf32>
    %731 = tpu.concatenate %729, %730 in 1 : vector<4x32xf32>, vector<4x32xf32> -> vector<4x64xf32>
    %732 = vector.extract_strided_slice %719 {offsets = [0, 64], sizes = [4, 32], strides = [1, 1]} : vector<4x192xf32> to vector<4x32xf32>
    %733 = vector.extract_strided_slice %719 {offsets = [0, 160], sizes = [4, 32], strides = [1, 1]} : vector<4x192xf32> to vector<4x32xf32>
    %734 = tpu.concatenate %732, %733 in 1 : vector<4x32xf32>, vector<4x32xf32> -> vector<4x64xf32>
    %735 = vector.extract_strided_slice %725 {offsets = [0, 0], sizes = [4, 64], strides = [1, 1]} : vector<4x192xf32> to vector<4x64xf32>
    %736 = arith.addf %728, %735 : vector<4x64xf32>
    %737 = arith.negf %736 : vector<4x64xf32>
    %738 = math.exp %737 : vector<4x64xf32>
    %cst_116 = arith.constant 1.000000e+00 : f32
    %739 = vector.broadcast %cst_116 : f32 to vector<4x64xf32>
    %740 = arith.addf %739, %738 : vector<4x64xf32>
    %741 = arith.divf %739, %740 : vector<4x64xf32>
    %742 = vector.extract_strided_slice %725 {offsets = [0, 64], sizes = [4, 64], strides = [1, 1]} : vector<4x192xf32> to vector<4x64xf32>
    %743 = arith.addf %731, %742 : vector<4x64xf32>
    %744 = arith.negf %743 : vector<4x64xf32>
    %745 = math.exp %744 : vector<4x64xf32>
    %cst_117 = arith.constant 1.000000e+00 : f32
    %746 = vector.broadcast %cst_117 : f32 to vector<4x64xf32>
    %747 = arith.addf %746, %745 : vector<4x64xf32>
    %748 = arith.divf %746, %747 : vector<4x64xf32>
    %749 = vector.extract_strided_slice %725 {offsets = [0, 128], sizes = [4, 64], strides = [1, 1]} : vector<4x192xf32> to vector<4x64xf32>
    %750 = arith.mulf %741, %749 : vector<4x64xf32>
    %751 = arith.addf %734, %750 : vector<4x64xf32>
    %752 = math.tanh %751 : vector<4x64xf32>
    %cst_118 = arith.constant 1.000000e+00 : f32
    %753 = vector.broadcast %cst_118 : f32 to vector<4x64xf32>
    %754 = arith.subf %753, %748 : vector<4x64xf32>
    %755 = arith.mulf %754, %752 : vector<4x64xf32>
    %756 = arith.mulf %748, %722 : vector<4x64xf32>
    %757 = arith.addf %755, %756 : vector<4x64xf32>
    %758 = arith.mulf %1, %757 : vector<4x64xf32>
    %cst_119 = arith.constant 1.000000e+00 : f32
    %759 = vector.broadcast %cst_119 : f32 to vector<4x64xf32>
    %760 = arith.subf %759, %1 : vector<4x64xf32>
    %761 = arith.mulf %760, %722 : vector<4x64xf32>
    %762 = arith.addf %758, %761 : vector<4x64xf32>
    %cst_120 = arith.constant dense<0.000000e+00> : vector<4x192xf32>
    %763 = tpu.matmul %762, %720, %cst_120 {dimension_numbers = #tpu.dot_dimension_numbers<[1], [0], [0], [1], [0, 0, 1, 1], [], []>} : vector<4x64xf32>, vector<64x192xf32>, vector<4x192xf32> -> vector<4x192xf32>
    %764 = vector.broadcast %721 : vector<1x192xf32> to vector<4x192xf32>
    %765 = arith.addf %763, %764 : vector<4x192xf32>
    %766 = vector.extract_strided_slice %719 {offsets = [0, 0], sizes = [4, 32], strides = [1, 1]} : vector<4x192xf32> to vector<4x32xf32>
    %767 = vector.extract_strided_slice %719 {offsets = [0, 96], sizes = [4, 32], strides = [1, 1]} : vector<4x192xf32> to vector<4x32xf32>
    %768 = tpu.concatenate %766, %767 in 1 : vector<4x32xf32>, vector<4x32xf32> -> vector<4x64xf32>
    %769 = vector.extract_strided_slice %719 {offsets = [0, 32], sizes = [4, 32], strides = [1, 1]} : vector<4x192xf32> to vector<4x32xf32>
    %770 = vector.extract_strided_slice %719 {offsets = [0, 128], sizes = [4, 32], strides = [1, 1]} : vector<4x192xf32> to vector<4x32xf32>
    %771 = tpu.concatenate %769, %770 in 1 : vector<4x32xf32>, vector<4x32xf32> -> vector<4x64xf32>
    %772 = vector.extract_strided_slice %719 {offsets = [0, 64], sizes = [4, 32], strides = [1, 1]} : vector<4x192xf32> to vector<4x32xf32>
    %773 = vector.extract_strided_slice %719 {offsets = [0, 160], sizes = [4, 32], strides = [1, 1]} : vector<4x192xf32> to vector<4x32xf32>
    %774 = tpu.concatenate %772, %773 in 1 : vector<4x32xf32>, vector<4x32xf32> -> vector<4x64xf32>
    %775 = vector.extract_strided_slice %765 {offsets = [0, 0], sizes = [4, 64], strides = [1, 1]} : vector<4x192xf32> to vector<4x64xf32>
    %776 = arith.addf %768, %775 : vector<4x64xf32>
    %777 = arith.negf %776 : vector<4x64xf32>
    %778 = math.exp %777 : vector<4x64xf32>
    %cst_121 = arith.constant 1.000000e+00 : f32
    %779 = vector.broadcast %cst_121 : f32 to vector<4x64xf32>
    %780 = arith.addf %779, %778 : vector<4x64xf32>
    %781 = arith.divf %779, %780 : vector<4x64xf32>
    %782 = vector.extract_strided_slice %765 {offsets = [0, 64], sizes = [4, 64], strides = [1, 1]} : vector<4x192xf32> to vector<4x64xf32>
    %783 = arith.addf %771, %782 : vector<4x64xf32>
    %784 = arith.negf %783 : vector<4x64xf32>
    %785 = math.exp %784 : vector<4x64xf32>
    %cst_122 = arith.constant 1.000000e+00 : f32
    %786 = vector.broadcast %cst_122 : f32 to vector<4x64xf32>
    %787 = arith.addf %786, %785 : vector<4x64xf32>
    %788 = arith.divf %786, %787 : vector<4x64xf32>
    %789 = vector.extract_strided_slice %765 {offsets = [0, 128], sizes = [4, 64], strides = [1, 1]} : vector<4x192xf32> to vector<4x64xf32>
    %790 = arith.mulf %781, %789 : vector<4x64xf32>
    %791 = arith.addf %774, %790 : vector<4x64xf32>
    %792 = math.tanh %791 : vector<4x64xf32>
    %cst_123 = arith.constant 1.000000e+00 : f32
    %793 = vector.broadcast %cst_123 : f32 to vector<4x64xf32>
    %794 = arith.subf %793, %788 : vector<4x64xf32>
    %795 = arith.mulf %794, %792 : vector<4x64xf32>
    %796 = arith.mulf %788, %762 : vector<4x64xf32>
    %797 = arith.addf %795, %796 : vector<4x64xf32>
    %798 = arith.mulf %2, %797 : vector<4x64xf32>
    %cst_124 = arith.constant 1.000000e+00 : f32
    %799 = vector.broadcast %cst_124 : f32 to vector<4x64xf32>
    %800 = arith.subf %799, %2 : vector<4x64xf32>
    %801 = arith.mulf %800, %762 : vector<4x64xf32>
    %802 = arith.addf %798, %801 : vector<4x64xf32>
    %cst_125 = arith.constant dense<0.000000e+00> : vector<4x192xf32>
    %803 = tpu.matmul %802, %720, %cst_125 {dimension_numbers = #tpu.dot_dimension_numbers<[1], [0], [0], [1], [0, 0, 1, 1], [], []>} : vector<4x64xf32>, vector<64x192xf32>, vector<4x192xf32> -> vector<4x192xf32>
    %804 = vector.broadcast %721 : vector<1x192xf32> to vector<4x192xf32>
    %805 = arith.addf %803, %804 : vector<4x192xf32>
    %806 = vector.extract_strided_slice %719 {offsets = [0, 0], sizes = [4, 32], strides = [1, 1]} : vector<4x192xf32> to vector<4x32xf32>
    %807 = vector.extract_strided_slice %719 {offsets = [0, 96], sizes = [4, 32], strides = [1, 1]} : vector<4x192xf32> to vector<4x32xf32>
    %808 = tpu.concatenate %806, %807 in 1 : vector<4x32xf32>, vector<4x32xf32> -> vector<4x64xf32>
    %809 = vector.extract_strided_slice %719 {offsets = [0, 32], sizes = [4, 32], strides = [1, 1]} : vector<4x192xf32> to vector<4x32xf32>
    %810 = vector.extract_strided_slice %719 {offsets = [0, 128], sizes = [4, 32], strides = [1, 1]} : vector<4x192xf32> to vector<4x32xf32>
    %811 = tpu.concatenate %809, %810 in 1 : vector<4x32xf32>, vector<4x32xf32> -> vector<4x64xf32>
    %812 = vector.extract_strided_slice %719 {offsets = [0, 64], sizes = [4, 32], strides = [1, 1]} : vector<4x192xf32> to vector<4x32xf32>
    %813 = vector.extract_strided_slice %719 {offsets = [0, 160], sizes = [4, 32], strides = [1, 1]} : vector<4x192xf32> to vector<4x32xf32>
    %814 = tpu.concatenate %812, %813 in 1 : vector<4x32xf32>, vector<4x32xf32> -> vector<4x64xf32>
    %815 = vector.extract_strided_slice %805 {offsets = [0, 0], sizes = [4, 64], strides = [1, 1]} : vector<4x192xf32> to vector<4x64xf32>
    %816 = arith.addf %808, %815 : vector<4x64xf32>
    %817 = arith.negf %816 : vector<4x64xf32>
    %818 = math.exp %817 : vector<4x64xf32>
    %cst_126 = arith.constant 1.000000e+00 : f32
    %819 = vector.broadcast %cst_126 : f32 to vector<4x64xf32>
    %820 = arith.addf %819, %818 : vector<4x64xf32>
    %821 = arith.divf %819, %820 : vector<4x64xf32>
    %822 = vector.extract_strided_slice %805 {offsets = [0, 64], sizes = [4, 64], strides = [1, 1]} : vector<4x192xf32> to vector<4x64xf32>
    %823 = arith.addf %811, %822 : vector<4x64xf32>
    %824 = arith.negf %823 : vector<4x64xf32>
    %825 = math.exp %824 : vector<4x64xf32>
    %cst_127 = arith.constant 1.000000e+00 : f32
    %826 = vector.broadcast %cst_127 : f32 to vector<4x64xf32>
    %827 = arith.addf %826, %825 : vector<4x64xf32>
    %828 = arith.divf %826, %827 : vector<4x64xf32>
    %829 = vector.extract_strided_slice %805 {offsets = [0, 128], sizes = [4, 64], strides = [1, 1]} : vector<4x192xf32> to vector<4x64xf32>
    %830 = arith.mulf %821, %829 : vector<4x64xf32>
    %831 = arith.addf %814, %830 : vector<4x64xf32>
    %832 = math.tanh %831 : vector<4x64xf32>
    %cst_128 = arith.constant 1.000000e+00 : f32
    %833 = vector.broadcast %cst_128 : f32 to vector<4x64xf32>
    %834 = arith.subf %833, %828 : vector<4x64xf32>
    %835 = arith.mulf %834, %832 : vector<4x64xf32>
    %836 = arith.mulf %828, %802 : vector<4x64xf32>
    %837 = arith.addf %835, %836 : vector<4x64xf32>
    %838 = arith.mulf %3, %837 : vector<4x64xf32>
    %cst_129 = arith.constant 1.000000e+00 : f32
    %839 = vector.broadcast %cst_129 : f32 to vector<4x64xf32>
    %840 = arith.subf %839, %3 : vector<4x64xf32>
    %841 = arith.mulf %840, %802 : vector<4x64xf32>
    %842 = arith.addf %838, %841 : vector<4x64xf32>
    %cst_130 = arith.constant dense<0.000000e+00> : vector<4x192xf32>
    %843 = tpu.matmul %842, %720, %cst_130 {dimension_numbers = #tpu.dot_dimension_numbers<[1], [0], [0], [1], [0, 0, 1, 1], [], []>} : vector<4x64xf32>, vector<64x192xf32>, vector<4x192xf32> -> vector<4x192xf32>
    %844 = vector.broadcast %721 : vector<1x192xf32> to vector<4x192xf32>
    %845 = arith.addf %843, %844 : vector<4x192xf32>
    %846 = vector.extract_strided_slice %719 {offsets = [0, 0], sizes = [4, 32], strides = [1, 1]} : vector<4x192xf32> to vector<4x32xf32>
    %847 = vector.extract_strided_slice %719 {offsets = [0, 96], sizes = [4, 32], strides = [1, 1]} : vector<4x192xf32> to vector<4x32xf32>
    %848 = tpu.concatenate %846, %847 in 1 : vector<4x32xf32>, vector<4x32xf32> -> vector<4x64xf32>
    %849 = vector.extract_strided_slice %719 {offsets = [0, 32], sizes = [4, 32], strides = [1, 1]} : vector<4x192xf32> to vector<4x32xf32>
    %850 = vector.extract_strided_slice %719 {offsets = [0, 128], sizes = [4, 32], strides = [1, 1]} : vector<4x192xf32> to vector<4x32xf32>
    %851 = tpu.concatenate %849, %850 in 1 : vector<4x32xf32>, vector<4x32xf32> -> vector<4x64xf32>
    %852 = vector.extract_strided_slice %719 {offsets = [0, 64], sizes = [4, 32], strides = [1, 1]} : vector<4x192xf32> to vector<4x32xf32>
    %853 = vector.extract_strided_slice %719 {offsets = [0, 160], sizes = [4, 32], strides = [1, 1]} : vector<4x192xf32> to vector<4x32xf32>
    %854 = tpu.concatenate %852, %853 in 1 : vector<4x32xf32>, vector<4x32xf32> -> vector<4x64xf32>
    %855 = vector.extract_strided_slice %845 {offsets = [0, 0], sizes = [4, 64], strides = [1, 1]} : vector<4x192xf32> to vector<4x64xf32>
    %856 = arith.addf %848, %855 : vector<4x64xf32>
    %857 = arith.negf %856 : vector<4x64xf32>
    %858 = math.exp %857 : vector<4x64xf32>
    %cst_131 = arith.constant 1.000000e+00 : f32
    %859 = vector.broadcast %cst_131 : f32 to vector<4x64xf32>
    %860 = arith.addf %859, %858 : vector<4x64xf32>
    %861 = arith.divf %859, %860 : vector<4x64xf32>
    %862 = vector.extract_strided_slice %845 {offsets = [0, 64], sizes = [4, 64], strides = [1, 1]} : vector<4x192xf32> to vector<4x64xf32>
    %863 = arith.addf %851, %862 : vector<4x64xf32>
    %864 = arith.negf %863 : vector<4x64xf32>
    %865 = math.exp %864 : vector<4x64xf32>
    %cst_132 = arith.constant 1.000000e+00 : f32
    %866 = vector.broadcast %cst_132 : f32 to vector<4x64xf32>
    %867 = arith.addf %866, %865 : vector<4x64xf32>
    %868 = arith.divf %866, %867 : vector<4x64xf32>
    %869 = vector.extract_strided_slice %845 {offsets = [0, 128], sizes = [4, 64], strides = [1, 1]} : vector<4x192xf32> to vector<4x64xf32>
    %870 = arith.mulf %861, %869 : vector<4x64xf32>
    %871 = arith.addf %854, %870 : vector<4x64xf32>
    %872 = math.tanh %871 : vector<4x64xf32>
    %cst_133 = arith.constant 1.000000e+00 : f32
    %873 = vector.broadcast %cst_133 : f32 to vector<4x64xf32>
    %874 = arith.subf %873, %868 : vector<4x64xf32>
    %875 = arith.mulf %874, %872 : vector<4x64xf32>
    %876 = arith.mulf %868, %842 : vector<4x64xf32>
    %877 = arith.addf %875, %876 : vector<4x64xf32>
    %878 = arith.mulf %4, %877 : vector<4x64xf32>
    %cst_134 = arith.constant 1.000000e+00 : f32
    %879 = vector.broadcast %cst_134 : f32 to vector<4x64xf32>
    %880 = arith.subf %879, %4 : vector<4x64xf32>
    %881 = arith.mulf %880, %842 : vector<4x64xf32>
    %882 = arith.addf %878, %881 : vector<4x64xf32>
    %cst_135 = arith.constant dense<0.000000e+00> : vector<4x192xf32>
    %883 = tpu.matmul %882, %720, %cst_135 {dimension_numbers = #tpu.dot_dimension_numbers<[1], [0], [0], [1], [0, 0, 1, 1], [], []>} : vector<4x64xf32>, vector<64x192xf32>, vector<4x192xf32> -> vector<4x192xf32>
    %884 = vector.broadcast %721 : vector<1x192xf32> to vector<4x192xf32>
    %885 = arith.addf %883, %884 : vector<4x192xf32>
    %886 = vector.extract_strided_slice %719 {offsets = [0, 0], sizes = [4, 32], strides = [1, 1]} : vector<4x192xf32> to vector<4x32xf32>
    %887 = vector.extract_strided_slice %719 {offsets = [0, 96], sizes = [4, 32], strides = [1, 1]} : vector<4x192xf32> to vector<4x32xf32>
    %888 = tpu.concatenate %886, %887 in 1 : vector<4x32xf32>, vector<4x32xf32> -> vector<4x64xf32>
    %889 = vector.extract_strided_slice %719 {offsets = [0, 32], sizes = [4, 32], strides = [1, 1]} : vector<4x192xf32> to vector<4x32xf32>
    %890 = vector.extract_strided_slice %719 {offsets = [0, 128], sizes = [4, 32], strides = [1, 1]} : vector<4x192xf32> to vector<4x32xf32>
    %891 = tpu.concatenate %889, %890 in 1 : vector<4x32xf32>, vector<4x32xf32> -> vector<4x64xf32>
    %892 = vector.extract_strided_slice %719 {offsets = [0, 64], sizes = [4, 32], strides = [1, 1]} : vector<4x192xf32> to vector<4x32xf32>
    %893 = vector.extract_strided_slice %719 {offsets = [0, 160], sizes = [4, 32], strides = [1, 1]} : vector<4x192xf32> to vector<4x32xf32>
    %894 = tpu.concatenate %892, %893 in 1 : vector<4x32xf32>, vector<4x32xf32> -> vector<4x64xf32>
    %895 = vector.extract_strided_slice %885 {offsets = [0, 0], sizes = [4, 64], strides = [1, 1]} : vector<4x192xf32> to vector<4x64xf32>
    %896 = arith.addf %888, %895 : vector<4x64xf32>
    %897 = arith.negf %896 : vector<4x64xf32>
    %898 = math.exp %897 : vector<4x64xf32>
    %cst_136 = arith.constant 1.000000e+00 : f32
    %899 = vector.broadcast %cst_136 : f32 to vector<4x64xf32>
    %900 = arith.addf %899, %898 : vector<4x64xf32>
    %901 = arith.divf %899, %900 : vector<4x64xf32>
    %902 = vector.extract_strided_slice %885 {offsets = [0, 64], sizes = [4, 64], strides = [1, 1]} : vector<4x192xf32> to vector<4x64xf32>
    %903 = arith.addf %891, %902 : vector<4x64xf32>
    %904 = arith.negf %903 : vector<4x64xf32>
    %905 = math.exp %904 : vector<4x64xf32>
    %cst_137 = arith.constant 1.000000e+00 : f32
    %906 = vector.broadcast %cst_137 : f32 to vector<4x64xf32>
    %907 = arith.addf %906, %905 : vector<4x64xf32>
    %908 = arith.divf %906, %907 : vector<4x64xf32>
    %909 = vector.extract_strided_slice %885 {offsets = [0, 128], sizes = [4, 64], strides = [1, 1]} : vector<4x192xf32> to vector<4x64xf32>
    %910 = arith.mulf %901, %909 : vector<4x64xf32>
    %911 = arith.addf %894, %910 : vector<4x64xf32>
    %912 = math.tanh %911 : vector<4x64xf32>
    %cst_138 = arith.constant 1.000000e+00 : f32
    %913 = vector.broadcast %cst_138 : f32 to vector<4x64xf32>
    %914 = arith.subf %913, %908 : vector<4x64xf32>
    %915 = arith.mulf %914, %912 : vector<4x64xf32>
    %916 = arith.mulf %908, %882 : vector<4x64xf32>
    %917 = arith.addf %915, %916 : vector<4x64xf32>
    %918 = arith.mulf %5, %917 : vector<4x64xf32>
    %cst_139 = arith.constant 1.000000e+00 : f32
    %919 = vector.broadcast %cst_139 : f32 to vector<4x64xf32>
    %920 = arith.subf %919, %5 : vector<4x64xf32>
    %921 = arith.mulf %920, %882 : vector<4x64xf32>
    %922 = arith.addf %918, %921 : vector<4x64xf32>
    %cst_140 = arith.constant dense<0.000000e+00> : vector<4x192xf32>
    %923 = tpu.matmul %922, %720, %cst_140 {dimension_numbers = #tpu.dot_dimension_numbers<[1], [0], [0], [1], [0, 0, 1, 1], [], []>} : vector<4x64xf32>, vector<64x192xf32>, vector<4x192xf32> -> vector<4x192xf32>
    %924 = vector.broadcast %721 : vector<1x192xf32> to vector<4x192xf32>
    %925 = arith.addf %923, %924 : vector<4x192xf32>
    %926 = vector.extract_strided_slice %719 {offsets = [0, 0], sizes = [4, 32], strides = [1, 1]} : vector<4x192xf32> to vector<4x32xf32>
    %927 = vector.extract_strided_slice %719 {offsets = [0, 96], sizes = [4, 32], strides = [1, 1]} : vector<4x192xf32> to vector<4x32xf32>
    %928 = tpu.concatenate %926, %927 in 1 : vector<4x32xf32>, vector<4x32xf32> -> vector<4x64xf32>
    %929 = vector.extract_strided_slice %719 {offsets = [0, 32], sizes = [4, 32], strides = [1, 1]} : vector<4x192xf32> to vector<4x32xf32>
    %930 = vector.extract_strided_slice %719 {offsets = [0, 128], sizes = [4, 32], strides = [1, 1]} : vector<4x192xf32> to vector<4x32xf32>
    %931 = tpu.concatenate %929, %930 in 1 : vector<4x32xf32>, vector<4x32xf32> -> vector<4x64xf32>
    %932 = vector.extract_strided_slice %719 {offsets = [0, 64], sizes = [4, 32], strides = [1, 1]} : vector<4x192xf32> to vector<4x32xf32>
    %933 = vector.extract_strided_slice %719 {offsets = [0, 160], sizes = [4, 32], strides = [1, 1]} : vector<4x192xf32> to vector<4x32xf32>
    %934 = tpu.concatenate %932, %933 in 1 : vector<4x32xf32>, vector<4x32xf32> -> vector<4x64xf32>
    %935 = vector.extract_strided_slice %925 {offsets = [0, 0], sizes = [4, 64], strides = [1, 1]} : vector<4x192xf32> to vector<4x64xf32>
    %936 = arith.addf %928, %935 : vector<4x64xf32>
    %937 = arith.negf %936 : vector<4x64xf32>
    %938 = math.exp %937 : vector<4x64xf32>
    %cst_141 = arith.constant 1.000000e+00 : f32
    %939 = vector.broadcast %cst_141 : f32 to vector<4x64xf32>
    %940 = arith.addf %939, %938 : vector<4x64xf32>
    %941 = arith.divf %939, %940 : vector<4x64xf32>
    %942 = vector.extract_strided_slice %925 {offsets = [0, 64], sizes = [4, 64], strides = [1, 1]} : vector<4x192xf32> to vector<4x64xf32>
    %943 = arith.addf %931, %942 : vector<4x64xf32>
    %944 = arith.negf %943 : vector<4x64xf32>
    %945 = math.exp %944 : vector<4x64xf32>
    %cst_142 = arith.constant 1.000000e+00 : f32
    %946 = vector.broadcast %cst_142 : f32 to vector<4x64xf32>
    %947 = arith.addf %946, %945 : vector<4x64xf32>
    %948 = arith.divf %946, %947 : vector<4x64xf32>
    %949 = vector.extract_strided_slice %925 {offsets = [0, 128], sizes = [4, 64], strides = [1, 1]} : vector<4x192xf32> to vector<4x64xf32>
    %950 = arith.mulf %941, %949 : vector<4x64xf32>
    %951 = arith.addf %934, %950 : vector<4x64xf32>
    %952 = math.tanh %951 : vector<4x64xf32>
    %cst_143 = arith.constant 1.000000e+00 : f32
    %953 = vector.broadcast %cst_143 : f32 to vector<4x64xf32>
    %954 = arith.subf %953, %948 : vector<4x64xf32>
    %955 = arith.mulf %954, %952 : vector<4x64xf32>
    %956 = arith.mulf %948, %922 : vector<4x64xf32>
    %957 = arith.addf %955, %956 : vector<4x64xf32>
    %958 = arith.mulf %6, %957 : vector<4x64xf32>
    %cst_144 = arith.constant 1.000000e+00 : f32
    %959 = vector.broadcast %cst_144 : f32 to vector<4x64xf32>
    %960 = arith.subf %959, %6 : vector<4x64xf32>
    %961 = arith.mulf %960, %922 : vector<4x64xf32>
    %962 = arith.addf %958, %961 : vector<4x64xf32>
    %cst_145 = arith.constant dense<0.000000e+00> : vector<4x192xf32>
    %963 = tpu.matmul %962, %720, %cst_145 {dimension_numbers = #tpu.dot_dimension_numbers<[1], [0], [0], [1], [0, 0, 1, 1], [], []>} : vector<4x64xf32>, vector<64x192xf32>, vector<4x192xf32> -> vector<4x192xf32>
    %964 = vector.broadcast %721 : vector<1x192xf32> to vector<4x192xf32>
    %965 = arith.addf %963, %964 : vector<4x192xf32>
    %966 = vector.extract_strided_slice %719 {offsets = [0, 0], sizes = [4, 32], strides = [1, 1]} : vector<4x192xf32> to vector<4x32xf32>
    %967 = vector.extract_strided_slice %719 {offsets = [0, 96], sizes = [4, 32], strides = [1, 1]} : vector<4x192xf32> to vector<4x32xf32>
    %968 = tpu.concatenate %966, %967 in 1 : vector<4x32xf32>, vector<4x32xf32> -> vector<4x64xf32>
    %969 = vector.extract_strided_slice %719 {offsets = [0, 32], sizes = [4, 32], strides = [1, 1]} : vector<4x192xf32> to vector<4x32xf32>
    %970 = vector.extract_strided_slice %719 {offsets = [0, 128], sizes = [4, 32], strides = [1, 1]} : vector<4x192xf32> to vector<4x32xf32>
    %971 = tpu.concatenate %969, %970 in 1 : vector<4x32xf32>, vector<4x32xf32> -> vector<4x64xf32>
    %972 = vector.extract_strided_slice %719 {offsets = [0, 64], sizes = [4, 32], strides = [1, 1]} : vector<4x192xf32> to vector<4x32xf32>
    %973 = vector.extract_strided_slice %719 {offsets = [0, 160], sizes = [4, 32], strides = [1, 1]} : vector<4x192xf32> to vector<4x32xf32>
    %974 = tpu.concatenate %972, %973 in 1 : vector<4x32xf32>, vector<4x32xf32> -> vector<4x64xf32>
    %975 = vector.extract_strided_slice %965 {offsets = [0, 0], sizes = [4, 64], strides = [1, 1]} : vector<4x192xf32> to vector<4x64xf32>
    %976 = arith.addf %968, %975 : vector<4x64xf32>
    %977 = arith.negf %976 : vector<4x64xf32>
    %978 = math.exp %977 : vector<4x64xf32>
    %cst_146 = arith.constant 1.000000e+00 : f32
    %979 = vector.broadcast %cst_146 : f32 to vector<4x64xf32>
    %980 = arith.addf %979, %978 : vector<4x64xf32>
    %981 = arith.divf %979, %980 : vector<4x64xf32>
    %982 = vector.extract_strided_slice %965 {offsets = [0, 64], sizes = [4, 64], strides = [1, 1]} : vector<4x192xf32> to vector<4x64xf32>
    %983 = arith.addf %971, %982 : vector<4x64xf32>
    %984 = arith.negf %983 : vector<4x64xf32>
    %985 = math.exp %984 : vector<4x64xf32>
    %cst_147 = arith.constant 1.000000e+00 : f32
    %986 = vector.broadcast %cst_147 : f32 to vector<4x64xf32>
    %987 = arith.addf %986, %985 : vector<4x64xf32>
    %988 = arith.divf %986, %987 : vector<4x64xf32>
    %989 = vector.extract_strided_slice %965 {offsets = [0, 128], sizes = [4, 64], strides = [1, 1]} : vector<4x192xf32> to vector<4x64xf32>
    %990 = arith.mulf %981, %989 : vector<4x64xf32>
    %991 = arith.addf %974, %990 : vector<4x64xf32>
    %992 = math.tanh %991 : vector<4x64xf32>
    %cst_148 = arith.constant 1.000000e+00 : f32
    %993 = vector.broadcast %cst_148 : f32 to vector<4x64xf32>
    %994 = arith.subf %993, %988 : vector<4x64xf32>
    %995 = arith.mulf %994, %992 : vector<4x64xf32>
    %996 = arith.mulf %988, %962 : vector<4x64xf32>
    %997 = arith.addf %995, %996 : vector<4x64xf32>
    %998 = arith.mulf %7, %997 : vector<4x64xf32>
    %cst_149 = arith.constant 1.000000e+00 : f32
    %999 = vector.broadcast %cst_149 : f32 to vector<4x64xf32>
    %1000 = arith.subf %999, %7 : vector<4x64xf32>
    %1001 = arith.mulf %1000, %962 : vector<4x64xf32>
    %1002 = arith.addf %998, %1001 : vector<4x64xf32>
    %cst_150 = arith.constant dense<0.000000e+00> : vector<4x192xf32>
    %1003 = tpu.matmul %1002, %720, %cst_150 {dimension_numbers = #tpu.dot_dimension_numbers<[1], [0], [0], [1], [0, 0, 1, 1], [], []>} : vector<4x64xf32>, vector<64x192xf32>, vector<4x192xf32> -> vector<4x192xf32>
    %1004 = vector.broadcast %721 : vector<1x192xf32> to vector<4x192xf32>
    %1005 = arith.addf %1003, %1004 : vector<4x192xf32>
    %1006 = vector.extract_strided_slice %719 {offsets = [0, 0], sizes = [4, 32], strides = [1, 1]} : vector<4x192xf32> to vector<4x32xf32>
    %1007 = vector.extract_strided_slice %719 {offsets = [0, 96], sizes = [4, 32], strides = [1, 1]} : vector<4x192xf32> to vector<4x32xf32>
    %1008 = tpu.concatenate %1006, %1007 in 1 : vector<4x32xf32>, vector<4x32xf32> -> vector<4x64xf32>
    %1009 = vector.extract_strided_slice %719 {offsets = [0, 32], sizes = [4, 32], strides = [1, 1]} : vector<4x192xf32> to vector<4x32xf32>
    %1010 = vector.extract_strided_slice %719 {offsets = [0, 128], sizes = [4, 32], strides = [1, 1]} : vector<4x192xf32> to vector<4x32xf32>
    %1011 = tpu.concatenate %1009, %1010 in 1 : vector<4x32xf32>, vector<4x32xf32> -> vector<4x64xf32>
    %1012 = vector.extract_strided_slice %719 {offsets = [0, 64], sizes = [4, 32], strides = [1, 1]} : vector<4x192xf32> to vector<4x32xf32>
    %1013 = vector.extract_strided_slice %719 {offsets = [0, 160], sizes = [4, 32], strides = [1, 1]} : vector<4x192xf32> to vector<4x32xf32>
    %1014 = tpu.concatenate %1012, %1013 in 1 : vector<4x32xf32>, vector<4x32xf32> -> vector<4x64xf32>
    %1015 = vector.extract_strided_slice %1005 {offsets = [0, 0], sizes = [4, 64], strides = [1, 1]} : vector<4x192xf32> to vector<4x64xf32>
    %1016 = arith.addf %1008, %1015 : vector<4x64xf32>
    %1017 = arith.negf %1016 : vector<4x64xf32>
    %1018 = math.exp %1017 : vector<4x64xf32>
    %cst_151 = arith.constant 1.000000e+00 : f32
    %1019 = vector.broadcast %cst_151 : f32 to vector<4x64xf32>
    %1020 = arith.addf %1019, %1018 : vector<4x64xf32>
    %1021 = arith.divf %1019, %1020 : vector<4x64xf32>
    %1022 = vector.extract_strided_slice %1005 {offsets = [0, 64], sizes = [4, 64], strides = [1, 1]} : vector<4x192xf32> to vector<4x64xf32>
    %1023 = arith.addf %1011, %1022 : vector<4x64xf32>
    %1024 = arith.negf %1023 : vector<4x64xf32>
    %1025 = math.exp %1024 : vector<4x64xf32>
    %cst_152 = arith.constant 1.000000e+00 : f32
    %1026 = vector.broadcast %cst_152 : f32 to vector<4x64xf32>
    %1027 = arith.addf %1026, %1025 : vector<4x64xf32>
    %1028 = arith.divf %1026, %1027 : vector<4x64xf32>
    %1029 = vector.extract_strided_slice %1005 {offsets = [0, 128], sizes = [4, 64], strides = [1, 1]} : vector<4x192xf32> to vector<4x64xf32>
    %1030 = arith.mulf %1021, %1029 : vector<4x64xf32>
    %1031 = arith.addf %1014, %1030 : vector<4x64xf32>
    %1032 = math.tanh %1031 : vector<4x64xf32>
    %cst_153 = arith.constant 1.000000e+00 : f32
    %1033 = vector.broadcast %cst_153 : f32 to vector<4x64xf32>
    %1034 = arith.subf %1033, %1028 : vector<4x64xf32>
    %1035 = arith.mulf %1034, %1032 : vector<4x64xf32>
    %1036 = arith.mulf %1028, %1002 : vector<4x64xf32>
    %1037 = arith.addf %1035, %1036 : vector<4x64xf32>
    %1038 = arith.mulf %8, %1037 : vector<4x64xf32>
    %cst_154 = arith.constant 1.000000e+00 : f32
    %1039 = vector.broadcast %cst_154 : f32 to vector<4x64xf32>
    %1040 = arith.subf %1039, %8 : vector<4x64xf32>
    %1041 = arith.mulf %1040, %1002 : vector<4x64xf32>
    %1042 = arith.addf %1038, %1041 : vector<4x64xf32>
    %1043 = vector.extract_strided_slice %758 {offsets = [0, 0], sizes = [4, 32], strides = [1, 1]} : vector<4x64xf32> to vector<4x32xf32>
    %1044 = vector.extract_strided_slice %1038 {offsets = [0, 32], sizes = [4, 32], strides = [1, 1]} : vector<4x64xf32> to vector<4x32xf32>
    %1045 = tpu.concatenate %1043, %1044 in 1 : vector<4x32xf32>, vector<4x32xf32> -> vector<4x64xf32>
    %1046 = vector.extract_strided_slice %798 {offsets = [0, 0], sizes = [4, 32], strides = [1, 1]} : vector<4x64xf32> to vector<4x32xf32>
    %1047 = vector.extract_strided_slice %998 {offsets = [0, 32], sizes = [4, 32], strides = [1, 1]} : vector<4x64xf32> to vector<4x32xf32>
    %1048 = tpu.concatenate %1046, %1047 in 1 : vector<4x32xf32>, vector<4x32xf32> -> vector<4x64xf32>
    %1049 = vector.extract_strided_slice %838 {offsets = [0, 0], sizes = [4, 32], strides = [1, 1]} : vector<4x64xf32> to vector<4x32xf32>
    %1050 = vector.extract_strided_slice %958 {offsets = [0, 32], sizes = [4, 32], strides = [1, 1]} : vector<4x64xf32> to vector<4x32xf32>
    %1051 = tpu.concatenate %1049, %1050 in 1 : vector<4x32xf32>, vector<4x32xf32> -> vector<4x64xf32>
    %1052 = vector.extract_strided_slice %878 {offsets = [0, 0], sizes = [4, 32], strides = [1, 1]} : vector<4x64xf32> to vector<4x32xf32>
    %1053 = vector.extract_strided_slice %918 {offsets = [0, 32], sizes = [4, 32], strides = [1, 1]} : vector<4x64xf32> to vector<4x32xf32>
    %1054 = tpu.concatenate %1052, %1053 in 1 : vector<4x32xf32>, vector<4x32xf32> -> vector<4x64xf32>
    %1055 = vector.extract_strided_slice %918 {offsets = [0, 0], sizes = [4, 32], strides = [1, 1]} : vector<4x64xf32> to vector<4x32xf32>
    %1056 = vector.extract_strided_slice %878 {offsets = [0, 32], sizes = [4, 32], strides = [1, 1]} : vector<4x64xf32> to vector<4x32xf32>
    %1057 = tpu.concatenate %1055, %1056 in 1 : vector<4x32xf32>, vector<4x32xf32> -> vector<4x64xf32>
    %1058 = vector.extract_strided_slice %958 {offsets = [0, 0], sizes = [4, 32], strides = [1, 1]} : vector<4x64xf32> to vector<4x32xf32>
    %1059 = vector.extract_strided_slice %838 {offsets = [0, 32], sizes = [4, 32], strides = [1, 1]} : vector<4x64xf32> to vector<4x32xf32>
    %1060 = tpu.concatenate %1058, %1059 in 1 : vector<4x32xf32>, vector<4x32xf32> -> vector<4x64xf32>
    %1061 = vector.extract_strided_slice %998 {offsets = [0, 0], sizes = [4, 32], strides = [1, 1]} : vector<4x64xf32> to vector<4x32xf32>
    %1062 = vector.extract_strided_slice %798 {offsets = [0, 32], sizes = [4, 32], strides = [1, 1]} : vector<4x64xf32> to vector<4x32xf32>
    %1063 = tpu.concatenate %1061, %1062 in 1 : vector<4x32xf32>, vector<4x32xf32> -> vector<4x64xf32>
    %1064 = vector.extract_strided_slice %1038 {offsets = [0, 0], sizes = [4, 32], strides = [1, 1]} : vector<4x64xf32> to vector<4x32xf32>
    %1065 = vector.extract_strided_slice %758 {offsets = [0, 32], sizes = [4, 32], strides = [1, 1]} : vector<4x64xf32> to vector<4x32xf32>
    %1066 = tpu.concatenate %1064, %1065 in 1 : vector<4x32xf32>, vector<4x32xf32> -> vector<4x64xf32>
    %1067 = tpu.concatenate %1045, %1048, %1051, %1054, %1057, %1060, %1063, %1066 in 0 : vector<4x64xf32>, vector<4x64xf32>, vector<4x64xf32>, vector<4x64xf32>, vector<4x64xf32>, vector<4x64xf32>, vector<4x64xf32>, vector<4x64xf32> -> vector<32x64xf32>
    %c0_155 = arith.constant 0 : index
    %c0_156 = arith.constant 0 : index
    %1068 = vector.load %arg16[%c0_155, %c0_156] : memref<64x192xf32, #tpu.memory_space<vmem>>, vector<64x192xf32>
    %cst_157 = arith.constant dense<0.000000e+00> : vector<32x192xf32>
    %1069 = tpu.matmul %1067, %1068, %cst_157 {dimension_numbers = #tpu.dot_dimension_numbers<[1], [0], [0], [1], [0, 0, 1, 1], [], []>} : vector<32x64xf32>, vector<64x192xf32>, vector<32x192xf32> -> vector<32x192xf32>
    %c0_158 = arith.constant 0 : index
    %c0_159 = arith.constant 0 : index
    %1070 = vector.load %arg18[%c0_158, %c0_159] : memref<1x192xf32, #tpu.memory_space<vmem>>, vector<1x192xf32>
    %1071 = vector.broadcast %1070 : vector<1x192xf32> to vector<32x192xf32>
    %1072 = arith.addf %1069, %1071 : vector<32x192xf32>
    %1073 = vector.extract_strided_slice %1072 {offsets = [0, 0], sizes = [4, 192], strides = [1, 1]} : vector<32x192xf32> to vector<4x192xf32>
    %1074 = vector.extract_strided_slice %1072 {offsets = [4, 0], sizes = [4, 192], strides = [1, 1]} : vector<32x192xf32> to vector<4x192xf32>
    %1075 = vector.extract_strided_slice %1072 {offsets = [8, 0], sizes = [4, 192], strides = [1, 1]} : vector<32x192xf32> to vector<4x192xf32>
    %1076 = vector.extract_strided_slice %1072 {offsets = [12, 0], sizes = [4, 192], strides = [1, 1]} : vector<32x192xf32> to vector<4x192xf32>
    %1077 = vector.extract_strided_slice %1072 {offsets = [16, 0], sizes = [4, 192], strides = [1, 1]} : vector<32x192xf32> to vector<4x192xf32>
    %1078 = vector.extract_strided_slice %1072 {offsets = [20, 0], sizes = [4, 192], strides = [1, 1]} : vector<32x192xf32> to vector<4x192xf32>
    %1079 = vector.extract_strided_slice %1072 {offsets = [24, 0], sizes = [4, 192], strides = [1, 1]} : vector<32x192xf32> to vector<4x192xf32>
    %1080 = vector.extract_strided_slice %1072 {offsets = [28, 0], sizes = [4, 192], strides = [1, 1]} : vector<32x192xf32> to vector<4x192xf32>
    %c0_160 = arith.constant 0 : index
    %c0_161 = arith.constant 0 : index
    %1081 = vector.load %arg17[%c0_160, %c0_161] : memref<64x192xf32, #tpu.memory_space<vmem>>, vector<64x192xf32>
    %c0_162 = arith.constant 0 : index
    %c0_163 = arith.constant 0 : index
    %1082 = vector.load %arg19[%c0_162, %c0_163] : memref<1x192xf32, #tpu.memory_space<vmem>>, vector<1x192xf32>
    %cst_164 = arith.constant 0.000000e+00 : f32
    %1083 = vector.broadcast %cst_164 : f32 to vector<4x64xf32>
    %cst_165 = arith.constant dense<0.000000e+00> : vector<4x192xf32>
    %1084 = tpu.matmul %1083, %1081, %cst_165 {dimension_numbers = #tpu.dot_dimension_numbers<[1], [0], [0], [1], [0, 0, 1, 1], [], []>} : vector<4x64xf32>, vector<64x192xf32>, vector<4x192xf32> -> vector<4x192xf32>
    %1085 = vector.broadcast %1082 : vector<1x192xf32> to vector<4x192xf32>
    %1086 = arith.addf %1084, %1085 : vector<4x192xf32>
    %1087 = vector.extract_strided_slice %1073 {offsets = [0, 0], sizes = [4, 32], strides = [1, 1]} : vector<4x192xf32> to vector<4x32xf32>
    %1088 = vector.extract_strided_slice %1080 {offsets = [0, 96], sizes = [4, 32], strides = [1, 1]} : vector<4x192xf32> to vector<4x32xf32>
    %1089 = tpu.concatenate %1087, %1088 in 1 : vector<4x32xf32>, vector<4x32xf32> -> vector<4x64xf32>
    %1090 = vector.extract_strided_slice %1073 {offsets = [0, 32], sizes = [4, 32], strides = [1, 1]} : vector<4x192xf32> to vector<4x32xf32>
    %1091 = vector.extract_strided_slice %1080 {offsets = [0, 128], sizes = [4, 32], strides = [1, 1]} : vector<4x192xf32> to vector<4x32xf32>
    %1092 = tpu.concatenate %1090, %1091 in 1 : vector<4x32xf32>, vector<4x32xf32> -> vector<4x64xf32>
    %1093 = vector.extract_strided_slice %1073 {offsets = [0, 64], sizes = [4, 32], strides = [1, 1]} : vector<4x192xf32> to vector<4x32xf32>
    %1094 = vector.extract_strided_slice %1080 {offsets = [0, 160], sizes = [4, 32], strides = [1, 1]} : vector<4x192xf32> to vector<4x32xf32>
    %1095 = tpu.concatenate %1093, %1094 in 1 : vector<4x32xf32>, vector<4x32xf32> -> vector<4x64xf32>
    %1096 = vector.extract_strided_slice %1086 {offsets = [0, 0], sizes = [4, 64], strides = [1, 1]} : vector<4x192xf32> to vector<4x64xf32>
    %1097 = arith.addf %1089, %1096 : vector<4x64xf32>
    %1098 = arith.negf %1097 : vector<4x64xf32>
    %1099 = math.exp %1098 : vector<4x64xf32>
    %cst_166 = arith.constant 1.000000e+00 : f32
    %1100 = vector.broadcast %cst_166 : f32 to vector<4x64xf32>
    %1101 = arith.addf %1100, %1099 : vector<4x64xf32>
    %1102 = arith.divf %1100, %1101 : vector<4x64xf32>
    %1103 = vector.extract_strided_slice %1086 {offsets = [0, 64], sizes = [4, 64], strides = [1, 1]} : vector<4x192xf32> to vector<4x64xf32>
    %1104 = arith.addf %1092, %1103 : vector<4x64xf32>
    %1105 = arith.negf %1104 : vector<4x64xf32>
    %1106 = math.exp %1105 : vector<4x64xf32>
    %cst_167 = arith.constant 1.000000e+00 : f32
    %1107 = vector.broadcast %cst_167 : f32 to vector<4x64xf32>
    %1108 = arith.addf %1107, %1106 : vector<4x64xf32>
    %1109 = arith.divf %1107, %1108 : vector<4x64xf32>
    %1110 = vector.extract_strided_slice %1086 {offsets = [0, 128], sizes = [4, 64], strides = [1, 1]} : vector<4x192xf32> to vector<4x64xf32>
    %1111 = arith.mulf %1102, %1110 : vector<4x64xf32>
    %1112 = arith.addf %1095, %1111 : vector<4x64xf32>
    %1113 = math.tanh %1112 : vector<4x64xf32>
    %cst_168 = arith.constant 1.000000e+00 : f32
    %1114 = vector.broadcast %cst_168 : f32 to vector<4x64xf32>
    %1115 = arith.subf %1114, %1109 : vector<4x64xf32>
    %1116 = arith.mulf %1115, %1113 : vector<4x64xf32>
    %1117 = arith.mulf %1109, %1083 : vector<4x64xf32>
    %1118 = arith.addf %1116, %1117 : vector<4x64xf32>
    %1119 = arith.mulf %1, %1118 : vector<4x64xf32>
    %cst_169 = arith.constant 1.000000e+00 : f32
    %1120 = vector.broadcast %cst_169 : f32 to vector<4x64xf32>
    %1121 = arith.subf %1120, %1 : vector<4x64xf32>
    %1122 = arith.mulf %1121, %1083 : vector<4x64xf32>
    %1123 = arith.addf %1119, %1122 : vector<4x64xf32>
    %cst_170 = arith.constant dense<0.000000e+00> : vector<4x192xf32>
    %1124 = tpu.matmul %1123, %1081, %cst_170 {dimension_numbers = #tpu.dot_dimension_numbers<[1], [0], [0], [1], [0, 0, 1, 1], [], []>} : vector<4x64xf32>, vector<64x192xf32>, vector<4x192xf32> -> vector<4x192xf32>
    %1125 = vector.broadcast %1082 : vector<1x192xf32> to vector<4x192xf32>
    %1126 = arith.addf %1124, %1125 : vector<4x192xf32>
    %1127 = vector.extract_strided_slice %1074 {offsets = [0, 0], sizes = [4, 32], strides = [1, 1]} : vector<4x192xf32> to vector<4x32xf32>
    %1128 = vector.extract_strided_slice %1079 {offsets = [0, 96], sizes = [4, 32], strides = [1, 1]} : vector<4x192xf32> to vector<4x32xf32>
    %1129 = tpu.concatenate %1127, %1128 in 1 : vector<4x32xf32>, vector<4x32xf32> -> vector<4x64xf32>
    %1130 = vector.extract_strided_slice %1074 {offsets = [0, 32], sizes = [4, 32], strides = [1, 1]} : vector<4x192xf32> to vector<4x32xf32>
    %1131 = vector.extract_strided_slice %1079 {offsets = [0, 128], sizes = [4, 32], strides = [1, 1]} : vector<4x192xf32> to vector<4x32xf32>
    %1132 = tpu.concatenate %1130, %1131 in 1 : vector<4x32xf32>, vector<4x32xf32> -> vector<4x64xf32>
    %1133 = vector.extract_strided_slice %1074 {offsets = [0, 64], sizes = [4, 32], strides = [1, 1]} : vector<4x192xf32> to vector<4x32xf32>
    %1134 = vector.extract_strided_slice %1079 {offsets = [0, 160], sizes = [4, 32], strides = [1, 1]} : vector<4x192xf32> to vector<4x32xf32>
    %1135 = tpu.concatenate %1133, %1134 in 1 : vector<4x32xf32>, vector<4x32xf32> -> vector<4x64xf32>
    %1136 = vector.extract_strided_slice %1126 {offsets = [0, 0], sizes = [4, 64], strides = [1, 1]} : vector<4x192xf32> to vector<4x64xf32>
    %1137 = arith.addf %1129, %1136 : vector<4x64xf32>
    %1138 = arith.negf %1137 : vector<4x64xf32>
    %1139 = math.exp %1138 : vector<4x64xf32>
    %cst_171 = arith.constant 1.000000e+00 : f32
    %1140 = vector.broadcast %cst_171 : f32 to vector<4x64xf32>
    %1141 = arith.addf %1140, %1139 : vector<4x64xf32>
    %1142 = arith.divf %1140, %1141 : vector<4x64xf32>
    %1143 = vector.extract_strided_slice %1126 {offsets = [0, 64], sizes = [4, 64], strides = [1, 1]} : vector<4x192xf32> to vector<4x64xf32>
    %1144 = arith.addf %1132, %1143 : vector<4x64xf32>
    %1145 = arith.negf %1144 : vector<4x64xf32>
    %1146 = math.exp %1145 : vector<4x64xf32>
    %cst_172 = arith.constant 1.000000e+00 : f32
    %1147 = vector.broadcast %cst_172 : f32 to vector<4x64xf32>
    %1148 = arith.addf %1147, %1146 : vector<4x64xf32>
    %1149 = arith.divf %1147, %1148 : vector<4x64xf32>
    %1150 = vector.extract_strided_slice %1126 {offsets = [0, 128], sizes = [4, 64], strides = [1, 1]} : vector<4x192xf32> to vector<4x64xf32>
    %1151 = arith.mulf %1142, %1150 : vector<4x64xf32>
    %1152 = arith.addf %1135, %1151 : vector<4x64xf32>
    %1153 = math.tanh %1152 : vector<4x64xf32>
    %cst_173 = arith.constant 1.000000e+00 : f32
    %1154 = vector.broadcast %cst_173 : f32 to vector<4x64xf32>
    %1155 = arith.subf %1154, %1149 : vector<4x64xf32>
    %1156 = arith.mulf %1155, %1153 : vector<4x64xf32>
    %1157 = arith.mulf %1149, %1123 : vector<4x64xf32>
    %1158 = arith.addf %1156, %1157 : vector<4x64xf32>
    %1159 = arith.mulf %2, %1158 : vector<4x64xf32>
    %cst_174 = arith.constant 1.000000e+00 : f32
    %1160 = vector.broadcast %cst_174 : f32 to vector<4x64xf32>
    %1161 = arith.subf %1160, %2 : vector<4x64xf32>
    %1162 = arith.mulf %1161, %1123 : vector<4x64xf32>
    %1163 = arith.addf %1159, %1162 : vector<4x64xf32>
    %cst_175 = arith.constant dense<0.000000e+00> : vector<4x192xf32>
    %1164 = tpu.matmul %1163, %1081, %cst_175 {dimension_numbers = #tpu.dot_dimension_numbers<[1], [0], [0], [1], [0, 0, 1, 1], [], []>} : vector<4x64xf32>, vector<64x192xf32>, vector<4x192xf32> -> vector<4x192xf32>
    %1165 = vector.broadcast %1082 : vector<1x192xf32> to vector<4x192xf32>
    %1166 = arith.addf %1164, %1165 : vector<4x192xf32>
    %1167 = vector.extract_strided_slice %1075 {offsets = [0, 0], sizes = [4, 32], strides = [1, 1]} : vector<4x192xf32> to vector<4x32xf32>
    %1168 = vector.extract_strided_slice %1078 {offsets = [0, 96], sizes = [4, 32], strides = [1, 1]} : vector<4x192xf32> to vector<4x32xf32>
    %1169 = tpu.concatenate %1167, %1168 in 1 : vector<4x32xf32>, vector<4x32xf32> -> vector<4x64xf32>
    %1170 = vector.extract_strided_slice %1075 {offsets = [0, 32], sizes = [4, 32], strides = [1, 1]} : vector<4x192xf32> to vector<4x32xf32>
    %1171 = vector.extract_strided_slice %1078 {offsets = [0, 128], sizes = [4, 32], strides = [1, 1]} : vector<4x192xf32> to vector<4x32xf32>
    %1172 = tpu.concatenate %1170, %1171 in 1 : vector<4x32xf32>, vector<4x32xf32> -> vector<4x64xf32>
    %1173 = vector.extract_strided_slice %1075 {offsets = [0, 64], sizes = [4, 32], strides = [1, 1]} : vector<4x192xf32> to vector<4x32xf32>
    %1174 = vector.extract_strided_slice %1078 {offsets = [0, 160], sizes = [4, 32], strides = [1, 1]} : vector<4x192xf32> to vector<4x32xf32>
    %1175 = tpu.concatenate %1173, %1174 in 1 : vector<4x32xf32>, vector<4x32xf32> -> vector<4x64xf32>
    %1176 = vector.extract_strided_slice %1166 {offsets = [0, 0], sizes = [4, 64], strides = [1, 1]} : vector<4x192xf32> to vector<4x64xf32>
    %1177 = arith.addf %1169, %1176 : vector<4x64xf32>
    %1178 = arith.negf %1177 : vector<4x64xf32>
    %1179 = math.exp %1178 : vector<4x64xf32>
    %cst_176 = arith.constant 1.000000e+00 : f32
    %1180 = vector.broadcast %cst_176 : f32 to vector<4x64xf32>
    %1181 = arith.addf %1180, %1179 : vector<4x64xf32>
    %1182 = arith.divf %1180, %1181 : vector<4x64xf32>
    %1183 = vector.extract_strided_slice %1166 {offsets = [0, 64], sizes = [4, 64], strides = [1, 1]} : vector<4x192xf32> to vector<4x64xf32>
    %1184 = arith.addf %1172, %1183 : vector<4x64xf32>
    %1185 = arith.negf %1184 : vector<4x64xf32>
    %1186 = math.exp %1185 : vector<4x64xf32>
    %cst_177 = arith.constant 1.000000e+00 : f32
    %1187 = vector.broadcast %cst_177 : f32 to vector<4x64xf32>
    %1188 = arith.addf %1187, %1186 : vector<4x64xf32>
    %1189 = arith.divf %1187, %1188 : vector<4x64xf32>
    %1190 = vector.extract_strided_slice %1166 {offsets = [0, 128], sizes = [4, 64], strides = [1, 1]} : vector<4x192xf32> to vector<4x64xf32>
    %1191 = arith.mulf %1182, %1190 : vector<4x64xf32>
    %1192 = arith.addf %1175, %1191 : vector<4x64xf32>
    %1193 = math.tanh %1192 : vector<4x64xf32>
    %cst_178 = arith.constant 1.000000e+00 : f32
    %1194 = vector.broadcast %cst_178 : f32 to vector<4x64xf32>
    %1195 = arith.subf %1194, %1189 : vector<4x64xf32>
    %1196 = arith.mulf %1195, %1193 : vector<4x64xf32>
    %1197 = arith.mulf %1189, %1163 : vector<4x64xf32>
    %1198 = arith.addf %1196, %1197 : vector<4x64xf32>
    %1199 = arith.mulf %3, %1198 : vector<4x64xf32>
    %cst_179 = arith.constant 1.000000e+00 : f32
    %1200 = vector.broadcast %cst_179 : f32 to vector<4x64xf32>
    %1201 = arith.subf %1200, %3 : vector<4x64xf32>
    %1202 = arith.mulf %1201, %1163 : vector<4x64xf32>
    %1203 = arith.addf %1199, %1202 : vector<4x64xf32>
    %cst_180 = arith.constant dense<0.000000e+00> : vector<4x192xf32>
    %1204 = tpu.matmul %1203, %1081, %cst_180 {dimension_numbers = #tpu.dot_dimension_numbers<[1], [0], [0], [1], [0, 0, 1, 1], [], []>} : vector<4x64xf32>, vector<64x192xf32>, vector<4x192xf32> -> vector<4x192xf32>
    %1205 = vector.broadcast %1082 : vector<1x192xf32> to vector<4x192xf32>
    %1206 = arith.addf %1204, %1205 : vector<4x192xf32>
    %1207 = vector.extract_strided_slice %1076 {offsets = [0, 0], sizes = [4, 32], strides = [1, 1]} : vector<4x192xf32> to vector<4x32xf32>
    %1208 = vector.extract_strided_slice %1077 {offsets = [0, 96], sizes = [4, 32], strides = [1, 1]} : vector<4x192xf32> to vector<4x32xf32>
    %1209 = tpu.concatenate %1207, %1208 in 1 : vector<4x32xf32>, vector<4x32xf32> -> vector<4x64xf32>
    %1210 = vector.extract_strided_slice %1076 {offsets = [0, 32], sizes = [4, 32], strides = [1, 1]} : vector<4x192xf32> to vector<4x32xf32>
    %1211 = vector.extract_strided_slice %1077 {offsets = [0, 128], sizes = [4, 32], strides = [1, 1]} : vector<4x192xf32> to vector<4x32xf32>
    %1212 = tpu.concatenate %1210, %1211 in 1 : vector<4x32xf32>, vector<4x32xf32> -> vector<4x64xf32>
    %1213 = vector.extract_strided_slice %1076 {offsets = [0, 64], sizes = [4, 32], strides = [1, 1]} : vector<4x192xf32> to vector<4x32xf32>
    %1214 = vector.extract_strided_slice %1077 {offsets = [0, 160], sizes = [4, 32], strides = [1, 1]} : vector<4x192xf32> to vector<4x32xf32>
    %1215 = tpu.concatenate %1213, %1214 in 1 : vector<4x32xf32>, vector<4x32xf32> -> vector<4x64xf32>
    %1216 = vector.extract_strided_slice %1206 {offsets = [0, 0], sizes = [4, 64], strides = [1, 1]} : vector<4x192xf32> to vector<4x64xf32>
    %1217 = arith.addf %1209, %1216 : vector<4x64xf32>
    %1218 = arith.negf %1217 : vector<4x64xf32>
    %1219 = math.exp %1218 : vector<4x64xf32>
    %cst_181 = arith.constant 1.000000e+00 : f32
    %1220 = vector.broadcast %cst_181 : f32 to vector<4x64xf32>
    %1221 = arith.addf %1220, %1219 : vector<4x64xf32>
    %1222 = arith.divf %1220, %1221 : vector<4x64xf32>
    %1223 = vector.extract_strided_slice %1206 {offsets = [0, 64], sizes = [4, 64], strides = [1, 1]} : vector<4x192xf32> to vector<4x64xf32>
    %1224 = arith.addf %1212, %1223 : vector<4x64xf32>
    %1225 = arith.negf %1224 : vector<4x64xf32>
    %1226 = math.exp %1225 : vector<4x64xf32>
    %cst_182 = arith.constant 1.000000e+00 : f32
    %1227 = vector.broadcast %cst_182 : f32 to vector<4x64xf32>
    %1228 = arith.addf %1227, %1226 : vector<4x64xf32>
    %1229 = arith.divf %1227, %1228 : vector<4x64xf32>
    %1230 = vector.extract_strided_slice %1206 {offsets = [0, 128], sizes = [4, 64], strides = [1, 1]} : vector<4x192xf32> to vector<4x64xf32>
    %1231 = arith.mulf %1222, %1230 : vector<4x64xf32>
    %1232 = arith.addf %1215, %1231 : vector<4x64xf32>
    %1233 = math.tanh %1232 : vector<4x64xf32>
    %cst_183 = arith.constant 1.000000e+00 : f32
    %1234 = vector.broadcast %cst_183 : f32 to vector<4x64xf32>
    %1235 = arith.subf %1234, %1229 : vector<4x64xf32>
    %1236 = arith.mulf %1235, %1233 : vector<4x64xf32>
    %1237 = arith.mulf %1229, %1203 : vector<4x64xf32>
    %1238 = arith.addf %1236, %1237 : vector<4x64xf32>
    %1239 = arith.mulf %4, %1238 : vector<4x64xf32>
    %cst_184 = arith.constant 1.000000e+00 : f32
    %1240 = vector.broadcast %cst_184 : f32 to vector<4x64xf32>
    %1241 = arith.subf %1240, %4 : vector<4x64xf32>
    %1242 = arith.mulf %1241, %1203 : vector<4x64xf32>
    %1243 = arith.addf %1239, %1242 : vector<4x64xf32>
    %cst_185 = arith.constant dense<0.000000e+00> : vector<4x192xf32>
    %1244 = tpu.matmul %1243, %1081, %cst_185 {dimension_numbers = #tpu.dot_dimension_numbers<[1], [0], [0], [1], [0, 0, 1, 1], [], []>} : vector<4x64xf32>, vector<64x192xf32>, vector<4x192xf32> -> vector<4x192xf32>
    %1245 = vector.broadcast %1082 : vector<1x192xf32> to vector<4x192xf32>
    %1246 = arith.addf %1244, %1245 : vector<4x192xf32>
    %1247 = vector.extract_strided_slice %1077 {offsets = [0, 0], sizes = [4, 32], strides = [1, 1]} : vector<4x192xf32> to vector<4x32xf32>
    %1248 = vector.extract_strided_slice %1076 {offsets = [0, 96], sizes = [4, 32], strides = [1, 1]} : vector<4x192xf32> to vector<4x32xf32>
    %1249 = tpu.concatenate %1247, %1248 in 1 : vector<4x32xf32>, vector<4x32xf32> -> vector<4x64xf32>
    %1250 = vector.extract_strided_slice %1077 {offsets = [0, 32], sizes = [4, 32], strides = [1, 1]} : vector<4x192xf32> to vector<4x32xf32>
    %1251 = vector.extract_strided_slice %1076 {offsets = [0, 128], sizes = [4, 32], strides = [1, 1]} : vector<4x192xf32> to vector<4x32xf32>
    %1252 = tpu.concatenate %1250, %1251 in 1 : vector<4x32xf32>, vector<4x32xf32> -> vector<4x64xf32>
    %1253 = vector.extract_strided_slice %1077 {offsets = [0, 64], sizes = [4, 32], strides = [1, 1]} : vector<4x192xf32> to vector<4x32xf32>
    %1254 = vector.extract_strided_slice %1076 {offsets = [0, 160], sizes = [4, 32], strides = [1, 1]} : vector<4x192xf32> to vector<4x32xf32>
    %1255 = tpu.concatenate %1253, %1254 in 1 : vector<4x32xf32>, vector<4x32xf32> -> vector<4x64xf32>
    %1256 = vector.extract_strided_slice %1246 {offsets = [0, 0], sizes = [4, 64], strides = [1, 1]} : vector<4x192xf32> to vector<4x64xf32>
    %1257 = arith.addf %1249, %1256 : vector<4x64xf32>
    %1258 = arith.negf %1257 : vector<4x64xf32>
    %1259 = math.exp %1258 : vector<4x64xf32>
    %cst_186 = arith.constant 1.000000e+00 : f32
    %1260 = vector.broadcast %cst_186 : f32 to vector<4x64xf32>
    %1261 = arith.addf %1260, %1259 : vector<4x64xf32>
    %1262 = arith.divf %1260, %1261 : vector<4x64xf32>
    %1263 = vector.extract_strided_slice %1246 {offsets = [0, 64], sizes = [4, 64], strides = [1, 1]} : vector<4x192xf32> to vector<4x64xf32>
    %1264 = arith.addf %1252, %1263 : vector<4x64xf32>
    %1265 = arith.negf %1264 : vector<4x64xf32>
    %1266 = math.exp %1265 : vector<4x64xf32>
    %cst_187 = arith.constant 1.000000e+00 : f32
    %1267 = vector.broadcast %cst_187 : f32 to vector<4x64xf32>
    %1268 = arith.addf %1267, %1266 : vector<4x64xf32>
    %1269 = arith.divf %1267, %1268 : vector<4x64xf32>
    %1270 = vector.extract_strided_slice %1246 {offsets = [0, 128], sizes = [4, 64], strides = [1, 1]} : vector<4x192xf32> to vector<4x64xf32>
    %1271 = arith.mulf %1262, %1270 : vector<4x64xf32>
    %1272 = arith.addf %1255, %1271 : vector<4x64xf32>
    %1273 = math.tanh %1272 : vector<4x64xf32>
    %cst_188 = arith.constant 1.000000e+00 : f32
    %1274 = vector.broadcast %cst_188 : f32 to vector<4x64xf32>
    %1275 = arith.subf %1274, %1269 : vector<4x64xf32>
    %1276 = arith.mulf %1275, %1273 : vector<4x64xf32>
    %1277 = arith.mulf %1269, %1243 : vector<4x64xf32>
    %1278 = arith.addf %1276, %1277 : vector<4x64xf32>
    %1279 = arith.mulf %5, %1278 : vector<4x64xf32>
    %cst_189 = arith.constant 1.000000e+00 : f32
    %1280 = vector.broadcast %cst_189 : f32 to vector<4x64xf32>
    %1281 = arith.subf %1280, %5 : vector<4x64xf32>
    %1282 = arith.mulf %1281, %1243 : vector<4x64xf32>
    %1283 = arith.addf %1279, %1282 : vector<4x64xf32>
    %cst_190 = arith.constant dense<0.000000e+00> : vector<4x192xf32>
    %1284 = tpu.matmul %1283, %1081, %cst_190 {dimension_numbers = #tpu.dot_dimension_numbers<[1], [0], [0], [1], [0, 0, 1, 1], [], []>} : vector<4x64xf32>, vector<64x192xf32>, vector<4x192xf32> -> vector<4x192xf32>
    %1285 = vector.broadcast %1082 : vector<1x192xf32> to vector<4x192xf32>
    %1286 = arith.addf %1284, %1285 : vector<4x192xf32>
    %1287 = vector.extract_strided_slice %1078 {offsets = [0, 0], sizes = [4, 32], strides = [1, 1]} : vector<4x192xf32> to vector<4x32xf32>
    %1288 = vector.extract_strided_slice %1075 {offsets = [0, 96], sizes = [4, 32], strides = [1, 1]} : vector<4x192xf32> to vector<4x32xf32>
    %1289 = tpu.concatenate %1287, %1288 in 1 : vector<4x32xf32>, vector<4x32xf32> -> vector<4x64xf32>
    %1290 = vector.extract_strided_slice %1078 {offsets = [0, 32], sizes = [4, 32], strides = [1, 1]} : vector<4x192xf32> to vector<4x32xf32>
    %1291 = vector.extract_strided_slice %1075 {offsets = [0, 128], sizes = [4, 32], strides = [1, 1]} : vector<4x192xf32> to vector<4x32xf32>
    %1292 = tpu.concatenate %1290, %1291 in 1 : vector<4x32xf32>, vector<4x32xf32> -> vector<4x64xf32>
    %1293 = vector.extract_strided_slice %1078 {offsets = [0, 64], sizes = [4, 32], strides = [1, 1]} : vector<4x192xf32> to vector<4x32xf32>
    %1294 = vector.extract_strided_slice %1075 {offsets = [0, 160], sizes = [4, 32], strides = [1, 1]} : vector<4x192xf32> to vector<4x32xf32>
    %1295 = tpu.concatenate %1293, %1294 in 1 : vector<4x32xf32>, vector<4x32xf32> -> vector<4x64xf32>
    %1296 = vector.extract_strided_slice %1286 {offsets = [0, 0], sizes = [4, 64], strides = [1, 1]} : vector<4x192xf32> to vector<4x64xf32>
    %1297 = arith.addf %1289, %1296 : vector<4x64xf32>
    %1298 = arith.negf %1297 : vector<4x64xf32>
    %1299 = math.exp %1298 : vector<4x64xf32>
    %cst_191 = arith.constant 1.000000e+00 : f32
    %1300 = vector.broadcast %cst_191 : f32 to vector<4x64xf32>
    %1301 = arith.addf %1300, %1299 : vector<4x64xf32>
    %1302 = arith.divf %1300, %1301 : vector<4x64xf32>
    %1303 = vector.extract_strided_slice %1286 {offsets = [0, 64], sizes = [4, 64], strides = [1, 1]} : vector<4x192xf32> to vector<4x64xf32>
    %1304 = arith.addf %1292, %1303 : vector<4x64xf32>
    %1305 = arith.negf %1304 : vector<4x64xf32>
    %1306 = math.exp %1305 : vector<4x64xf32>
    %cst_192 = arith.constant 1.000000e+00 : f32
    %1307 = vector.broadcast %cst_192 : f32 to vector<4x64xf32>
    %1308 = arith.addf %1307, %1306 : vector<4x64xf32>
    %1309 = arith.divf %1307, %1308 : vector<4x64xf32>
    %1310 = vector.extract_strided_slice %1286 {offsets = [0, 128], sizes = [4, 64], strides = [1, 1]} : vector<4x192xf32> to vector<4x64xf32>
    %1311 = arith.mulf %1302, %1310 : vector<4x64xf32>
    %1312 = arith.addf %1295, %1311 : vector<4x64xf32>
    %1313 = math.tanh %1312 : vector<4x64xf32>
    %cst_193 = arith.constant 1.000000e+00 : f32
    %1314 = vector.broadcast %cst_193 : f32 to vector<4x64xf32>
    %1315 = arith.subf %1314, %1309 : vector<4x64xf32>
    %1316 = arith.mulf %1315, %1313 : vector<4x64xf32>
    %1317 = arith.mulf %1309, %1283 : vector<4x64xf32>
    %1318 = arith.addf %1316, %1317 : vector<4x64xf32>
    %1319 = arith.mulf %6, %1318 : vector<4x64xf32>
    %cst_194 = arith.constant 1.000000e+00 : f32
    %1320 = vector.broadcast %cst_194 : f32 to vector<4x64xf32>
    %1321 = arith.subf %1320, %6 : vector<4x64xf32>
    %1322 = arith.mulf %1321, %1283 : vector<4x64xf32>
    %1323 = arith.addf %1319, %1322 : vector<4x64xf32>
    %cst_195 = arith.constant dense<0.000000e+00> : vector<4x192xf32>
    %1324 = tpu.matmul %1323, %1081, %cst_195 {dimension_numbers = #tpu.dot_dimension_numbers<[1], [0], [0], [1], [0, 0, 1, 1], [], []>} : vector<4x64xf32>, vector<64x192xf32>, vector<4x192xf32> -> vector<4x192xf32>
    %1325 = vector.broadcast %1082 : vector<1x192xf32> to vector<4x192xf32>
    %1326 = arith.addf %1324, %1325 : vector<4x192xf32>
    %1327 = vector.extract_strided_slice %1079 {offsets = [0, 0], sizes = [4, 32], strides = [1, 1]} : vector<4x192xf32> to vector<4x32xf32>
    %1328 = vector.extract_strided_slice %1074 {offsets = [0, 96], sizes = [4, 32], strides = [1, 1]} : vector<4x192xf32> to vector<4x32xf32>
    %1329 = tpu.concatenate %1327, %1328 in 1 : vector<4x32xf32>, vector<4x32xf32> -> vector<4x64xf32>
    %1330 = vector.extract_strided_slice %1079 {offsets = [0, 32], sizes = [4, 32], strides = [1, 1]} : vector<4x192xf32> to vector<4x32xf32>
    %1331 = vector.extract_strided_slice %1074 {offsets = [0, 128], sizes = [4, 32], strides = [1, 1]} : vector<4x192xf32> to vector<4x32xf32>
    %1332 = tpu.concatenate %1330, %1331 in 1 : vector<4x32xf32>, vector<4x32xf32> -> vector<4x64xf32>
    %1333 = vector.extract_strided_slice %1079 {offsets = [0, 64], sizes = [4, 32], strides = [1, 1]} : vector<4x192xf32> to vector<4x32xf32>
    %1334 = vector.extract_strided_slice %1074 {offsets = [0, 160], sizes = [4, 32], strides = [1, 1]} : vector<4x192xf32> to vector<4x32xf32>
    %1335 = tpu.concatenate %1333, %1334 in 1 : vector<4x32xf32>, vector<4x32xf32> -> vector<4x64xf32>
    %1336 = vector.extract_strided_slice %1326 {offsets = [0, 0], sizes = [4, 64], strides = [1, 1]} : vector<4x192xf32> to vector<4x64xf32>
    %1337 = arith.addf %1329, %1336 : vector<4x64xf32>
    %1338 = arith.negf %1337 : vector<4x64xf32>
    %1339 = math.exp %1338 : vector<4x64xf32>
    %cst_196 = arith.constant 1.000000e+00 : f32
    %1340 = vector.broadcast %cst_196 : f32 to vector<4x64xf32>
    %1341 = arith.addf %1340, %1339 : vector<4x64xf32>
    %1342 = arith.divf %1340, %1341 : vector<4x64xf32>
    %1343 = vector.extract_strided_slice %1326 {offsets = [0, 64], sizes = [4, 64], strides = [1, 1]} : vector<4x192xf32> to vector<4x64xf32>
    %1344 = arith.addf %1332, %1343 : vector<4x64xf32>
    %1345 = arith.negf %1344 : vector<4x64xf32>
    %1346 = math.exp %1345 : vector<4x64xf32>
    %cst_197 = arith.constant 1.000000e+00 : f32
    %1347 = vector.broadcast %cst_197 : f32 to vector<4x64xf32>
    %1348 = arith.addf %1347, %1346 : vector<4x64xf32>
    %1349 = arith.divf %1347, %1348 : vector<4x64xf32>
    %1350 = vector.extract_strided_slice %1326 {offsets = [0, 128], sizes = [4, 64], strides = [1, 1]} : vector<4x192xf32> to vector<4x64xf32>
    %1351 = arith.mulf %1342, %1350 : vector<4x64xf32>
    %1352 = arith.addf %1335, %1351 : vector<4x64xf32>
    %1353 = math.tanh %1352 : vector<4x64xf32>
    %cst_198 = arith.constant 1.000000e+00 : f32
    %1354 = vector.broadcast %cst_198 : f32 to vector<4x64xf32>
    %1355 = arith.subf %1354, %1349 : vector<4x64xf32>
    %1356 = arith.mulf %1355, %1353 : vector<4x64xf32>
    %1357 = arith.mulf %1349, %1323 : vector<4x64xf32>
    %1358 = arith.addf %1356, %1357 : vector<4x64xf32>
    %1359 = arith.mulf %7, %1358 : vector<4x64xf32>
    %cst_199 = arith.constant 1.000000e+00 : f32
    %1360 = vector.broadcast %cst_199 : f32 to vector<4x64xf32>
    %1361 = arith.subf %1360, %7 : vector<4x64xf32>
    %1362 = arith.mulf %1361, %1323 : vector<4x64xf32>
    %1363 = arith.addf %1359, %1362 : vector<4x64xf32>
    %cst_200 = arith.constant dense<0.000000e+00> : vector<4x192xf32>
    %1364 = tpu.matmul %1363, %1081, %cst_200 {dimension_numbers = #tpu.dot_dimension_numbers<[1], [0], [0], [1], [0, 0, 1, 1], [], []>} : vector<4x64xf32>, vector<64x192xf32>, vector<4x192xf32> -> vector<4x192xf32>
    %1365 = vector.broadcast %1082 : vector<1x192xf32> to vector<4x192xf32>
    %1366 = arith.addf %1364, %1365 : vector<4x192xf32>
    %1367 = vector.extract_strided_slice %1080 {offsets = [0, 0], sizes = [4, 32], strides = [1, 1]} : vector<4x192xf32> to vector<4x32xf32>
    %1368 = vector.extract_strided_slice %1073 {offsets = [0, 96], sizes = [4, 32], strides = [1, 1]} : vector<4x192xf32> to vector<4x32xf32>
    %1369 = tpu.concatenate %1367, %1368 in 1 : vector<4x32xf32>, vector<4x32xf32> -> vector<4x64xf32>
    %1370 = vector.extract_strided_slice %1080 {offsets = [0, 32], sizes = [4, 32], strides = [1, 1]} : vector<4x192xf32> to vector<4x32xf32>
    %1371 = vector.extract_strided_slice %1073 {offsets = [0, 128], sizes = [4, 32], strides = [1, 1]} : vector<4x192xf32> to vector<4x32xf32>
    %1372 = tpu.concatenate %1370, %1371 in 1 : vector<4x32xf32>, vector<4x32xf32> -> vector<4x64xf32>
    %1373 = vector.extract_strided_slice %1080 {offsets = [0, 64], sizes = [4, 32], strides = [1, 1]} : vector<4x192xf32> to vector<4x32xf32>
    %1374 = vector.extract_strided_slice %1073 {offsets = [0, 160], sizes = [4, 32], strides = [1, 1]} : vector<4x192xf32> to vector<4x32xf32>
    %1375 = tpu.concatenate %1373, %1374 in 1 : vector<4x32xf32>, vector<4x32xf32> -> vector<4x64xf32>
    %1376 = vector.extract_strided_slice %1366 {offsets = [0, 0], sizes = [4, 64], strides = [1, 1]} : vector<4x192xf32> to vector<4x64xf32>
    %1377 = arith.addf %1369, %1376 : vector<4x64xf32>
    %1378 = arith.negf %1377 : vector<4x64xf32>
    %1379 = math.exp %1378 : vector<4x64xf32>
    %cst_201 = arith.constant 1.000000e+00 : f32
    %1380 = vector.broadcast %cst_201 : f32 to vector<4x64xf32>
    %1381 = arith.addf %1380, %1379 : vector<4x64xf32>
    %1382 = arith.divf %1380, %1381 : vector<4x64xf32>
    %1383 = vector.extract_strided_slice %1366 {offsets = [0, 64], sizes = [4, 64], strides = [1, 1]} : vector<4x192xf32> to vector<4x64xf32>
    %1384 = arith.addf %1372, %1383 : vector<4x64xf32>
    %1385 = arith.negf %1384 : vector<4x64xf32>
    %1386 = math.exp %1385 : vector<4x64xf32>
    %cst_202 = arith.constant 1.000000e+00 : f32
    %1387 = vector.broadcast %cst_202 : f32 to vector<4x64xf32>
    %1388 = arith.addf %1387, %1386 : vector<4x64xf32>
    %1389 = arith.divf %1387, %1388 : vector<4x64xf32>
    %1390 = vector.extract_strided_slice %1366 {offsets = [0, 128], sizes = [4, 64], strides = [1, 1]} : vector<4x192xf32> to vector<4x64xf32>
    %1391 = arith.mulf %1382, %1390 : vector<4x64xf32>
    %1392 = arith.addf %1375, %1391 : vector<4x64xf32>
    %1393 = math.tanh %1392 : vector<4x64xf32>
    %cst_203 = arith.constant 1.000000e+00 : f32
    %1394 = vector.broadcast %cst_203 : f32 to vector<4x64xf32>
    %1395 = arith.subf %1394, %1389 : vector<4x64xf32>
    %1396 = arith.mulf %1395, %1393 : vector<4x64xf32>
    %1397 = arith.mulf %1389, %1363 : vector<4x64xf32>
    %1398 = arith.addf %1396, %1397 : vector<4x64xf32>
    %1399 = arith.mulf %8, %1398 : vector<4x64xf32>
    %cst_204 = arith.constant 1.000000e+00 : f32
    %1400 = vector.broadcast %cst_204 : f32 to vector<4x64xf32>
    %1401 = arith.subf %1400, %8 : vector<4x64xf32>
    %1402 = arith.mulf %1401, %1363 : vector<4x64xf32>
    %1403 = arith.addf %1399, %1402 : vector<4x64xf32>
    %1404 = vector.extract_strided_slice %1119 {offsets = [0, 0], sizes = [4, 32], strides = [1, 1]} : vector<4x64xf32> to vector<4x32xf32>
    %1405 = vector.extract_strided_slice %1399 {offsets = [0, 32], sizes = [4, 32], strides = [1, 1]} : vector<4x64xf32> to vector<4x32xf32>
    %1406 = tpu.concatenate %1404, %1405 in 1 : vector<4x32xf32>, vector<4x32xf32> -> vector<4x64xf32>
    %1407 = vector.extract_strided_slice %1159 {offsets = [0, 0], sizes = [4, 32], strides = [1, 1]} : vector<4x64xf32> to vector<4x32xf32>
    %1408 = vector.extract_strided_slice %1359 {offsets = [0, 32], sizes = [4, 32], strides = [1, 1]} : vector<4x64xf32> to vector<4x32xf32>
    %1409 = tpu.concatenate %1407, %1408 in 1 : vector<4x32xf32>, vector<4x32xf32> -> vector<4x64xf32>
    %1410 = vector.extract_strided_slice %1199 {offsets = [0, 0], sizes = [4, 32], strides = [1, 1]} : vector<4x64xf32> to vector<4x32xf32>
    %1411 = vector.extract_strided_slice %1319 {offsets = [0, 32], sizes = [4, 32], strides = [1, 1]} : vector<4x64xf32> to vector<4x32xf32>
    %1412 = tpu.concatenate %1410, %1411 in 1 : vector<4x32xf32>, vector<4x32xf32> -> vector<4x64xf32>
    %1413 = vector.extract_strided_slice %1239 {offsets = [0, 0], sizes = [4, 32], strides = [1, 1]} : vector<4x64xf32> to vector<4x32xf32>
    %1414 = vector.extract_strided_slice %1279 {offsets = [0, 32], sizes = [4, 32], strides = [1, 1]} : vector<4x64xf32> to vector<4x32xf32>
    %1415 = tpu.concatenate %1413, %1414 in 1 : vector<4x32xf32>, vector<4x32xf32> -> vector<4x64xf32>
    %1416 = vector.extract_strided_slice %1279 {offsets = [0, 0], sizes = [4, 32], strides = [1, 1]} : vector<4x64xf32> to vector<4x32xf32>
    %1417 = vector.extract_strided_slice %1239 {offsets = [0, 32], sizes = [4, 32], strides = [1, 1]} : vector<4x64xf32> to vector<4x32xf32>
    %1418 = tpu.concatenate %1416, %1417 in 1 : vector<4x32xf32>, vector<4x32xf32> -> vector<4x64xf32>
    %1419 = vector.extract_strided_slice %1319 {offsets = [0, 0], sizes = [4, 32], strides = [1, 1]} : vector<4x64xf32> to vector<4x32xf32>
    %1420 = vector.extract_strided_slice %1199 {offsets = [0, 32], sizes = [4, 32], strides = [1, 1]} : vector<4x64xf32> to vector<4x32xf32>
    %1421 = tpu.concatenate %1419, %1420 in 1 : vector<4x32xf32>, vector<4x32xf32> -> vector<4x64xf32>
    %1422 = vector.extract_strided_slice %1359 {offsets = [0, 0], sizes = [4, 32], strides = [1, 1]} : vector<4x64xf32> to vector<4x32xf32>
    %1423 = vector.extract_strided_slice %1159 {offsets = [0, 32], sizes = [4, 32], strides = [1, 1]} : vector<4x64xf32> to vector<4x32xf32>
    %1424 = tpu.concatenate %1422, %1423 in 1 : vector<4x32xf32>, vector<4x32xf32> -> vector<4x64xf32>
    %1425 = vector.extract_strided_slice %1399 {offsets = [0, 0], sizes = [4, 32], strides = [1, 1]} : vector<4x64xf32> to vector<4x32xf32>
    %1426 = vector.extract_strided_slice %1119 {offsets = [0, 32], sizes = [4, 32], strides = [1, 1]} : vector<4x64xf32> to vector<4x32xf32>
    %1427 = tpu.concatenate %1425, %1426 in 1 : vector<4x32xf32>, vector<4x32xf32> -> vector<4x64xf32>
    %1428 = tpu.concatenate %1406, %1409, %1412, %1415, %1418, %1421, %1424, %1427 in 0 : vector<4x64xf32>, vector<4x64xf32>, vector<4x64xf32>, vector<4x64xf32>, vector<4x64xf32>, vector<4x64xf32>, vector<4x64xf32>, vector<4x64xf32> -> vector<32x64xf32>
    %1429 = tpu.concatenate %1042, %1403 in 1 : vector<4x64xf32>, vector<4x64xf32> -> vector<4x128xf32>
    %1430 = tpu.concatenate %1067, %1428 in 1 : vector<32x64xf32>, vector<32x64xf32> -> vector<32x128xf32>
    %c0_205 = arith.constant 0 : index
    %c0_206 = arith.constant 0 : index
    %1431 = vector.load %arg20[%c0_205, %c0_206] : memref<128x50xf32, #tpu.memory_space<vmem>>, vector<128x50xf32>
    %cst_207 = arith.constant dense<0.000000e+00> : vector<32x50xf32>
    %1432 = tpu.matmul %1430, %1431, %cst_207 {dimension_numbers = #tpu.dot_dimension_numbers<[1], [0], [0], [1], [0, 0, 1, 1], [], []>} : vector<32x128xf32>, vector<128x50xf32>, vector<32x50xf32> -> vector<32x50xf32>
    %c0_208 = arith.constant 0 : index
    %c0_209 = arith.constant 0 : index
    %1433 = vector.load %arg21[%c0_208, %c0_209] : memref<1x50xf32, #tpu.memory_space<vmem>>, vector<1x50xf32>
    %1434 = vector.broadcast %1433 : vector<1x50xf32> to vector<32x50xf32>
    %1435 = arith.addf %1432, %1434 : vector<32x50xf32>
    %1436 = tpu.iota {dimensions = array<i32: 1>} : vector<32x50xi32>
    %1437 = vector.broadcast %9 : vector<32x1xi32> to vector<32x50xi32>
    %1438 = arith.cmpi eq, %1436, %1437 : vector<32x50xi32>
    %1439 = arith.extui %1438 : vector<32x50xi1> to vector<32x50xi32>
    %1440 = arith.sitofp %1439 : vector<32x50xi32> to vector<32x50xf32>
    %cst_210 = arith.constant dense<0xFF800000> : vector<32xf32>
    %1441 = vector.multi_reduction <maximumf>, %1435, %cst_210 [1] : vector<32x50xf32> to vector<32xf32>
    %1442 = vector.shape_cast %1441 : vector<32xf32> to vector<32x1xf32>
    %1443 = vector.broadcast %1442 : vector<32x1xf32> to vector<32x50xf32>
    %1444 = arith.subf %1435, %1443 : vector<32x50xf32>
    %1445 = math.exp %1444 : vector<32x50xf32>
    %cst_211 = arith.constant dense<0.000000e+00> : vector<32xf32>
    %1446 = vector.multi_reduction <add>, %1445, %cst_211 [1] : vector<32x50xf32> to vector<32xf32>
    %1447 = vector.shape_cast %1446 : vector<32xf32> to vector<32x1xf32>
    %1448 = math.log %1447 : vector<32x1xf32>
    %1449 = arith.addf %1448, %1442 : vector<32x1xf32>
    %1450 = arith.mulf %1435, %1440 : vector<32x50xf32>
    %cst_212 = arith.constant dense<0.000000e+00> : vector<32xf32>
    %1451 = vector.multi_reduction <add>, %1450, %cst_212 [1] : vector<32x50xf32> to vector<32xf32>
    %1452 = vector.shape_cast %1451 : vector<32xf32> to vector<32x1xf32>
    %c0_i32 = arith.constant 0 : i32
    %1453 = vector.broadcast %c0_i32 : i32 to vector<32x1xi32>
    %1454 = arith.cmpi ne, %9, %1453 : vector<32x1xi32>
    %1455 = arith.extui %1454 : vector<32x1xi1> to vector<32x1xi32>
    %1456 = arith.sitofp %1455 : vector<32x1xi32> to vector<32x1xf32>
    %1457 = vector.shape_cast %1456 : vector<32x1xf32> to vector<1x32x1xf32>
    %cst_213 = arith.constant dense<0.000000e+00> : vector<1xf32>
    %1458 = vector.multi_reduction <add>, %1457, %cst_213 [1, 2] : vector<1x32x1xf32> to vector<1xf32>
    %1459 = vector.shape_cast %1458 : vector<1xf32> to vector<1x1x1xf32>
    %1460 = vector.extract %1459[0, 0, 0] : f32 from vector<1x1x1xf32>
    %1461 = vector.broadcast %1460 : f32 to vector<1x1xf32>
    %cst_214 = arith.constant 1.000000e+00 : f32
    %1462 = vector.broadcast %cst_214 : f32 to vector<1x1xf32>
    %1463 = arith.maximumf %1461, %1462 : vector<1x1xf32>
    %1464 = arith.subf %1449, %1452 : vector<32x1xf32>
    %1465 = arith.mulf %1464, %1456 : vector<32x1xf32>
    %1466 = vector.shape_cast %1465 : vector<32x1xf32> to vector<1x32x1xf32>
    %cst_215 = arith.constant dense<0.000000e+00> : vector<1xf32>
    %1467 = vector.multi_reduction <add>, %1466, %cst_215 [1, 2] : vector<1x32x1xf32> to vector<1xf32>
    %1468 = vector.shape_cast %1467 : vector<1xf32> to vector<1x1x1xf32>
    %1469 = vector.extract %1468[0, 0, 0] : f32 from vector<1x1x1xf32>
    %1470 = vector.broadcast %1469 : f32 to vector<1x1xf32>
    %1471 = tpu.reciprocal %1463 {approx = true} : vector<1x1xf32> -> vector<1x1xf32>
    %1472 = arith.mulf %1470, %1471 : vector<1x1xf32>
    %1473 = arith.mulf %714, %1429 : vector<4x128xf32>
    %1474 = tpu.concatenate %714, %1429, %1473 in 1 : vector<4x128xf32>, vector<4x128xf32>, vector<4x128xf32> -> vector<4x384xf32>
    %c0_216 = arith.constant 0 : index
    %c0_217 = arith.constant 0 : index
    %1475 = vector.load %arg22[%c0_216, %c0_217] : memref<384x128xf32, #tpu.memory_space<vmem>>, vector<384x128xf32>
    %cst_218 = arith.constant dense<0.000000e+00> : vector<4x128xf32>
    %1476 = tpu.matmul %1474, %1475, %cst_218 {dimension_numbers = #tpu.dot_dimension_numbers<[1], [0], [0], [1], [0, 0, 1, 1], [], []>} : vector<4x384xf32>, vector<384x128xf32>, vector<4x128xf32> -> vector<4x128xf32>
    %c0_219 = arith.constant 0 : index
    %c0_220 = arith.constant 0 : index
    %1477 = vector.load %arg23[%c0_219, %c0_220] : memref<1x128xf32, #tpu.memory_space<vmem>>, vector<1x128xf32>
    %1478 = vector.broadcast %1477 : vector<1x128xf32> to vector<4x128xf32>
    %1479 = arith.addf %1476, %1478 : vector<4x128xf32>
    %1480 = arith.negf %1479 : vector<4x128xf32>
    %1481 = math.exp %1480 : vector<4x128xf32>
    %cst_221 = arith.constant 1.000000e+00 : f32
    %1482 = vector.broadcast %cst_221 : f32 to vector<4x128xf32>
    %1483 = arith.addf %1482, %1481 : vector<4x128xf32>
    %1484 = arith.divf %1482, %1483 : vector<4x128xf32>
    %c0_222 = arith.constant 0 : index
    %c0_223 = arith.constant 0 : index
    %1485 = vector.load %arg24[%c0_222, %c0_223] : memref<384x128xf32, #tpu.memory_space<vmem>>, vector<384x128xf32>
    %cst_224 = arith.constant dense<0.000000e+00> : vector<4x128xf32>
    %1486 = tpu.matmul %1474, %1485, %cst_224 {dimension_numbers = #tpu.dot_dimension_numbers<[1], [0], [0], [1], [0, 0, 1, 1], [], []>} : vector<4x384xf32>, vector<384x128xf32>, vector<4x128xf32> -> vector<4x128xf32>
    %c0_225 = arith.constant 0 : index
    %c0_226 = arith.constant 0 : index
    %1487 = vector.load %arg25[%c0_225, %c0_226] : memref<1x128xf32, #tpu.memory_space<vmem>>, vector<1x128xf32>
    %1488 = vector.broadcast %1487 : vector<1x128xf32> to vector<4x128xf32>
    %1489 = arith.addf %1486, %1488 : vector<4x128xf32>
    %1490 = math.tanh %1489 : vector<4x128xf32>
    %1491 = arith.mulf %714, %1484 : vector<4x128xf32>
    %cst_227 = arith.constant 1.000000e+00 : f32
    %1492 = vector.broadcast %cst_227 : f32 to vector<4x128xf32>
    %1493 = arith.subf %1492, %1484 : vector<4x128xf32>
    %1494 = arith.mulf %1493, %1490 : vector<4x128xf32>
    %1495 = arith.addf %1491, %1494 : vector<4x128xf32>
    %c0_228 = arith.constant 0 : index
    %c0_229 = arith.constant 0 : index
    %1496 = vector.load %arg26[%c0_228, %c0_229] : memref<128x64xf32, #tpu.memory_space<vmem>>, vector<128x64xf32>
    %cst_230 = arith.constant dense<0.000000e+00> : vector<4x64xf32>
    %1497 = tpu.matmul %1495, %1496, %cst_230 {dimension_numbers = #tpu.dot_dimension_numbers<[1], [0], [0], [1], [0, 0, 1, 1], [], []>} : vector<4x128xf32>, vector<128x64xf32>, vector<4x64xf32> -> vector<4x64xf32>
    %c0_231 = arith.constant 0 : index
    %c0_232 = arith.constant 0 : index
    %1498 = vector.load %arg27[%c0_231, %c0_232] : memref<1x64xf32, #tpu.memory_space<vmem>>, vector<1x64xf32>
    %1499 = vector.broadcast %1498 : vector<1x64xf32> to vector<4x64xf32>
    %1500 = arith.addf %1497, %1499 : vector<4x64xf32>
    %cst_233 = arith.constant 0.000000e+00 : f32
    %1501 = vector.broadcast %cst_233 : f32 to vector<4x64xf32>
    %1502 = arith.cmpf ogt, %1500, %1501 : vector<4x64xf32>
    %cst_234 = arith.constant 0.000000e+00 : f32
    %1503 = vector.broadcast %cst_234 : f32 to vector<4x64xf32>
    %1504 = arith.minimumf %1500, %1503 : vector<4x64xf32>
    %1505 = math.exp %1504 : vector<4x64xf32>
    %cst_235 = arith.constant 1.000000e+00 : f32
    %1506 = vector.broadcast %cst_235 : f32 to vector<4x64xf32>
    %1507 = arith.subf %1505, %1506 : vector<4x64xf32>
    %cst_236 = arith.constant 1.67326319 : f32
    %1508 = vector.broadcast %cst_236 : f32 to vector<4x64xf32>
    %1509 = arith.mulf %1508, %1507 : vector<4x64xf32>
    %1510 = arith.select %1502, %1500, %1509 : vector<4x64xi1>, vector<4x64xf32>
    %cst_237 = arith.constant 1.05070102 : f32
    %1511 = vector.broadcast %cst_237 : f32 to vector<4x64xf32>
    %1512 = arith.mulf %1511, %1510 : vector<4x64xf32>
    %c0_238 = arith.constant 0 : index
    %c0_239 = arith.constant 0 : index
    %1513 = vector.load %arg28[%c0_238, %c0_239] : memref<64x10xf32, #tpu.memory_space<vmem>>, vector<64x10xf32>
    %cst_240 = arith.constant dense<0.000000e+00> : vector<4x10xf32>
    %1514 = tpu.matmul %1512, %1513, %cst_240 {dimension_numbers = #tpu.dot_dimension_numbers<[1], [0], [0], [1], [0, 0, 1, 1], [], []>} : vector<4x64xf32>, vector<64x10xf32>, vector<4x10xf32> -> vector<4x10xf32>
    %c0_241 = arith.constant 0 : index
    %c0_242 = arith.constant 0 : index
    %1515 = vector.load %arg29[%c0_241, %c0_242] : memref<1x10xf32, #tpu.memory_space<vmem>>, vector<1x10xf32>
    %1516 = vector.broadcast %1515 : vector<1x10xf32> to vector<4x10xf32>
    %1517 = arith.addf %1514, %1516 : vector<4x10xf32>
    %c0_243 = arith.constant 0 : index
    %c0_244 = arith.constant 0 : index
    %1518 = vector.load %arg30[%c0_243, %c0_244] : memref<4x10xf32, #tpu.memory_space<vmem>>, vector<4x10xf32>
    tpu.vector_store %arg30[%c0_243, %c0_244], %1517 {strides = array<i32>} : memref<4x10xf32, #tpu.memory_space<vmem>>, vector<4x10xf32>,
    %c0_245 = arith.constant 0 : index
    %c0_246 = arith.constant 0 : index
    %1519 = vector.load %arg2[%c0_245, %c0_246] : memref<4x1xi32, #tpu.memory_space<vmem>>, vector<4x1xi32>
    %1520 = tpu.iota {dimensions = array<i32: 1>} : vector<4x10xi32>
    %1521 = vector.broadcast %1519 : vector<4x1xi32> to vector<4x10xi32>
    %1522 = arith.cmpi eq, %1520, %1521 : vector<4x10xi32>
    %1523 = arith.extui %1522 : vector<4x10xi1> to vector<4x10xi32>
    %1524 = arith.sitofp %1523 : vector<4x10xi32> to vector<4x10xf32>
    %cst_247 = arith.constant dense<0xFF800000> : vector<4xf32>
    %1525 = vector.multi_reduction <maximumf>, %1517, %cst_247 [1] : vector<4x10xf32> to vector<4xf32>
    %1526 = vector.shape_cast %1525 : vector<4xf32> to vector<4x1xf32>
    %1527 = vector.broadcast %1526 : vector<4x1xf32> to vector<4x10xf32>
    %1528 = arith.subf %1517, %1527 : vector<4x10xf32>
    %1529 = math.exp %1528 : vector<4x10xf32>
    %cst_248 = arith.constant dense<0.000000e+00> : vector<4xf32>
    %1530 = vector.multi_reduction <add>, %1529, %cst_248 [1] : vector<4x10xf32> to vector<4xf32>
    %1531 = vector.shape_cast %1530 : vector<4xf32> to vector<4x1xf32>
    %1532 = math.log %1531 : vector<4x1xf32>
    %1533 = arith.addf %1532, %1526 : vector<4x1xf32>
    %1534 = arith.mulf %1517, %1524 : vector<4x10xf32>
    %cst_249 = arith.constant dense<0.000000e+00> : vector<4xf32>
    %1535 = vector.multi_reduction <add>, %1534, %cst_249 [1] : vector<4x10xf32> to vector<4xf32>
    %1536 = vector.shape_cast %1535 : vector<4xf32> to vector<4x1xf32>
    %1537 = arith.subf %1533, %1536 : vector<4x1xf32>
    %1538 = vector.shape_cast %1537 : vector<4x1xf32> to vector<1x4x1xf32>
    %cst_250 = arith.constant dense<0.000000e+00> : vector<1xf32>
    %1539 = vector.multi_reduction <add>, %1538, %cst_250 [1, 2] : vector<1x4x1xf32> to vector<1xf32>
    %1540 = vector.shape_cast %1539 : vector<1xf32> to vector<1x1x1xf32>
    %1541 = vector.extract %1540[0, 0, 0] : f32 from vector<1x1x1xf32>
    %1542 = vector.broadcast %1541 : f32 to vector<1x1xf32>
    %cst_251 = arith.constant 2.500000e-01 : f32
    %1543 = vector.broadcast %cst_251 : f32 to vector<1x1xf32>
    %1544 = arith.mulf %1542, %1543 : vector<1x1xf32>
    %cst_252 = arith.constant 1.000000e-01 : f32
    %1545 = vector.broadcast %cst_252 : f32 to vector<1x1xf32>
    %1546 = arith.mulf %1545, %1472 : vector<1x1xf32>
    %1547 = arith.addf %1544, %1546 : vector<1x1xf32>
    %c0_253 = arith.constant 0 : index
    %c0_254 = arith.constant 0 : index
    %1548 = vector.load %arg31[%c0_253, %c0_254] : memref<1x1xf32, #tpu.memory_space<vmem>>, vector<1x1xf32>
    tpu.vector_store %arg31[%c0_253, %c0_254], %1547 {strides = array<i32>} : memref<1x1xf32, #tpu.memory_space<vmem>>, vector<1x1xf32>,
    return
  }
}

</mosaic_0001>

<llo_original>
// kernel: fsnet_forward.1
$region0: #{fsnet_forward.1}
  #allocation0 [shape = 'u32[]', space=smem, size = 0x4, offset = 0x4, fixed_abs, tag = 'smem constant byte address 0x4 - core index']
  #allocation1 [shape = 'u32[72,128]{1,0:T(1,128)}', space=vmem, size = 0x9000, scoped, tag = 'internal scratch']
  %s0 = inlined_call_operand.smem [shape: u32[32], index: -1, kind: input, shape index: {}]
  %s1 = sld [smem:[%s0]]
  %s2 = scalar_lea.smem %s0, 1
  %s3 = sld [smem:[%s2]]
  %s4 = scalar_lea.smem %s0, 2
  %s5 = sld [smem:[%s4]]
  %s6 = scalar_lea.smem %s0, 3
  %s7 = sld [smem:[%s6]]
  %s8 = scalar_lea.smem %s0, 4
  %s9 = sld [smem:[%s8]]
  %s10 = scalar_lea.smem %s0, 5
  %s11 = sld [smem:[%s10]]
  %s12 = scalar_lea.smem %s0, 6
  %s13 = sld [smem:[%s12]]
  %s14 = scalar_lea.smem %s0, 7
  %s15 = sld [smem:[%s14]]
  %s16 = scalar_lea.smem %s0, 8
  %s17 = sld [smem:[%s16]]
  %s18 = scalar_lea.smem %s0, 9
  %s19 = sld [smem:[%s18]]
  %s20 = scalar_lea.smem %s0, 10
  %s21 = sld [smem:[%s20]]
  %s22 = scalar_lea.smem %s0, 11
  %s23 = sld [smem:[%s22]]
  %s24 = scalar_lea.smem %s0, 12
  %s25 = sld [smem:[%s24]]
  %s26 = scalar_lea.smem %s0, 13
  %s27 = sld [smem:[%s26]]
  %s28 = scalar_lea.smem %s0, 14
  %s29 = sld [smem:[%s28]]
  %s30 = scalar_lea.smem %s0, 15
  %s31 = sld [smem:[%s30]]
  %s32 = scalar_lea.smem %s0, 16
  %s33 = sld [smem:[%s32]]
  %s34 = scalar_lea.smem %s0, 17
  %s35 = sld [smem:[%s34]]
  %s36 = scalar_lea.smem %s0, 18
  %s37 = sld [smem:[%s36]]
  %s38 = scalar_lea.smem %s0, 19
  %s39 = sld [smem:[%s38]]
  %s40 = scalar_lea.smem %s0, 20
  %s41 = sld [smem:[%s40]]
  %s42 = scalar_lea.smem %s0, 21
  %s43 = sld [smem:[%s42]]
  %s44 = scalar_lea.smem %s0, 22
  %s45 = sld [smem:[%s44]]
  %s46 = scalar_lea.smem %s0, 23
  %s47 = sld [smem:[%s46]]
  %s48 = scalar_lea.smem %s0, 24
  %s49 = sld [smem:[%s48]]
  %s50 = scalar_lea.smem %s0, 25
  %s51 = sld [smem:[%s50]]
  %s52 = scalar_lea.smem %s0, 26
  %s53 = sld [smem:[%s52]]
  %s54 = scalar_lea.smem %s0, 27
  %s55 = sld [smem:[%s54]]
  %s56 = scalar_lea.smem %s0, 28
  %s57 = sld [smem:[%s56]]
  %s58 = scalar_lea.smem %s0, 29
  %s59 = sld [smem:[%s58]]
  %s60 = scalar_lea.smem %s0, 30
  %s61 = sld [smem:[%s60]]
  %s62 = scalar_lea.smem %s0, 31
  %s63 = sld [smem:[%s62]]
  %64 = xla_tuple %s61, %s63
  %s65 = sld [smem:[#allocation0]]
  $region154: #{fsnet_forward.1} parent=0
    _
  %s67 = ssub.s32 1, %s65
  %s68 = scalar_select 0, %s67, %s65
  $region1: #{fsnet_forward.1} parent=0
    #allocation2 [shape = 'u8[65536]{0}', space=vmem, size = 0x10000, scoped, tag = 'input window, operand 13, single buffered']
    #allocation3 [shape = 's32[1]{0}', space=sflag, size = 0x4, scoped, tag = 'scoped memory for fsnet_forward.1']
    #allocation4 [shape = 's32[1]{0}', space=sflag, size = 0x4, scoped, tag = 'scoped memory for fsnet_forward.1']
    #allocation5 [shape = 'u8[65536]{0}', space=vmem, size = 0x10000, scoped, tag = 'input window, operand 16, single buffered']
    #allocation6 [shape = 's32[1]{0}', space=sflag, size = 0x4, scoped, tag = 'scoped memory for fsnet_forward.1']
    #allocation7 [shape = 'u8[65536]{0}', space=vmem, size = 0x10000, scoped, tag = 'input window, operand 17, single buffered']
    #allocation8 [shape = 'u8[196608]{0}', space=vmem, size = 0x30000, scoped, tag = 'input window, operand 24, single buffered']
    #allocation9 [shape = 's32[1]{0}', space=sflag, size = 0x4, scoped, tag = 'scoped memory for fsnet_forward.1']
    #allocation10 [shape = 'u8[512]{0}', space=vmem, size = 0x400, scoped, tag = 'output window, operand 1, single buffered']
    %69 = vsyncpa [#allocation3], 0
    %70 = vsyncpa [#allocation6], 0
    %71 = vsyncpa [#allocation9], 0
    %72 = vsyncpa [#allocation4], 0
    // Predicated region
    $region2: #{fsnet_forward.1} parent=1 // pred_check
      _
    $region3: #{fsnet_forward.1} parent=1 // pred_check_branch
      %74 = sbr.rel (0) target = $region5
    $region4: #{fsnet_forward.1} parent=1 // pred_region
      _
    $region5: #{fsnet_forward.1} parent=1 // pred_fallthru
      _
    // Predicated region
    $region6: #{fsnet_forward.1} parent=1 // pred_check
      _
    $region7: #{fsnet_forward.1} parent=1 // pred_check_branch
      %76 = sbr.rel (0) target = $region9
    $region8: #{fsnet_forward.1} parent=1 // pred_region
      _
    $region9: #{fsnet_forward.1} parent=1 // pred_fallthru
      _
    // Predicated region
    $region10: #{fsnet_forward.1} parent=1 // pred_check
      _
    $region11: #{fsnet_forward.1} parent=1 // pred_check_branch
      %78 = sbr.rel (0) target = $region13
    $region12: #{fsnet_forward.1} parent=1 // pred_region
      _
    $region13: #{fsnet_forward.1} parent=1 // pred_fallthru
      _
    // Predicated region
    $region14: #{fsnet_forward.1} parent=1 // pred_check
      _
    $region15: #{fsnet_forward.1} parent=1 // pred_check_branch
      %80 = sbr.rel (0) target = $region17
    $region16: #{fsnet_forward.1} parent=1 // pred_region
      _
    $region17: #{fsnet_forward.1} parent=1 // pred_fallthru
      _
    // Predicated region
    $region18: #{fsnet_forward.1} parent=1 // pred_check
      _
    $region19: #{fsnet_forward.1} parent=1 // pred_check_branch
      %82 = sbr.rel (0) target = $region21
    $region20: #{fsnet_forward.1} parent=1 // pred_region
      _
    $region21: #{fsnet_forward.1} parent=1 // pred_fallthru
      _
    // Predicated region
    $region22: #{fsnet_forward.1} parent=1 // pred_check
      _
    $region23: #{fsnet_forward.1} parent=1 // pred_check_branch
      %84 = sbr.rel (0) target = $region25
    $region24: #{fsnet_forward.1} parent=1 // pred_region
      _
    $region25: #{fsnet_forward.1} parent=1 // pred_fallthru
      _
    // Predicated region
    $region26: #{fsnet_forward.1} parent=1 // pred_check
      _
    $region27: #{fsnet_forward.1} parent=1 // pred_check_branch
      %86 = sbr.rel (0) target = $region29
    $region28: #{fsnet_forward.1} parent=1 // pred_region
      _
    $region29: #{fsnet_forward.1} parent=1 // pred_fallthru
      _
    // Predicated region
    $region30: #{fsnet_forward.1} parent=1 // pred_check
      _
    $region31: #{fsnet_forward.1} parent=1 // pred_check_branch
      %88 = sbr.rel (0) target = $region33
    $region32: #{fsnet_forward.1} parent=1 // pred_region
      _
    $region33: #{fsnet_forward.1} parent=1 // pred_fallthru
      _
    // Predicated region
    $region34: #{fsnet_forward.1} parent=1 // pred_check
      _
    $region35: #{fsnet_forward.1} parent=1 // pred_check_branch
      %90 = sbr.rel (0) target = $region37
    $region36: #{fsnet_forward.1} parent=1 // pred_region
      _
    $region37: #{fsnet_forward.1} parent=1 // pred_fallthru
      _
    // Predicated region
    $region38: #{fsnet_forward.1} parent=1 // pred_check
      _
    $region39: #{fsnet_forward.1} parent=1 // pred_check_branch
      %92 = sbr.rel (0) target = $region41
    $region40: #{fsnet_forward.1} parent=1 // pred_region
      _
    $region41: #{fsnet_forward.1} parent=1 // pred_fallthru
      _
    // Predicated region
    $region42: #{fsnet_forward.1} parent=1 // pred_check
      _
    $region43: #{fsnet_forward.1} parent=1 // pred_check_branch
      %94 = sbr.rel (0) target = $region45
    $region44: #{fsnet_forward.1} parent=1 // pred_region
      _
    $region45: #{fsnet_forward.1} parent=1 // pred_fallthru
      _
    // Predicated region
    $region46: #{fsnet_forward.1} parent=1 // pred_check
      _
    $region47: #{fsnet_forward.1} parent=1 // pred_check_branch
      %96 = sbr.rel (0) target = $region49
    $region48: #{fsnet_forward.1} parent=1 // pred_region
      _
    $region49: #{fsnet_forward.1} parent=1 // pred_fallthru
      _
    // Predicated region
    $region50: #{fsnet_forward.1} parent=1 // pred_check
      _
    $region51: #{fsnet_forward.1} parent=1 // pred_check_branch
      %98 = sbr.rel (0) target = $region53
    $region52: #{fsnet_forward.1} parent=1 // pred_region
      _
    $region53: #{fsnet_forward.1} parent=1 // pred_fallthru
      _
    // Predicated region
    $region54: #{fsnet_forward.1} parent=1 // pred_check
      _
    $region55: #{fsnet_forward.1} parent=1 // pred_check_branch
      %100 = sbr.rel (0) target = $region57
    $region56: #{fsnet_forward.1} parent=1 // pred_region
      %102 = vsyncadd [#allocation3], 0
      %s103 = sshll.u32 %s27, 4
      %s104 = int_to_ptr.hbm [resolvable:$true] %s103
      %s105 = sshll.u32 [#allocation2], 4
      %s106 = int_to_ptr.vmem [resolvable:$true] %s105
      %111 = dma.hbm_to_vmem [thread:$0]  %s104, 2048, %s106, [#allocation3], 256, 256, 16
    $region57: #{fsnet_forward.1} parent=1 // pred_fallthru
      _
    // Predicated region
    $region58: #{fsnet_forward.1} parent=1 // pred_check
      _
    $region59: #{fsnet_forward.1} parent=1 // pred_check_branch
      %113 = sbr.rel (0) target = $region61
    $region60: #{fsnet_forward.1} parent=1 // pred_region
      _
    $region61: #{fsnet_forward.1} parent=1 // pred_fallthru
      _
    // Predicated region
    $region62: #{fsnet_forward.1} parent=1 // pred_check
      _
    $region63: #{fsnet_forward.1} parent=1 // pred_check_branch
      %115 = sbr.rel (0) target = $region65
    $region64: #{fsnet_forward.1} parent=1 // pred_region
      _
    $region65: #{fsnet_forward.1} parent=1 // pred_fallthru
      _
    // Predicated region
    $region66: #{fsnet_forward.1} parent=1 // pred_check
      _
    $region67: #{fsnet_forward.1} parent=1 // pred_check_branch
      %117 = sbr.rel (0) target = $region69
    $region68: #{fsnet_forward.1} parent=1 // pred_region
      %119 = vsyncadd [#allocation6], 0
      %s120 = sshll.u32 %s33, 4
      %s121 = int_to_ptr.hbm [resolvable:$true] %s120
      %s122 = sshll.u32 [#allocation5], 4
      %s123 = int_to_ptr.vmem [resolvable:$true] %s122
      %128 = dma.hbm_to_vmem [thread:$0]  %s121, 2048, %s123, [#allocation6], 256, 256, 16
    $region69: #{fsnet_forward.1} parent=1 // pred_fallthru
      _
    // Predicated region
    $region70: #{fsnet_forward.1} parent=1 // pred_check
      _
    $region71: #{fsnet_forward.1} parent=1 // pred_check_branch
      %130 = sbr.rel (0) target = $region73
    $region72: #{fsnet_forward.1} parent=1 // pred_region
      %132 = vsyncadd [#allocation6], 0
      %s133 = sshll.u32 %s35, 4
      %s134 = int_to_ptr.hbm [resolvable:$true] %s133
      %s135 = sshll.u32 [#allocation7], 4
      %s136 = int_to_ptr.vmem [resolvable:$true] %s135
      %141 = dma.hbm_to_vmem [thread:$0]  %s134, 2048, %s136, [#allocation6], 256, 256, 16
    $region73: #{fsnet_forward.1} parent=1 // pred_fallthru
      _
    // Predicated region
    $region74: #{fsnet_forward.1} parent=1 // pred_check
      _
    $region75: #{fsnet_forward.1} parent=1 // pred_check_branch
      %143 = sbr.rel (0) target = $region77
    $region76: #{fsnet_forward.1} parent=1 // pred_region
      _
    $region77: #{fsnet_forward.1} parent=1 // pred_fallthru
      _
    // Predicated region
    $region78: #{fsnet_forward.1} parent=1 // pred_check
      _
    $region79: #{fsnet_forward.1} parent=1 // pred_check_branch
      %145 = sbr.rel (0) target = $region81
    $region80: #{fsnet_forward.1} parent=1 // pred_region
      _
    $region81: #{fsnet_forward.1} parent=1 // pred_fallthru
      _
    // Predicated region
    $region82: #{fsnet_forward.1} parent=1 // pred_check
      _
    $region83: #{fsnet_forward.1} parent=1 // pred_check_branch
      %147 = sbr.rel (0) target = $region85
    $region84: #{fsnet_forward.1} parent=1 // pred_region
      _
    $region85: #{fsnet_forward.1} parent=1 // pred_fallthru
      _
    // Predicated region
    $region86: #{fsnet_forward.1} parent=1 // pred_check
      _
    $region87: #{fsnet_forward.1} parent=1 // pred_check_branch
      %149 = sbr.rel (0) target = $region89
    $region88: #{fsnet_forward.1} parent=1 // pred_region
      _
    $region89: #{fsnet_forward.1} parent=1 // pred_fallthru
      _
    // Predicated region
    $region90: #{fsnet_forward.1} parent=1 // pred_check
      _
    $region91: #{fsnet_forward.1} parent=1 // pred_check_branch
      %151 = sbr.rel (0) target = $region93
    $region92: #{fsnet_forward.1} parent=1 // pred_region
      _
    $region93: #{fsnet_forward.1} parent=1 // pred_fallthru
      _
    // Predicated region
    $region94: #{fsnet_forward.1} parent=1 // pred_check
      _
    $region95: #{fsnet_forward.1} parent=1 // pred_check_branch
      %153 = sbr.rel (0) target = $region97
    $region96: #{fsnet_forward.1} parent=1 // pred_region
      _
    $region97: #{fsnet_forward.1} parent=1 // pred_fallthru
      _
    // Predicated region
    $region98: #{fsnet_forward.1} parent=1 // pred_check
      _
    $region99: #{fsnet_forward.1} parent=1 // pred_check_branch
      %155 = sbr.rel (0) target = $region101
    $region100: #{fsnet_forward.1} parent=1 // pred_region
      %157 = vsyncadd [#allocation9], 0
      %s158 = sshll.u32 %s49, 4
      %s159 = int_to_ptr.hbm [resolvable:$true] %s158
      %s160 = sshll.u32 [#allocation8], 4
      %s161 = int_to_ptr.vmem [resolvable:$true] %s160
      %166 = dma.hbm_to_vmem [thread:$0]  %s159, 6144, %s161, [#allocation9], 128, 128, 8
    $region101: #{fsnet_forward.1} parent=1 // pred_fallthru
      _
    // Predicated region
    $region102: #{fsnet_forward.1} parent=1 // pred_check
      _
    $region103: #{fsnet_forward.1} parent=1 // pred_check_branch
      %168 = sbr.rel (0) target = $region105
    $region104: #{fsnet_forward.1} parent=1 // pred_region
      _
    $region105: #{fsnet_forward.1} parent=1 // pred_fallthru
      _
    // Predicated region
    $region106: #{fsnet_forward.1} parent=1 // pred_check
      _
    $region107: #{fsnet_forward.1} parent=1 // pred_check_branch
      %170 = sbr.rel (0) target = $region109
    $region108: #{fsnet_forward.1} parent=1 // pred_region
      _
    $region109: #{fsnet_forward.1} parent=1 // pred_fallthru
      _
    // Predicated region
    $region110: #{fsnet_forward.1} parent=1 // pred_check
      _
    $region111: #{fsnet_forward.1} parent=1 // pred_check_branch
      %172 = sbr.rel (0) target = $region113
    $region112: #{fsnet_forward.1} parent=1 // pred_region
      _
    $region113: #{fsnet_forward.1} parent=1 // pred_fallthru
      _
    // Predicated region
    $region114: #{fsnet_forward.1} parent=1 // pred_check
      _
    $region115: #{fsnet_forward.1} parent=1 // pred_check_branch
      %174 = sbr.rel (0) target = $region117
    $region116: #{fsnet_forward.1} parent=1 // pred_region
      _
    $region117: #{fsnet_forward.1} parent=1 // pred_fallthru
      _
    // Predicated region
    $region118: #{fsnet_forward.1} parent=1 // pred_check
      _
    $region119: #{fsnet_forward.1} parent=1 // pred_check_branch
      %176 = sbr.rel (0) target = $region121
    $region120: #{fsnet_forward.1} parent=1 // pred_region
      _
    $region121: #{fsnet_forward.1} parent=1 // pred_fallthru
      _
    // Predicated region
    $region122: #{fsnet_forward.1} parent=1 // pred_check
      _
    $region123: #{fsnet_forward.1} parent=1 // pred_check_branch
      %178 = sbr.rel (0) target = $region125
    $region124: #{fsnet_forward.1} parent=1 // pred_region
      %180 = dma.done [#allocation3], 2048
    $region125: #{fsnet_forward.1} parent=1 // pred_fallthru
      _
    // Predicated region
    $region126: #{fsnet_forward.1} parent=1 // pred_check
      _
    $region127: #{fsnet_forward.1} parent=1 // pred_check_branch
      %182 = sbr.rel (0) target = $region129
    $region128: #{fsnet_forward.1} parent=1 // pred_region
      %184 = dma.done [#allocation6], 2048
    $region129: #{fsnet_forward.1} parent=1 // pred_fallthru
      _
    // Predicated region
    $region130: #{fsnet_forward.1} parent=1 // pred_check
      _
    $region131: #{fsnet_forward.1} parent=1 // pred_check_branch
      %186 = sbr.rel (0) target = $region133
    $region132: #{fsnet_forward.1} parent=1 // pred_region
      %188 = dma.done [#allocation6], 2048
    $region133: #{fsnet_forward.1} parent=1 // pred_fallthru
      _
    // Predicated region
    $region134: #{fsnet_forward.1} parent=1 // pred_check
      _
    $region135: #{fsnet_forward.1} parent=1 // pred_check_branch
      %190 = sbr.rel (0) target = $region137
    $region136: #{fsnet_forward.1} parent=1 // pred_region
      %192 = dma.done [#allocation9], 6144
    $region137: #{fsnet_forward.1} parent=1 // pred_fallthru
      _
    %v193 = vld [vmem:[%s3] sm:$0xff]
    %v194 = vld [vmem:[%s3 + $0x8] sm:$0xff]
    %v195 = vld [vmem:[%s3 + $0x10] sm:$0xff]
    %v196 = vld [vmem:[%s3 + $0x18] sm:$0xff]
    %v197 = vld [vmem:[%s1] sm:$0xff]
    %v198 = vld [vmem:[%s1 + $0x8] sm:$0xff]
    %v199 = vld [vmem:[%s1 + $0x10] sm:$0xff]
    %v200 = vld [vmem:[%s1 + $0x18] sm:$0xff]
    %v201 = vlaneseq
    %v202 = vand.u32 %v201, 127
    %203 = vset.pattern.permute.xlu0 0
    %204 = vperm.xlu0 %203, %v197
    %v205 = vpop.permute.xlu0 %204
    %206 = vset.pattern.permute.xlu0 0
    %207 = vperm.xlu0 %206, %v198
    %v208 = vpop.permute.xlu0 %207
    %209 = vset.pattern.permute.xlu0 0
    %210 = vperm.xlu0 %209, %v199
    %v211 = vpop.permute.xlu0 %210
    %212 = vset.pattern.permute.xlu0 0
    %213 = vperm.xlu0 %212, %v200
    %v214 = vpop.permute.xlu0 %213
    %vm215 = vcmp.eq.s32.totalorder %v202, %v205
    %vm216 = vcmp.eq.s32.totalorder %v202, %v208
    %vm217 = vcmp.eq.s32.totalorder %v202, %v211
    %vm218 = vcmp.eq.s32.totalorder %v202, %v214
    %v219 = vsel %vm215, 1, 0
    %v220 = vsel %vm216, 1, 0
    %v221 = vsel %vm217, 1, 0
    %v222 = vsel %vm218, 1, 0
    %v223 = vcvt.s32.f32 %v219
    %v224 = vcvt.s32.f32 %v220
    %v225 = vcvt.s32.f32 %v221
    %v226 = vcvt.s32.f32 %v222
    %v227 = vld [vmem:[%s7] sm:$0xff]
    %v228 = vld [vmem:[%s7 + $0x8] sm:$0xff]
    %v229 = vld [vmem:[%s7 + $0x10] sm:$0xff]
    %v230 = vld [vmem:[%s7 + $0x18] sm:$0xff]
    %v231 = vld [vmem:[%s7 + $0x20] sm:$0xff]
    %v232 = vld [vmem:[%s7 + $0x28] sm:$0xff]
    %v233 = vld [vmem:[%s7 + $0x30] sm:$0x3]
    %vm234 = vcmask 408576
    %v236 = vsel %vm234, %v223, 0
    %v239 = vsel %vm234, %v224, 0
    %v242 = vsel %vm234, %v225, 0
    %v245 = vsel %vm234, %v226, 0
    %vm247 = vcmask 1041408
    %v249 = vsel %vm247, %v233, 0
    %251 = vmatpush.msra.mxu0 0.0
    %252 = vmatpush.msra.mxu0 0.0
    %253 = vmatpush.msra.mxu0 0.0
    %254 = vmatpush.msra.mxu0 0.0
    %255 = vmatpush.msra.mxu0 0.0
    %256 = vmatpush.msra.mxu0 0.0
    %257 = vmatpush.msra.mxu0 0.0
    %258 = vmatpush.msra.mxu0 0.0
    %259 = vmatpush.msra.mxu0 0.0
    %260 = vmatpush.msra.mxu0 %v249
    %261 = vmatpush.msra.mxu0 %v232
    %262 = vmatpush.msra.mxu0 %v231
    %263 = vmatpush.msra.mxu0 %v230
    %264 = vmatpush.msra.mxu0 %v229
    %265 = vmatpush.msra.mxu0 %v228
    %266 = vmatpush.msra.mxu0 %v227
    %267 = vmatmul.f32.gmra.mxu0 %v236
    %v268 = vpop.f32.mrf.mxu0
    %v269 = vadd.f32 0.0, %v268
    %270 = vmatmul.f32.gmra.mxu0 %v239
    %v271 = vpop.f32.mrf.mxu0
    %v272 = vadd.f32 0.0, %v271
    %273 = vmatmul.f32.gmra.mxu0 %v242
    %v274 = vpop.f32.mrf.mxu0
    %v275 = vadd.f32 0.0, %v274
    %276 = vmatmul.f32.gmra.mxu0 %v245
    %v277 = vpop.f32.mrf.mxu0
    %v278 = vadd.f32 0.0, %v277
    %279 = vdwg.mxu0
    %v280 = vld [vmem:[%s9] sm:$0xff]
    %v281 = vld [vmem:[%s9 + $0x8] sm:$0xff]
    %v282 = vld [vmem:[%s9 + $0x10] sm:$0xff]
    %v283 = vld [vmem:[%s9 + $0x18] sm:$0xff]
    %v284 = vld [vmem:[%s9 + $0x20] sm:$0xff]
    %v285 = vld [vmem:[%s9 + $0x28] sm:$0xff]
    %v286 = vld [vmem:[%s9 + $0x30] sm:$0xff]
    %v287 = vld [vmem:[%s9 + $0x38] sm:$0xff]
    %v288 = vld [vmem:[%s13] sm:$0x3]
    %v290 = vperm.slane %v288, 0
    %v291 = vperm.slane %v288, 1
    %vm294 = vcmask 261120
    %v296 = vsel %vm294, %v269, 0
    %v299 = vsel %vm294, %v272, 0
    %v302 = vsel %vm294, %v275, 0
    %v305 = vsel %vm294, %v278, 0
    %307 = vmatpush.msra.mxu0 0.0
    %308 = vmatpush.msra.mxu0 0.0
    %309 = vmatpush.msra.mxu0 0.0
    %310 = vmatpush.msra.mxu0 0.0
    %311 = vmatpush.msra.mxu0 0.0
    %312 = vmatpush.msra.mxu0 0.0
    %313 = vmatpush.msra.mxu0 0.0
    %314 = vmatpush.msra.mxu0 0.0
    %315 = vmatpush.msra.mxu0 0.0
    %316 = vmatpush.msra.mxu0 0.0
    %317 = vmatpush.msra.mxu0 0.0
    %318 = vmatpush.msra.mxu0 0.0
    %319 = vmatpush.msra.mxu0 %v286
    %320 = vmatpush.msra.mxu0 %v284
    %321 = vmatpush.msra.mxu0 %v282
    %322 = vmatpush.msra.mxu0 %v280
    %323 = vmatmul.f32.gmra.mxu0 %v296
    %v324 = vpop.f32.mrf.mxu0
    %v325 = vadd.f32 %v290, %v324
    %326 = vmatmul.f32.gmra.mxu0 %v299
    %v327 = vpop.f32.mrf.mxu0
    %v328 = vadd.f32 %v290, %v327
    %329 = vmatmul.f32.gmra.mxu0 %v302
    %v330 = vpop.f32.mrf.mxu0
    %v331 = vadd.f32 %v290, %v330
    %332 = vmatmul.f32.gmra.mxu0 %v305
    %v333 = vpop.f32.mrf.mxu0
    %v334 = vadd.f32 %v290, %v333
    %335 = vdwg.mxu0
    %336 = vmatpush.msra.mxu0 0.0
    %337 = vmatpush.msra.mxu0 0.0
    %338 = vmatpush.msra.mxu0 0.0
    %339 = vmatpush.msra.mxu0 0.0
    %340 = vmatpush.msra.mxu0 0.0
    %341 = vmatpush.msra.mxu0 0.0
    %342 = vmatpush.msra.mxu0 0.0
    %343 = vmatpush.msra.mxu0 0.0
    %344 = vmatpush.msra.mxu0 0.0
    %345 = vmatpush.msra.mxu0 0.0
    %346 = vmatpush.msra.mxu0 0.0
    %347 = vmatpush.msra.mxu0 0.0
    %348 = vmatpush.msra.mxu0 %v287
    %349 = vmatpush.msra.mxu0 %v285
    %350 = vmatpush.msra.mxu0 %v283
    %351 = vmatpush.msra.mxu0 %v281
    %352 = vmatmul.f32.gmra.mxu0 %v296
    %v353 = vpop.f32.mrf.mxu0
    %v354 = vadd.f32 %v291, %v353
    %355 = vmatmul.f32.gmra.mxu0 %v299
    %v356 = vpop.f32.mrf.mxu0
    %v357 = vadd.f32 %v291, %v356
    %358 = vmatmul.f32.gmra.mxu0 %v302
    %v359 = vpop.f32.mrf.mxu0
    %v360 = vadd.f32 %v291, %v359
    %361 = vmatmul.f32.gmra.mxu0 %v305
    %v362 = vpop.f32.mrf.mxu0
    %v363 = vadd.f32 %v291, %v362
    %364 = vdwg.mxu0
    %v365 = vld [vmem:[%s11] sm:$0xff]
    %v366 = vld [vmem:[%s11 + $0x8] sm:$0xff]
    %v367 = vld [vmem:[%s11 + $0x10] sm:$0xff]
    %v368 = vld [vmem:[%s11 + $0x18] sm:$0xff]
    %v369 = vld [vmem:[%s11 + $0x20] sm:$0xff]
    %v370 = vld [vmem:[%s11 + $0x28] sm:$0xff]
    %v371 = vld [vmem:[%s11 + $0x30] sm:$0xff]
    %v372 = vld [vmem:[%s11 + $0x38] sm:$0xff]
    %v373 = vld [vmem:[%s11 + $0x40] sm:$0xff]
    %v374 = vld [vmem:[%s11 + $0x48] sm:$0xff]
    %v375 = vld [vmem:[%s11 + $0x50] sm:$0xff]
    %v376 = vld [vmem:[%s11 + $0x58] sm:$0xff]
    %v377 = vld [vmem:[%s11 + $0x60] sm:$0xff]
    %v378 = vld [vmem:[%s11 + $0x68] sm:$0xff]
    %v379 = vld [vmem:[%s11 + $0x70] sm:$0xff]
    %v380 = vld [vmem:[%s11 + $0x78] sm:$0xff]
    %v381 = vld [vmem:[%s15] sm:$0x3]
    %v383 = vperm.slane %v381, 0
    %v384 = vperm.slane %v381, 1
    %vm387 = vcmask 523264
    %v389 = vsel %vm387, 0.0, 0
    %391 = vmatpush.msra.mxu0 0.0
    %392 = vmatpush.msra.mxu0 0.0
    %393 = vmatpush.msra.mxu0 0.0
    %394 = vmatpush.msra.mxu0 0.0
    %395 = vmatpush.msra.mxu0 0.0
    %396 = vmatpush.msra.mxu0 0.0
    %397 = vmatpush.msra.mxu0 0.0
    %398 = vmatpush.msra.mxu0 0.0
    %399 = vmatpush.msra.mxu0 %v379
    %400 = vmatpush.msra.mxu0 %v377
    %401 = vmatpush.msra.mxu0 %v375
    %402 = vmatpush.msra.mxu0 %v373
    %403 = vmatpush.msra.mxu0 %v371
    %404 = vmatpush.msra.mxu0 %v369
    %405 = vmatpush.msra.mxu0 %v367
    %406 = vmatpush.msra.mxu0 %v365
    %407 = vmatmul.f32.gmra.mxu0 %v389
    %v408 = vpop.f32.mrf.mxu0
    %v409 = vadd.f32 %v383, %v408
    %410 = vdwg.mxu0
    %411 = vmatpush.msra.mxu0 0.0
    %412 = vmatpush.msra.mxu0 0.0
    %413 = vmatpush.msra.mxu0 0.0
    %414 = vmatpush.msra.mxu0 0.0
    %415 = vmatpush.msra.mxu0 0.0
    %416 = vmatpush.msra.mxu0 0.0
    %417 = vmatpush.msra.mxu0 0.0
    %418 = vmatpush.msra.mxu0 0.0
    %419 = vmatpush.msra.mxu0 %v380
    %420 = vmatpush.msra.mxu0 %v378
    %421 = vmatpush.msra.mxu0 %v376
    %422 = vmatpush.msra.mxu0 %v374
    %423 = vmatpush.msra.mxu0 %v372
    %424 = vmatpush.msra.mxu0 %v370
    %425 = vmatpush.msra.mxu0 %v368
    %426 = vmatpush.msra.mxu0 %v366
    %427 = vmatmul.f32.gmra.mxu0 %v389
    %v428 = vpop.f32.mrf.mxu0
    %v429 = vadd.f32 %v384, %v428
    %430 = vdwg.mxu0
    %v432 = vrot.slane %v334, 4
    %433 = vrot.lane.b32.xlu0 %v432, 64
    %v434 = vpop.permute.xlu0 %433
    %v436 = vsel %vm294, %v325, %v434
    %438 = vrot.lane.b32.xlu0 %v325, 96
    %v439 = vpop.permute.xlu0 %438
    %v442 = vrot.slane %v363, 4
    %443 = vrot.lane.b32.xlu0 %v442, 32
    %v444 = vpop.permute.xlu0 %443
    %v446 = vsel %vm294, %v439, %v444
    %447 = vrot.lane.b32.xlu0 %v325, 64
    %v448 = vpop.permute.xlu0 %447
    %v451 = vsel %vm294, %v448, %v442
    %v452 = vadd.f32 %v436, %v409
    %v453 = vxor.u32 %v452, 2147483648
    %v454 = vmul.f32 %v453, 1.442695
    %v455 = vpow.pop %v454
    %v456 = vadd.f32 %v455, 1.0
    %v457 = vrcp.pop %v456
    %v458 = vmul.f32 %v456, %v457
    %v459 = vsub.f32 1.0, %v458
    %v460 = vmul.f32 %v457, %v459
    %v461 = vadd.f32 %v457, %v460
    %vm462 = vweird.f32 %v456
    %vm463 = vweird.f32 %v457
    %vm464 = vmor %vm462, %vm463
    %v465 = vsel %vm464, %v457, %v461
    %v466 = vand.u32 2147483647, %v456
    %vm467 = vcmp.eq.f32.partialorder %v466, 8.507059e+37
    %v468 = vand.u32 %v456, 2147483648
    %v469 = vor.u32 1.1754944e-38, %v468
    %v470 = vsel %vm467, %v469, %v465
    %v471 = vmul.f32 1.0, %v470
    %473 = vrot.lane.b32.xlu0 %v409, 64
    %v474 = vpop.permute.xlu0 %473
    %v476 = vadd.f32 %v446, %v474
    %v477 = vxor.u32 %v476, 2147483648
    %v478 = vmul.f32 %v477, 1.442695
    %v479 = vpow.pop %v478
    %v480 = vadd.f32 %v479, 1.0
    %v481 = vrcp.pop %v480
    %v482 = vmul.f32 %v480, %v481
    %v483 = vsub.f32 1.0, %v482
    %v484 = vmul.f32 %v481, %v483
    %v485 = vadd.f32 %v481, %v484
    %vm486 = vweird.f32 %v480
    %vm487 = vweird.f32 %v481
    %vm488 = vmor %vm486, %vm487
    %v489 = vsel %vm488, %v481, %v485
    %v490 = vand.u32 2147483647, %v480
    %vm491 = vcmp.eq.f32.partialorder %v490, 8.507059e+37
    %v492 = vand.u32 %v480, 2147483648
    %v493 = vor.u32 1.1754944e-38, %v492
    %v494 = vsel %vm491, %v493, %v489
    %v495 = vmul.f32 1.0, %v494
    %v496 = vmul.f32 %v471, %v429
    %v497 = vadd.f32 %v451, %v496
    %v498 = vtanh.pop %v497
    %v499 = vsub.f32 1.0, %v495
    %v500 = vmul.f32 %v499, %v498
    %v501 = vmul.f32 %v495, 0.0
    %v502 = vadd.f32 %v500, %v501
    %v503 = vmul.f32 %v193, %v502
    %v504 = vsub.f32 1.0, %v193
    %v505 = vmul.f32 %v504, 0.0
    %v506 = vadd.f32 %v503, %v505
    %v508 = vsel %vm387, %v506, 0
    %510 = vmatpush.msra.mxu0 0.0
    %511 = vmatpush.msra.mxu0 0.0
    %512 = vmatpush.msra.mxu0 0.0
    %513 = vmatpush.msra.mxu0 0.0
    %514 = vmatpush.msra.mxu0 0.0
    %515 = vmatpush.msra.mxu0 0.0
    %516 = vmatpush.msra.mxu0 0.0
    %517 = vmatpush.msra.mxu0 0.0
    %518 = vmatpush.msra.mxu0 %v379
    %519 = vmatpush.msra.mxu0 %v377
    %520 = vmatpush.msra.mxu0 %v375
    %521 = vmatpush.msra.mxu0 %v373
    %522 = vmatpush.msra.mxu0 %v371
    %523 = vmatpush.msra.mxu0 %v369
    %524 = vmatpush.msra.mxu0 %v367
    %525 = vmatpush.msra.mxu0 %v365
    %526 = vmatmul.f32.gmra.mxu0 %v508
    %v527 = vpop.f32.mrf.mxu0
    %v528 = vadd.f32 %v383, %v527
    %529 = vdwg.mxu0
    %530 = vmatpush.msra.mxu0 0.0
    %531 = vmatpush.msra.mxu0 0.0
    %532 = vmatpush.msra.mxu0 0.0
    %533 = vmatpush.msra.mxu0 0.0
    %534 = vmatpush.msra.mxu0 0.0
    %535 = vmatpush.msra.mxu0 0.0
    %536 = vmatpush.msra.mxu0 0.0
    %537 = vmatpush.msra.mxu0 0.0
    %538 = vmatpush.msra.mxu0 %v380
    %539 = vmatpush.msra.mxu0 %v378
    %540 = vmatpush.msra.mxu0 %v376
    %541 = vmatpush.msra.mxu0 %v374
    %542 = vmatpush.msra.mxu0 %v372
    %543 = vmatpush.msra.mxu0 %v370
    %544 = vmatpush.msra.mxu0 %v368
    %545 = vmatpush.msra.mxu0 %v366
    %546 = vmatmul.f32.gmra.mxu0 %v508
    %v547 = vpop.f32.mrf.mxu0
    %v548 = vadd.f32 %v384, %v547
    %549 = vdwg.mxu0
    %v551 = vrot.slane %v528, 4
    %v553 = vadd.f32 %v436, %v551
    %v554 = vxor.u32 %v553, 2147483648
    %v555 = vmul.f32 %v554, 1.442695
    %v556 = vpow.pop %v555
    %v557 = vadd.f32 %v556, 1.0
    %v558 = vrcp.pop %v557
    %v559 = vmul.f32 %v557, %v558
    %v560 = vsub.f32 1.0, %v559
    %v561 = vmul.f32 %v558, %v560
    %v562 = vadd.f32 %v558, %v561
    %vm563 = vweird.f32 %v557
    %vm564 = vweird.f32 %v558
    %vm565 = vmor %vm563, %vm564
    %v566 = vsel %vm565, %v558, %v562
    %v567 = vand.u32 2147483647, %v557
    %vm568 = vcmp.eq.f32.partialorder %v567, 8.507059e+37
    %v569 = vand.u32 %v557, 2147483648
    %v570 = vor.u32 1.1754944e-38, %v569
    %v571 = vsel %vm568, %v570, %v566
    %v572 = vmul.f32 1.0, %v571
    %573 = vrot.lane.b32.xlu0 %v551, 64
    %v574 = vpop.permute.xlu0 %573
    %v576 = vadd.f32 %v446, %v574
    %v577 = vxor.u32 %v576, 2147483648
    %v578 = vmul.f32 %v577, 1.442695
    %v579 = vpow.pop %v578
    %v580 = vadd.f32 %v579, 1.0
    %v581 = vrcp.pop %v580
    %v582 = vmul.f32 %v580, %v581
    %v583 = vsub.f32 1.0, %v582
    %v584 = vmul.f32 %v581, %v583
    %v585 = vadd.f32 %v581, %v584
    %vm586 = vweird.f32 %v580
    %vm587 = vweird.f32 %v581
    %vm588 = vmor %vm586, %vm587
    %v589 = vsel %vm588, %v581, %v585
    %v590 = vand.u32 2147483647, %v580
    %vm591 = vcmp.eq.f32.partialorder %v590, 8.507059e+37
    %v592 = vand.u32 %v580, 2147483648
    %v593 = vor.u32 1.1754944e-38, %v592
    %v594 = vsel %vm591, %v593, %v589
    %v595 = vmul.f32 1.0, %v594
    %v597 = vrot.slane %v548, 4
    %v599 = vmul.f32 %v572, %v597
    %v600 = vadd.f32 %v451, %v599
    %v601 = vtanh.pop %v600
    %v602 = vsub.f32 1.0, %v595
    %v603 = vmul.f32 %v602, %v601
    %v604 = vrot.slane %v506, 4
    %v606 = vmul.f32 %v595, %v604
    %v607 = vadd.f32 %v603, %v606
    %v608 = vmul.f32 %v193, %v607
    %v609 = vmul.f32 %v504, %v604
    %v610 = vadd.f32 %v608, %v609
    %v612 = vrot.slane %v610, 4
    %v613 = vsel %vm387, %v612, 0
    %615 = vmatpush.msra.mxu0 0.0
    %616 = vmatpush.msra.mxu0 0.0
    %617 = vmatpush.msra.mxu0 0.0
    %618 = vmatpush.msra.mxu0 0.0
    %619 = vmatpush.msra.mxu0 0.0
    %620 = vmatpush.msra.mxu0 0.0
    %621 = vmatpush.msra.mxu0 0.0
    %622 = vmatpush.msra.mxu0 0.0
    %623 = vmatpush.msra.mxu0 %v379
    %624 = vmatpush.msra.mxu0 %v377
    %625 = vmatpush.msra.mxu0 %v375
    %626 = vmatpush.msra.mxu0 %v373
    %627 = vmatpush.msra.mxu0 %v371
    %628 = vmatpush.msra.mxu0 %v369
    %629 = vmatpush.msra.mxu0 %v367
    %630 = vmatpush.msra.mxu0 %v365
    %631 = vmatmul.f32.gmra.mxu0 %v613
    %v632 = vpop.f32.mrf.mxu0
    %v633 = vadd.f32 %v383, %v632
    %634 = vdwg.mxu0
    %635 = vmatpush.msra.mxu0 0.0
    %636 = vmatpush.msra.mxu0 0.0
    %637 = vmatpush.msra.mxu0 0.0
    %638 = vmatpush.msra.mxu0 0.0
    %639 = vmatpush.msra.mxu0 0.0
    %640 = vmatpush.msra.mxu0 0.0
    %641 = vmatpush.msra.mxu0 0.0
    %642 = vmatpush.msra.mxu0 0.0
    %643 = vmatpush.msra.mxu0 %v380
    %644 = vmatpush.msra.mxu0 %v378
    %645 = vmatpush.msra.mxu0 %v376
    %646 = vmatpush.msra.mxu0 %v374
    %647 = vmatpush.msra.mxu0 %v372
    %648 = vmatpush.msra.mxu0 %v370
    %649 = vmatpush.msra.mxu0 %v368
    %650 = vmatpush.msra.mxu0 %v366
    %651 = vmatmul.f32.gmra.mxu0 %v613
    %v652 = vpop.f32.mrf.mxu0
    %v653 = vadd.f32 %v384, %v652
    %654 = vdwg.mxu0
    %v656 = vrot.slane %v331, 4
    %657 = vrot.lane.b32.xlu0 %v656, 64
    %v658 = vpop.permute.xlu0 %657
    %v660 = vsel %vm294, %v328, %v658
    %662 = vrot.lane.b32.xlu0 %v328, 96
    %v663 = vpop.permute.xlu0 %662
    %v666 = vrot.slane %v360, 4
    %667 = vrot.lane.b32.xlu0 %v666, 32
    %v668 = vpop.permute.xlu0 %667
    %v670 = vsel %vm294, %v663, %v668
    %671 = vrot.lane.b32.xlu0 %v328, 64
    %v672 = vpop.permute.xlu0 %671
    %v675 = vsel %vm294, %v672, %v666
    %v676 = vadd.f32 %v660, %v633
    %v677 = vxor.u32 %v676, 2147483648
    %v678 = vmul.f32 %v677, 1.442695
    %v679 = vpow.pop %v678
    %v680 = vadd.f32 %v679, 1.0
    %v681 = vrcp.pop %v680
    %v682 = vmul.f32 %v680, %v681
    %v683 = vsub.f32 1.0, %v682
    %v684 = vmul.f32 %v681, %v683
    %v685 = vadd.f32 %v681, %v684
    %vm686 = vweird.f32 %v680
    %vm687 = vweird.f32 %v681
    %vm688 = vmor %vm686, %vm687
    %v689 = vsel %vm688, %v681, %v685
    %v690 = vand.u32 2147483647, %v680
    %vm691 = vcmp.eq.f32.partialorder %v690, 8.507059e+37
    %v692 = vand.u32 %v680, 2147483648
    %v693 = vor.u32 1.1754944e-38, %v692
    %v694 = vsel %vm691, %v693, %v689
    %v695 = vmul.f32 1.0, %v694
    %697 = vrot.lane.b32.xlu0 %v633, 64
    %v698 = vpop.permute.xlu0 %697
    %v700 = vadd.f32 %v670, %v698
    %v701 = vxor.u32 %v700, 2147483648
    %v702 = vmul.f32 %v701, 1.442695
    %v703 = vpow.pop %v702
    %v704 = vadd.f32 %v703, 1.0
    %v705 = vrcp.pop %v704
    %v706 = vmul.f32 %v704, %v705
    %v707 = vsub.f32 1.0, %v706
    %v708 = vmul.f32 %v705, %v707
    %v709 = vadd.f32 %v705, %v708
    %vm710 = vweird.f32 %v704
    %vm711 = vweird.f32 %v705
    %vm712 = vmor %vm710, %vm711
    %v713 = vsel %vm712, %v705, %v709
    %v714 = vand.u32 2147483647, %v704
    %vm715 = vcmp.eq.f32.partialorder %v714, 8.507059e+37
    %v716 = vand.u32 %v704, 2147483648
    %v717 = vor.u32 1.1754944e-38, %v716
    %v718 = vsel %vm715, %v717, %v713
    %v719 = vmul.f32 1.0, %v718
    %v720 = vmul.f32 %v695, %v653
    %v721 = vadd.f32 %v675, %v720
    %v722 = vtanh.pop %v721
    %v723 = vsub.f32 1.0, %v719
    %v724 = vmul.f32 %v723, %v722
    %v726 = vmul.f32 %v719, %v612
    %v727 = vadd.f32 %v724, %v726
    %v728 = vmul.f32 %v194, %v727
    %v729 = vsub.f32 1.0, %v194
    %v730 = vmul.f32 %v729, %v612
    %v731 = vadd.f32 %v728, %v730
    %v733 = vsel %vm387, %v731, 0
    %735 = vmatpush.msra.mxu0 0.0
    %736 = vmatpush.msra.mxu0 0.0
    %737 = vmatpush.msra.mxu0 0.0
    %738 = vmatpush.msra.mxu0 0.0
    %739 = vmatpush.msra.mxu0 0.0
    %740 = vmatpush.msra.mxu0 0.0
    %741 = vmatpush.msra.mxu0 0.0
    %742 = vmatpush.msra.mxu0 0.0
    %743 = vmatpush.msra.mxu0 %v379
    %744 = vmatpush.msra.mxu0 %v377
    %745 = vmatpush.msra.mxu0 %v375
    %746 = vmatpush.msra.mxu0 %v373
    %747 = vmatpush.msra.mxu0 %v371
    %748 = vmatpush.msra.mxu0 %v369
    %749 = vmatpush.msra.mxu0 %v367
    %750 = vmatpush.msra.mxu0 %v365
    %751 = vmatmul.f32.gmra.mxu0 %v733
    %v752 = vpop.f32.mrf.mxu0
    %v753 = vadd.f32 %v383, %v752
    %754 = vdwg.mxu0
    %755 = vmatpush.msra.mxu0 0.0
    %756 = vmatpush.msra.mxu0 0.0
    %757 = vmatpush.msra.mxu0 0.0
    %758 = vmatpush.msra.mxu0 0.0
    %759 = vmatpush.msra.mxu0 0.0
    %760 = vmatpush.msra.mxu0 0.0
    %761 = vmatpush.msra.mxu0 0.0
    %762 = vmatpush.msra.mxu0 0.0
    %763 = vmatpush.msra.mxu0 %v380
    %764 = vmatpush.msra.mxu0 %v378
    %765 = vmatpush.msra.mxu0 %v376
    %766 = vmatpush.msra.mxu0 %v374
    %767 = vmatpush.msra.mxu0 %v372
    %768 = vmatpush.msra.mxu0 %v370
    %769 = vmatpush.msra.mxu0 %v368
    %770 = vmatpush.msra.mxu0 %v366
    %771 = vmatmul.f32.gmra.mxu0 %v733
    %v772 = vpop.f32.mrf.mxu0
    %v773 = vadd.f32 %v384, %v772
    %774 = vdwg.mxu0
    %v776 = vrot.slane %v753, 4
    %v778 = vadd.f32 %v660, %v776
    %v779 = vxor.u32 %v778, 2147483648
    %v780 = vmul.f32 %v779, 1.442695
    %v781 = vpow.pop %v780
    %v782 = vadd.f32 %v781, 1.0
    %v783 = vrcp.pop %v782
    %v784 = vmul.f32 %v782, %v783
    %v785 = vsub.f32 1.0, %v784
    %v786 = vmul.f32 %v783, %v785
    %v787 = vadd.f32 %v783, %v786
    %vm788 = vweird.f32 %v782
    %vm789 = vweird.f32 %v783
    %vm790 = vmor %vm788, %vm789
    %v791 = vsel %vm790, %v783, %v787
    %v792 = vand.u32 2147483647, %v782
    %vm793 = vcmp.eq.f32.partialorder %v792, 8.507059e+37
    %v794 = vand.u32 %v782, 2147483648
    %v795 = vor.u32 1.1754944e-38, %v794
    %v796 = vsel %vm793, %v795, %v791
    %v797 = vmul.f32 1.0, %v796
    %798 = vrot.lane.b32.xlu0 %v776, 64
    %v799 = vpop.permute.xlu0 %798
    %v801 = vadd.f32 %v670, %v799
    %v802 = vxor.u32 %v801, 2147483648
    %v803 = vmul.f32 %v802, 1.442695
    %v804 = vpow.pop %v803
    %v805 = vadd.f32 %v804, 1.0
    %v806 = vrcp.pop %v805
    %v807 = vmul.f32 %v805, %v806
    %v808 = vsub.f32 1.0, %v807
    %v809 = vmul.f32 %v806, %v808
    %v810 = vadd.f32 %v806, %v809
    %vm811 = vweird.f32 %v805
    %vm812 = vweird.f32 %v806
    %vm813 = vmor %vm811, %vm812
    %v814 = vsel %vm813, %v806, %v810
    %v815 = vand.u32 2147483647, %v805
    %vm816 = vcmp.eq.f32.partialorder %v815, 8.507059e+37
    %v817 = vand.u32 %v805, 2147483648
    %v818 = vor.u32 1.1754944e-38, %v817
    %v819 = vsel %vm816, %v818, %v814
    %v820 = vmul.f32 1.0, %v819
    %v822 = vrot.slane %v773, 4
    %v824 = vmul.f32 %v797, %v822
    %v825 = vadd.f32 %v675, %v824
    %v826 = vtanh.pop %v825
    %v827 = vsub.f32 1.0, %v820
    %v828 = vmul.f32 %v827, %v826
    %v829 = vrot.slane %v731, 4
    %v831 = vmul.f32 %v820, %v829
    %v832 = vadd.f32 %v828, %v831
    %v833 = vmul.f32 %v194, %v832
    %v834 = vmul.f32 %v729, %v829
    %v835 = vadd.f32 %v833, %v834
    %v837 = vrot.slane %v835, 4
    %v838 = vsel %vm387, %v837, 0
    %840 = vmatpush.msra.mxu0 0.0
    %841 = vmatpush.msra.mxu0 0.0
    %842 = vmatpush.msra.mxu0 0.0
    %843 = vmatpush.msra.mxu0 0.0
    %844 = vmatpush.msra.mxu0 0.0
    %845 = vmatpush.msra.mxu0 0.0
    %846 = vmatpush.msra.mxu0 0.0
    %847 = vmatpush.msra.mxu0 0.0
    %848 = vmatpush.msra.mxu0 %v379
    %849 = vmatpush.msra.mxu0 %v377
    %850 = vmatpush.msra.mxu0 %v375
    %851 = vmatpush.msra.mxu0 %v373
    %852 = vmatpush.msra.mxu0 %v371
    %853 = vmatpush.msra.mxu0 %v369
    %854 = vmatpush.msra.mxu0 %v367
    %855 = vmatpush.msra.mxu0 %v365
    %856 = vmatmul.f32.gmra.mxu0 %v838
    %v857 = vpop.f32.mrf.mxu0
    %v858 = vadd.f32 %v383, %v857
    %859 = vdwg.mxu0
    %860 = vmatpush.msra.mxu0 0.0
    %861 = vmatpush.msra.mxu0 0.0
    %862 = vmatpush.msra.mxu0 0.0
    %863 = vmatpush.msra.mxu0 0.0
    %864 = vmatpush.msra.mxu0 0.0
    %865 = vmatpush.msra.mxu0 0.0
    %866 = vmatpush.msra.mxu0 0.0
    %867 = vmatpush.msra.mxu0 0.0
    %868 = vmatpush.msra.mxu0 %v380
    %869 = vmatpush.msra.mxu0 %v378
    %870 = vmatpush.msra.mxu0 %v376
    %871 = vmatpush.msra.mxu0 %v374
    %872 = vmatpush.msra.mxu0 %v372
    %873 = vmatpush.msra.mxu0 %v370
    %874 = vmatpush.msra.mxu0 %v368
    %875 = vmatpush.msra.mxu0 %v366
    %876 = vmatmul.f32.gmra.mxu0 %v838
    %v877 = vpop.f32.mrf.mxu0
    %v878 = vadd.f32 %v384, %v877
    %879 = vdwg.mxu0
    %v880 = vrot.slane %v328, 4
    %881 = vrot.lane.b32.xlu0 %v880, 64
    %v882 = vpop.permute.xlu0 %881
    %v884 = vsel %vm294, %v331, %v882
    %885 = vrot.lane.b32.xlu0 %v331, 96
    %v886 = vpop.permute.xlu0 %885
    %v889 = vrot.slane %v357, 4
    %890 = vrot.lane.b32.xlu0 %v889, 32
    %v891 = vpop.permute.xlu0 %890
    %v893 = vsel %vm294, %v886, %v891
    %894 = vrot.lane.b32.xlu0 %v331, 64
    %v895 = vpop.permute.xlu0 %894
    %v898 = vsel %vm294, %v895, %v889
    %v899 = vadd.f32 %v884, %v858
    %v900 = vxor.u32 %v899, 2147483648
    %v901 = vmul.f32 %v900, 1.442695
    %v902 = vpow.pop %v901
    %v903 = vadd.f32 %v902, 1.0
    %v904 = vrcp.pop %v903
    %v905 = vmul.f32 %v903, %v904
    %v906 = vsub.f32 1.0, %v905
    %v907 = vmul.f32 %v904, %v906
    %v908 = vadd.f32 %v904, %v907
    %vm909 = vweird.f32 %v903
    %vm910 = vweird.f32 %v904
    %vm911 = vmor %vm909, %vm910
    %v912 = vsel %vm911, %v904, %v908
    %v913 = vand.u32 2147483647, %v903
    %vm914 = vcmp.eq.f32.partialorder %v913, 8.507059e+37
    %v915 = vand.u32 %v903, 2147483648
    %v916 = vor.u32 1.1754944e-38, %v915
    %v917 = vsel %vm914, %v916, %v912
    %v918 = vmul.f32 1.0, %v917
    %920 = vrot.lane.b32.xlu0 %v858, 64
    %v921 = vpop.permute.xlu0 %920
    %v923 = vadd.f32 %v893, %v921
    %v924 = vxor.u32 %v923, 2147483648
    %v925 = vmul.f32 %v924, 1.442695
    %v926 = vpow.pop %v925
    %v927 = vadd.f32 %v926, 1.0
    %v928 = vrcp.pop %v927
    %v929 = vmul.f32 %v927, %v928
    %v930 = vsub.f32 1.0, %v929
    %v931 = vmul.f32 %v928, %v930
    %v932 = vadd.f32 %v928, %v931
    %vm933 = vweird.f32 %v927
    %vm934 = vweird.f32 %v928
    %vm935 = vmor %vm933, %vm934
    %v936 = vsel %vm935, %v928, %v932
    %v937 = vand.u32 2147483647, %v927
    %vm938 = vcmp.eq.f32.partialorder %v937, 8.507059e+37
    %v939 = vand.u32 %v927, 2147483648
    %v940 = vor.u32 1.1754944e-38, %v939
    %v941 = vsel %vm938, %v940, %v936
    %v942 = vmul.f32 1.0, %v941
    %v943 = vmul.f32 %v918, %v878
    %v944 = vadd.f32 %v898, %v943
    %v945 = vtanh.pop %v944
    %v946 = vsub.f32 1.0, %v942
    %v947 = vmul.f32 %v946, %v945
    %v949 = vmul.f32 %v942, %v837
    %v950 = vadd.f32 %v947, %v949
    %v951 = vmul.f32 %v195, %v950
    %v952 = vsub.f32 1.0, %v195
    %v953 = vmul.f32 %v952, %v837
    %v954 = vadd.f32 %v951, %v953
    %v956 = vsel %vm387, %v954, 0
    %958 = vmatpush.msra.mxu0 0.0
    %959 = vmatpush.msra.mxu0 0.0
    %960 = vmatpush.msra.mxu0 0.0
    %961 = vmatpush.msra.mxu0 0.0
    %962 = vmatpush.msra.mxu0 0.0
    %963 = vmatpush.msra.mxu0 0.0
    %964 = vmatpush.msra.mxu0 0.0
    %965 = vmatpush.msra.mxu0 0.0
    %966 = vmatpush.msra.mxu0 %v379
    %967 = vmatpush.msra.mxu0 %v377
    %968 = vmatpush.msra.mxu0 %v375
    %969 = vmatpush.msra.mxu0 %v373
    %970 = vmatpush.msra.mxu0 %v371
    %971 = vmatpush.msra.mxu0 %v369
    %972 = vmatpush.msra.mxu0 %v367
    %973 = vmatpush.msra.mxu0 %v365
    %974 = vmatmul.f32.gmra.mxu0 %v956
    %v975 = vpop.f32.mrf.mxu0
    %v976 = vadd.f32 %v383, %v975
    %977 = vdwg.mxu0
    %978 = vmatpush.msra.mxu0 0.0
    %979 = vmatpush.msra.mxu0 0.0
    %980 = vmatpush.msra.mxu0 0.0
    %981 = vmatpush.msra.mxu0 0.0
    %982 = vmatpush.msra.mxu0 0.0
    %983 = vmatpush.msra.mxu0 0.0
    %984 = vmatpush.msra.mxu0 0.0
    %985 = vmatpush.msra.mxu0 0.0
    %986 = vmatpush.msra.mxu0 %v380
    %987 = vmatpush.msra.mxu0 %v378
    %988 = vmatpush.msra.mxu0 %v376
    %989 = vmatpush.msra.mxu0 %v374
    %990 = vmatpush.msra.mxu0 %v372
    %991 = vmatpush.msra.mxu0 %v370
    %992 = vmatpush.msra.mxu0 %v368
    %993 = vmatpush.msra.mxu0 %v366
    %994 = vmatmul.f32.gmra.mxu0 %v956
    %v995 = vpop.f32.mrf.mxu0
    %v996 = vadd.f32 %v384, %v995
    %997 = vdwg.mxu0
    %v999 = vrot.slane %v976, 4
    %v1001 = vadd.f32 %v884, %v999
    %v1002 = vxor.u32 %v1001, 2147483648
    %v1003 = vmul.f32 %v1002, 1.442695
    %v1004 = vpow.pop %v1003
    %v1005 = vadd.f32 %v1004, 1.0
    %v1006 = vrcp.pop %v1005
    %v1007 = vmul.f32 %v1005, %v1006
    %v1008 = vsub.f32 1.0, %v1007
    %v1009 = vmul.f32 %v1006, %v1008
    %v1010 = vadd.f32 %v1006, %v1009
    %vm1011 = vweird.f32 %v1005
    %vm1012 = vweird.f32 %v1006
    %vm1013 = vmor %vm1011, %vm1012
    %v1014 = vsel %vm1013, %v1006, %v1010
    %v1015 = vand.u32 2147483647, %v1005
    %vm1016 = vcmp.eq.f32.partialorder %v1015, 8.507059e+37
    %v1017 = vand.u32 %v1005, 2147483648
    %v1018 = vor.u32 1.1754944e-38, %v1017
    %v1019 = vsel %vm1016, %v1018, %v1014
    %v1020 = vmul.f32 1.0, %v1019
    %1021 = vrot.lane.b32.xlu0 %v999, 64
    %v1022 = vpop.permute.xlu0 %1021
    %v1024 = vadd.f32 %v893, %v1022
    %v1025 = vxor.u32 %v1024, 2147483648
    %v1026 = vmul.f32 %v1025, 1.442695
    %v1027 = vpow.pop %v1026
    %v1028 = vadd.f32 %v1027, 1.0
    %v1029 = vrcp.pop %v1028
    %v1030 = vmul.f32 %v1028, %v1029
    %v1031 = vsub.f32 1.0, %v1030
    %v1032 = vmul.f32 %v1029, %v1031
    %v1033 = vadd.f32 %v1029, %v1032
    %vm1034 = vweird.f32 %v1028
    %vm1035 = vweird.f32 %v1029
    %vm1036 = vmor %vm1034, %vm1035
    %v1037 = vsel %vm1036, %v1029, %v1033
    %v1038 = vand.u32 2147483647, %v1028
    %vm1039 = vcmp.eq.f32.partialorder %v1038, 8.507059e+37
    %v1040 = vand.u32 %v1028, 2147483648
    %v1041 = vor.u32 1.1754944e-38, %v1040
    %v1042 = vsel %vm1039, %v1041, %v1037
    %v1043 = vmul.f32 1.0, %v1042
    %v1045 = vrot.slane %v996, 4
    %v1047 = vmul.f32 %v1020, %v1045
    %v1048 = vadd.f32 %v898, %v1047
    %v1049 = vtanh.pop %v1048
    %v1050 = vsub.f32 1.0, %v1043
    %v1051 = vmul.f32 %v1050, %v1049
    %v1052 = vrot.slane %v954, 4
    %v1054 = vmul.f32 %v1043, %v1052
    %v1055 = vadd.f32 %v1051, %v1054
    %v1056 = vmul.f32 %v195, %v1055
    %v1057 = vmul.f32 %v952, %v1052
    %v1058 = vadd.f32 %v1056, %v1057
    %v1060 = vrot.slane %v1058, 4
    %v1061 = vsel %vm387, %v1060, 0
    %1063 = vmatpush.msra.mxu0 0.0
    %1064 = vmatpush.msra.mxu0 0.0
    %1065 = vmatpush.msra.mxu0 0.0
    %1066 = vmatpush.msra.mxu0 0.0
    %1067 = vmatpush.msra.mxu0 0.0
    %1068 = vmatpush.msra.mxu0 0.0
    %1069 = vmatpush.msra.mxu0 0.0
    %1070 = vmatpush.msra.mxu0 0.0
    %1071 = vmatpush.msra.mxu0 %v379
    %1072 = vmatpush.msra.mxu0 %v377
    %1073 = vmatpush.msra.mxu0 %v375
    %1074 = vmatpush.msra.mxu0 %v373
    %1075 = vmatpush.msra.mxu0 %v371
    %1076 = vmatpush.msra.mxu0 %v369
    %1077 = vmatpush.msra.mxu0 %v367
    %1078 = vmatpush.msra.mxu0 %v365
    %1079 = vmatmul.f32.gmra.mxu0 %v1061
    %v1080 = vpop.f32.mrf.mxu0
    %v1081 = vadd.f32 %v383, %v1080
    %1082 = vdwg.mxu0
    %1083 = vmatpush.msra.mxu0 0.0
    %1084 = vmatpush.msra.mxu0 0.0
    %1085 = vmatpush.msra.mxu0 0.0
    %1086 = vmatpush.msra.mxu0 0.0
    %1087 = vmatpush.msra.mxu0 0.0
    %1088 = vmatpush.msra.mxu0 0.0
    %1089 = vmatpush.msra.mxu0 0.0
    %1090 = vmatpush.msra.mxu0 0.0
    %1091 = vmatpush.msra.mxu0 %v380
    %1092 = vmatpush.msra.mxu0 %v378
    %1093 = vmatpush.msra.mxu0 %v376
    %1094 = vmatpush.msra.mxu0 %v374
    %1095 = vmatpush.msra.mxu0 %v372
    %1096 = vmatpush.msra.mxu0 %v370
    %1097 = vmatpush.msra.mxu0 %v368
    %1098 = vmatpush.msra.mxu0 %v366
    %1099 = vmatmul.f32.gmra.mxu0 %v1061
    %v1100 = vpop.f32.mrf.mxu0
    %v1101 = vadd.f32 %v384, %v1100
    %1102 = vdwg.mxu0
    %v1103 = vrot.slane %v325, 4
    %1104 = vrot.lane.b32.xlu0 %v1103, 64
    %v1105 = vpop.permute.xlu0 %1104
    %v1107 = vsel %vm294, %v334, %v1105
    %1108 = vrot.lane.b32.xlu0 %v334, 96
    %v1109 = vpop.permute.xlu0 %1108
    %v1112 = vrot.slane %v354, 4
    %1113 = vrot.lane.b32.xlu0 %v1112, 32
    %v1114 = vpop.permute.xlu0 %1113
    %v1116 = vsel %vm294, %v1109, %v1114
    %1117 = vrot.lane.b32.xlu0 %v334, 64
    %v1118 = vpop.permute.xlu0 %1117
    %v1121 = vsel %vm294, %v1118, %v1112
    %v1122 = vadd.f32 %v1107, %v1081
    %v1123 = vxor.u32 %v1122, 2147483648
    %v1124 = vmul.f32 %v1123, 1.442695
    %v1125 = vpow.pop %v1124
    %v1126 = vadd.f32 %v1125, 1.0
    %v1127 = vrcp.pop %v1126
    %v1128 = vmul.f32 %v1126, %v1127
    %v1129 = vsub.f32 1.0, %v1128
    %v1130 = vmul.f32 %v1127, %v1129
    %v1131 = vadd.f32 %v1127, %v1130
    %vm1132 = vweird.f32 %v1126
    %vm1133 = vweird.f32 %v1127
    %vm1134 = vmor %vm1132, %vm1133
    %v1135 = vsel %vm1134, %v1127, %v1131
    %v1136 = vand.u32 2147483647, %v1126
    %vm1137 = vcmp.eq.f32.partialorder %v1136, 8.507059e+37
    %v1138 = vand.u32 %v1126, 2147483648
    %v1139 = vor.u32 1.1754944e-38, %v1138
    %v1140 = vsel %vm1137, %v1139, %v1135
    %v1141 = vmul.f32 1.0, %v1140
    %1143 = vrot.lane.b32.xlu0 %v1081, 64
    %v1144 = vpop.permute.xlu0 %1143
    %v1146 = vadd.f32 %v1116, %v1144
    %v1147 = vxor.u32 %v1146, 2147483648
    %v1148 = vmul.f32 %v1147, 1.442695
    %v1149 = vpow.pop %v1148
    %v1150 = vadd.f32 %v1149, 1.0
    %v1151 = vrcp.pop %v1150
    %v1152 = vmul.f32 %v1150, %v1151
    %v1153 = vsub.f32 1.0, %v1152
    %v1154 = vmul.f32 %v1151, %v1153
    %v1155 = vadd.f32 %v1151, %v1154
    %vm1156 = vweird.f32 %v1150
    %vm1157 = vweird.f32 %v1151
    %vm1158 = vmor %vm1156, %vm1157
    %v1159 = vsel %vm1158, %v1151, %v1155
    %v1160 = vand.u32 2147483647, %v1150
    %vm1161 = vcmp.eq.f32.partialorder %v1160, 8.507059e+37
    %v1162 = vand.u32 %v1150, 2147483648
    %v1163 = vor.u32 1.1754944e-38, %v1162
    %v1164 = vsel %vm1161, %v1163, %v1159
    %v1165 = vmul.f32 1.0, %v1164
    %v1166 = vmul.f32 %v1141, %v1101
    %v1167 = vadd.f32 %v1121, %v1166
    %v1168 = vtanh.pop %v1167
    %v1169 = vsub.f32 1.0, %v1165
    %v1170 = vmul.f32 %v1169, %v1168
    %v1172 = vmul.f32 %v1165, %v1060
    %v1173 = vadd.f32 %v1170, %v1172
    %v1174 = vmul.f32 %v196, %v1173
    %v1175 = vsub.f32 1.0, %v196
    %v1176 = vmul.f32 %v1175, %v1060
    %v1177 = vadd.f32 %v1174, %v1176
    %v1179 = vsel %vm387, %v1177, 0
    %1181 = vmatpush.msra.mxu0 0.0
    %1182 = vmatpush.msra.mxu0 0.0
    %1183 = vmatpush.msra.mxu0 0.0
    %1184 = vmatpush.msra.mxu0 0.0
    %1185 = vmatpush.msra.mxu0 0.0
    %1186 = vmatpush.msra.mxu0 0.0
    %1187 = vmatpush.msra.mxu0 0.0
    %1188 = vmatpush.msra.mxu0 0.0
    %1189 = vmatpush.msra.mxu0 %v379
    %1190 = vmatpush.msra.mxu0 %v377
    %1191 = vmatpush.msra.mxu0 %v375
    %1192 = vmatpush.msra.mxu0 %v373
    %1193 = vmatpush.msra.mxu0 %v371
    %1194 = vmatpush.msra.mxu0 %v369
    %1195 = vmatpush.msra.mxu0 %v367
    %1196 = vmatpush.msra.mxu0 %v365
    %1197 = vmatmul.f32.gmra.mxu0 %v1179
    %v1198 = vpop.f32.mrf.mxu0
    %v1199 = vadd.f32 %v383, %v1198
    %1200 = vdwg.mxu0
    %1201 = vmatpush.msra.mxu0 0.0
    %1202 = vmatpush.msra.mxu0 0.0
    %1203 = vmatpush.msra.mxu0 0.0
    %1204 = vmatpush.msra.mxu0 0.0
    %1205 = vmatpush.msra.mxu0 0.0
    %1206 = vmatpush.msra.mxu0 0.0
    %1207 = vmatpush.msra.mxu0 0.0
    %1208 = vmatpush.msra.mxu0 0.0
    %1209 = vmatpush.msra.mxu0 %v380
    %1210 = vmatpush.msra.mxu0 %v378
    %1211 = vmatpush.msra.mxu0 %v376
    %1212 = vmatpush.msra.mxu0 %v374
    %1213 = vmatpush.msra.mxu0 %v372
    %1214 = vmatpush.msra.mxu0 %v370
    %1215 = vmatpush.msra.mxu0 %v368
    %1216 = vmatpush.msra.mxu0 %v366
    %1217 = vmatmul.f32.gmra.mxu0 %v1179
    %v1218 = vpop.f32.mrf.mxu0
    %v1219 = vadd.f32 %v384, %v1218
    %1220 = vdwg.mxu0
    %v1222 = vrot.slane %v1199, 4
    %v1224 = vadd.f32 %v1107, %v1222
    %v1225 = vxor.u32 %v1224, 2147483648
    %v1226 = vmul.f32 %v1225, 1.442695
    %v1227 = vpow.pop %v1226
    %v1228 = vadd.f32 %v1227, 1.0
    %v1229 = vrcp.pop %v1228
    %v1230 = vmul.f32 %v1228, %v1229
    %v1231 = vsub.f32 1.0, %v1230
    %v1232 = vmul.f32 %v1229, %v1231
    %v1233 = vadd.f32 %v1229, %v1232
    %vm1234 = vweird.f32 %v1228
    %vm1235 = vweird.f32 %v1229
    %vm1236 = vmor %vm1234, %vm1235
    %v1237 = vsel %vm1236, %v1229, %v1233
    %v1238 = vand.u32 2147483647, %v1228
    %vm1239 = vcmp.eq.f32.partialorder %v1238, 8.507059e+37
    %v1240 = vand.u32 %v1228, 2147483648
    %v1241 = vor.u32 1.1754944e-38, %v1240
    %v1242 = vsel %vm1239, %v1241, %v1237
    %v1243 = vmul.f32 1.0, %v1242
    %1244 = vrot.lane.b32.xlu0 %v1222, 64
    %v1245 = vpop.permute.xlu0 %1244
    %v1247 = vadd.f32 %v1116, %v1245
    %v1248 = vxor.u32 %v1247, 2147483648
    %v1249 = vmul.f32 %v1248, 1.442695
    %v1250 = vpow.pop %v1249
    %v1251 = vadd.f32 %v1250, 1.0
    %v1252 = vrcp.pop %v1251
    %v1253 = vmul.f32 %v1251, %v1252
    %v1254 = vsub.f32 1.0, %v1253
    %v1255 = vmul.f32 %v1252, %v1254
    %v1256 = vadd.f32 %v1252, %v1255
    %vm1257 = vweird.f32 %v1251
    %vm1258 = vweird.f32 %v1252
    %vm1259 = vmor %vm1257, %vm1258
    %v1260 = vsel %vm1259, %v1252, %v1256
    %v1261 = vand.u32 2147483647, %v1251
    %vm1262 = vcmp.eq.f32.partialorder %v1261, 8.507059e+37
    %v1263 = vand.u32 %v1251, 2147483648
    %v1264 = vor.u32 1.1754944e-38, %v1263
    %v1265 = vsel %vm1262, %v1264, %v1260
    %v1266 = vmul.f32 1.0, %v1265
    %v1268 = vrot.slane %v1219, 4
    %v1270 = vmul.f32 %v1243, %v1268
    %v1271 = vadd.f32 %v1121, %v1270
    %v1272 = vtanh.pop %v1271
    %v1273 = vsub.f32 1.0, %v1266
    %v1274 = vmul.f32 %v1273, %v1272
    %v1275 = vrot.slane %v1177, 4
    %v1277 = vmul.f32 %v1266, %v1275
    %v1278 = vadd.f32 %v1274, %v1277
    %v1279 = vmul.f32 %v196, %v1278
    %v1280 = vmul.f32 %v1175, %v1275
    %v1281 = vadd.f32 %v1279, %v1280
    %v1283 = vrot.slane %v1279, 4
    %v1285 = vsel %vm294, %v503, %v1283
    %v1287 = vrot.slane %v1174, 4
    %v1289 = vsel %vm294, %v608, %v1287
    %v1291 = vrot.slane %v1056, 4
    %v1293 = vsel %vm294, %v728, %v1291
    %v1295 = vrot.slane %v951, 4
    %v1297 = vsel %vm294, %v833, %v1295
    %v1299 = vrot.slane %v833, 4
    %v1301 = vsel %vm294, %v951, %v1299
    %v1303 = vrot.slane %v728, 4
    %v1305 = vsel %vm294, %v1056, %v1303
    %v1307 = vrot.slane %v608, 4
    %v1309 = vsel %vm294, %v1174, %v1307
    %v1311 = vrot.slane %v503, 4
    %v1313 = vsel %vm294, %v1279, %v1311
    %vm1314 = vcmask 1043456
    %v1315 = vsel %vm1314, %v1285, %v1289
    %v1316 = vsel %vm1314, %v1293, %v1297
    %v1317 = vsel %vm1314, %v1301, %v1305
    %v1318 = vsel %vm1314, %v1309, %v1313
    %v1319 = vld [vmem:[%s17] sm:$0xff]
    %v1320 = vld [vmem:[%s17 + $0x8] sm:$0xff]
    %v1321 = vld [vmem:[%s17 + $0x10] sm:$0xff]
    %v1322 = vld [vmem:[%s17 + $0x18] sm:$0xff]
    %v1323 = vld [vmem:[%s17 + $0x20] sm:$0xff]
    %v1324 = vld [vmem:[%s17 + $0x28] sm:$0xff]
    %v1325 = vld [vmem:[%s17 + $0x30] sm:$0xff]
    %v1326 = vld [vmem:[%s17 + $0x38] sm:$0xff]
    %v1327 = vld [vmem:[%s17 + $0x40] sm:$0xff]
    %v1328 = vld [vmem:[%s17 + $0x48] sm:$0xff]
    %v1329 = vld [vmem:[%s17 + $0x50] sm:$0xff]
    %v1330 = vld [vmem:[%s17 + $0x58] sm:$0xff]
    %v1331 = vld [vmem:[%s17 + $0x60] sm:$0xff]
    %v1332 = vld [vmem:[%s17 + $0x68] sm:$0xff]
    %v1333 = vld [vmem:[%s17 + $0x70] sm:$0xff]
    %v1334 = vld [vmem:[%s17 + $0x78] sm:$0xff]
    %v1335 = vld [vmem:[%s21] sm:$0x3]
    %v1337 = vperm.slane %v1335, 0
    %v1338 = vperm.slane %v1335, 1
    %v1342 = vsel %vm387, %v1315, 0
    %v1345 = vsel %vm387, %v1316, 0
    %v1348 = vsel %vm387, %v1317, 0
    %v1351 = vsel %vm387, %v1318, 0
    %1353 = vmatpush.msra.mxu0 0.0
    %1354 = vmatpush.msra.mxu0 0.0
    %1355 = vmatpush.msra.mxu0 0.0
    %1356 = vmatpush.msra.mxu0 0.0
    %1357 = vmatpush.msra.mxu0 0.0
    %1358 = vmatpush.msra.mxu0 0.0
    %1359 = vmatpush.msra.mxu0 0.0
    %1360 = vmatpush.msra.mxu0 0.0
    %1361 = vmatpush.msra.mxu0 %v1333
    %1362 = vmatpush.msra.mxu0 %v1331
    %1363 = vmatpush.msra.mxu0 %v1329
    %1364 = vmatpush.msra.mxu0 %v1327
    %1365 = vmatpush.msra.mxu0 %v1325
    %1366 = vmatpush.msra.mxu0 %v1323
    %1367 = vmatpush.msra.mxu0 %v1321
    %1368 = vmatpush.msra.mxu0 %v1319
    %1369 = vmatmul.f32.gmra.mxu0 %v1342
    %v1370 = vpop.f32.mrf.mxu0
    %v1371 = vadd.f32 %v1337, %v1370
    %1372 = vmatmul.f32.gmra.mxu0 %v1345
    %v1373 = vpop.f32.mrf.mxu0
    %v1374 = vadd.f32 %v1337, %v1373
    %1375 = vmatmul.f32.gmra.mxu0 %v1348
    %v1376 = vpop.f32.mrf.mxu0
    %v1377 = vadd.f32 %v1337, %v1376
    %1378 = vmatmul.f32.gmra.mxu0 %v1351
    %v1379 = vpop.f32.mrf.mxu0
    %v1380 = vadd.f32 %v1337, %v1379
    %1381 = vdwg.mxu0
    %1382 = vmatpush.msra.mxu0 0.0
    %1383 = vmatpush.msra.mxu0 0.0
    %1384 = vmatpush.msra.mxu0 0.0
    %1385 = vmatpush.msra.mxu0 0.0
    %1386 = vmatpush.msra.mxu0 0.0
    %1387 = vmatpush.msra.mxu0 0.0
    %1388 = vmatpush.msra.mxu0 0.0
    %1389 = vmatpush.msra.mxu0 0.0
    %1390 = vmatpush.msra.mxu0 %v1334
    %1391 = vmatpush.msra.mxu0 %v1332
    %1392 = vmatpush.msra.mxu0 %v1330
    %1393 = vmatpush.msra.mxu0 %v1328
    %1394 = vmatpush.msra.mxu0 %v1326
    %1395 = vmatpush.msra.mxu0 %v1324
    %1396 = vmatpush.msra.mxu0 %v1322
    %1397 = vmatpush.msra.mxu0 %v1320
    %1398 = vmatmul.f32.gmra.mxu0 %v1342
    %v1399 = vpop.f32.mrf.mxu0
    %v1400 = vadd.f32 %v1338, %v1399
    %1401 = vmatmul.f32.gmra.mxu0 %v1345
    %v1402 = vpop.f32.mrf.mxu0
    %v1403 = vadd.f32 %v1338, %v1402
    %1404 = vmatmul.f32.gmra.mxu0 %v1348
    %v1405 = vpop.f32.mrf.mxu0
    %v1406 = vadd.f32 %v1338, %v1405
    %1407 = vmatmul.f32.gmra.mxu0 %v1351
    %v1408 = vpop.f32.mrf.mxu0
    %v1409 = vadd.f32 %v1338, %v1408
    %1410 = vdwg.mxu0
    %v1411 = vld [vmem:[%s19] sm:$0xff]
    %v1412 = vld [vmem:[%s19 + $0x8] sm:$0xff]
    %v1413 = vld [vmem:[%s19 + $0x10] sm:$0xff]
    %v1414 = vld [vmem:[%s19 + $0x18] sm:$0xff]
    %v1415 = vld [vmem:[%s19 + $0x20] sm:$0xff]
    %v1416 = vld [vmem:[%s19 + $0x28] sm:$0xff]
    %v1417 = vld [vmem:[%s19 + $0x30] sm:$0xff]
    %v1418 = vld [vmem:[%s19 + $0x38] sm:$0xff]
    %v1419 = vld [vmem:[%s19 + $0x40] sm:$0xff]
    %v1420 = vld [vmem:[%s19 + $0x48] sm:$0xff]
    %v1421 = vld [vmem:[%s19 + $0x50] sm:$0xff]
    %v1422 = vld [vmem:[%s19 + $0x58] sm:$0xff]
    %v1423 = vld [vmem:[%s19 + $0x60] sm:$0xff]
    %v1424 = vld [vmem:[%s19 + $0x68] sm:$0xff]
    %v1425 = vld [vmem:[%s19 + $0x70] sm:$0xff]
    %v1426 = vld [vmem:[%s19 + $0x78] sm:$0xff]
    %v1427 = vld [vmem:[%s23] sm:$0x3]
    %v1429 = vperm.slane %v1427, 0
    %v1430 = vperm.slane %v1427, 1
    %1433 = vmatpush.msra.mxu0 0.0
    %1434 = vmatpush.msra.mxu0 0.0
    %1435 = vmatpush.msra.mxu0 0.0
    %1436 = vmatpush.msra.mxu0 0.0
    %1437 = vmatpush.msra.mxu0 0.0
    %1438 = vmatpush.msra.mxu0 0.0
    %1439 = vmatpush.msra.mxu0 0.0
    %1440 = vmatpush.msra.mxu0 0.0
    %1441 = vmatpush.msra.mxu0 %v1425
    %1442 = vmatpush.msra.mxu0 %v1423
    %1443 = vmatpush.msra.mxu0 %v1421
    %1444 = vmatpush.msra.mxu0 %v1419
    %1445 = vmatpush.msra.mxu0 %v1417
    %1446 = vmatpush.msra.mxu0 %v1415
    %1447 = vmatpush.msra.mxu0 %v1413
    %1448 = vmatpush.msra.mxu0 %v1411
    %1449 = vmatmul.f32.gmra.mxu0 %v389
    %v1450 = vpop.f32.mrf.mxu0
    %v1451 = vadd.f32 %v1429, %v1450
    %1452 = vdwg.mxu0
    %1453 = vmatpush.msra.mxu0 0.0
    %1454 = vmatpush.msra.mxu0 0.0
    %1455 = vmatpush.msra.mxu0 0.0
    %1456 = vmatpush.msra.mxu0 0.0
    %1457 = vmatpush.msra.mxu0 0.0
    %1458 = vmatpush.msra.mxu0 0.0
    %1459 = vmatpush.msra.mxu0 0.0
    %1460 = vmatpush.msra.mxu0 0.0
    %1461 = vmatpush.msra.mxu0 %v1426
    %1462 = vmatpush.msra.mxu0 %v1424
    %1463 = vmatpush.msra.mxu0 %v1422
    %1464 = vmatpush.msra.mxu0 %v1420
    %1465 = vmatpush.msra.mxu0 %v1418
    %1466 = vmatpush.msra.mxu0 %v1416
    %1467 = vmatpush.msra.mxu0 %v1414
    %1468 = vmatpush.msra.mxu0 %v1412
    %1469 = vmatmul.f32.gmra.mxu0 %v389
    %v1470 = vpop.f32.mrf.mxu0
    %v1471 = vadd.f32 %v1430, %v1470
    %1472 = vdwg.mxu0
    %v1474 = vrot.slane %v1380, 4
    %1475 = vrot.lane.b32.xlu0 %v1474, 64
    %v1476 = vpop.permute.xlu0 %1475
    %v1478 = vsel %vm294, %v1371, %v1476
    %1480 = vrot.lane.b32.xlu0 %v1371, 96
    %v1481 = vpop.permute.xlu0 %1480
    %v1484 = vrot.slane %v1409, 4
    %1485 = vrot.lane.b32.xlu0 %v1484, 32
    %v1486 = vpop.permute.xlu0 %1485
    %v1488 = vsel %vm294, %v1481, %v1486
    %1489 = vrot.lane.b32.xlu0 %v1371, 64
    %v1490 = vpop.permute.xlu0 %1489
    %v1493 = vsel %vm294, %v1490, %v1484
    %v1494 = vadd.f32 %v1478, %v1451
    %v1495 = vxor.u32 %v1494, 2147483648
    %v1496 = vmul.f32 %v1495, 1.442695
    %v1497 = vpow.pop %v1496
    %v1498 = vadd.f32 %v1497, 1.0
    %v1499 = vrcp.pop %v1498
    %v1500 = vmul.f32 %v1498, %v1499
    %v1501 = vsub.f32 1.0, %v1500
    %v1502 = vmul.f32 %v1499, %v1501
    %v1503 = vadd.f32 %v1499, %v1502
    %vm1504 = vweird.f32 %v1498
    %vm1505 = vweird.f32 %v1499
    %vm1506 = vmor %vm1504, %vm1505
    %v1507 = vsel %vm1506, %v1499, %v1503
    %v1508 = vand.u32 2147483647, %v1498
    %vm1509 = vcmp.eq.f32.partialorder %v1508, 8.507059e+37
    %v1510 = vand.u32 %v1498, 2147483648
    %v1511 = vor.u32 1.1754944e-38, %v1510
    %v1512 = vsel %vm1509, %v1511, %v1507
    %v1513 = vmul.f32 1.0, %v1512
    %1515 = vrot.lane.b32.xlu0 %v1451, 64
    %v1516 = vpop.permute.xlu0 %1515
    %v1518 = vadd.f32 %v1488, %v1516
    %v1519 = vxor.u32 %v1518, 2147483648
    %v1520 = vmul.f32 %v1519, 1.442695
    %v1521 = vpow.pop %v1520
    %v1522 = vadd.f32 %v1521, 1.0
    %v1523 = vrcp.pop %v1522
    %v1524 = vmul.f32 %v1522, %v1523
    %v1525 = vsub.f32 1.0, %v1524
    %v1526 = vmul.f32 %v1523, %v1525
    %v1527 = vadd.f32 %v1523, %v1526
    %vm1528 = vweird.f32 %v1522
    %vm1529 = vweird.f32 %v1523
    %vm1530 = vmor %vm1528, %vm1529
    %v1531 = vsel %vm1530, %v1523, %v1527
    %v1532 = vand.u32 2147483647, %v1522
    %vm1533 = vcmp.eq.f32.partialorder %v1532, 8.507059e+37
    %v1534 = vand.u32 %v1522, 2147483648
    %v1535 = vor.u32 1.1754944e-38, %v1534
    %v1536 = vsel %vm1533, %v1535, %v1531
    %v1537 = vmul.f32 1.0, %v1536
    %v1538 = vmul.f32 %v1513, %v1471
    %v1539 = vadd.f32 %v1493, %v1538
    %v1540 = vtanh.pop %v1539
    %v1541 = vsub.f32 1.0, %v1537
    %v1542 = vmul.f32 %v1541, %v1540
    %v1543 = vmul.f32 %v1537, 0.0
    %v1544 = vadd.f32 %v1542, %v1543
    %v1545 = vmul.f32 %v193, %v1544
    %v1546 = vadd.f32 %v1545, %v505
    %v1548 = vsel %vm387, %v1546, 0
    %1550 = vmatpush.msra.mxu0 0.0
    %1551 = vmatpush.msra.mxu0 0.0
    %1552 = vmatpush.msra.mxu0 0.0
    %1553 = vmatpush.msra.mxu0 0.0
    %1554 = vmatpush.msra.mxu0 0.0
    %1555 = vmatpush.msra.mxu0 0.0
    %1556 = vmatpush.msra.mxu0 0.0
    %1557 = vmatpush.msra.mxu0 0.0
    %1558 = vmatpush.msra.mxu0 %v1425
    %1559 = vmatpush.msra.mxu0 %v1423
    %1560 = vmatpush.msra.mxu0 %v1421
    %1561 = vmatpush.msra.mxu0 %v1419
    %1562 = vmatpush.msra.mxu0 %v1417
    %1563 = vmatpush.msra.mxu0 %v1415
    %1564 = vmatpush.msra.mxu0 %v1413
    %1565 = vmatpush.msra.mxu0 %v1411
    %1566 = vmatmul.f32.gmra.mxu0 %v1548
    %v1567 = vpop.f32.mrf.mxu0
    %v1568 = vadd.f32 %v1429, %v1567
    %1569 = vdwg.mxu0
    %1570 = vmatpush.msra.mxu0 0.0
    %1571 = vmatpush.msra.mxu0 0.0
    %1572 = vmatpush.msra.mxu0 0.0
    %1573 = vmatpush.msra.mxu0 0.0
    %1574 = vmatpush.msra.mxu0 0.0
    %1575 = vmatpush.msra.mxu0 0.0
    %1576 = vmatpush.msra.mxu0 0.0
    %1577 = vmatpush.msra.mxu0 0.0
    %1578 = vmatpush.msra.mxu0 %v1426
    %1579 = vmatpush.msra.mxu0 %v1424
    %1580 = vmatpush.msra.mxu0 %v1422
    %1581 = vmatpush.msra.mxu0 %v1420
    %1582 = vmatpush.msra.mxu0 %v1418
    %1583 = vmatpush.msra.mxu0 %v1416
    %1584 = vmatpush.msra.mxu0 %v1414
    %1585 = vmatpush.msra.mxu0 %v1412
    %1586 = vmatmul.f32.gmra.mxu0 %v1548
    %v1587 = vpop.f32.mrf.mxu0
    %v1588 = vadd.f32 %v1430, %v1587
    %1589 = vdwg.mxu0
    %v1591 = vrot.slane %v1568, 4
    %v1593 = vadd.f32 %v1478, %v1591
    %v1594 = vxor.u32 %v1593, 2147483648
    %v1595 = vmul.f32 %v1594, 1.442695
    %v1596 = vpow.pop %v1595
    %v1597 = vadd.f32 %v1596, 1.0
    %v1598 = vrcp.pop %v1597
    %v1599 = vmul.f32 %v1597, %v1598
    %v1600 = vsub.f32 1.0, %v1599
    %v1601 = vmul.f32 %v1598, %v1600
    %v1602 = vadd.f32 %v1598, %v1601
    %vm1603 = vweird.f32 %v1597
    %vm1604 = vweird.f32 %v1598
    %vm1605 = vmor %vm1603, %vm1604
    %v1606 = vsel %vm1605, %v1598, %v1602
    %v1607 = vand.u32 2147483647, %v1597
    %vm1608 = vcmp.eq.f32.partialorder %v1607, 8.507059e+37
    %v1609 = vand.u32 %v1597, 2147483648
    %v1610 = vor.u32 1.1754944e-38, %v1609
    %v1611 = vsel %vm1608, %v1610, %v1606
    %v1612 = vmul.f32 1.0, %v1611
    %1613 = vrot.lane.b32.xlu0 %v1591, 64
    %v1614 = vpop.permute.xlu0 %1613
    %v1616 = vadd.f32 %v1488, %v1614
    %v1617 = vxor.u32 %v1616, 2147483648
    %v1618 = vmul.f32 %v1617, 1.442695
    %v1619 = vpow.pop %v1618
    %v1620 = vadd.f32 %v1619, 1.0
    %v1621 = vrcp.pop %v1620
    %v1622 = vmul.f32 %v1620, %v1621
    %v1623 = vsub.f32 1.0, %v1622
    %v1624 = vmul.f32 %v1621, %v1623
    %v1625 = vadd.f32 %v1621, %v1624
    %vm1626 = vweird.f32 %v1620
    %vm1627 = vweird.f32 %v1621
    %vm1628 = vmor %vm1626, %vm1627
    %v1629 = vsel %vm1628, %v1621, %v1625
    %v1630 = vand.u32 2147483647, %v1620
    %vm1631 = vcmp.eq.f32.partialorder %v1630, 8.507059e+37
    %v1632 = vand.u32 %v1620, 2147483648
    %v1633 = vor.u32 1.1754944e-38, %v1632
    %v1634 = vsel %vm1631, %v1633, %v1629
    %v1635 = vmul.f32 1.0, %v1634
    %v1637 = vrot.slane %v1588, 4
    %v1639 = vmul.f32 %v1612, %v1637
    %v1640 = vadd.f32 %v1493, %v1639
    %v1641 = vtanh.pop %v1640
    %v1642 = vsub.f32 1.0, %v1635
    %v1643 = vmul.f32 %v1642, %v1641
    %v1644 = vrot.slane %v1546, 4
    %v1646 = vmul.f32 %v1635, %v1644
    %v1647 = vadd.f32 %v1643, %v1646
    %v1648 = vmul.f32 %v193, %v1647
    %v1649 = vmul.f32 %v504, %v1644
    %v1650 = vadd.f32 %v1648, %v1649
    %v1652 = vrot.slane %v1650, 4
    %v1653 = vsel %vm387, %v1652, 0
    %1655 = vmatpush.msra.mxu0 0.0
    %1656 = vmatpush.msra.mxu0 0.0
    %1657 = vmatpush.msra.mxu0 0.0
    %1658 = vmatpush.msra.mxu0 0.0
    %1659 = vmatpush.msra.mxu0 0.0
    %1660 = vmatpush.msra.mxu0 0.0
    %1661 = vmatpush.msra.mxu0 0.0
    %1662 = vmatpush.msra.mxu0 0.0
    %1663 = vmatpush.msra.mxu0 %v1425
    %1664 = vmatpush.msra.mxu0 %v1423
    %1665 = vmatpush.msra.mxu0 %v1421
    %1666 = vmatpush.msra.mxu0 %v1419
    %1667 = vmatpush.msra.mxu0 %v1417
    %1668 = vmatpush.msra.mxu0 %v1415
    %1669 = vmatpush.msra.mxu0 %v1413
    %1670 = vmatpush.msra.mxu0 %v1411
    %1671 = vmatmul.f32.gmra.mxu0 %v1653
    %v1672 = vpop.f32.mrf.mxu0
    %v1673 = vadd.f32 %v1429, %v1672
    %1674 = vdwg.mxu0
    %1675 = vmatpush.msra.mxu0 0.0
    %1676 = vmatpush.msra.mxu0 0.0
    %1677 = vmatpush.msra.mxu0 0.0
    %1678 = vmatpush.msra.mxu0 0.0
    %1679 = vmatpush.msra.mxu0 0.0
    %1680 = vmatpush.msra.mxu0 0.0
    %1681 = vmatpush.msra.mxu0 0.0
    %1682 = vmatpush.msra.mxu0 0.0
    %1683 = vmatpush.msra.mxu0 %v1426
    %1684 = vmatpush.msra.mxu0 %v1424
    %1685 = vmatpush.msra.mxu0 %v1422
    %1686 = vmatpush.msra.mxu0 %v1420
    %1687 = vmatpush.msra.mxu0 %v1418
    %1688 = vmatpush.msra.mxu0 %v1416
    %1689 = vmatpush.msra.mxu0 %v1414
    %1690 = vmatpush.msra.mxu0 %v1412
    %1691 = vmatmul.f32.gmra.mxu0 %v1653
    %v1692 = vpop.f32.mrf.mxu0
    %v1693 = vadd.f32 %v1430, %v1692
    %1694 = vdwg.mxu0
    %v1696 = vrot.slane %v1377, 4
    %1697 = vrot.lane.b32.xlu0 %v1696, 64
    %v1698 = vpop.permute.xlu0 %1697
    %v1700 = vsel %vm294, %v1374, %v1698
    %1702 = vrot.lane.b32.xlu0 %v1374, 96
    %v1703 = vpop.permute.xlu0 %1702
    %v1706 = vrot.slane %v1406, 4
    %1707 = vrot.lane.b32.xlu0 %v1706, 32
    %v1708 = vpop.permute.xlu0 %1707
    %v1710 = vsel %vm294, %v1703, %v1708
    %1711 = vrot.lane.b32.xlu0 %v1374, 64
    %v1712 = vpop.permute.xlu0 %1711
    %v1715 = vsel %vm294, %v1712, %v1706
    %v1716 = vadd.f32 %v1700, %v1673
    %v1717 = vxor.u32 %v1716, 2147483648
    %v1718 = vmul.f32 %v1717, 1.442695
    %v1719 = vpow.pop %v1718
    %v1720 = vadd.f32 %v1719, 1.0
    %v1721 = vrcp.pop %v1720
    %v1722 = vmul.f32 %v1720, %v1721
    %v1723 = vsub.f32 1.0, %v1722
    %v1724 = vmul.f32 %v1721, %v1723
    %v1725 = vadd.f32 %v1721, %v1724
    %vm1726 = vweird.f32 %v1720
    %vm1727 = vweird.f32 %v1721
    %vm1728 = vmor %vm1726, %vm1727
    %v1729 = vsel %vm1728, %v1721, %v1725
    %v1730 = vand.u32 2147483647, %v1720
    %vm1731 = vcmp.eq.f32.partialorder %v1730, 8.507059e+37
    %v1732 = vand.u32 %v1720, 2147483648
    %v1733 = vor.u32 1.1754944e-38, %v1732
    %v1734 = vsel %vm1731, %v1733, %v1729
    %v1735 = vmul.f32 1.0, %v1734
    %1737 = vrot.lane.b32.xlu0 %v1673, 64
    %v1738 = vpop.permute.xlu0 %1737
    %v1740 = vadd.f32 %v1710, %v1738
    %v1741 = vxor.u32 %v1740, 2147483648
    %v1742 = vmul.f32 %v1741, 1.442695
    %v1743 = vpow.pop %v1742
    %v1744 = vadd.f32 %v1743, 1.0
    %v1745 = vrcp.pop %v1744
    %v1746 = vmul.f32 %v1744, %v1745
    %v1747 = vsub.f32 1.0, %v1746
    %v1748 = vmul.f32 %v1745, %v1747
    %v1749 = vadd.f32 %v1745, %v1748
    %vm1750 = vweird.f32 %v1744
    %vm1751 = vweird.f32 %v1745
    %vm1752 = vmor %vm1750, %vm1751
    %v1753 = vsel %vm1752, %v1745, %v1749
    %v1754 = vand.u32 2147483647, %v1744
    %vm1755 = vcmp.eq.f32.partialorder %v1754, 8.507059e+37
    %v1756 = vand.u32 %v1744, 2147483648
    %v1757 = vor.u32 1.1754944e-38, %v1756
    %v1758 = vsel %vm1755, %v1757, %v1753
    %v1759 = vmul.f32 1.0, %v1758
    %v1760 = vmul.f32 %v1735, %v1693
    %v1761 = vadd.f32 %v1715, %v1760
    %v1762 = vtanh.pop %v1761
    %v1763 = vsub.f32 1.0, %v1759
    %v1764 = vmul.f32 %v1763, %v1762
    %v1766 = vmul.f32 %v1759, %v1652
    %v1767 = vadd.f32 %v1764, %v1766
    %v1768 = vmul.f32 %v194, %v1767
    %v1769 = vmul.f32 %v729, %v1652
    %v1770 = vadd.f32 %v1768, %v1769
    %v1772 = vsel %vm387, %v1770, 0
    %1774 = vmatpush.msra.mxu0 0.0
    %1775 = vmatpush.msra.mxu0 0.0
    %1776 = vmatpush.msra.mxu0 0.0
    %1777 = vmatpush.msra.mxu0 0.0
    %1778 = vmatpush.msra.mxu0 0.0
    %1779 = vmatpush.msra.mxu0 0.0
    %1780 = vmatpush.msra.mxu0 0.0
    %1781 = vmatpush.msra.mxu0 0.0
    %1782 = vmatpush.msra.mxu0 %v1425
    %1783 = vmatpush.msra.mxu0 %v1423
    %1784 = vmatpush.msra.mxu0 %v1421
    %1785 = vmatpush.msra.mxu0 %v1419
    %1786 = vmatpush.msra.mxu0 %v1417
    %1787 = vmatpush.msra.mxu0 %v1415
    %1788 = vmatpush.msra.mxu0 %v1413
    %1789 = vmatpush.msra.mxu0 %v1411
    %1790 = vmatmul.f32.gmra.mxu0 %v1772
    %v1791 = vpop.f32.mrf.mxu0
    %v1792 = vadd.f32 %v1429, %v1791
    %1793 = vdwg.mxu0
    %1794 = vmatpush.msra.mxu0 0.0
    %1795 = vmatpush.msra.mxu0 0.0
    %1796 = vmatpush.msra.mxu0 0.0
    %1797 = vmatpush.msra.mxu0 0.0
    %1798 = vmatpush.msra.mxu0 0.0
    %1799 = vmatpush.msra.mxu0 0.0
    %1800 = vmatpush.msra.mxu0 0.0
    %1801 = vmatpush.msra.mxu0 0.0
    %1802 = vmatpush.msra.mxu0 %v1426
    %1803 = vmatpush.msra.mxu0 %v1424
    %1804 = vmatpush.msra.mxu0 %v1422
    %1805 = vmatpush.msra.mxu0 %v1420
    %1806 = vmatpush.msra.mxu0 %v1418
    %1807 = vmatpush.msra.mxu0 %v1416
    %1808 = vmatpush.msra.mxu0 %v1414
    %1809 = vmatpush.msra.mxu0 %v1412
    %1810 = vmatmul.f32.gmra.mxu0 %v1772
    %v1811 = vpop.f32.mrf.mxu0
    %v1812 = vadd.f32 %v1430, %v1811
    %1813 = vdwg.mxu0
    %v1815 = vrot.slane %v1792, 4
    %v1817 = vadd.f32 %v1700, %v1815
    %v1818 = vxor.u32 %v1817, 2147483648
    %v1819 = vmul.f32 %v1818, 1.442695
    %v1820 = vpow.pop %v1819
    %v1821 = vadd.f32 %v1820, 1.0
    %v1822 = vrcp.pop %v1821
    %v1823 = vmul.f32 %v1821, %v1822
    %v1824 = vsub.f32 1.0, %v1823
    %v1825 = vmul.f32 %v1822, %v1824
    %v1826 = vadd.f32 %v1822, %v1825
    %vm1827 = vweird.f32 %v1821
    %vm1828 = vweird.f32 %v1822
    %vm1829 = vmor %vm1827, %vm1828
    %v1830 = vsel %vm1829, %v1822, %v1826
    %v1831 = vand.u32 2147483647, %v1821
    %vm1832 = vcmp.eq.f32.partialorder %v1831, 8.507059e+37
    %v1833 = vand.u32 %v1821, 2147483648
    %v1834 = vor.u32 1.1754944e-38, %v1833
    %v1835 = vsel %vm1832, %v1834, %v1830
    %v1836 = vmul.f32 1.0, %v1835
    %1837 = vrot.lane.b32.xlu0 %v1815, 64
    %v1838 = vpop.permute.xlu0 %1837
    %v1840 = vadd.f32 %v1710, %v1838
    %v1841 = vxor.u32 %v1840, 2147483648
    %v1842 = vmul.f32 %v1841, 1.442695
    %v1843 = vpow.pop %v1842
    %v1844 = vadd.f32 %v1843, 1.0
    %v1845 = vrcp.pop %v1844
    %v1846 = vmul.f32 %v1844, %v1845
    %v1847 = vsub.f32 1.0, %v1846
    %v1848 = vmul.f32 %v1845, %v1847
    %v1849 = vadd.f32 %v1845, %v1848
    %vm1850 = vweird.f32 %v1844
    %vm1851 = vweird.f32 %v1845
    %vm1852 = vmor %vm1850, %vm1851
    %v1853 = vsel %vm1852, %v1845, %v1849
    %v1854 = vand.u32 2147483647, %v1844
    %vm1855 = vcmp.eq.f32.partialorder %v1854, 8.507059e+37
    %v1856 = vand.u32 %v1844, 2147483648
    %v1857 = vor.u32 1.1754944e-38, %v1856
    %v1858 = vsel %vm1855, %v1857, %v1853
    %v1859 = vmul.f32 1.0, %v1858
    %v1861 = vrot.slane %v1812, 4
    %v1863 = vmul.f32 %v1836, %v1861
    %v1864 = vadd.f32 %v1715, %v1863
    %v1865 = vtanh.pop %v1864
    %v1866 = vsub.f32 1.0, %v1859
    %v1867 = vmul.f32 %v1866, %v1865
    %v1868 = vrot.slane %v1770, 4
    %v1870 = vmul.f32 %v1859, %v1868
    %v1871 = vadd.f32 %v1867, %v1870
    %v1872 = vmul.f32 %v194, %v1871
    %v1873 = vmul.f32 %v729, %v1868
    %v1874 = vadd.f32 %v1872, %v1873
    %v1876 = vrot.slane %v1874, 4
    %v1877 = vsel %vm387, %v1876, 0
    %1879 = vmatpush.msra.mxu0 0.0
    %1880 = vmatpush.msra.mxu0 0.0
    %1881 = vmatpush.msra.mxu0 0.0
    %1882 = vmatpush.msra.mxu0 0.0
    %1883 = vmatpush.msra.mxu0 0.0
    %1884 = vmatpush.msra.mxu0 0.0
    %1885 = vmatpush.msra.mxu0 0.0
    %1886 = vmatpush.msra.mxu0 0.0
    %1887 = vmatpush.msra.mxu0 %v1425
    %1888 = vmatpush.msra.mxu0 %v1423
    %1889 = vmatpush.msra.mxu0 %v1421
    %1890 = vmatpush.msra.mxu0 %v1419
    %1891 = vmatpush.msra.mxu0 %v1417
    %1892 = vmatpush.msra.mxu0 %v1415
    %1893 = vmatpush.msra.mxu0 %v1413
    %1894 = vmatpush.msra.mxu0 %v1411
    %1895 = vmatmul.f32.gmra.mxu0 %v1877
    %v1896 = vpop.f32.mrf.mxu0
    %v1897 = vadd.f32 %v1429, %v1896
    %1898 = vdwg.mxu0
    %1899 = vmatpush.msra.mxu0 0.0
    %1900 = vmatpush.msra.mxu0 0.0
    %1901 = vmatpush.msra.mxu0 0.0
    %1902 = vmatpush.msra.mxu0 0.0
    %1903 = vmatpush.msra.mxu0 0.0
    %1904 = vmatpush.msra.mxu0 0.0
    %1905 = vmatpush.msra.mxu0 0.0
    %1906 = vmatpush.msra.mxu0 0.0
    %1907 = vmatpush.msra.mxu0 %v1426
    %1908 = vmatpush.msra.mxu0 %v1424
    %1909 = vmatpush.msra.mxu0 %v1422
    %1910 = vmatpush.msra.mxu0 %v1420
    %1911 = vmatpush.msra.mxu0 %v1418
    %1912 = vmatpush.msra.mxu0 %v1416
    %1913 = vmatpush.msra.mxu0 %v1414
    %1914 = vmatpush.msra.mxu0 %v1412
    %1915 = vmatmul.f32.gmra.mxu0 %v1877
    %v1916 = vpop.f32.mrf.mxu0
    %v1917 = vadd.f32 %v1430, %v1916
    %1918 = vdwg.mxu0
    %v1919 = vrot.slane %v1374, 4
    %1920 = vrot.lane.b32.xlu0 %v1919, 64
    %v1921 = vpop.permute.xlu0 %1920
    %v1923 = vsel %vm294, %v1377, %v1921
    %1924 = vrot.lane.b32.xlu0 %v1377, 96
    %v1925 = vpop.permute.xlu0 %1924
    %v1928 = vrot.slane %v1403, 4
    %1929 = vrot.lane.b32.xlu0 %v1928, 32
    %v1930 = vpop.permute.xlu0 %1929
    %v1932 = vsel %vm294, %v1925, %v1930
    %1933 = vrot.lane.b32.xlu0 %v1377, 64
    %v1934 = vpop.permute.xlu0 %1933
    %v1937 = vsel %vm294, %v1934, %v1928
    %v1938 = vadd.f32 %v1923, %v1897
    %v1939 = vxor.u32 %v1938, 2147483648
    %v1940 = vmul.f32 %v1939, 1.442695
    %v1941 = vpow.pop %v1940
    %v1942 = vadd.f32 %v1941, 1.0
    %v1943 = vrcp.pop %v1942
    %v1944 = vmul.f32 %v1942, %v1943
    %v1945 = vsub.f32 1.0, %v1944
    %v1946 = vmul.f32 %v1943, %v1945
    %v1947 = vadd.f32 %v1943, %v1946
    %vm1948 = vweird.f32 %v1942
    %vm1949 = vweird.f32 %v1943
    %vm1950 = vmor %vm1948, %vm1949
    %v1951 = vsel %vm1950, %v1943, %v1947
    %v1952 = vand.u32 2147483647, %v1942
    %vm1953 = vcmp.eq.f32.partialorder %v1952, 8.507059e+37
    %v1954 = vand.u32 %v1942, 2147483648
    %v1955 = vor.u32 1.1754944e-38, %v1954
    %v1956 = vsel %vm1953, %v1955, %v1951
    %v1957 = vmul.f32 1.0, %v1956
    %1959 = vrot.lane.b32.xlu0 %v1897, 64
    %v1960 = vpop.permute.xlu0 %1959
    %v1962 = vadd.f32 %v1932, %v1960
    %v1963 = vxor.u32 %v1962, 2147483648
    %v1964 = vmul.f32 %v1963, 1.442695
    %v1965 = vpow.pop %v1964
    %v1966 = vadd.f32 %v1965, 1.0
    %v1967 = vrcp.pop %v1966
    %v1968 = vmul.f32 %v1966, %v1967
    %v1969 = vsub.f32 1.0, %v1968
    %v1970 = vmul.f32 %v1967, %v1969
    %v1971 = vadd.f32 %v1967, %v1970
    %vm1972 = vweird.f32 %v1966
    %vm1973 = vweird.f32 %v1967
    %vm1974 = vmor %vm1972, %vm1973
    %v1975 = vsel %vm1974, %v1967, %v1971
    %v1976 = vand.u32 2147483647, %v1966
    %vm1977 = vcmp.eq.f32.partialorder %v1976, 8.507059e+37
    %v1978 = vand.u32 %v1966, 2147483648
    %v1979 = vor.u32 1.1754944e-38, %v1978
    %v1980 = vsel %vm1977, %v1979, %v1975
    %v1981 = vmul.f32 1.0, %v1980
    %v1982 = vmul.f32 %v1957, %v1917
    %v1983 = vadd.f32 %v1937, %v1982
    %v1984 = vtanh.pop %v1983
    %v1985 = vsub.f32 1.0, %v1981
    %v1986 = vmul.f32 %v1985, %v1984
    %v1988 = vmul.f32 %v1981, %v1876
    %v1989 = vadd.f32 %v1986, %v1988
    %v1990 = vmul.f32 %v195, %v1989
    %v1991 = vmul.f32 %v952, %v1876
    %v1992 = vadd.f32 %v1990, %v1991
    %v1994 = vsel %vm387, %v1992, 0
    %1996 = vmatpush.msra.mxu0 0.0
    %1997 = vmatpush.msra.mxu0 0.0
    %1998 = vmatpush.msra.mxu0 0.0
    %1999 = vmatpush.msra.mxu0 0.0
    %2000 = vmatpush.msra.mxu0 0.0
    %2001 = vmatpush.msra.mxu0 0.0
    %2002 = vmatpush.msra.mxu0 0.0
    %2003 = vmatpush.msra.mxu0 0.0
    %2004 = vmatpush.msra.mxu0 %v1425
    %2005 = vmatpush.msra.mxu0 %v1423
    %2006 = vmatpush.msra.mxu0 %v1421
    %2007 = vmatpush.msra.mxu0 %v1419
    %2008 = vmatpush.msra.mxu0 %v1417
    %2009 = vmatpush.msra.mxu0 %v1415
    %2010 = vmatpush.msra.mxu0 %v1413
    %2011 = vmatpush.msra.mxu0 %v1411
    %2012 = vmatmul.f32.gmra.mxu0 %v1994
    %v2013 = vpop.f32.mrf.mxu0
    %v2014 = vadd.f32 %v1429, %v2013
    %2015 = vdwg.mxu0
    %2016 = vmatpush.msra.mxu0 0.0
    %2017 = vmatpush.msra.mxu0 0.0
    %2018 = vmatpush.msra.mxu0 0.0
    %2019 = vmatpush.msra.mxu0 0.0
    %2020 = vmatpush.msra.mxu0 0.0
    %2021 = vmatpush.msra.mxu0 0.0
    %2022 = vmatpush.msra.mxu0 0.0
    %2023 = vmatpush.msra.mxu0 0.0
    %2024 = vmatpush.msra.mxu0 %v1426
    %2025 = vmatpush.msra.mxu0 %v1424
    %2026 = vmatpush.msra.mxu0 %v1422
    %2027 = vmatpush.msra.mxu0 %v1420
    %2028 = vmatpush.msra.mxu0 %v1418
    %2029 = vmatpush.msra.mxu0 %v1416
    %2030 = vmatpush.msra.mxu0 %v1414
    %2031 = vmatpush.msra.mxu0 %v1412
    %2032 = vmatmul.f32.gmra.mxu0 %v1994
    %v2033 = vpop.f32.mrf.mxu0
    %v2034 = vadd.f32 %v1430, %v2033
    %2035 = vdwg.mxu0
    %v2037 = vrot.slane %v2014, 4
    %v2039 = vadd.f32 %v1923, %v2037
    %v2040 = vxor.u32 %v2039, 2147483648
    %v2041 = vmul.f32 %v2040, 1.442695
    %v2042 = vpow.pop %v2041
    %v2043 = vadd.f32 %v2042, 1.0
    %v2044 = vrcp.pop %v2043
    %v2045 = vmul.f32 %v2043, %v2044
    %v2046 = vsub.f32 1.0, %v2045
    %v2047 = vmul.f32 %v2044, %v2046
    %v2048 = vadd.f32 %v2044, %v2047
    %vm2049 = vweird.f32 %v2043
    %vm2050 = vweird.f32 %v2044
    %vm2051 = vmor %vm2049, %vm2050
    %v2052 = vsel %vm2051, %v2044, %v2048
    %v2053 = vand.u32 2147483647, %v2043
    %vm2054 = vcmp.eq.f32.partialorder %v2053, 8.507059e+37
    %v2055 = vand.u32 %v2043, 2147483648
    %v2056 = vor.u32 1.1754944e-38, %v2055
    %v2057 = vsel %vm2054, %v2056, %v2052
    %v2058 = vmul.f32 1.0, %v2057
    %2059 = vrot.lane.b32.xlu0 %v2037, 64
    %v2060 = vpop.permute.xlu0 %2059
    %v2062 = vadd.f32 %v1932, %v2060
    %v2063 = vxor.u32 %v2062, 2147483648
    %v2064 = vmul.f32 %v2063, 1.442695
    %v2065 = vpow.pop %v2064
    %v2066 = vadd.f32 %v2065, 1.0
    %v2067 = vrcp.pop %v2066
    %v2068 = vmul.f32 %v2066, %v2067
    %v2069 = vsub.f32 1.0, %v2068
    %v2070 = vmul.f32 %v2067, %v2069
    %v2071 = vadd.f32 %v2067, %v2070
    %vm2072 = vweird.f32 %v2066
    %vm2073 = vweird.f32 %v2067
    %vm2074 = vmor %vm2072, %vm2073
    %v2075 = vsel %vm2074, %v2067, %v2071
    %v2076 = vand.u32 2147483647, %v2066
    %vm2077 = vcmp.eq.f32.partialorder %v2076, 8.507059e+37
    %v2078 = vand.u32 %v2066, 2147483648
    %v2079 = vor.u32 1.1754944e-38, %v2078
    %v2080 = vsel %vm2077, %v2079, %v2075
    %v2081 = vmul.f32 1.0, %v2080
    %v2083 = vrot.slane %v2034, 4
    %v2085 = vmul.f32 %v2058, %v2083
    %v2086 = vadd.f32 %v1937, %v2085
    %v2087 = vtanh.pop %v2086
    %v2088 = vsub.f32 1.0, %v2081
    %v2089 = vmul.f32 %v2088, %v2087
    %v2090 = vrot.slane %v1992, 4
    %v2092 = vmul.f32 %v2081, %v2090
    %v2093 = vadd.f32 %v2089, %v2092
    %v2094 = vmul.f32 %v195, %v2093
    %v2095 = vmul.f32 %v952, %v2090
    %v2096 = vadd.f32 %v2094, %v2095
    %v2098 = vrot.slane %v2096, 4
    %v2099 = vsel %vm387, %v2098, 0
    %2101 = vmatpush.msra.mxu0 0.0
    %2102 = vmatpush.msra.mxu0 0.0
    %2103 = vmatpush.msra.mxu0 0.0
    %2104 = vmatpush.msra.mxu0 0.0
    %2105 = vmatpush.msra.mxu0 0.0
    %2106 = vmatpush.msra.mxu0 0.0
    %2107 = vmatpush.msra.mxu0 0.0
    %2108 = vmatpush.msra.mxu0 0.0
    %2109 = vmatpush.msra.mxu0 %v1425
    %2110 = vmatpush.msra.mxu0 %v1423
    %2111 = vmatpush.msra.mxu0 %v1421
    %2112 = vmatpush.msra.mxu0 %v1419
    %2113 = vmatpush.msra.mxu0 %v1417
    %2114 = vmatpush.msra.mxu0 %v1415
    %2115 = vmatpush.msra.mxu0 %v1413
    %2116 = vmatpush.msra.mxu0 %v1411
    %2117 = vmatmul.f32.gmra.mxu0 %v2099
    %v2118 = vpop.f32.mrf.mxu0
    %v2119 = vadd.f32 %v1429, %v2118
    %2120 = vdwg.mxu0
    %2121 = vmatpush.msra.mxu0 0.0
    %2122 = vmatpush.msra.mxu0 0.0
    %2123 = vmatpush.msra.mxu0 0.0
    %2124 = vmatpush.msra.mxu0 0.0
    %2125 = vmatpush.msra.mxu0 0.0
    %2126 = vmatpush.msra.mxu0 0.0
    %2127 = vmatpush.msra.mxu0 0.0
    %2128 = vmatpush.msra.mxu0 0.0
    %2129 = vmatpush.msra.mxu0 %v1426
    %2130 = vmatpush.msra.mxu0 %v1424
    %2131 = vmatpush.msra.mxu0 %v1422
    %2132 = vmatpush.msra.mxu0 %v1420
    %2133 = vmatpush.msra.mxu0 %v1418
    %2134 = vmatpush.msra.mxu0 %v1416
    %2135 = vmatpush.msra.mxu0 %v1414
    %2136 = vmatpush.msra.mxu0 %v1412
    %2137 = vmatmul.f32.gmra.mxu0 %v2099
    %v2138 = vpop.f32.mrf.mxu0
    %v2139 = vadd.f32 %v1430, %v2138
    %2140 = vdwg.mxu0
    %v2141 = vrot.slane %v1371, 4
    %2142 = vrot.lane.b32.xlu0 %v2141, 64
    %v2143 = vpop.permute.xlu0 %2142
    %v2145 = vsel %vm294, %v1380, %v2143
    %2146 = vrot.lane.b32.xlu0 %v1380, 96
    %v2147 = vpop.permute.xlu0 %2146
    %v2150 = vrot.slane %v1400, 4
    %2151 = vrot.lane.b32.xlu0 %v2150, 32
    %v2152 = vpop.permute.xlu0 %2151
    %v2154 = vsel %vm294, %v2147, %v2152
    %2155 = vrot.lane.b32.xlu0 %v1380, 64
    %v2156 = vpop.permute.xlu0 %2155
    %v2159 = vsel %vm294, %v2156, %v2150
    %v2160 = vadd.f32 %v2145, %v2119
    %v2161 = vxor.u32 %v2160, 2147483648
    %v2162 = vmul.f32 %v2161, 1.442695
    %v2163 = vpow.pop %v2162
    %v2164 = vadd.f32 %v2163, 1.0
    %v2165 = vrcp.pop %v2164
    %v2166 = vmul.f32 %v2164, %v2165
    %v2167 = vsub.f32 1.0, %v2166
    %v2168 = vmul.f32 %v2165, %v2167
    %v2169 = vadd.f32 %v2165, %v2168
    %vm2170 = vweird.f32 %v2164
    %vm2171 = vweird.f32 %v2165
    %vm2172 = vmor %vm2170, %vm2171
    %v2173 = vsel %vm2172, %v2165, %v2169
    %v2174 = vand.u32 2147483647, %v2164
    %vm2175 = vcmp.eq.f32.partialorder %v2174, 8.507059e+37
    %v2176 = vand.u32 %v2164, 2147483648
    %v2177 = vor.u32 1.1754944e-38, %v2176
    %v2178 = vsel %vm2175, %v2177, %v2173
    %v2179 = vmul.f32 1.0, %v2178
    %2181 = vrot.lane.b32.xlu0 %v2119, 64
    %v2182 = vpop.permute.xlu0 %2181
    %v2184 = vadd.f32 %v2154, %v2182
    %v2185 = vxor.u32 %v2184, 2147483648
    %v2186 = vmul.f32 %v2185, 1.442695
    %v2187 = vpow.pop %v2186
    %v2188 = vadd.f32 %v2187, 1.0
    %v2189 = vrcp.pop %v2188
    %v2190 = vmul.f32 %v2188, %v2189
    %v2191 = vsub.f32 1.0, %v2190
    %v2192 = vmul.f32 %v2189, %v2191
    %v2193 = vadd.f32 %v2189, %v2192
    %vm2194 = vweird.f32 %v2188
    %vm2195 = vweird.f32 %v2189
    %vm2196 = vmor %vm2194, %vm2195
    %v2197 = vsel %vm2196, %v2189, %v2193
    %v2198 = vand.u32 2147483647, %v2188
    %vm2199 = vcmp.eq.f32.partialorder %v2198, 8.507059e+37
    %v2200 = vand.u32 %v2188, 2147483648
    %v2201 = vor.u32 1.1754944e-38, %v2200
    %v2202 = vsel %vm2199, %v2201, %v2197
    %v2203 = vmul.f32 1.0, %v2202
    %v2204 = vmul.f32 %v2179, %v2139
    %v2205 = vadd.f32 %v2159, %v2204
    %v2206 = vtanh.pop %v2205
    %v2207 = vsub.f32 1.0, %v2203
    %v2208 = vmul.f32 %v2207, %v2206
    %v2210 = vmul.f32 %v2203, %v2098
    %v2211 = vadd.f32 %v2208, %v2210
    %v2212 = vmul.f32 %v196, %v2211
    %v2213 = vmul.f32 %v1175, %v2098
    %v2214 = vadd.f32 %v2212, %v2213
    %v2216 = vsel %vm387, %v2214, 0
    %2218 = vmatpush.msra.mxu0 0.0
    %2219 = vmatpush.msra.mxu0 0.0
    %2220 = vmatpush.msra.mxu0 0.0
    %2221 = vmatpush.msra.mxu0 0.0
    %2222 = vmatpush.msra.mxu0 0.0
    %2223 = vmatpush.msra.mxu0 0.0
    %2224 = vmatpush.msra.mxu0 0.0
    %2225 = vmatpush.msra.mxu0 0.0
    %2226 = vmatpush.msra.mxu0 %v1425
    %2227 = vmatpush.msra.mxu0 %v1423
    %2228 = vmatpush.msra.mxu0 %v1421
    %2229 = vmatpush.msra.mxu0 %v1419
    %2230 = vmatpush.msra.mxu0 %v1417
    %2231 = vmatpush.msra.mxu0 %v1415
    %2232 = vmatpush.msra.mxu0 %v1413
    %2233 = vmatpush.msra.mxu0 %v1411
    %2234 = vmatmul.f32.gmra.mxu0 %v2216
    %v2235 = vpop.f32.mrf.mxu0
    %v2236 = vadd.f32 %v1429, %v2235
    %2237 = vdwg.mxu0
    %2238 = vmatpush.msra.mxu0 0.0
    %2239 = vmatpush.msra.mxu0 0.0
    %2240 = vmatpush.msra.mxu0 0.0
    %2241 = vmatpush.msra.mxu0 0.0
    %2242 = vmatpush.msra.mxu0 0.0
    %2243 = vmatpush.msra.mxu0 0.0
    %2244 = vmatpush.msra.mxu0 0.0
    %2245 = vmatpush.msra.mxu0 0.0
    %2246 = vmatpush.msra.mxu0 %v1426
    %2247 = vmatpush.msra.mxu0 %v1424
    %2248 = vmatpush.msra.mxu0 %v1422
    %2249 = vmatpush.msra.mxu0 %v1420
    %2250 = vmatpush.msra.mxu0 %v1418
    %2251 = vmatpush.msra.mxu0 %v1416
    %2252 = vmatpush.msra.mxu0 %v1414
    %2253 = vmatpush.msra.mxu0 %v1412
    %2254 = vmatmul.f32.gmra.mxu0 %v2216
    %v2255 = vpop.f32.mrf.mxu0
    %v2256 = vadd.f32 %v1430, %v2255
    %2257 = vdwg.mxu0
    %v2259 = vrot.slane %v2236, 4
    %v2261 = vadd.f32 %v2145, %v2259
    %v2262 = vxor.u32 %v2261, 2147483648
    %v2263 = vmul.f32 %v2262, 1.442695
    %v2264 = vpow.pop %v2263
    %v2265 = vadd.f32 %v2264, 1.0
    %v2266 = vrcp.pop %v2265
    %v2267 = vmul.f32 %v2265, %v2266
    %v2268 = vsub.f32 1.0, %v2267
    %v2269 = vmul.f32 %v2266, %v2268
    %v2270 = vadd.f32 %v2266, %v2269
    %vm2271 = vweird.f32 %v2265
    %vm2272 = vweird.f32 %v2266
    %vm2273 = vmor %vm2271, %vm2272
    %v2274 = vsel %vm2273, %v2266, %v2270
    %v2275 = vand.u32 2147483647, %v2265
    %vm2276 = vcmp.eq.f32.partialorder %v2275, 8.507059e+37
    %v2277 = vand.u32 %v2265, 2147483648
    %v2278 = vor.u32 1.1754944e-38, %v2277
    %v2279 = vsel %vm2276, %v2278, %v2274
    %v2280 = vmul.f32 1.0, %v2279
    %2281 = vrot.lane.b32.xlu0 %v2259, 64
    %v2282 = vpop.permute.xlu0 %2281
    %v2284 = vadd.f32 %v2154, %v2282
    %v2285 = vxor.u32 %v2284, 2147483648
    %v2286 = vmul.f32 %v2285, 1.442695
    %v2287 = vpow.pop %v2286
    %v2288 = vadd.f32 %v2287, 1.0
    %v2289 = vrcp.pop %v2288
    %v2290 = vmul.f32 %v2288, %v2289
    %v2291 = vsub.f32 1.0, %v2290
    %v2292 = vmul.f32 %v2289, %v2291
    %v2293 = vadd.f32 %v2289, %v2292
    %vm2294 = vweird.f32 %v2288
    %vm2295 = vweird.f32 %v2289
    %vm2296 = vmor %vm2294, %vm2295
    %v2297 = vsel %vm2296, %v2289, %v2293
    %v2298 = vand.u32 2147483647, %v2288
    %vm2299 = vcmp.eq.f32.partialorder %v2298, 8.507059e+37
    %v2300 = vand.u32 %v2288, 2147483648
    %v2301 = vor.u32 1.1754944e-38, %v2300
    %v2302 = vsel %vm2299, %v2301, %v2297
    %v2303 = vmul.f32 1.0, %v2302
    %v2305 = vrot.slane %v2256, 4
    %v2307 = vmul.f32 %v2280, %v2305
    %v2308 = vadd.f32 %v2159, %v2307
    %v2309 = vtanh.pop %v2308
    %v2310 = vsub.f32 1.0, %v2303
    %v2311 = vmul.f32 %v2310, %v2309
    %v2312 = vrot.slane %v2214, 4
    %v2314 = vmul.f32 %v2303, %v2312
    %v2315 = vadd.f32 %v2311, %v2314
    %v2316 = vmul.f32 %v196, %v2315
    %v2317 = vmul.f32 %v1175, %v2312
    %v2318 = vadd.f32 %v2316, %v2317
    %2320 = vrot.lane.b32.xlu0 %v2318, 64
    %v2321 = vpop.permute.xlu0 %2320
    %v2323 = vsel %vm387, %v1281, %v2321
    %v2324 = vld [vmem:[%s25] sm:$0xff]
    %v2325 = vld [vmem:[%s25 + $0x8] sm:$0xff]
    %v2326 = vld [vmem:[%s25 + $0x10] sm:$0xff]
    %v2327 = vld [vmem:[%s25 + $0x18] sm:$0xff]
    %v2328 = vld [vmem:[%s25 + $0x20] sm:$0xff]
    %v2329 = vld [vmem:[%s25 + $0x28] sm:$0xff]
    %v2330 = vld [vmem:[%s25 + $0x30] sm:$0xff]
    %v2331 = vld [vmem:[%s25 + $0x38] sm:$0xff]
    %v2332 = vld [vmem:[%s25 + $0x40] sm:$0xff]
    %v2333 = vld [vmem:[%s25 + $0x48] sm:$0xff]
    %v2334 = vld [vmem:[%s25 + $0x50] sm:$0xff]
    %v2335 = vld [vmem:[%s25 + $0x58] sm:$0xff]
    %v2336 = vld [vmem:[%s25 + $0x60] sm:$0xff]
    %v2337 = vld [vmem:[%s25 + $0x68] sm:$0xff]
    %v2338 = vld [vmem:[%s25 + $0x70] sm:$0xff]
    %v2339 = vld [vmem:[%s25 + $0x78] sm:$0xff]
    %v2340 = vld [vmem:[%s25 + $0x80] sm:$0xff]
    %v2341 = vld [vmem:[%s25 + $0x88] sm:$0xff]
    %v2342 = vld [vmem:[%s25 + $0x90] sm:$0xff]
    %v2343 = vld [vmem:[%s25 + $0x98] sm:$0xff]
    %v2344 = vld [vmem:[%s25 + $0xa0] sm:$0xff]
    %v2345 = vld [vmem:[%s25 + $0xa8] sm:$0xff]
    %v2346 = vld [vmem:[%s25 + $0xb0] sm:$0xff]
    %v2347 = vld [vmem:[%s25 + $0xb8] sm:$0xff]
    %v2348 = vld [vmem:[%s25 + $0xc0] sm:$0xff]
    %v2349 = vld [vmem:[%s25 + $0xc8] sm:$0xff]
    %v2350 = vld [vmem:[%s25 + $0xd0] sm:$0xff]
    %v2351 = vld [vmem:[%s25 + $0xd8] sm:$0xff]
    %v2352 = vld [vmem:[%s25 + $0xe0] sm:$0xff]
    %v2353 = vld [vmem:[%s25 + $0xe8] sm:$0xff]
    %v2354 = vld [vmem:[%s25 + $0xf0] sm:$0xff]
    %v2355 = vld [vmem:[%s25 + $0xf8] sm:$0xff]
    %v2356 = vld [vmem:[%s29] sm:$0x3]
    %v2358 = vperm.slane %v2356, 0
    %v2359 = vperm.slane %v2356, 1
    %v2363 = vrot.slane %v2323, 4
    %2365 = vmatpush.msra.mxu0 %v2354
    %2366 = vmatpush.msra.mxu0 %v2352
    %2367 = vmatpush.msra.mxu0 %v2350
    %2368 = vmatpush.msra.mxu0 %v2348
    %2369 = vmatpush.msra.mxu0 %v2346
    %2370 = vmatpush.msra.mxu0 %v2344
    %2371 = vmatpush.msra.mxu0 %v2342
    %2372 = vmatpush.msra.mxu0 %v2340
    %2373 = vmatpush.msra.mxu0 %v2338
    %2374 = vmatpush.msra.mxu0 %v2336
    %2375 = vmatpush.msra.mxu0 %v2334
    %2376 = vmatpush.msra.mxu0 %v2332
    %2377 = vmatpush.msra.mxu0 %v2330
    %2378 = vmatpush.msra.mxu0 %v2328
    %2379 = vmatpush.msra.mxu0 %v2326
    %2380 = vmatpush.msra.mxu0 %v2324
    %2381 = vmatmul.f32.gmra.mxu0 %v2363
    %v2382 = vpop.f32.mrf.mxu0
    %v2383 = vadd.f32 %v2358, %v2382
    %2384 = vdwg.mxu0
    %2385 = vmatpush.msra.mxu0 %v2355
    %2386 = vmatpush.msra.mxu0 %v2353
    %2387 = vmatpush.msra.mxu0 %v2351
    %2388 = vmatpush.msra.mxu0 %v2349
    %2389 = vmatpush.msra.mxu0 %v2347
    %2390 = vmatpush.msra.mxu0 %v2345
    %2391 = vmatpush.msra.mxu0 %v2343
    %2392 = vmatpush.msra.mxu0 %v2341
    %2393 = vmatpush.msra.mxu0 %v2339
    %2394 = vmatpush.msra.mxu0 %v2337
    %2395 = vmatpush.msra.mxu0 %v2335
    %2396 = vmatpush.msra.mxu0 %v2333
    %2397 = vmatpush.msra.mxu0 %v2331
    %2398 = vmatpush.msra.mxu0 %v2329
    %2399 = vmatpush.msra.mxu0 %v2327
    %2400 = vmatpush.msra.mxu0 %v2325
    %2401 = vmatmul.f32.gmra.mxu0 %v2363
    %v2402 = vpop.f32.mrf.mxu0
    %v2403 = vadd.f32 %v2359, %v2402
    %2404 = vdwg.mxu0
    %v2405 = vld [vmem:[#allocation2] sm:$0xff]
    %v2406 = vld [vmem:[#allocation2 + $0x8] sm:$0xff]
    %v2407 = vld [vmem:[#allocation2 + $0x10] sm:$0xff]
    %v2408 = vld [vmem:[#allocation2 + $0x18] sm:$0xff]
    %v2409 = vld [vmem:[#allocation2 + $0x20] sm:$0xff]
    %v2410 = vld [vmem:[#allocation2 + $0x28] sm:$0xff]
    %v2411 = vld [vmem:[#allocation2 + $0x30] sm:$0xff]
    %v2412 = vld [vmem:[#allocation2 + $0x38] sm:$0xff]
    %v2413 = vld [vmem:[#allocation2 + $0x40] sm:$0xff]
    %v2414 = vld [vmem:[#allocation2 + $0x48] sm:$0xff]
    %v2415 = vld [vmem:[#allocation2 + $0x50] sm:$0xff]
    %v2416 = vld [vmem:[#allocation2 + $0x58] sm:$0xff]
    %v2417 = vld [vmem:[#allocation2 + $0x60] sm:$0xff]
    %v2418 = vld [vmem:[#allocation2 + $0x68] sm:$0xff]
    %v2419 = vld [vmem:[#allocation2 + $0x70] sm:$0xff]
    %v2420 = vld [vmem:[#allocation2 + $0x78] sm:$0xff]
    %v2421 = vld [vmem:[%s31] sm:$0x3]
    %v2423 = vperm.slane %v2421, 0
    %v2424 = vperm.slane %v2421, 1
    %2427 = vmatpush.msra.mxu0 0.0
    %2428 = vmatpush.msra.mxu0 0.0
    %2429 = vmatpush.msra.mxu0 0.0
    %2430 = vmatpush.msra.mxu0 0.0
    %2431 = vmatpush.msra.mxu0 0.0
    %2432 = vmatpush.msra.mxu0 0.0
    %2433 = vmatpush.msra.mxu0 0.0
    %2434 = vmatpush.msra.mxu0 0.0
    %2435 = vmatpush.msra.mxu0 %v2419
    %2436 = vmatpush.msra.mxu0 %v2417
    %2437 = vmatpush.msra.mxu0 %v2415
    %2438 = vmatpush.msra.mxu0 %v2413
    %2439 = vmatpush.msra.mxu0 %v2411
    %2440 = vmatpush.msra.mxu0 %v2409
    %2441 = vmatpush.msra.mxu0 %v2407
    %2442 = vmatpush.msra.mxu0 %v2405
    %2443 = vmatmul.f32.gmra.mxu0 %v389
    %v2444 = vpop.f32.mrf.mxu0
    %v2445 = vadd.f32 %v2423, %v2444
    %2446 = vdwg.mxu0
    %2447 = vmatpush.msra.mxu0 0.0
    %2448 = vmatpush.msra.mxu0 0.0
    %2449 = vmatpush.msra.mxu0 0.0
    %2450 = vmatpush.msra.mxu0 0.0
    %2451 = vmatpush.msra.mxu0 0.0
    %2452 = vmatpush.msra.mxu0 0.0
    %2453 = vmatpush.msra.mxu0 0.0
    %2454 = vmatpush.msra.mxu0 0.0
    %2455 = vmatpush.msra.mxu0 %v2420
    %2456 = vmatpush.msra.mxu0 %v2418
    %2457 = vmatpush.msra.mxu0 %v2416
    %2458 = vmatpush.msra.mxu0 %v2414
    %2459 = vmatpush.msra.mxu0 %v2412
    %2460 = vmatpush.msra.mxu0 %v2410
    %2461 = vmatpush.msra.mxu0 %v2408
    %2462 = vmatpush.msra.mxu0 %v2406
    %2463 = vmatmul.f32.gmra.mxu0 %v389
    %v2464 = vpop.f32.mrf.mxu0
    %v2465 = vadd.f32 %v2424, %v2464
    %2466 = vdwg.mxu0
    %2468 = vrot.lane.b32.xlu0 %v2383, 64
    %v2469 = vpop.permute.xlu0 %2468
    %v2471 = vsel %vm294, %v2383, %v2469
    %2472 = vrot.lane.b32.xlu0 %v2383, 96
    %v2473 = vpop.permute.xlu0 %2472
    %2476 = vrot.lane.b32.xlu0 %v2403, 32
    %v2477 = vpop.permute.xlu0 %2476
    %v2479 = vsel %vm294, %v2473, %v2477
    %v2480 = vsel %vm294, %v2469, %v2403
    %v2481 = vadd.f32 %v2471, %v2445
    %v2482 = vxor.u32 %v2481, 2147483648
    %v2483 = vmul.f32 %v2482, 1.442695
    %v2484 = vpow.pop %v2483
    %v2485 = vadd.f32 %v2484, 1.0
    %v2486 = vrcp.pop %v2485
    %v2487 = vmul.f32 %v2485, %v2486
    %v2488 = vsub.f32 1.0, %v2487
    %v2489 = vmul.f32 %v2486, %v2488
    %v2490 = vadd.f32 %v2486, %v2489
    %vm2491 = vweird.f32 %v2485
    %vm2492 = vweird.f32 %v2486
    %vm2493 = vmor %vm2491, %vm2492
    %v2494 = vsel %vm2493, %v2486, %v2490
    %v2495 = vand.u32 2147483647, %v2485
    %vm2496 = vcmp.eq.f32.partialorder %v2495, 8.507059e+37
    %v2497 = vand.u32 %v2485, 2147483648
    %v2498 = vor.u32 1.1754944e-38, %v2497
    %v2499 = vsel %vm2496, %v2498, %v2494
    %v2500 = vmul.f32 1.0, %v2499
    %2502 = vrot.lane.b32.xlu0 %v2445, 64
    %v2503 = vpop.permute.xlu0 %2502
    %v2505 = vadd.f32 %v2479, %v2503
    %v2506 = vxor.u32 %v2505, 2147483648
    %v2507 = vmul.f32 %v2506, 1.442695
    %v2508 = vpow.pop %v2507
    %v2509 = vadd.f32 %v2508, 1.0
    %v2510 = vrcp.pop %v2509
    %v2511 = vmul.f32 %v2509, %v2510
    %v2512 = vsub.f32 1.0, %v2511
    %v2513 = vmul.f32 %v2510, %v2512
    %v2514 = vadd.f32 %v2510, %v2513
    %vm2515 = vweird.f32 %v2509
    %vm2516 = vweird.f32 %v2510
    %vm2517 = vmor %vm2515, %vm2516
    %v2518 = vsel %vm2517, %v2510, %v2514
    %v2519 = vand.u32 2147483647, %v2509
    %vm2520 = vcmp.eq.f32.partialorder %v2519, 8.507059e+37
    %v2521 = vand.u32 %v2509, 2147483648
    %v2522 = vor.u32 1.1754944e-38, %v2521
    %v2523 = vsel %vm2520, %v2522, %v2518
    %v2524 = vmul.f32 1.0, %v2523
    %v2525 = vmul.f32 %v2500, %v2465
    %v2526 = vadd.f32 %v2480, %v2525
    %v2527 = vtanh.pop %v2526
    %v2528 = vsub.f32 1.0, %v2524
    %v2529 = vmul.f32 %v2528, %v2527
    %v2530 = vmul.f32 %v2524, 0.0
    %v2531 = vadd.f32 %v2529, %v2530
    %v2532 = vmul.f32 %v193, %v2531
    %v2533 = vadd.f32 %v2532, %v505
    %v2535 = vsel %vm387, %v2533, 0
    %2537 = vmatpush.msra.mxu0 0.0
    %2538 = vmatpush.msra.mxu0 0.0
    %2539 = vmatpush.msra.mxu0 0.0
    %2540 = vmatpush.msra.mxu0 0.0
    %2541 = vmatpush.msra.mxu0 0.0
    %2542 = vmatpush.msra.mxu0 0.0
    %2543 = vmatpush.msra.mxu0 0.0
    %2544 = vmatpush.msra.mxu0 0.0
    %2545 = vmatpush.msra.mxu0 %v2419
    %2546 = vmatpush.msra.mxu0 %v2417
    %2547 = vmatpush.msra.mxu0 %v2415
    %2548 = vmatpush.msra.mxu0 %v2413
    %2549 = vmatpush.msra.mxu0 %v2411
    %2550 = vmatpush.msra.mxu0 %v2409
    %2551 = vmatpush.msra.mxu0 %v2407
    %2552 = vmatpush.msra.mxu0 %v2405
    %2553 = vmatmul.f32.gmra.mxu0 %v2535
    %v2554 = vpop.f32.mrf.mxu0
    %v2555 = vadd.f32 %v2423, %v2554
    %2556 = vdwg.mxu0
    %2557 = vmatpush.msra.mxu0 0.0
    %2558 = vmatpush.msra.mxu0 0.0
    %2559 = vmatpush.msra.mxu0 0.0
    %2560 = vmatpush.msra.mxu0 0.0
    %2561 = vmatpush.msra.mxu0 0.0
    %2562 = vmatpush.msra.mxu0 0.0
    %2563 = vmatpush.msra.mxu0 0.0
    %2564 = vmatpush.msra.mxu0 0.0
    %2565 = vmatpush.msra.mxu0 %v2420
    %2566 = vmatpush.msra.mxu0 %v2418
    %2567 = vmatpush.msra.mxu0 %v2416
    %2568 = vmatpush.msra.mxu0 %v2414
    %2569 = vmatpush.msra.mxu0 %v2412
    %2570 = vmatpush.msra.mxu0 %v2410
    %2571 = vmatpush.msra.mxu0 %v2408
    %2572 = vmatpush.msra.mxu0 %v2406
    %2573 = vmatmul.f32.gmra.mxu0 %v2535
    %v2574 = vpop.f32.mrf.mxu0
    %v2575 = vadd.f32 %v2424, %v2574
    %2576 = vdwg.mxu0
    %v2577 = vadd.f32 %v2471, %v2555
    %v2578 = vxor.u32 %v2577, 2147483648
    %v2579 = vmul.f32 %v2578, 1.442695
    %v2580 = vpow.pop %v2579
    %v2581 = vadd.f32 %v2580, 1.0
    %v2582 = vrcp.pop %v2581
    %v2583 = vmul.f32 %v2581, %v2582
    %v2584 = vsub.f32 1.0, %v2583
    %v2585 = vmul.f32 %v2582, %v2584
    %v2586 = vadd.f32 %v2582, %v2585
    %vm2587 = vweird.f32 %v2581
    %vm2588 = vweird.f32 %v2582
    %vm2589 = vmor %vm2587, %vm2588
    %v2590 = vsel %vm2589, %v2582, %v2586
    %v2591 = vand.u32 2147483647, %v2581
    %vm2592 = vcmp.eq.f32.partialorder %v2591, 8.507059e+37
    %v2593 = vand.u32 %v2581, 2147483648
    %v2594 = vor.u32 1.1754944e-38, %v2593
    %v2595 = vsel %vm2592, %v2594, %v2590
    %v2596 = vmul.f32 1.0, %v2595
    %2598 = vrot.lane.b32.xlu0 %v2555, 64
    %v2599 = vpop.permute.xlu0 %2598
    %v2601 = vadd.f32 %v2479, %v2599
    %v2602 = vxor.u32 %v2601, 2147483648
    %v2603 = vmul.f32 %v2602, 1.442695
    %v2604 = vpow.pop %v2603
    %v2605 = vadd.f32 %v2604, 1.0
    %v2606 = vrcp.pop %v2605
    %v2607 = vmul.f32 %v2605, %v2606
    %v2608 = vsub.f32 1.0, %v2607
    %v2609 = vmul.f32 %v2606, %v2608
    %v2610 = vadd.f32 %v2606, %v2609
    %vm2611 = vweird.f32 %v2605
    %vm2612 = vweird.f32 %v2606
    %vm2613 = vmor %vm2611, %vm2612
    %v2614 = vsel %vm2613, %v2606, %v2610
    %v2615 = vand.u32 2147483647, %v2605
    %vm2616 = vcmp.eq.f32.partialorder %v2615, 8.507059e+37
    %v2617 = vand.u32 %v2605, 2147483648
    %v2618 = vor.u32 1.1754944e-38, %v2617
    %v2619 = vsel %vm2616, %v2618, %v2614
    %v2620 = vmul.f32 1.0, %v2619
    %v2621 = vmul.f32 %v2596, %v2575
    %v2622 = vadd.f32 %v2480, %v2621
    %v2623 = vtanh.pop %v2622
    %v2624 = vsub.f32 1.0, %v2620
    %v2625 = vmul.f32 %v2624, %v2623
    %v2626 = vmul.f32 %v2620, %v2533
    %v2627 = vadd.f32 %v2625, %v2626
    %v2629 = vrot.slane %v2627, 4
    %v2631 = vmul.f32 %v193, %v2629
    %v2632 = vrot.slane %v2533, 4
    %v2634 = vmul.f32 %v504, %v2632
    %v2635 = vadd.f32 %v2631, %v2634
    %v2637 = vrot.slane %v2635, 4
    %v2638 = vsel %vm387, %v2637, 0
    %2640 = vmatpush.msra.mxu0 0.0
    %2641 = vmatpush.msra.mxu0 0.0
    %2642 = vmatpush.msra.mxu0 0.0
    %2643 = vmatpush.msra.mxu0 0.0
    %2644 = vmatpush.msra.mxu0 0.0
    %2645 = vmatpush.msra.mxu0 0.0
    %2646 = vmatpush.msra.mxu0 0.0
    %2647 = vmatpush.msra.mxu0 0.0
    %2648 = vmatpush.msra.mxu0 %v2419
    %2649 = vmatpush.msra.mxu0 %v2417
    %2650 = vmatpush.msra.mxu0 %v2415
    %2651 = vmatpush.msra.mxu0 %v2413
    %2652 = vmatpush.msra.mxu0 %v2411
    %2653 = vmatpush.msra.mxu0 %v2409
    %2654 = vmatpush.msra.mxu0 %v2407
    %2655 = vmatpush.msra.mxu0 %v2405
    %2656 = vmatmul.f32.gmra.mxu0 %v2638
    %v2657 = vpop.f32.mrf.mxu0
    %v2658 = vadd.f32 %v2423, %v2657
    %2659 = vdwg.mxu0
    %2660 = vmatpush.msra.mxu0 0.0
    %2661 = vmatpush.msra.mxu0 0.0
    %2662 = vmatpush.msra.mxu0 0.0
    %2663 = vmatpush.msra.mxu0 0.0
    %2664 = vmatpush.msra.mxu0 0.0
    %2665 = vmatpush.msra.mxu0 0.0
    %2666 = vmatpush.msra.mxu0 0.0
    %2667 = vmatpush.msra.mxu0 0.0
    %2668 = vmatpush.msra.mxu0 %v2420
    %2669 = vmatpush.msra.mxu0 %v2418
    %2670 = vmatpush.msra.mxu0 %v2416
    %2671 = vmatpush.msra.mxu0 %v2414
    %2672 = vmatpush.msra.mxu0 %v2412
    %2673 = vmatpush.msra.mxu0 %v2410
    %2674 = vmatpush.msra.mxu0 %v2408
    %2675 = vmatpush.msra.mxu0 %v2406
    %2676 = vmatmul.f32.gmra.mxu0 %v2638
    %v2677 = vpop.f32.mrf.mxu0
    %v2678 = vadd.f32 %v2424, %v2677
    %2679 = vdwg.mxu0
    %v2680 = vadd.f32 %v2471, %v2658
    %v2681 = vxor.u32 %v2680, 2147483648
    %v2682 = vmul.f32 %v2681, 1.442695
    %v2683 = vpow.pop %v2682
    %v2684 = vadd.f32 %v2683, 1.0
    %v2685 = vrcp.pop %v2684
    %v2686 = vmul.f32 %v2684, %v2685
    %v2687 = vsub.f32 1.0, %v2686
    %v2688 = vmul.f32 %v2685, %v2687
    %v2689 = vadd.f32 %v2685, %v2688
    %vm2690 = vweird.f32 %v2684
    %vm2691 = vweird.f32 %v2685
    %vm2692 = vmor %vm2690, %vm2691
    %v2693 = vsel %vm2692, %v2685, %v2689
    %v2694 = vand.u32 2147483647, %v2684
    %vm2695 = vcmp.eq.f32.partialorder %v2694, 8.507059e+37
    %v2696 = vand.u32 %v2684, 2147483648
    %v2697 = vor.u32 1.1754944e-38, %v2696
    %v2698 = vsel %vm2695, %v2697, %v2693
    %v2699 = vmul.f32 1.0, %v2698
    %2701 = vrot.lane.b32.xlu0 %v2658, 64
    %v2702 = vpop.permute.xlu0 %2701
    %v2704 = vadd.f32 %v2479, %v2702
    %v2705 = vxor.u32 %v2704, 2147483648
    %v2706 = vmul.f32 %v2705, 1.442695
    %v2707 = vpow.pop %v2706
    %v2708 = vadd.f32 %v2707, 1.0
    %v2709 = vrcp.pop %v2708
    %v2710 = vmul.f32 %v2708, %v2709
    %v2711 = vsub.f32 1.0, %v2710
    %v2712 = vmul.f32 %v2709, %v2711
    %v2713 = vadd.f32 %v2709, %v2712
    %vm2714 = vweird.f32 %v2708
    %vm2715 = vweird.f32 %v2709
    %vm2716 = vmor %vm2714, %vm2715
    %v2717 = vsel %vm2716, %v2709, %v2713
    %v2718 = vand.u32 2147483647, %v2708
    %vm2719 = vcmp.eq.f32.partialorder %v2718, 8.507059e+37
    %v2720 = vand.u32 %v2708, 2147483648
    %v2721 = vor.u32 1.1754944e-38, %v2720
    %v2722 = vsel %vm2719, %v2721, %v2717
    %v2723 = vmul.f32 1.0, %v2722
    %v2724 = vmul.f32 %v2699, %v2678
    %v2725 = vadd.f32 %v2480, %v2724
    %v2726 = vtanh.pop %v2725
    %v2727 = vsub.f32 1.0, %v2723
    %v2728 = vmul.f32 %v2727, %v2726
    %v2730 = vmul.f32 %v2723, %v2637
    %v2731 = vadd.f32 %v2728, %v2730
    %v2732 = vmul.f32 %v194, %v2731
    %v2733 = vmul.f32 %v729, %v2637
    %v2734 = vadd.f32 %v2732, %v2733
    %v2736 = vsel %vm387, %v2734, 0
    %2738 = vmatpush.msra.mxu0 0.0
    %2739 = vmatpush.msra.mxu0 0.0
    %2740 = vmatpush.msra.mxu0 0.0
    %2741 = vmatpush.msra.mxu0 0.0
    %2742 = vmatpush.msra.mxu0 0.0
    %2743 = vmatpush.msra.mxu0 0.0
    %2744 = vmatpush.msra.mxu0 0.0
    %2745 = vmatpush.msra.mxu0 0.0
    %2746 = vmatpush.msra.mxu0 %v2419
    %2747 = vmatpush.msra.mxu0 %v2417
    %2748 = vmatpush.msra.mxu0 %v2415
    %2749 = vmatpush.msra.mxu0 %v2413
    %2750 = vmatpush.msra.mxu0 %v2411
    %2751 = vmatpush.msra.mxu0 %v2409
    %2752 = vmatpush.msra.mxu0 %v2407
    %2753 = vmatpush.msra.mxu0 %v2405
    %2754 = vmatmul.f32.gmra.mxu0 %v2736
    %v2755 = vpop.f32.mrf.mxu0
    %v2756 = vadd.f32 %v2423, %v2755
    %2757 = vdwg.mxu0
    %2758 = vmatpush.msra.mxu0 0.0
    %2759 = vmatpush.msra.mxu0 0.0
    %2760 = vmatpush.msra.mxu0 0.0
    %2761 = vmatpush.msra.mxu0 0.0
    %2762 = vmatpush.msra.mxu0 0.0
    %2763 = vmatpush.msra.mxu0 0.0
    %2764 = vmatpush.msra.mxu0 0.0
    %2765 = vmatpush.msra.mxu0 0.0
    %2766 = vmatpush.msra.mxu0 %v2420
    %2767 = vmatpush.msra.mxu0 %v2418
    %2768 = vmatpush.msra.mxu0 %v2416
    %2769 = vmatpush.msra.mxu0 %v2414
    %2770 = vmatpush.msra.mxu0 %v2412
    %2771 = vmatpush.msra.mxu0 %v2410
    %2772 = vmatpush.msra.mxu0 %v2408
    %2773 = vmatpush.msra.mxu0 %v2406
    %2774 = vmatmul.f32.gmra.mxu0 %v2736
    %v2775 = vpop.f32.mrf.mxu0
    %v2776 = vadd.f32 %v2424, %v2775
    %2777 = vdwg.mxu0
    %v2778 = vadd.f32 %v2471, %v2756
    %v2779 = vxor.u32 %v2778, 2147483648
    %v2780 = vmul.f32 %v2779, 1.442695
    %v2781 = vpow.pop %v2780
    %v2782 = vadd.f32 %v2781, 1.0
    %v2783 = vrcp.pop %v2782
    %v2784 = vmul.f32 %v2782, %v2783
    %v2785 = vsub.f32 1.0, %v2784
    %v2786 = vmul.f32 %v2783, %v2785
    %v2787 = vadd.f32 %v2783, %v2786
    %vm2788 = vweird.f32 %v2782
    %vm2789 = vweird.f32 %v2783
    %vm2790 = vmor %vm2788, %vm2789
    %v2791 = vsel %vm2790, %v2783, %v2787
    %v2792 = vand.u32 2147483647, %v2782
    %vm2793 = vcmp.eq.f32.partialorder %v2792, 8.507059e+37
    %v2794 = vand.u32 %v2782, 2147483648
    %v2795 = vor.u32 1.1754944e-38, %v2794
    %v2796 = vsel %vm2793, %v2795, %v2791
    %v2797 = vmul.f32 1.0, %v2796
    %2799 = vrot.lane.b32.xlu0 %v2756, 64
    %v2800 = vpop.permute.xlu0 %2799
    %v2802 = vadd.f32 %v2479, %v2800
    %v2803 = vxor.u32 %v2802, 2147483648
    %v2804 = vmul.f32 %v2803, 1.442695
    %v2805 = vpow.pop %v2804
    %v2806 = vadd.f32 %v2805, 1.0
    %v2807 = vrcp.pop %v2806
    %v2808 = vmul.f32 %v2806, %v2807
    %v2809 = vsub.f32 1.0, %v2808
    %v2810 = vmul.f32 %v2807, %v2809
    %v2811 = vadd.f32 %v2807, %v2810
    %vm2812 = vweird.f32 %v2806
    %vm2813 = vweird.f32 %v2807
    %vm2814 = vmor %vm2812, %vm2813
    %v2815 = vsel %vm2814, %v2807, %v2811
    %v2816 = vand.u32 2147483647, %v2806
    %vm2817 = vcmp.eq.f32.partialorder %v2816, 8.507059e+37
    %v2818 = vand.u32 %v2806, 2147483648
    %v2819 = vor.u32 1.1754944e-38, %v2818
    %v2820 = vsel %vm2817, %v2819, %v2815
    %v2821 = vmul.f32 1.0, %v2820
    %v2822 = vmul.f32 %v2797, %v2776
    %v2823 = vadd.f32 %v2480, %v2822
    %v2824 = vtanh.pop %v2823
    %v2825 = vsub.f32 1.0, %v2821
    %v2826 = vmul.f32 %v2825, %v2824
    %v2827 = vmul.f32 %v2821, %v2734
    %v2828 = vadd.f32 %v2826, %v2827
    %v2830 = vrot.slane %v2828, 4
    %v2832 = vmul.f32 %v194, %v2830
    %v2833 = vrot.slane %v2734, 4
    %v2835 = vmul.f32 %v729, %v2833
    %v2836 = vadd.f32 %v2832, %v2835
    %v2838 = vrot.slane %v2836, 4
    %v2839 = vsel %vm387, %v2838, 0
    %2841 = vmatpush.msra.mxu0 0.0
    %2842 = vmatpush.msra.mxu0 0.0
    %2843 = vmatpush.msra.mxu0 0.0
    %2844 = vmatpush.msra.mxu0 0.0
    %2845 = vmatpush.msra.mxu0 0.0
    %2846 = vmatpush.msra.mxu0 0.0
    %2847 = vmatpush.msra.mxu0 0.0
    %2848 = vmatpush.msra.mxu0 0.0
    %2849 = vmatpush.msra.mxu0 %v2419
    %2850 = vmatpush.msra.mxu0 %v2417
    %2851 = vmatpush.msra.mxu0 %v2415
    %2852 = vmatpush.msra.mxu0 %v2413
    %2853 = vmatpush.msra.mxu0 %v2411
    %2854 = vmatpush.msra.mxu0 %v2409
    %2855 = vmatpush.msra.mxu0 %v2407
    %2856 = vmatpush.msra.mxu0 %v2405
    %2857 = vmatmul.f32.gmra.mxu0 %v2839
    %v2858 = vpop.f32.mrf.mxu0
    %v2859 = vadd.f32 %v2423, %v2858
    %2860 = vdwg.mxu0
    %2861 = vmatpush.msra.mxu0 0.0
    %2862 = vmatpush.msra.mxu0 0.0
    %2863 = vmatpush.msra.mxu0 0.0
    %2864 = vmatpush.msra.mxu0 0.0
    %2865 = vmatpush.msra.mxu0 0.0
    %2866 = vmatpush.msra.mxu0 0.0
    %2867 = vmatpush.msra.mxu0 0.0
    %2868 = vmatpush.msra.mxu0 0.0
    %2869 = vmatpush.msra.mxu0 %v2420
    %2870 = vmatpush.msra.mxu0 %v2418
    %2871 = vmatpush.msra.mxu0 %v2416
    %2872 = vmatpush.msra.mxu0 %v2414
    %2873 = vmatpush.msra.mxu0 %v2412
    %2874 = vmatpush.msra.mxu0 %v2410
    %2875 = vmatpush.msra.mxu0 %v2408
    %2876 = vmatpush.msra.mxu0 %v2406
    %2877 = vmatmul.f32.gmra.mxu0 %v2839
    %v2878 = vpop.f32.mrf.mxu0
    %v2879 = vadd.f32 %v2424, %v2878
    %2880 = vdwg.mxu0
    %v2881 = vadd.f32 %v2471, %v2859
    %v2882 = vxor.u32 %v2881, 2147483648
    %v2883 = vmul.f32 %v2882, 1.442695
    %v2884 = vpow.pop %v2883
    %v2885 = vadd.f32 %v2884, 1.0
    %v2886 = vrcp.pop %v2885
    %v2887 = vmul.f32 %v2885, %v2886
    %v2888 = vsub.f32 1.0, %v2887
    %v2889 = vmul.f32 %v2886, %v2888
    %v2890 = vadd.f32 %v2886, %v2889
    %vm2891 = vweird.f32 %v2885
    %vm2892 = vweird.f32 %v2886
    %vm2893 = vmor %vm2891, %vm2892
    %v2894 = vsel %vm2893, %v2886, %v2890
    %v2895 = vand.u32 2147483647, %v2885
    %vm2896 = vcmp.eq.f32.partialorder %v2895, 8.507059e+37
    %v2897 = vand.u32 %v2885, 2147483648
    %v2898 = vor.u32 1.1754944e-38, %v2897
    %v2899 = vsel %vm2896, %v2898, %v2894
    %v2900 = vmul.f32 1.0, %v2899
    %2902 = vrot.lane.b32.xlu0 %v2859, 64
    %v2903 = vpop.permute.xlu0 %2902
    %v2905 = vadd.f32 %v2479, %v2903
    %v2906 = vxor.u32 %v2905, 2147483648
    %v2907 = vmul.f32 %v2906, 1.442695
    %v2908 = vpow.pop %v2907
    %v2909 = vadd.f32 %v2908, 1.0
    %v2910 = vrcp.pop %v2909
    %v2911 = vmul.f32 %v2909, %v2910
    %v2912 = vsub.f32 1.0, %v2911
    %v2913 = vmul.f32 %v2910, %v2912
    %v2914 = vadd.f32 %v2910, %v2913
    %vm2915 = vweird.f32 %v2909
    %vm2916 = vweird.f32 %v2910
    %vm2917 = vmor %vm2915, %vm2916
    %v2918 = vsel %vm2917, %v2910, %v2914
    %v2919 = vand.u32 2147483647, %v2909
    %vm2920 = vcmp.eq.f32.partialorder %v2919, 8.507059e+37
    %v2921 = vand.u32 %v2909, 2147483648
    %v2922 = vor.u32 1.1754944e-38, %v2921
    %v2923 = vsel %vm2920, %v2922, %v2918
    %v2924 = vmul.f32 1.0, %v2923
    %v2925 = vmul.f32 %v2900, %v2879
    %v2926 = vadd.f32 %v2480, %v2925
    %v2927 = vtanh.pop %v2926
    %v2928 = vsub.f32 1.0, %v2924
    %v2929 = vmul.f32 %v2928, %v2927
    %v2931 = vmul.f32 %v2924, %v2838
    %v2932 = vadd.f32 %v2929, %v2931
    %v2933 = vmul.f32 %v195, %v2932
    %v2934 = vmul.f32 %v952, %v2838
    %v2935 = vadd.f32 %v2933, %v2934
    %v2937 = vsel %vm387, %v2935, 0
    %2939 = vmatpush.msra.mxu0 0.0
    %2940 = vmatpush.msra.mxu0 0.0
    %2941 = vmatpush.msra.mxu0 0.0
    %2942 = vmatpush.msra.mxu0 0.0
    %2943 = vmatpush.msra.mxu0 0.0
    %2944 = vmatpush.msra.mxu0 0.0
    %2945 = vmatpush.msra.mxu0 0.0
    %2946 = vmatpush.msra.mxu0 0.0
    %2947 = vmatpush.msra.mxu0 %v2419
    %2948 = vmatpush.msra.mxu0 %v2417
    %2949 = vmatpush.msra.mxu0 %v2415
    %2950 = vmatpush.msra.mxu0 %v2413
    %2951 = vmatpush.msra.mxu0 %v2411
    %2952 = vmatpush.msra.mxu0 %v2409
    %2953 = vmatpush.msra.mxu0 %v2407
    %2954 = vmatpush.msra.mxu0 %v2405
    %2955 = vmatmul.f32.gmra.mxu0 %v2937
    %v2956 = vpop.f32.mrf.mxu0
    %v2957 = vadd.f32 %v2423, %v2956
    %2958 = vdwg.mxu0
    %2959 = vmatpush.msra.mxu0 0.0
    %2960 = vmatpush.msra.mxu0 0.0
    %2961 = vmatpush.msra.mxu0 0.0
    %2962 = vmatpush.msra.mxu0 0.0
    %2963 = vmatpush.msra.mxu0 0.0
    %2964 = vmatpush.msra.mxu0 0.0
    %2965 = vmatpush.msra.mxu0 0.0
    %2966 = vmatpush.msra.mxu0 0.0
    %2967 = vmatpush.msra.mxu0 %v2420
    %2968 = vmatpush.msra.mxu0 %v2418
    %2969 = vmatpush.msra.mxu0 %v2416
    %2970 = vmatpush.msra.mxu0 %v2414
    %2971 = vmatpush.msra.mxu0 %v2412
    %2972 = vmatpush.msra.mxu0 %v2410
    %2973 = vmatpush.msra.mxu0 %v2408
    %2974 = vmatpush.msra.mxu0 %v2406
    %2975 = vmatmul.f32.gmra.mxu0 %v2937
    %v2976 = vpop.f32.mrf.mxu0
    %v2977 = vadd.f32 %v2424, %v2976
    %2978 = vdwg.mxu0
    %v2979 = vadd.f32 %v2471, %v2957
    %v2980 = vxor.u32 %v2979, 2147483648
    %v2981 = vmul.f32 %v2980, 1.442695
    %v2982 = vpow.pop %v2981
    %v2983 = vadd.f32 %v2982, 1.0
    %v2984 = vrcp.pop %v2983
    %v2985 = vmul.f32 %v2983, %v2984
    %v2986 = vsub.f32 1.0, %v2985
    %v2987 = vmul.f32 %v2984, %v2986
    %v2988 = vadd.f32 %v2984, %v2987
    %vm2989 = vweird.f32 %v2983
    %vm2990 = vweird.f32 %v2984
    %vm2991 = vmor %vm2989, %vm2990
    %v2992 = vsel %vm2991, %v2984, %v2988
    %v2993 = vand.u32 2147483647, %v2983
    %vm2994 = vcmp.eq.f32.partialorder %v2993, 8.507059e+37
    %v2995 = vand.u32 %v2983, 2147483648
    %v2996 = vor.u32 1.1754944e-38, %v2995
    %v2997 = vsel %vm2994, %v2996, %v2992
    %v2998 = vmul.f32 1.0, %v2997
    %3000 = vrot.lane.b32.xlu0 %v2957, 64
    %v3001 = vpop.permute.xlu0 %3000
    %v3003 = vadd.f32 %v2479, %v3001
    %v3004 = vxor.u32 %v3003, 2147483648
    %v3005 = vmul.f32 %v3004, 1.442695
    %v3006 = vpow.pop %v3005
    %v3007 = vadd.f32 %v3006, 1.0
    %v3008 = vrcp.pop %v3007
    %v3009 = vmul.f32 %v3007, %v3008
    %v3010 = vsub.f32 1.0, %v3009
    %v3011 = vmul.f32 %v3008, %v3010
    %v3012 = vadd.f32 %v3008, %v3011
    %vm3013 = vweird.f32 %v3007
    %vm3014 = vweird.f32 %v3008
    %vm3015 = vmor %vm3013, %vm3014
    %v3016 = vsel %vm3015, %v3008, %v3012
    %v3017 = vand.u32 2147483647, %v3007
    %vm3018 = vcmp.eq.f32.partialorder %v3017, 8.507059e+37
    %v3019 = vand.u32 %v3007, 2147483648
    %v3020 = vor.u32 1.1754944e-38, %v3019
    %v3021 = vsel %vm3018, %v3020, %v3016
    %v3022 = vmul.f32 1.0, %v3021
    %v3023 = vmul.f32 %v2998, %v2977
    %v3024 = vadd.f32 %v2480, %v3023
    %v3025 = vtanh.pop %v3024
    %v3026 = vsub.f32 1.0, %v3022
    %v3027 = vmul.f32 %v3026, %v3025
    %v3028 = vmul.f32 %v3022, %v2935
    %v3029 = vadd.f32 %v3027, %v3028
    %v3031 = vrot.slane %v3029, 4
    %v3033 = vmul.f32 %v195, %v3031
    %v3034 = vrot.slane %v2935, 4
    %v3036 = vmul.f32 %v952, %v3034
    %v3037 = vadd.f32 %v3033, %v3036
    %v3039 = vrot.slane %v3037, 4
    %v3040 = vsel %vm387, %v3039, 0
    %3042 = vmatpush.msra.mxu0 0.0
    %3043 = vmatpush.msra.mxu0 0.0
    %3044 = vmatpush.msra.mxu0 0.0
    %3045 = vmatpush.msra.mxu0 0.0
    %3046 = vmatpush.msra.mxu0 0.0
    %3047 = vmatpush.msra.mxu0 0.0
    %3048 = vmatpush.msra.mxu0 0.0
    %3049 = vmatpush.msra.mxu0 0.0
    %3050 = vmatpush.msra.mxu0 %v2419
    %3051 = vmatpush.msra.mxu0 %v2417
    %3052 = vmatpush.msra.mxu0 %v2415
    %3053 = vmatpush.msra.mxu0 %v2413
    %3054 = vmatpush.msra.mxu0 %v2411
    %3055 = vmatpush.msra.mxu0 %v2409
    %3056 = vmatpush.msra.mxu0 %v2407
    %3057 = vmatpush.msra.mxu0 %v2405
    %3058 = vmatmul.f32.gmra.mxu0 %v3040
    %v3059 = vpop.f32.mrf.mxu0
    %v3060 = vadd.f32 %v2423, %v3059
    %3061 = vdwg.mxu0
    %3062 = vmatpush.msra.mxu0 0.0
    %3063 = vmatpush.msra.mxu0 0.0
    %3064 = vmatpush.msra.mxu0 0.0
    %3065 = vmatpush.msra.mxu0 0.0
    %3066 = vmatpush.msra.mxu0 0.0
    %3067 = vmatpush.msra.mxu0 0.0
    %3068 = vmatpush.msra.mxu0 0.0
    %3069 = vmatpush.msra.mxu0 0.0
    %3070 = vmatpush.msra.mxu0 %v2420
    %3071 = vmatpush.msra.mxu0 %v2418
    %3072 = vmatpush.msra.mxu0 %v2416
    %3073 = vmatpush.msra.mxu0 %v2414
    %3074 = vmatpush.msra.mxu0 %v2412
    %3075 = vmatpush.msra.mxu0 %v2410
    %3076 = vmatpush.msra.mxu0 %v2408
    %3077 = vmatpush.msra.mxu0 %v2406
    %3078 = vmatmul.f32.gmra.mxu0 %v3040
    %v3079 = vpop.f32.mrf.mxu0
    %v3080 = vadd.f32 %v2424, %v3079
    %3081 = vdwg.mxu0
    %v3082 = vadd.f32 %v2471, %v3060
    %v3083 = vxor.u32 %v3082, 2147483648
    %v3084 = vmul.f32 %v3083, 1.442695
    %v3085 = vpow.pop %v3084
    %v3086 = vadd.f32 %v3085, 1.0
    %v3087 = vrcp.pop %v3086
    %v3088 = vmul.f32 %v3086, %v3087
    %v3089 = vsub.f32 1.0, %v3088
    %v3090 = vmul.f32 %v3087, %v3089
    %v3091 = vadd.f32 %v3087, %v3090
    %vm3092 = vweird.f32 %v3086
    %vm3093 = vweird.f32 %v3087
    %vm3094 = vmor %vm3092, %vm3093
    %v3095 = vsel %vm3094, %v3087, %v3091
    %v3096 = vand.u32 2147483647, %v3086
    %vm3097 = vcmp.eq.f32.partialorder %v3096, 8.507059e+37
    %v3098 = vand.u32 %v3086, 2147483648
    %v3099 = vor.u32 1.1754944e-38, %v3098
    %v3100 = vsel %vm3097, %v3099, %v3095
    %v3101 = vmul.f32 1.0, %v3100
    %3103 = vrot.lane.b32.xlu0 %v3060, 64
    %v3104 = vpop.permute.xlu0 %3103
    %v3106 = vadd.f32 %v2479, %v3104
    %v3107 = vxor.u32 %v3106, 2147483648
    %v3108 = vmul.f32 %v3107, 1.442695
    %v3109 = vpow.pop %v3108
    %v3110 = vadd.f32 %v3109, 1.0
    %v3111 = vrcp.pop %v3110
    %v3112 = vmul.f32 %v3110, %v3111
    %v3113 = vsub.f32 1.0, %v3112
    %v3114 = vmul.f32 %v3111, %v3113
    %v3115 = vadd.f32 %v3111, %v3114
    %vm3116 = vweird.f32 %v3110
    %vm3117 = vweird.f32 %v3111
    %vm3118 = vmor %vm3116, %vm3117
    %v3119 = vsel %vm3118, %v3111, %v3115
    %v3120 = vand.u32 2147483647, %v3110
    %vm3121 = vcmp.eq.f32.partialorder %v3120, 8.507059e+37
    %v3122 = vand.u32 %v3110, 2147483648
    %v3123 = vor.u32 1.1754944e-38, %v3122
    %v3124 = vsel %vm3121, %v3123, %v3119
    %v3125 = vmul.f32 1.0, %v3124
    %v3126 = vmul.f32 %v3101, %v3080
    %v3127 = vadd.f32 %v2480, %v3126
    %v3128 = vtanh.pop %v3127
    %v3129 = vsub.f32 1.0, %v3125
    %v3130 = vmul.f32 %v3129, %v3128
    %v3132 = vmul.f32 %v3125, %v3039
    %v3133 = vadd.f32 %v3130, %v3132
    %v3134 = vmul.f32 %v196, %v3133
    %v3135 = vmul.f32 %v1175, %v3039
    %v3136 = vadd.f32 %v3134, %v3135
    %v3138 = vsel %vm387, %v3136, 0
    %3140 = vmatpush.msra.mxu0 0.0
    %3141 = vmatpush.msra.mxu0 0.0
    %3142 = vmatpush.msra.mxu0 0.0
    %3143 = vmatpush.msra.mxu0 0.0
    %3144 = vmatpush.msra.mxu0 0.0
    %3145 = vmatpush.msra.mxu0 0.0
    %3146 = vmatpush.msra.mxu0 0.0
    %3147 = vmatpush.msra.mxu0 0.0
    %3148 = vmatpush.msra.mxu0 %v2419
    %3149 = vmatpush.msra.mxu0 %v2417
    %3150 = vmatpush.msra.mxu0 %v2415
    %3151 = vmatpush.msra.mxu0 %v2413
    %3152 = vmatpush.msra.mxu0 %v2411
    %3153 = vmatpush.msra.mxu0 %v2409
    %3154 = vmatpush.msra.mxu0 %v2407
    %3155 = vmatpush.msra.mxu0 %v2405
    %3156 = vmatmul.f32.gmra.mxu0 %v3138
    %v3157 = vpop.f32.mrf.mxu0
    %v3158 = vadd.f32 %v2423, %v3157
    %3159 = vdwg.mxu0
    %3160 = vmatpush.msra.mxu0 0.0
    %3161 = vmatpush.msra.mxu0 0.0
    %3162 = vmatpush.msra.mxu0 0.0
    %3163 = vmatpush.msra.mxu0 0.0
    %3164 = vmatpush.msra.mxu0 0.0
    %3165 = vmatpush.msra.mxu0 0.0
    %3166 = vmatpush.msra.mxu0 0.0
    %3167 = vmatpush.msra.mxu0 0.0
    %3168 = vmatpush.msra.mxu0 %v2420
    %3169 = vmatpush.msra.mxu0 %v2418
    %3170 = vmatpush.msra.mxu0 %v2416
    %3171 = vmatpush.msra.mxu0 %v2414
    %3172 = vmatpush.msra.mxu0 %v2412
    %3173 = vmatpush.msra.mxu0 %v2410
    %3174 = vmatpush.msra.mxu0 %v2408
    %3175 = vmatpush.msra.mxu0 %v2406
    %3176 = vmatmul.f32.gmra.mxu0 %v3138
    %v3177 = vpop.f32.mrf.mxu0
    %v3178 = vadd.f32 %v2424, %v3177
    %3179 = vdwg.mxu0
    %v3180 = vadd.f32 %v2471, %v3158
    %v3181 = vxor.u32 %v3180, 2147483648
    %v3182 = vmul.f32 %v3181, 1.442695
    %v3183 = vpow.pop %v3182
    %v3184 = vadd.f32 %v3183, 1.0
    %v3185 = vrcp.pop %v3184
    %v3186 = vmul.f32 %v3184, %v3185
    %v3187 = vsub.f32 1.0, %v3186
    %v3188 = vmul.f32 %v3185, %v3187
    %v3189 = vadd.f32 %v3185, %v3188
    %vm3190 = vweird.f32 %v3184
    %vm3191 = vweird.f32 %v3185
    %vm3192 = vmor %vm3190, %vm3191
    %v3193 = vsel %vm3192, %v3185, %v3189
    %v3194 = vand.u32 2147483647, %v3184
    %vm3195 = vcmp.eq.f32.partialorder %v3194, 8.507059e+37
    %v3196 = vand.u32 %v3184, 2147483648
    %v3197 = vor.u32 1.1754944e-38, %v3196
    %v3198 = vsel %vm3195, %v3197, %v3193
    %v3199 = vmul.f32 1.0, %v3198
    %3201 = vrot.lane.b32.xlu0 %v3158, 64
    %v3202 = vpop.permute.xlu0 %3201
    %v3204 = vadd.f32 %v2479, %v3202
    %v3205 = vxor.u32 %v3204, 2147483648
    %v3206 = vmul.f32 %v3205, 1.442695
    %v3207 = vpow.pop %v3206
    %v3208 = vadd.f32 %v3207, 1.0
    %v3209 = vrcp.pop %v3208
    %v3210 = vmul.f32 %v3208, %v3209
    %v3211 = vsub.f32 1.0, %v3210
    %v3212 = vmul.f32 %v3209, %v3211
    %v3213 = vadd.f32 %v3209, %v3212
    %vm3214 = vweird.f32 %v3208
    %vm3215 = vweird.f32 %v3209
    %vm3216 = vmor %vm3214, %vm3215
    %v3217 = vsel %vm3216, %v3209, %v3213
    %v3218 = vand.u32 2147483647, %v3208
    %vm3219 = vcmp.eq.f32.partialorder %v3218, 8.507059e+37
    %v3220 = vand.u32 %v3208, 2147483648
    %v3221 = vor.u32 1.1754944e-38, %v3220
    %v3222 = vsel %vm3219, %v3221, %v3217
    %v3223 = vmul.f32 1.0, %v3222
    %v3224 = vmul.f32 %v3199, %v3178
    %v3225 = vadd.f32 %v2480, %v3224
    %v3226 = vtanh.pop %v3225
    %v3227 = vsub.f32 1.0, %v3223
    %v3228 = vmul.f32 %v3227, %v3226
    %v3229 = vmul.f32 %v3223, %v3136
    %v3230 = vadd.f32 %v3228, %v3229
    %v3232 = vrot.slane %v3230, 4
    %v3234 = vmul.f32 %v196, %v3232
    %v3235 = vrot.slane %v3136, 4
    %v3237 = vmul.f32 %v1175, %v3235
    %v3238 = vadd.f32 %v3234, %v3237
    %v3240 = vrot.slane %v3234, 4
    %v3242 = vsel %vm294, %v2532, %v3240
    %v3244 = vrot.slane %v3134, 4
    %v3246 = vsel %vm294, %v2631, %v3244
    %v3248 = vrot.slane %v3033, 4
    %v3250 = vsel %vm294, %v2732, %v3248
    %v3252 = vrot.slane %v2933, 4
    %v3254 = vsel %vm294, %v2832, %v3252
    %v3256 = vrot.slane %v2832, 4
    %v3258 = vsel %vm294, %v2933, %v3256
    %v3260 = vrot.slane %v2732, 4
    %v3262 = vsel %vm294, %v3033, %v3260
    %v3264 = vrot.slane %v2631, 4
    %v3266 = vsel %vm294, %v3134, %v3264
    %v3268 = vrot.slane %v2532, 4
    %v3270 = vsel %vm294, %v3234, %v3268
    %v3271 = vsel %vm1314, %v3242, %v3246
    %v3272 = vsel %vm1314, %v3250, %v3254
    %v3273 = vsel %vm1314, %v3258, %v3262
    %v3274 = vsel %vm1314, %v3266, %v3270
    %v3275 = vld [vmem:[#allocation5] sm:$0xff]
    %v3276 = vld [vmem:[#allocation5 + $0x8] sm:$0xff]
    %v3277 = vld [vmem:[#allocation5 + $0x10] sm:$0xff]
    %v3278 = vld [vmem:[#allocation5 + $0x18] sm:$0xff]
    %v3279 = vld [vmem:[#allocation5 + $0x20] sm:$0xff]
    %v3280 = vld [vmem:[#allocation5 + $0x28] sm:$0xff]
    %v3281 = vld [vmem:[#allocation5 + $0x30] sm:$0xff]
    %v3282 = vld [vmem:[#allocation5 + $0x38] sm:$0xff]
    %v3283 = vld [vmem:[#allocation5 + $0x40] sm:$0xff]
    %v3284 = vld [vmem:[#allocation5 + $0x48] sm:$0xff]
    %v3285 = vld [vmem:[#allocation5 + $0x50] sm:$0xff]
    %v3286 = vld [vmem:[#allocation5 + $0x58] sm:$0xff]
    %v3287 = vld [vmem:[#allocation5 + $0x60] sm:$0xff]
    %v3288 = vld [vmem:[#allocation5 + $0x68] sm:$0xff]
    %v3289 = vld [vmem:[#allocation5 + $0x70] sm:$0xff]
    %v3290 = vld [vmem:[#allocation5 + $0x78] sm:$0xff]
    %v3291 = vld [vmem:[%s37] sm:$0x3]
    %v3293 = vperm.slane %v3291, 0
    %v3294 = vperm.slane %v3291, 1
    %v3298 = vsel %vm387, %v3271, 0
    %v3301 = vsel %vm387, %v3272, 0
    %v3304 = vsel %vm387, %v3273, 0
    %v3307 = vsel %vm387, %v3274, 0
    %3309 = vmatpush.msra.mxu0 0.0
    %3310 = vmatpush.msra.mxu0 0.0
    %3311 = vmatpush.msra.mxu0 0.0
    %3312 = vmatpush.msra.mxu0 0.0
    %3313 = vmatpush.msra.mxu0 0.0
    %3314 = vmatpush.msra.mxu0 0.0
    %3315 = vmatpush.msra.mxu0 0.0
    %3316 = vmatpush.msra.mxu0 0.0
    %3317 = vmatpush.msra.mxu0 %v3289
    %3318 = vmatpush.msra.mxu0 %v3287
    %3319 = vmatpush.msra.mxu0 %v3285
    %3320 = vmatpush.msra.mxu0 %v3283
    %3321 = vmatpush.msra.mxu0 %v3281
    %3322 = vmatpush.msra.mxu0 %v3279
    %3323 = vmatpush.msra.mxu0 %v3277
    %3324 = vmatpush.msra.mxu0 %v3275
    %3325 = vmatmul.f32.gmra.mxu0 %v3298
    %v3326 = vpop.f32.mrf.mxu0
    %v3327 = vadd.f32 %v3293, %v3326
    %3328 = vmatmul.f32.gmra.mxu0 %v3301
    %v3329 = vpop.f32.mrf.mxu0
    %v3330 = vadd.f32 %v3293, %v3329
    %3331 = vmatmul.f32.gmra.mxu0 %v3304
    %v3332 = vpop.f32.mrf.mxu0
    %v3333 = vadd.f32 %v3293, %v3332
    %3334 = vmatmul.f32.gmra.mxu0 %v3307
    %v3335 = vpop.f32.mrf.mxu0
    %v3336 = vadd.f32 %v3293, %v3335
    %3337 = vdwg.mxu0
    %3338 = vmatpush.msra.mxu0 0.0
    %3339 = vmatpush.msra.mxu0 0.0
    %3340 = vmatpush.msra.mxu0 0.0
    %3341 = vmatpush.msra.mxu0 0.0
    %3342 = vmatpush.msra.mxu0 0.0
    %3343 = vmatpush.msra.mxu0 0.0
    %3344 = vmatpush.msra.mxu0 0.0
    %3345 = vmatpush.msra.mxu0 0.0
    %3346 = vmatpush.msra.mxu0 %v3290
    %3347 = vmatpush.msra.mxu0 %v3288
    %3348 = vmatpush.msra.mxu0 %v3286
    %3349 = vmatpush.msra.mxu0 %v3284
    %3350 = vmatpush.msra.mxu0 %v3282
    %3351 = vmatpush.msra.mxu0 %v3280
    %3352 = vmatpush.msra.mxu0 %v3278
    %3353 = vmatpush.msra.mxu0 %v3276
    %3354 = vmatmul.f32.gmra.mxu0 %v3298
    %v3355 = vpop.f32.mrf.mxu0
    %v3356 = vadd.f32 %v3294, %v3355
    %3357 = vmatmul.f32.gmra.mxu0 %v3301
    %v3358 = vpop.f32.mrf.mxu0
    %v3359 = vadd.f32 %v3294, %v3358
    %3360 = vmatmul.f32.gmra.mxu0 %v3304
    %v3361 = vpop.f32.mrf.mxu0
    %v3362 = vadd.f32 %v3294, %v3361
    %3363 = vmatmul.f32.gmra.mxu0 %v3307
    %v3364 = vpop.f32.mrf.mxu0
    %v3365 = vadd.f32 %v3294, %v3364
    %3366 = vdwg.mxu0
    %v3367 = vld [vmem:[#allocation7] sm:$0xff]
    %v3368 = vld [vmem:[#allocation7 + $0x8] sm:$0xff]
    %v3369 = vld [vmem:[#allocation7 + $0x10] sm:$0xff]
    %v3370 = vld [vmem:[#allocation7 + $0x18] sm:$0xff]
    %v3371 = vld [vmem:[#allocation7 + $0x20] sm:$0xff]
    %v3372 = vld [vmem:[#allocation7 + $0x28] sm:$0xff]
    %v3373 = vld [vmem:[#allocation7 + $0x30] sm:$0xff]
    %v3374 = vld [vmem:[#allocation7 + $0x38] sm:$0xff]
    %v3375 = vld [vmem:[#allocation7 + $0x40] sm:$0xff]
    %v3376 = vld [vmem:[#allocation7 + $0x48] sm:$0xff]
    %v3377 = vld [vmem:[#allocation7 + $0x50] sm:$0xff]
    %v3378 = vld [vmem:[#allocation7 + $0x58] sm:$0xff]
    %v3379 = vld [vmem:[#allocation7 + $0x60] sm:$0xff]
    %v3380 = vld [vmem:[#allocation7 + $0x68] sm:$0xff]
    %v3381 = vld [vmem:[#allocation7 + $0x70] sm:$0xff]
    %v3382 = vld [vmem:[#allocation7 + $0x78] sm:$0xff]
    %v3383 = vld [vmem:[%s39] sm:$0x3]
    %v3385 = vperm.slane %v3383, 0
    %v3386 = vperm.slane %v3383, 1
    %3389 = vmatpush.msra.mxu0 0.0
    %3390 = vmatpush.msra.mxu0 0.0
    %3391 = vmatpush.msra.mxu0 0.0
    %3392 = vmatpush.msra.mxu0 0.0
    %3393 = vmatpush.msra.mxu0 0.0
    %3394 = vmatpush.msra.mxu0 0.0
    %3395 = vmatpush.msra.mxu0 0.0
    %3396 = vmatpush.msra.mxu0 0.0
    %3397 = vmatpush.msra.mxu0 %v3381
    %3398 = vmatpush.msra.mxu0 %v3379
    %3399 = vmatpush.msra.mxu0 %v3377
    %3400 = vmatpush.msra.mxu0 %v3375
    %3401 = vmatpush.msra.mxu0 %v3373
    %3402 = vmatpush.msra.mxu0 %v3371
    %3403 = vmatpush.msra.mxu0 %v3369
    %3404 = vmatpush.msra.mxu0 %v3367
    %3405 = vmatmul.f32.gmra.mxu0 %v389
    %v3406 = vpop.f32.mrf.mxu0
    %v3407 = vadd.f32 %v3385, %v3406
    %3408 = vdwg.mxu0
    %3409 = vmatpush.msra.mxu0 0.0
    %3410 = vmatpush.msra.mxu0 0.0
    %3411 = vmatpush.msra.mxu0 0.0
    %3412 = vmatpush.msra.mxu0 0.0
    %3413 = vmatpush.msra.mxu0 0.0
    %3414 = vmatpush.msra.mxu0 0.0
    %3415 = vmatpush.msra.mxu0 0.0
    %3416 = vmatpush.msra.mxu0 0.0
    %3417 = vmatpush.msra.mxu0 %v3382
    %3418 = vmatpush.msra.mxu0 %v3380
    %3419 = vmatpush.msra.mxu0 %v3378
    %3420 = vmatpush.msra.mxu0 %v3376
    %3421 = vmatpush.msra.mxu0 %v3374
    %3422 = vmatpush.msra.mxu0 %v3372
    %3423 = vmatpush.msra.mxu0 %v3370
    %3424 = vmatpush.msra.mxu0 %v3368
    %3425 = vmatmul.f32.gmra.mxu0 %v389
    %v3426 = vpop.f32.mrf.mxu0
    %v3427 = vadd.f32 %v3386, %v3426
    %3428 = vdwg.mxu0
    %v3430 = vrot.slane %v3336, 4
    %3431 = vrot.lane.b32.xlu0 %v3430, 64
    %v3432 = vpop.permute.xlu0 %3431
    %v3434 = vsel %vm294, %v3327, %v3432
    %3436 = vrot.lane.b32.xlu0 %v3327, 96
    %v3437 = vpop.permute.xlu0 %3436
    %v3440 = vrot.slane %v3365, 4
    %3441 = vrot.lane.b32.xlu0 %v3440, 32
    %v3442 = vpop.permute.xlu0 %3441
    %v3444 = vsel %vm294, %v3437, %v3442
    %3445 = vrot.lane.b32.xlu0 %v3327, 64
    %v3446 = vpop.permute.xlu0 %3445
    %v3449 = vsel %vm294, %v3446, %v3440
    %v3450 = vadd.f32 %v3434, %v3407
    %v3451 = vxor.u32 %v3450, 2147483648
    %v3452 = vmul.f32 %v3451, 1.442695
    %v3453 = vpow.pop %v3452
    %v3454 = vadd.f32 %v3453, 1.0
    %v3455 = vrcp.pop %v3454
    %v3456 = vmul.f32 %v3454, %v3455
    %v3457 = vsub.f32 1.0, %v3456
    %v3458 = vmul.f32 %v3455, %v3457
    %v3459 = vadd.f32 %v3455, %v3458
    %vm3460 = vweird.f32 %v3454
    %vm3461 = vweird.f32 %v3455
    %vm3462 = vmor %vm3460, %vm3461
    %v3463 = vsel %vm3462, %v3455, %v3459
    %v3464 = vand.u32 2147483647, %v3454
    %vm3465 = vcmp.eq.f32.partialorder %v3464, 8.507059e+37
    %v3466 = vand.u32 %v3454, 2147483648
    %v3467 = vor.u32 1.1754944e-38, %v3466
    %v3468 = vsel %vm3465, %v3467, %v3463
    %v3469 = vmul.f32 1.0, %v3468
    %3471 = vrot.lane.b32.xlu0 %v3407, 64
    %v3472 = vpop.permute.xlu0 %3471
    %v3474 = vadd.f32 %v3444, %v3472
    %v3475 = vxor.u32 %v3474, 2147483648
    %v3476 = vmul.f32 %v3475, 1.442695
    %v3477 = vpow.pop %v3476
    %v3478 = vadd.f32 %v3477, 1.0
    %v3479 = vrcp.pop %v3478
    %v3480 = vmul.f32 %v3478, %v3479
    %v3481 = vsub.f32 1.0, %v3480
    %v3482 = vmul.f32 %v3479, %v3481
    %v3483 = vadd.f32 %v3479, %v3482
    %vm3484 = vweird.f32 %v3478
    %vm3485 = vweird.f32 %v3479
    %vm3486 = vmor %vm3484, %vm3485
    %v3487 = vsel %vm3486, %v3479, %v3483
    %v3488 = vand.u32 2147483647, %v3478
    %vm3489 = vcmp.eq.f32.partialorder %v3488, 8.507059e+37
    %v3490 = vand.u32 %v3478, 2147483648
    %v3491 = vor.u32 1.1754944e-38, %v3490
    %v3492 = vsel %vm3489, %v3491, %v3487
    %v3493 = vmul.f32 1.0, %v3492
    %v3494 = vmul.f32 %v3469, %v3427
    %v3495 = vadd.f32 %v3449, %v3494
    %v3496 = vtanh.pop %v3495
    %v3497 = vsub.f32 1.0, %v3493
    %v3498 = vmul.f32 %v3497, %v3496
    %v3499 = vmul.f32 %v3493, 0.0
    %v3500 = vadd.f32 %v3498, %v3499
    %v3501 = vmul.f32 %v193, %v3500
    %v3502 = vadd.f32 %v3501, %v505
    %v3504 = vsel %vm387, %v3502, 0
    %3506 = vmatpush.msra.mxu0 0.0
    %3507 = vmatpush.msra.mxu0 0.0
    %3508 = vmatpush.msra.mxu0 0.0
    %3509 = vmatpush.msra.mxu0 0.0
    %3510 = vmatpush.msra.mxu0 0.0
    %3511 = vmatpush.msra.mxu0 0.0
    %3512 = vmatpush.msra.mxu0 0.0
    %3513 = vmatpush.msra.mxu0 0.0
    %3514 = vmatpush.msra.mxu0 %v3381
    %3515 = vmatpush.msra.mxu0 %v3379
    %3516 = vmatpush.msra.mxu0 %v3377
    %3517 = vmatpush.msra.mxu0 %v3375
    %3518 = vmatpush.msra.mxu0 %v3373
    %3519 = vmatpush.msra.mxu0 %v3371
    %3520 = vmatpush.msra.mxu0 %v3369
    %3521 = vmatpush.msra.mxu0 %v3367
    %3522 = vmatmul.f32.gmra.mxu0 %v3504
    %v3523 = vpop.f32.mrf.mxu0
    %v3524 = vadd.f32 %v3385, %v3523
    %3525 = vdwg.mxu0
    %3526 = vmatpush.msra.mxu0 0.0
    %3527 = vmatpush.msra.mxu0 0.0
    %3528 = vmatpush.msra.mxu0 0.0
    %3529 = vmatpush.msra.mxu0 0.0
    %3530 = vmatpush.msra.mxu0 0.0
    %3531 = vmatpush.msra.mxu0 0.0
    %3532 = vmatpush.msra.mxu0 0.0
    %3533 = vmatpush.msra.mxu0 0.0
    %3534 = vmatpush.msra.mxu0 %v3382
    %3535 = vmatpush.msra.mxu0 %v3380
    %3536 = vmatpush.msra.mxu0 %v3378
    %3537 = vmatpush.msra.mxu0 %v3376
    %3538 = vmatpush.msra.mxu0 %v3374
    %3539 = vmatpush.msra.mxu0 %v3372
    %3540 = vmatpush.msra.mxu0 %v3370
    %3541 = vmatpush.msra.mxu0 %v3368
    %3542 = vmatmul.f32.gmra.mxu0 %v3504
    %v3543 = vpop.f32.mrf.mxu0
    %v3544 = vadd.f32 %v3386, %v3543
    %3545 = vdwg.mxu0
    %v3547 = vrot.slane %v3524, 4
    %v3549 = vadd.f32 %v3434, %v3547
    %v3550 = vxor.u32 %v3549, 2147483648
    %v3551 = vmul.f32 %v3550, 1.442695
    %v3552 = vpow.pop %v3551
    %v3553 = vadd.f32 %v3552, 1.0
    %v3554 = vrcp.pop %v3553
    %v3555 = vmul.f32 %v3553, %v3554
    %v3556 = vsub.f32 1.0, %v3555
    %v3557 = vmul.f32 %v3554, %v3556
    %v3558 = vadd.f32 %v3554, %v3557
    %vm3559 = vweird.f32 %v3553
    %vm3560 = vweird.f32 %v3554
    %vm3561 = vmor %vm3559, %vm3560
    %v3562 = vsel %vm3561, %v3554, %v3558
    %v3563 = vand.u32 2147483647, %v3553
    %vm3564 = vcmp.eq.f32.partialorder %v3563, 8.507059e+37
    %v3565 = vand.u32 %v3553, 2147483648
    %v3566 = vor.u32 1.1754944e-38, %v3565
    %v3567 = vsel %vm3564, %v3566, %v3562
    %v3568 = vmul.f32 1.0, %v3567
    %3569 = vrot.lane.b32.xlu0 %v3547, 64
    %v3570 = vpop.permute.xlu0 %3569
    %v3572 = vadd.f32 %v3444, %v3570
    %v3573 = vxor.u32 %v3572, 2147483648
    %v3574 = vmul.f32 %v3573, 1.442695
    %v3575 = vpow.pop %v3574
    %v3576 = vadd.f32 %v3575, 1.0
    %v3577 = vrcp.pop %v3576
    %v3578 = vmul.f32 %v3576, %v3577
    %v3579 = vsub.f32 1.0, %v3578
    %v3580 = vmul.f32 %v3577, %v3579
    %v3581 = vadd.f32 %v3577, %v3580
    %vm3582 = vweird.f32 %v3576
    %vm3583 = vweird.f32 %v3577
    %vm3584 = vmor %vm3582, %vm3583
    %v3585 = vsel %vm3584, %v3577, %v3581
    %v3586 = vand.u32 2147483647, %v3576
    %vm3587 = vcmp.eq.f32.partialorder %v3586, 8.507059e+37
    %v3588 = vand.u32 %v3576, 2147483648
    %v3589 = vor.u32 1.1754944e-38, %v3588
    %v3590 = vsel %vm3587, %v3589, %v3585
    %v3591 = vmul.f32 1.0, %v3590
    %v3593 = vrot.slane %v3544, 4
    %v3595 = vmul.f32 %v3568, %v3593
    %v3596 = vadd.f32 %v3449, %v3595
    %v3597 = vtanh.pop %v3596
    %v3598 = vsub.f32 1.0, %v3591
    %v3599 = vmul.f32 %v3598, %v3597
    %v3600 = vrot.slane %v3502, 4
    %v3602 = vmul.f32 %v3591, %v3600
    %v3603 = vadd.f32 %v3599, %v3602
    %v3604 = vmul.f32 %v193, %v3603
    %v3605 = vmul.f32 %v504, %v3600
    %v3606 = vadd.f32 %v3604, %v3605
    %v3608 = vrot.slane %v3606, 4
    %v3609 = vsel %vm387, %v3608, 0
    %3611 = vmatpush.msra.mxu0 0.0
    %3612 = vmatpush.msra.mxu0 0.0
    %3613 = vmatpush.msra.mxu0 0.0
    %3614 = vmatpush.msra.mxu0 0.0
    %3615 = vmatpush.msra.mxu0 0.0
    %3616 = vmatpush.msra.mxu0 0.0
    %3617 = vmatpush.msra.mxu0 0.0
    %3618 = vmatpush.msra.mxu0 0.0
    %3619 = vmatpush.msra.mxu0 %v3381
    %3620 = vmatpush.msra.mxu0 %v3379
    %3621 = vmatpush.msra.mxu0 %v3377
    %3622 = vmatpush.msra.mxu0 %v3375
    %3623 = vmatpush.msra.mxu0 %v3373
    %3624 = vmatpush.msra.mxu0 %v3371
    %3625 = vmatpush.msra.mxu0 %v3369
    %3626 = vmatpush.msra.mxu0 %v3367
    %3627 = vmatmul.f32.gmra.mxu0 %v3609
    %v3628 = vpop.f32.mrf.mxu0
    %v3629 = vadd.f32 %v3385, %v3628
    %3630 = vdwg.mxu0
    %3631 = vmatpush.msra.mxu0 0.0
    %3632 = vmatpush.msra.mxu0 0.0
    %3633 = vmatpush.msra.mxu0 0.0
    %3634 = vmatpush.msra.mxu0 0.0
    %3635 = vmatpush.msra.mxu0 0.0
    %3636 = vmatpush.msra.mxu0 0.0
    %3637 = vmatpush.msra.mxu0 0.0
    %3638 = vmatpush.msra.mxu0 0.0
    %3639 = vmatpush.msra.mxu0 %v3382
    %3640 = vmatpush.msra.mxu0 %v3380
    %3641 = vmatpush.msra.mxu0 %v3378
    %3642 = vmatpush.msra.mxu0 %v3376
    %3643 = vmatpush.msra.mxu0 %v3374
    %3644 = vmatpush.msra.mxu0 %v3372
    %3645 = vmatpush.msra.mxu0 %v3370
    %3646 = vmatpush.msra.mxu0 %v3368
    %3647 = vmatmul.f32.gmra.mxu0 %v3609
    %v3648 = vpop.f32.mrf.mxu0
    %v3649 = vadd.f32 %v3386, %v3648
    %3650 = vdwg.mxu0
    %v3652 = vrot.slane %v3333, 4
    %3653 = vrot.lane.b32.xlu0 %v3652, 64
    %v3654 = vpop.permute.xlu0 %3653
    %v3656 = vsel %vm294, %v3330, %v3654
    %3658 = vrot.lane.b32.xlu0 %v3330, 96
    %v3659 = vpop.permute.xlu0 %3658
    %v3662 = vrot.slane %v3362, 4
    %3663 = vrot.lane.b32.xlu0 %v3662, 32
    %v3664 = vpop.permute.xlu0 %3663
    %v3666 = vsel %vm294, %v3659, %v3664
    %3667 = vrot.lane.b32.xlu0 %v3330, 64
    %v3668 = vpop.permute.xlu0 %3667
    %v3671 = vsel %vm294, %v3668, %v3662
    %v3672 = vadd.f32 %v3656, %v3629
    %v3673 = vxor.u32 %v3672, 2147483648
    %v3674 = vmul.f32 %v3673, 1.442695
    %v3675 = vpow.pop %v3674
    %v3676 = vadd.f32 %v3675, 1.0
    %v3677 = vrcp.pop %v3676
    %v3678 = vmul.f32 %v3676, %v3677
    %v3679 = vsub.f32 1.0, %v3678
    %v3680 = vmul.f32 %v3677, %v3679
    %v3681 = vadd.f32 %v3677, %v3680
    %vm3682 = vweird.f32 %v3676
    %vm3683 = vweird.f32 %v3677
    %vm3684 = vmor %vm3682, %vm3683
    %v3685 = vsel %vm3684, %v3677, %v3681
    %v3686 = vand.u32 2147483647, %v3676
    %vm3687 = vcmp.eq.f32.partialorder %v3686, 8.507059e+37
    %v3688 = vand.u32 %v3676, 2147483648
    %v3689 = vor.u32 1.1754944e-38, %v3688
    %v3690 = vsel %vm3687, %v3689, %v3685
    %v3691 = vmul.f32 1.0, %v3690
    %3693 = vrot.lane.b32.xlu0 %v3629, 64
    %v3694 = vpop.permute.xlu0 %3693
    %v3696 = vadd.f32 %v3666, %v3694
    %v3697 = vxor.u32 %v3696, 2147483648
    %v3698 = vmul.f32 %v3697, 1.442695
    %v3699 = vpow.pop %v3698
    %v3700 = vadd.f32 %v3699, 1.0
    %v3701 = vrcp.pop %v3700
    %v3702 = vmul.f32 %v3700, %v3701
    %v3703 = vsub.f32 1.0, %v3702
    %v3704 = vmul.f32 %v3701, %v3703
    %v3705 = vadd.f32 %v3701, %v3704
    %vm3706 = vweird.f32 %v3700
    %vm3707 = vweird.f32 %v3701
    %vm3708 = vmor %vm3706, %vm3707
    %v3709 = vsel %vm3708, %v3701, %v3705
    %v3710 = vand.u32 2147483647, %v3700
    %vm3711 = vcmp.eq.f32.partialorder %v3710, 8.507059e+37
    %v3712 = vand.u32 %v3700, 2147483648
    %v3713 = vor.u32 1.1754944e-38, %v3712
    %v3714 = vsel %vm3711, %v3713, %v3709
    %v3715 = vmul.f32 1.0, %v3714
    %v3716 = vmul.f32 %v3691, %v3649
    %v3717 = vadd.f32 %v3671, %v3716
    %v3718 = vtanh.pop %v3717
    %v3719 = vsub.f32 1.0, %v3715
    %v3720 = vmul.f32 %v3719, %v3718
    %v3722 = vmul.f32 %v3715, %v3608
    %v3723 = vadd.f32 %v3720, %v3722
    %v3724 = vmul.f32 %v194, %v3723
    %v3725 = vmul.f32 %v729, %v3608
    %v3726 = vadd.f32 %v3724, %v3725
    %v3728 = vsel %vm387, %v3726, 0
    %3730 = vmatpush.msra.mxu0 0.0
    %3731 = vmatpush.msra.mxu0 0.0
    %3732 = vmatpush.msra.mxu0 0.0
    %3733 = vmatpush.msra.mxu0 0.0
    %3734 = vmatpush.msra.mxu0 0.0
    %3735 = vmatpush.msra.mxu0 0.0
    %3736 = vmatpush.msra.mxu0 0.0
    %3737 = vmatpush.msra.mxu0 0.0
    %3738 = vmatpush.msra.mxu0 %v3381
    %3739 = vmatpush.msra.mxu0 %v3379
    %3740 = vmatpush.msra.mxu0 %v3377
    %3741 = vmatpush.msra.mxu0 %v3375
    %3742 = vmatpush.msra.mxu0 %v3373
    %3743 = vmatpush.msra.mxu0 %v3371
    %3744 = vmatpush.msra.mxu0 %v3369
    %3745 = vmatpush.msra.mxu0 %v3367
    %3746 = vmatmul.f32.gmra.mxu0 %v3728
    %v3747 = vpop.f32.mrf.mxu0
    %v3748 = vadd.f32 %v3385, %v3747
    %3749 = vdwg.mxu0
    %3750 = vmatpush.msra.mxu0 0.0
    %3751 = vmatpush.msra.mxu0 0.0
    %3752 = vmatpush.msra.mxu0 0.0
    %3753 = vmatpush.msra.mxu0 0.0
    %3754 = vmatpush.msra.mxu0 0.0
    %3755 = vmatpush.msra.mxu0 0.0
    %3756 = vmatpush.msra.mxu0 0.0
    %3757 = vmatpush.msra.mxu0 0.0
    %3758 = vmatpush.msra.mxu0 %v3382
    %3759 = vmatpush.msra.mxu0 %v3380
    %3760 = vmatpush.msra.mxu0 %v3378
    %3761 = vmatpush.msra.mxu0 %v3376
    %3762 = vmatpush.msra.mxu0 %v3374
    %3763 = vmatpush.msra.mxu0 %v3372
    %3764 = vmatpush.msra.mxu0 %v3370
    %3765 = vmatpush.msra.mxu0 %v3368
    %3766 = vmatmul.f32.gmra.mxu0 %v3728
    %v3767 = vpop.f32.mrf.mxu0
    %v3768 = vadd.f32 %v3386, %v3767
    %3769 = vdwg.mxu0
    %v3771 = vrot.slane %v3748, 4
    %v3773 = vadd.f32 %v3656, %v3771
    %v3774 = vxor.u32 %v3773, 2147483648
    %v3775 = vmul.f32 %v3774, 1.442695
    %v3776 = vpow.pop %v3775
    %v3777 = vadd.f32 %v3776, 1.0
    %v3778 = vrcp.pop %v3777
    %v3779 = vmul.f32 %v3777, %v3778
    %v3780 = vsub.f32 1.0, %v3779
    %v3781 = vmul.f32 %v3778, %v3780
    %v3782 = vadd.f32 %v3778, %v3781
    %vm3783 = vweird.f32 %v3777
    %vm3784 = vweird.f32 %v3778
    %vm3785 = vmor %vm3783, %vm3784
    %v3786 = vsel %vm3785, %v3778, %v3782
    %v3787 = vand.u32 2147483647, %v3777
    %vm3788 = vcmp.eq.f32.partialorder %v3787, 8.507059e+37
    %v3789 = vand.u32 %v3777, 2147483648
    %v3790 = vor.u32 1.1754944e-38, %v3789
    %v3791 = vsel %vm3788, %v3790, %v3786
    %v3792 = vmul.f32 1.0, %v3791
    %3793 = vrot.lane.b32.xlu0 %v3771, 64
    %v3794 = vpop.permute.xlu0 %3793
    %v3796 = vadd.f32 %v3666, %v3794
    %v3797 = vxor.u32 %v3796, 2147483648
    %v3798 = vmul.f32 %v3797, 1.442695
    %v3799 = vpow.pop %v3798
    %v3800 = vadd.f32 %v3799, 1.0
    %v3801 = vrcp.pop %v3800
    %v3802 = vmul.f32 %v3800, %v3801
    %v3803 = vsub.f32 1.0, %v3802
    %v3804 = vmul.f32 %v3801, %v3803
    %v3805 = vadd.f32 %v3801, %v3804
    %vm3806 = vweird.f32 %v3800
    %vm3807 = vweird.f32 %v3801
    %vm3808 = vmor %vm3806, %vm3807
    %v3809 = vsel %vm3808, %v3801, %v3805
    %v3810 = vand.u32 2147483647, %v3800
    %vm3811 = vcmp.eq.f32.partialorder %v3810, 8.507059e+37
    %v3812 = vand.u32 %v3800, 2147483648
    %v3813 = vor.u32 1.1754944e-38, %v3812
    %v3814 = vsel %vm3811, %v3813, %v3809
    %v3815 = vmul.f32 1.0, %v3814
    %v3817 = vrot.slane %v3768, 4
    %v3819 = vmul.f32 %v3792, %v3817
    %v3820 = vadd.f32 %v3671, %v3819
    %v3821 = vtanh.pop %v3820
    %v3822 = vsub.f32 1.0, %v3815
    %v3823 = vmul.f32 %v3822, %v3821
    %v3824 = vrot.slane %v3726, 4
    %v3826 = vmul.f32 %v3815, %v3824
    %v3827 = vadd.f32 %v3823, %v3826
    %v3828 = vmul.f32 %v194, %v3827
    %v3829 = vmul.f32 %v729, %v3824
    %v3830 = vadd.f32 %v3828, %v3829
    %v3832 = vrot.slane %v3830, 4
    %v3833 = vsel %vm387, %v3832, 0
    %3835 = vmatpush.msra.mxu0 0.0
    %3836 = vmatpush.msra.mxu0 0.0
    %3837 = vmatpush.msra.mxu0 0.0
    %3838 = vmatpush.msra.mxu0 0.0
    %3839 = vmatpush.msra.mxu0 0.0
    %3840 = vmatpush.msra.mxu0 0.0
    %3841 = vmatpush.msra.mxu0 0.0
    %3842 = vmatpush.msra.mxu0 0.0
    %3843 = vmatpush.msra.mxu0 %v3381
    %3844 = vmatpush.msra.mxu0 %v3379
    %3845 = vmatpush.msra.mxu0 %v3377
    %3846 = vmatpush.msra.mxu0 %v3375
    %3847 = vmatpush.msra.mxu0 %v3373
    %3848 = vmatpush.msra.mxu0 %v3371
    %3849 = vmatpush.msra.mxu0 %v3369
    %3850 = vmatpush.msra.mxu0 %v3367
    %3851 = vmatmul.f32.gmra.mxu0 %v3833
    %v3852 = vpop.f32.mrf.mxu0
    %v3853 = vadd.f32 %v3385, %v3852
    %3854 = vdwg.mxu0
    %3855 = vmatpush.msra.mxu0 0.0
    %3856 = vmatpush.msra.mxu0 0.0
    %3857 = vmatpush.msra.mxu0 0.0
    %3858 = vmatpush.msra.mxu0 0.0
    %3859 = vmatpush.msra.mxu0 0.0
    %3860 = vmatpush.msra.mxu0 0.0
    %3861 = vmatpush.msra.mxu0 0.0
    %3862 = vmatpush.msra.mxu0 0.0
    %3863 = vmatpush.msra.mxu0 %v3382
    %3864 = vmatpush.msra.mxu0 %v3380
    %3865 = vmatpush.msra.mxu0 %v3378
    %3866 = vmatpush.msra.mxu0 %v3376
    %3867 = vmatpush.msra.mxu0 %v3374
    %3868 = vmatpush.msra.mxu0 %v3372
    %3869 = vmatpush.msra.mxu0 %v3370
    %3870 = vmatpush.msra.mxu0 %v3368
    %3871 = vmatmul.f32.gmra.mxu0 %v3833
    %v3872 = vpop.f32.mrf.mxu0
    %v3873 = vadd.f32 %v3386, %v3872
    %3874 = vdwg.mxu0
    %v3875 = vrot.slane %v3330, 4
    %3876 = vrot.lane.b32.xlu0 %v3875, 64
    %v3877 = vpop.permute.xlu0 %3876
    %v3879 = vsel %vm294, %v3333, %v3877
    %3880 = vrot.lane.b32.xlu0 %v3333, 96
    %v3881 = vpop.permute.xlu0 %3880
    %v3884 = vrot.slane %v3359, 4
    %3885 = vrot.lane.b32.xlu0 %v3884, 32
    %v3886 = vpop.permute.xlu0 %3885
    %v3888 = vsel %vm294, %v3881, %v3886
    %3889 = vrot.lane.b32.xlu0 %v3333, 64
    %v3890 = vpop.permute.xlu0 %3889
    %v3893 = vsel %vm294, %v3890, %v3884
    %v3894 = vadd.f32 %v3879, %v3853
    %v3895 = vxor.u32 %v3894, 2147483648
    %v3896 = vmul.f32 %v3895, 1.442695
    %v3897 = vpow.pop %v3896
    %v3898 = vadd.f32 %v3897, 1.0
    %v3899 = vrcp.pop %v3898
    %v3900 = vmul.f32 %v3898, %v3899
    %v3901 = vsub.f32 1.0, %v3900
    %v3902 = vmul.f32 %v3899, %v3901
    %v3903 = vadd.f32 %v3899, %v3902
    %vm3904 = vweird.f32 %v3898
    %vm3905 = vweird.f32 %v3899
    %vm3906 = vmor %vm3904, %vm3905
    %v3907 = vsel %vm3906, %v3899, %v3903
    %v3908 = vand.u32 2147483647, %v3898
    %vm3909 = vcmp.eq.f32.partialorder %v3908, 8.507059e+37
    %v3910 = vand.u32 %v3898, 2147483648
    %v3911 = vor.u32 1.1754944e-38, %v3910
    %v3912 = vsel %vm3909, %v3911, %v3907
    %v3913 = vmul.f32 1.0, %v3912
    %3915 = vrot.lane.b32.xlu0 %v3853, 64
    %v3916 = vpop.permute.xlu0 %3915
    %v3918 = vadd.f32 %v3888, %v3916
    %v3919 = vxor.u32 %v3918, 2147483648
    %v3920 = vmul.f32 %v3919, 1.442695
    %v3921 = vpow.pop %v3920
    %v3922 = vadd.f32 %v3921, 1.0
    %v3923 = vrcp.pop %v3922
    %v3924 = vmul.f32 %v3922, %v3923
    %v3925 = vsub.f32 1.0, %v3924
    %v3926 = vmul.f32 %v3923, %v3925
    %v3927 = vadd.f32 %v3923, %v3926
    %vm3928 = vweird.f32 %v3922
    %vm3929 = vweird.f32 %v3923
    %vm3930 = vmor %vm3928, %vm3929
    %v3931 = vsel %vm3930, %v3923, %v3927
    %v3932 = vand.u32 2147483647, %v3922
    %vm3933 = vcmp.eq.f32.partialorder %v3932, 8.507059e+37
    %v3934 = vand.u32 %v3922, 2147483648
    %v3935 = vor.u32 1.1754944e-38, %v3934
    %v3936 = vsel %vm3933, %v3935, %v3931
    %v3937 = vmul.f32 1.0, %v3936
    %v3938 = vmul.f32 %v3913, %v3873
    %v3939 = vadd.f32 %v3893, %v3938
    %v3940 = vtanh.pop %v3939
    %v3941 = vsub.f32 1.0, %v3937
    %v3942 = vmul.f32 %v3941, %v3940
    %v3944 = vmul.f32 %v3937, %v3832
    %v3945 = vadd.f32 %v3942, %v3944
    %v3946 = vmul.f32 %v195, %v3945
    %v3947 = vmul.f32 %v952, %v3832
    %v3948 = vadd.f32 %v3946, %v3947
    %v3950 = vsel %vm387, %v3948, 0
    %3952 = vmatpush.msra.mxu0 0.0
    %3953 = vmatpush.msra.mxu0 0.0
    %3954 = vmatpush.msra.mxu0 0.0
    %3955 = vmatpush.msra.mxu0 0.0
    %3956 = vmatpush.msra.mxu0 0.0
    %3957 = vmatpush.msra.mxu0 0.0
    %3958 = vmatpush.msra.mxu0 0.0
    %3959 = vmatpush.msra.mxu0 0.0
    %3960 = vmatpush.msra.mxu0 %v3381
    %3961 = vmatpush.msra.mxu0 %v3379
    %3962 = vmatpush.msra.mxu0 %v3377
    %3963 = vmatpush.msra.mxu0 %v3375
    %3964 = vmatpush.msra.mxu0 %v3373
    %3965 = vmatpush.msra.mxu0 %v3371
    %3966 = vmatpush.msra.mxu0 %v3369
    %3967 = vmatpush.msra.mxu0 %v3367
    %3968 = vmatmul.f32.gmra.mxu0 %v3950
    %v3969 = vpop.f32.mrf.mxu0
    %v3970 = vadd.f32 %v3385, %v3969
    %3971 = vdwg.mxu0
    %3972 = vmatpush.msra.mxu0 0.0
    %3973 = vmatpush.msra.mxu0 0.0
    %3974 = vmatpush.msra.mxu0 0.0
    %3975 = vmatpush.msra.mxu0 0.0
    %3976 = vmatpush.msra.mxu0 0.0
    %3977 = vmatpush.msra.mxu0 0.0
    %3978 = vmatpush.msra.mxu0 0.0
    %3979 = vmatpush.msra.mxu0 0.0
    %3980 = vmatpush.msra.mxu0 %v3382
    %3981 = vmatpush.msra.mxu0 %v3380
    %3982 = vmatpush.msra.mxu0 %v3378
    %3983 = vmatpush.msra.mxu0 %v3376
    %3984 = vmatpush.msra.mxu0 %v3374
    %3985 = vmatpush.msra.mxu0 %v3372
    %3986 = vmatpush.msra.mxu0 %v3370
    %3987 = vmatpush.msra.mxu0 %v3368
    %3988 = vmatmul.f32.gmra.mxu0 %v3950
    %v3989 = vpop.f32.mrf.mxu0
    %v3990 = vadd.f32 %v3386, %v3989
    %3991 = vdwg.mxu0
    %v3993 = vrot.slane %v3970, 4
    %v3995 = vadd.f32 %v3879, %v3993
    %v3996 = vxor.u32 %v3995, 2147483648
    %v3997 = vmul.f32 %v3996, 1.442695
    %v3998 = vpow.pop %v3997
    %v3999 = vadd.f32 %v3998, 1.0
    %v4000 = vrcp.pop %v3999
    %v4001 = vmul.f32 %v3999, %v4000
    %v4002 = vsub.f32 1.0, %v4001
    %v4003 = vmul.f32 %v4000, %v4002
    %v4004 = vadd.f32 %v4000, %v4003
    %vm4005 = vweird.f32 %v3999
    %vm4006 = vweird.f32 %v4000
    %vm4007 = vmor %vm4005, %vm4006
    %v4008 = vsel %vm4007, %v4000, %v4004
    %v4009 = vand.u32 2147483647, %v3999
    %vm4010 = vcmp.eq.f32.partialorder %v4009, 8.507059e+37
    %v4011 = vand.u32 %v3999, 2147483648
    %v4012 = vor.u32 1.1754944e-38, %v4011
    %v4013 = vsel %vm4010, %v4012, %v4008
    %v4014 = vmul.f32 1.0, %v4013
    %4015 = vrot.lane.b32.xlu0 %v3993, 64
    %v4016 = vpop.permute.xlu0 %4015
    %v4018 = vadd.f32 %v3888, %v4016
    %v4019 = vxor.u32 %v4018, 2147483648
    %v4020 = vmul.f32 %v4019, 1.442695
    %v4021 = vpow.pop %v4020
    %v4022 = vadd.f32 %v4021, 1.0
    %v4023 = vrcp.pop %v4022
    %v4024 = vmul.f32 %v4022, %v4023
    %v4025 = vsub.f32 1.0, %v4024
    %v4026 = vmul.f32 %v4023, %v4025
    %v4027 = vadd.f32 %v4023, %v4026
    %vm4028 = vweird.f32 %v4022
    %vm4029 = vweird.f32 %v4023
    %vm4030 = vmor %vm4028, %vm4029
    %v4031 = vsel %vm4030, %v4023, %v4027
    %v4032 = vand.u32 2147483647, %v4022
    %vm4033 = vcmp.eq.f32.partialorder %v4032, 8.507059e+37
    %v4034 = vand.u32 %v4022, 2147483648
    %v4035 = vor.u32 1.1754944e-38, %v4034
    %v4036 = vsel %vm4033, %v4035, %v4031
    %v4037 = vmul.f32 1.0, %v4036
    %v4039 = vrot.slane %v3990, 4
    %v4041 = vmul.f32 %v4014, %v4039
    %v4042 = vadd.f32 %v3893, %v4041
    %v4043 = vtanh.pop %v4042
    %v4044 = vsub.f32 1.0, %v4037
    %v4045 = vmul.f32 %v4044, %v4043
    %v4046 = vrot.slane %v3948, 4
    %v4048 = vmul.f32 %v4037, %v4046
    %v4049 = vadd.f32 %v4045, %v4048
    %v4050 = vmul.f32 %v195, %v4049
    %v4051 = vmul.f32 %v952, %v4046
    %v4052 = vadd.f32 %v4050, %v4051
    %v4054 = vrot.slane %v4052, 4
    %v4055 = vsel %vm387, %v4054, 0
    %4057 = vmatpush.msra.mxu0 0.0
    %4058 = vmatpush.msra.mxu0 0.0
    %4059 = vmatpush.msra.mxu0 0.0
    %4060 = vmatpush.msra.mxu0 0.0
    %4061 = vmatpush.msra.mxu0 0.0
    %4062 = vmatpush.msra.mxu0 0.0
    %4063 = vmatpush.msra.mxu0 0.0
    %4064 = vmatpush.msra.mxu0 0.0
    %4065 = vmatpush.msra.mxu0 %v3381
    %4066 = vmatpush.msra.mxu0 %v3379
    %4067 = vmatpush.msra.mxu0 %v3377
    %4068 = vmatpush.msra.mxu0 %v3375
    %4069 = vmatpush.msra.mxu0 %v3373
    %4070 = vmatpush.msra.mxu0 %v3371
    %4071 = vmatpush.msra.mxu0 %v3369
    %4072 = vmatpush.msra.mxu0 %v3367
    %4073 = vmatmul.f32.gmra.mxu0 %v4055
    %v4074 = vpop.f32.mrf.mxu0
    %v4075 = vadd.f32 %v3385, %v4074
    %4076 = vdwg.mxu0
    %4077 = vmatpush.msra.mxu0 0.0
    %4078 = vmatpush.msra.mxu0 0.0
    %4079 = vmatpush.msra.mxu0 0.0
    %4080 = vmatpush.msra.mxu0 0.0
    %4081 = vmatpush.msra.mxu0 0.0
    %4082 = vmatpush.msra.mxu0 0.0
    %4083 = vmatpush.msra.mxu0 0.0
    %4084 = vmatpush.msra.mxu0 0.0
    %4085 = vmatpush.msra.mxu0 %v3382
    %4086 = vmatpush.msra.mxu0 %v3380
    %4087 = vmatpush.msra.mxu0 %v3378
    %4088 = vmatpush.msra.mxu0 %v3376
    %4089 = vmatpush.msra.mxu0 %v3374
    %4090 = vmatpush.msra.mxu0 %v3372
    %4091 = vmatpush.msra.mxu0 %v3370
    %4092 = vmatpush.msra.mxu0 %v3368
    %4093 = vmatmul.f32.gmra.mxu0 %v4055
    %v4094 = vpop.f32.mrf.mxu0
    %v4095 = vadd.f32 %v3386, %v4094
    %4096 = vdwg.mxu0
    %v4097 = vrot.slane %v3327, 4
    %4098 = vrot.lane.b32.xlu0 %v4097, 64
    %v4099 = vpop.permute.xlu0 %4098
    %v4101 = vsel %vm294, %v3336, %v4099
    %4102 = vrot.lane.b32.xlu0 %v3336, 96
    %v4103 = vpop.permute.xlu0 %4102
    %v4106 = vrot.slane %v3356, 4
    %4107 = vrot.lane.b32.xlu0 %v4106, 32
    %v4108 = vpop.permute.xlu0 %4107
    %v4110 = vsel %vm294, %v4103, %v4108
    %4111 = vrot.lane.b32.xlu0 %v3336, 64
    %v4112 = vpop.permute.xlu0 %4111
    %v4115 = vsel %vm294, %v4112, %v4106
    %v4116 = vadd.f32 %v4101, %v4075
    %v4117 = vxor.u32 %v4116, 2147483648
    %v4118 = vmul.f32 %v4117, 1.442695
    %v4119 = vpow.pop %v4118
    %v4120 = vadd.f32 %v4119, 1.0
    %v4121 = vrcp.pop %v4120
    %v4122 = vmul.f32 %v4120, %v4121
    %v4123 = vsub.f32 1.0, %v4122
    %v4124 = vmul.f32 %v4121, %v4123
    %v4125 = vadd.f32 %v4121, %v4124
    %vm4126 = vweird.f32 %v4120
    %vm4127 = vweird.f32 %v4121
    %vm4128 = vmor %vm4126, %vm4127
    %v4129 = vsel %vm4128, %v4121, %v4125
    %v4130 = vand.u32 2147483647, %v4120
    %vm4131 = vcmp.eq.f32.partialorder %v4130, 8.507059e+37
    %v4132 = vand.u32 %v4120, 2147483648
    %v4133 = vor.u32 1.1754944e-38, %v4132
    %v4134 = vsel %vm4131, %v4133, %v4129
    %v4135 = vmul.f32 1.0, %v4134
    %4137 = vrot.lane.b32.xlu0 %v4075, 64
    %v4138 = vpop.permute.xlu0 %4137
    %v4140 = vadd.f32 %v4110, %v4138
    %v4141 = vxor.u32 %v4140, 2147483648
    %v4142 = vmul.f32 %v4141, 1.442695
    %v4143 = vpow.pop %v4142
    %v4144 = vadd.f32 %v4143, 1.0
    %v4145 = vrcp.pop %v4144
    %v4146 = vmul.f32 %v4144, %v4145
    %v4147 = vsub.f32 1.0, %v4146
    %v4148 = vmul.f32 %v4145, %v4147
    %v4149 = vadd.f32 %v4145, %v4148
    %vm4150 = vweird.f32 %v4144
    %vm4151 = vweird.f32 %v4145
    %vm4152 = vmor %vm4150, %vm4151
    %v4153 = vsel %vm4152, %v4145, %v4149
    %v4154 = vand.u32 2147483647, %v4144
    %vm4155 = vcmp.eq.f32.partialorder %v4154, 8.507059e+37
    %v4156 = vand.u32 %v4144, 2147483648
    %v4157 = vor.u32 1.1754944e-38, %v4156
    %v4158 = vsel %vm4155, %v4157, %v4153
    %v4159 = vmul.f32 1.0, %v4158
    %v4160 = vmul.f32 %v4135, %v4095
    %v4161 = vadd.f32 %v4115, %v4160
    %v4162 = vtanh.pop %v4161
    %v4163 = vsub.f32 1.0, %v4159
    %v4164 = vmul.f32 %v4163, %v4162
    %v4166 = vmul.f32 %v4159, %v4054
    %v4167 = vadd.f32 %v4164, %v4166
    %v4168 = vmul.f32 %v196, %v4167
    %v4169 = vmul.f32 %v1175, %v4054
    %v4170 = vadd.f32 %v4168, %v4169
    %v4172 = vsel %vm387, %v4170, 0
    %4174 = vmatpush.msra.mxu0 0.0
    %4175 = vmatpush.msra.mxu0 0.0
    %4176 = vmatpush.msra.mxu0 0.0
    %4177 = vmatpush.msra.mxu0 0.0
    %4178 = vmatpush.msra.mxu0 0.0
    %4179 = vmatpush.msra.mxu0 0.0
    %4180 = vmatpush.msra.mxu0 0.0
    %4181 = vmatpush.msra.mxu0 0.0
    %4182 = vmatpush.msra.mxu0 %v3381
    %4183 = vmatpush.msra.mxu0 %v3379
    %4184 = vmatpush.msra.mxu0 %v3377
    %4185 = vmatpush.msra.mxu0 %v3375
    %4186 = vmatpush.msra.mxu0 %v3373
    %4187 = vmatpush.msra.mxu0 %v3371
    %4188 = vmatpush.msra.mxu0 %v3369
    %4189 = vmatpush.msra.mxu0 %v3367
    %4190 = vmatmul.f32.gmra.mxu0 %v4172
    %v4191 = vpop.f32.mrf.mxu0
    %v4192 = vadd.f32 %v3385, %v4191
    %4193 = vdwg.mxu0
    %4194 = vmatpush.msra.mxu0 0.0
    %4195 = vmatpush.msra.mxu0 0.0
    %4196 = vmatpush.msra.mxu0 0.0
    %4197 = vmatpush.msra.mxu0 0.0
    %4198 = vmatpush.msra.mxu0 0.0
    %4199 = vmatpush.msra.mxu0 0.0
    %4200 = vmatpush.msra.mxu0 0.0
    %4201 = vmatpush.msra.mxu0 0.0
    %4202 = vmatpush.msra.mxu0 %v3382
    %4203 = vmatpush.msra.mxu0 %v3380
    %4204 = vmatpush.msra.mxu0 %v3378
    %4205 = vmatpush.msra.mxu0 %v3376
    %4206 = vmatpush.msra.mxu0 %v3374
    %4207 = vmatpush.msra.mxu0 %v3372
    %4208 = vmatpush.msra.mxu0 %v3370
    %4209 = vmatpush.msra.mxu0 %v3368
    %4210 = vmatmul.f32.gmra.mxu0 %v4172
    %v4211 = vpop.f32.mrf.mxu0
    %v4212 = vadd.f32 %v3386, %v4211
    %4213 = vdwg.mxu0
    %v4215 = vrot.slane %v4192, 4
    %v4217 = vadd.f32 %v4101, %v4215
    %v4218 = vxor.u32 %v4217, 2147483648
    %v4219 = vmul.f32 %v4218, 1.442695
    %v4220 = vpow.pop %v4219
    %v4221 = vadd.f32 %v4220, 1.0
    %v4222 = vrcp.pop %v4221
    %v4223 = vmul.f32 %v4221, %v4222
    %v4224 = vsub.f32 1.0, %v4223
    %v4225 = vmul.f32 %v4222, %v4224
    %v4226 = vadd.f32 %v4222, %v4225
    %vm4227 = vweird.f32 %v4221
    %vm4228 = vweird.f32 %v4222
    %vm4229 = vmor %vm4227, %vm4228
    %v4230 = vsel %vm4229, %v4222, %v4226
    %v4231 = vand.u32 2147483647, %v4221
    %vm4232 = vcmp.eq.f32.partialorder %v4231, 8.507059e+37
    %v4233 = vand.u32 %v4221, 2147483648
    %v4234 = vor.u32 1.1754944e-38, %v4233
    %v4235 = vsel %vm4232, %v4234, %v4230
    %v4236 = vmul.f32 1.0, %v4235
    %4237 = vrot.lane.b32.xlu0 %v4215, 64
    %v4238 = vpop.permute.xlu0 %4237
    %v4240 = vadd.f32 %v4110, %v4238
    %v4241 = vxor.u32 %v4240, 2147483648
    %v4242 = vmul.f32 %v4241, 1.442695
    %v4243 = vpow.pop %v4242
    %v4244 = vadd.f32 %v4243, 1.0
    %v4245 = vrcp.pop %v4244
    %v4246 = vmul.f32 %v4244, %v4245
    %v4247 = vsub.f32 1.0, %v4246
    %v4248 = vmul.f32 %v4245, %v4247
    %v4249 = vadd.f32 %v4245, %v4248
    %vm4250 = vweird.f32 %v4244
    %vm4251 = vweird.f32 %v4245
    %vm4252 = vmor %vm4250, %vm4251
    %v4253 = vsel %vm4252, %v4245, %v4249
    %v4254 = vand.u32 2147483647, %v4244
    %vm4255 = vcmp.eq.f32.partialorder %v4254, 8.507059e+37
    %v4256 = vand.u32 %v4244, 2147483648
    %v4257 = vor.u32 1.1754944e-38, %v4256
    %v4258 = vsel %vm4255, %v4257, %v4253
    %v4259 = vmul.f32 1.0, %v4258
    %v4261 = vrot.slane %v4212, 4
    %v4263 = vmul.f32 %v4236, %v4261
    %v4264 = vadd.f32 %v4115, %v4263
    %v4265 = vtanh.pop %v4264
    %v4266 = vsub.f32 1.0, %v4259
    %v4267 = vmul.f32 %v4266, %v4265
    %v4268 = vrot.slane %v4170, 4
    %v4270 = vmul.f32 %v4259, %v4268
    %v4271 = vadd.f32 %v4267, %v4270
    %v4272 = vmul.f32 %v196, %v4271
    %v4273 = vmul.f32 %v1175, %v4268
    %v4274 = vadd.f32 %v4272, %v4273
    %v4276 = vrot.slane %v4272, 4
    %v4278 = vsel %vm294, %v3501, %v4276
    %v4280 = vrot.slane %v4168, 4
    %v4282 = vsel %vm294, %v3604, %v4280
    %v4284 = vrot.slane %v4050, 4
    %v4286 = vsel %vm294, %v3724, %v4284
    %v4288 = vrot.slane %v3946, 4
    %v4290 = vsel %vm294, %v3828, %v4288
    %v4292 = vrot.slane %v3828, 4
    %v4294 = vsel %vm294, %v3946, %v4292
    %v4296 = vrot.slane %v3724, 4
    %v4298 = vsel %vm294, %v4050, %v4296
    %v4300 = vrot.slane %v3604, 4
    %v4302 = vsel %vm294, %v4168, %v4300
    %v4304 = vrot.slane %v3501, 4
    %v4306 = vsel %vm294, %v4272, %v4304
    %v4307 = vsel %vm1314, %v4278, %v4282
    %v4308 = vsel %vm1314, %v4286, %v4290
    %v4309 = vsel %vm1314, %v4294, %v4298
    %v4310 = vsel %vm1314, %v4302, %v4306
    %4312 = vrot.lane.b32.xlu0 %v4274, 64
    %v4313 = vpop.permute.xlu0 %4312
    %v4315 = vsel %vm387, %v3238, %v4313
    %4320 = vrot.lane.b32.xlu0 %v4307, 64
    %v4321 = vpop.permute.xlu0 %4320
    %4322 = vrot.lane.b32.xlu0 %v4308, 64
    %v4323 = vpop.permute.xlu0 %4322
    %4324 = vrot.lane.b32.xlu0 %v4309, 64
    %v4325 = vpop.permute.xlu0 %4324
    %4326 = vrot.lane.b32.xlu0 %v4310, 64
    %v4327 = vpop.permute.xlu0 %4326
    %v4332 = vsel %vm387, %v3271, %v4321
    %v4333 = vsel %vm387, %v3272, %v4323
    %v4334 = vsel %vm387, %v3273, %v4325
    %v4335 = vsel %vm387, %v3274, %v4327
    %v4336 = vld [vmem:[%s41] sm:$0xff]
    %v4337 = vld [vmem:[%s41 + $0x8] sm:$0xff]
    %v4338 = vld [vmem:[%s41 + $0x10] sm:$0xff]
    %v4339 = vld [vmem:[%s41 + $0x18] sm:$0xff]
    %v4340 = vld [vmem:[%s41 + $0x20] sm:$0xff]
    %v4341 = vld [vmem:[%s41 + $0x28] sm:$0xff]
    %v4342 = vld [vmem:[%s41 + $0x30] sm:$0xff]
    %v4343 = vld [vmem:[%s41 + $0x38] sm:$0xff]
    %v4344 = vld [vmem:[%s41 + $0x40] sm:$0xff]
    %v4345 = vld [vmem:[%s41 + $0x48] sm:$0xff]
    %v4346 = vld [vmem:[%s41 + $0x50] sm:$0xff]
    %v4347 = vld [vmem:[%s41 + $0x58] sm:$0xff]
    %v4348 = vld [vmem:[%s41 + $0x60] sm:$0xff]
    %v4349 = vld [vmem:[%s41 + $0x68] sm:$0xff]
    %v4350 = vld [vmem:[%s41 + $0x70] sm:$0xff]
    %v4351 = vld [vmem:[%s41 + $0x78] sm:$0xff]
    %v4352 = vld [vmem:[%s43] sm:$0x1]
    %v4354 = vperm.slane %v4352, 0
    %4356 = vmatpush.msra.mxu0 %v4351
    %4357 = vmatpush.msra.mxu0 %v4350
    %4358 = vmatpush.msra.mxu0 %v4349
    %4359 = vmatpush.msra.mxu0 %v4348
    %4360 = vmatpush.msra.mxu0 %v4347
    %4361 = vmatpush.msra.mxu0 %v4346
    %4362 = vmatpush.msra.mxu0 %v4345
    %4363 = vmatpush.msra.mxu0 %v4344
    %4364 = vmatpush.msra.mxu0 %v4343
    %4365 = vmatpush.msra.mxu0 %v4342
    %4366 = vmatpush.msra.mxu0 %v4341
    %4367 = vmatpush.msra.mxu0 %v4340
    %4368 = vmatpush.msra.mxu0 %v4339
    %4369 = vmatpush.msra.mxu0 %v4338
    %4370 = vmatpush.msra.mxu0 %v4337
    %4371 = vmatpush.msra.mxu0 %v4336
    %4372 = vmatmul.f32.gmra.mxu0 %v4332
    %v4373 = vpop.f32.mrf.mxu0
    %v4374 = vadd.f32 %v4354, %v4373
    %4375 = vmatmul.f32.gmra.mxu0 %v4333
    %v4376 = vpop.f32.mrf.mxu0
    %v4377 = vadd.f32 %v4354, %v4376
    %4378 = vmatmul.f32.gmra.mxu0 %v4334
    %v4379 = vpop.f32.mrf.mxu0
    %v4380 = vadd.f32 %v4354, %v4379
    %4381 = vmatmul.f32.gmra.mxu0 %v4335
    %v4382 = vpop.f32.mrf.mxu0
    %v4383 = vadd.f32 %v4354, %v4382
    %4384 = vdwg.mxu0
    %v4385 = vsel %vm234, %v4374, -inf
    %4386 = vmax.xlane.f32.xlu0 %v4385
    %v4387 = vpop.xlane.xlu0 %4386
    %v4388 = vsel %vm234, %v4377, -inf
    %4389 = vmax.xlane.f32.xlu0 %v4388
    %v4390 = vpop.xlane.xlu0 %4389
    %v4391 = vsel %vm234, %v4380, -inf
    %4392 = vmax.xlane.f32.xlu0 %v4391
    %v4393 = vpop.xlane.xlu0 %4392
    %v4394 = vsel %vm234, %v4383, -inf
    %4395 = vmax.xlane.f32.xlu0 %v4394
    %v4396 = vpop.xlane.xlu0 %4395
    %v4397 = vsub.f32 %v4374, %v4387
    %v4398 = vsub.f32 %v4377, %v4390
    %v4399 = vsub.f32 %v4380, %v4393
    %v4400 = vsub.f32 %v4383, %v4396
    %v4401 = vmul.f32 %v4397, 1.442695
    %v4402 = vpow.pop %v4401
    %v4403 = vmul.f32 %v4398, 1.442695
    %v4404 = vpow.pop %v4403
    %v4405 = vmul.f32 %v4399, 1.442695
    %v4406 = vpow.pop %v4405
    %v4407 = vmul.f32 %v4400, 1.442695
    %v4408 = vpow.pop %v4407
    %v4409 = vsel %vm234, %v4402, 0.0
    %4410 = vadd.xlane.f32.xlu0 %v4409
    %v4411 = vpop.xlane.xlu0 %4410
    %v4412 = vsel %vm234, %v4404, 0.0
    %4413 = vadd.xlane.f32.xlu0 %v4412
    %v4414 = vpop.xlane.xlu0 %4413
    %v4415 = vsel %vm234, %v4406, 0.0
    %4416 = vadd.xlane.f32.xlu0 %v4415
    %v4417 = vpop.xlane.xlu0 %4416
    %v4418 = vsel %vm234, %v4408, 0.0
    %4419 = vadd.xlane.f32.xlu0 %v4418
    %v4420 = vpop.xlane.xlu0 %4419
    %v4421 = vlog2.pop %v4411
    %v4422 = vmul.f32 %v4421, 0.6931472
    %v4423 = vlog2.pop %v4414
    %v4424 = vmul.f32 %v4423, 0.6931472
    %v4425 = vlog2.pop %v4417
    %v4426 = vmul.f32 %v4425, 0.6931472
    %v4427 = vlog2.pop %v4420
    %v4428 = vmul.f32 %v4427, 0.6931472
    %v4429 = vadd.f32 %v4422, %v4387
    %v4430 = vadd.f32 %v4424, %v4390
    %v4431 = vadd.f32 %v4426, %v4393
    %v4432 = vadd.f32 %v4428, %v4396
    %v4433 = vmul.f32 %v4374, %v223
    %v4434 = vmul.f32 %v4377, %v224
    %v4435 = vmul.f32 %v4380, %v225
    %v4436 = vmul.f32 %v4383, %v226
    %v4437 = vsel %vm234, %v4433, 0.0
    %4438 = vadd.xlane.f32.xlu0 %v4437
    %v4439 = vpop.xlane.xlu0 %4438
    %v4440 = vsel %vm234, %v4434, 0.0
    %4441 = vadd.xlane.f32.xlu0 %v4440
    %v4442 = vpop.xlane.xlu0 %4441
    %v4443 = vsel %vm234, %v4435, 0.0
    %4444 = vadd.xlane.f32.xlu0 %v4443
    %v4445 = vpop.xlane.xlu0 %4444
    %v4446 = vsel %vm234, %v4436, 0.0
    %4447 = vadd.xlane.f32.xlu0 %v4446
    %v4448 = vpop.xlane.xlu0 %4447
    %vm4449 = vcmp.ne.s32.totalorder %v197, 0
    %vm4450 = vcmp.ne.s32.totalorder %v198, 0
    %vm4451 = vcmp.ne.s32.totalorder %v199, 0
    %vm4452 = vcmp.ne.s32.totalorder %v200, 0
    %v4453 = vsel %vm4449, 1, 0
    %v4454 = vsel %vm4450, 1, 0
    %v4455 = vsel %vm4451, 1, 0
    %v4456 = vsel %vm4452, 1, 0
    %v4457 = vcvt.s32.f32 %v4453
    %v4458 = vcvt.s32.f32 %v4454
    %v4459 = vcvt.s32.f32 %v4455
    %v4460 = vcvt.s32.f32 %v4456
    %vm4461 = vcmask 7168
    %v4462 = vsel %vm4461, %v4457, 0.0
    %v4463 = vsel %vm4461, %v4458, 0.0
    %v4464 = vadd.f32 %v4462, %v4463
    %v4465 = vsel %vm4461, %v4459, 0.0
    %v4466 = vadd.f32 %v4464, %v4465
    %v4467 = vsel %vm4461, %v4460, 0.0
    %v4468 = vadd.f32 %v4466, %v4467
    %4469 = vadd.xlane.f32.xlu0 %v4468
    %v4470 = vpop.xlane.xlu0 %4469
    %v4471 = vrot.slane %v4470, 4
    %v4472 = vadd.f32 %v4470, %v4471
    %v4473 = vrot.slane %v4472, 2
    %v4474 = vadd.f32 %v4472, %v4473
    %v4475 = vrot.slane %v4474, 1
    %v4476 = vadd.f32 %v4474, %v4475
    %s4477 = vtos %v4476
    %v4478 = vstv %s4477
    %v4479 = vmax.f32 %v4478, 1.0
    %v4480 = vsub.f32 %v4429, %v4439
    %v4481 = vsub.f32 %v4430, %v4442
    %v4482 = vsub.f32 %v4431, %v4445
    %v4483 = vsub.f32 %v4432, %v4448
    %v4484 = vmul.f32 %v4480, %v4457
    %v4485 = vmul.f32 %v4481, %v4458
    %v4486 = vmul.f32 %v4482, %v4459
    %v4487 = vmul.f32 %v4483, %v4460
    %v4488 = vsel %vm4461, %v4484, 0.0
    %v4489 = vsel %vm4461, %v4485, 0.0
    %v4490 = vadd.f32 %v4488, %v4489
    %v4491 = vsel %vm4461, %v4486, 0.0
    %v4492 = vadd.f32 %v4490, %v4491
    %v4493 = vsel %vm4461, %v4487, 0.0
    %v4494 = vadd.f32 %v4492, %v4493
    %4495 = vadd.xlane.f32.xlu0 %v4494
    %v4496 = vpop.xlane.xlu0 %4495
    %v4497 = vrot.slane %v4496, 4
    %v4498 = vadd.f32 %v4496, %v4497
    %v4499 = vrot.slane %v4498, 2
    %v4500 = vadd.f32 %v4498, %v4499
    %v4501 = vrot.slane %v4500, 1
    %v4502 = vadd.f32 %v4500, %v4501
    %s4503 = vtos %v4502
    %v4504 = vstv %s4503
    %v4505 = vrcp.pop %v4479
    %v4506 = vmul.f32 %v4504, %v4505
    %v4507 = vmul.f32 %v2323, %v4315
    %v4508 = vld [vmem:[%s45] sm:$0xff]
    %v4509 = vld [vmem:[%s45 + $0x8] sm:$0xff]
    %v4510 = vld [vmem:[%s45 + $0x10] sm:$0xff]
    %v4511 = vld [vmem:[%s45 + $0x18] sm:$0xff]
    %v4512 = vld [vmem:[%s45 + $0x20] sm:$0xff]
    %v4513 = vld [vmem:[%s45 + $0x28] sm:$0xff]
    %v4514 = vld [vmem:[%s45 + $0x30] sm:$0xff]
    %v4515 = vld [vmem:[%s45 + $0x38] sm:$0xff]
    %v4516 = vld [vmem:[%s45 + $0x40] sm:$0xff]
    %v4517 = vld [vmem:[%s45 + $0x48] sm:$0xff]
    %v4518 = vld [vmem:[%s45 + $0x50] sm:$0xff]
    %v4519 = vld [vmem:[%s45 + $0x58] sm:$0xff]
    %v4520 = vld [vmem:[%s45 + $0x60] sm:$0xff]
    %v4521 = vld [vmem:[%s45 + $0x68] sm:$0xff]
    %v4522 = vld [vmem:[%s45 + $0x70] sm:$0xff]
    %v4523 = vld [vmem:[%s45 + $0x78] sm:$0xff]
    %v4524 = vld [vmem:[%s45 + $0x80] sm:$0xff]
    %v4525 = vld [vmem:[%s45 + $0x88] sm:$0xff]
    %v4526 = vld [vmem:[%s45 + $0x90] sm:$0xff]
    %v4527 = vld [vmem:[%s45 + $0x98] sm:$0xff]
    %v4528 = vld [vmem:[%s45 + $0xa0] sm:$0xff]
    %v4529 = vld [vmem:[%s45 + $0xa8] sm:$0xff]
    %v4530 = vld [vmem:[%s45 + $0xb0] sm:$0xff]
    %v4531 = vld [vmem:[%s45 + $0xb8] sm:$0xff]
    %v4532 = vld [vmem:[%s45 + $0xc0] sm:$0xff]
    %v4533 = vld [vmem:[%s45 + $0xc8] sm:$0xff]
    %v4534 = vld [vmem:[%s45 + $0xd0] sm:$0xff]
    %v4535 = vld [vmem:[%s45 + $0xd8] sm:$0xff]
    %v4536 = vld [vmem:[%s45 + $0xe0] sm:$0xff]
    %v4537 = vld [vmem:[%s45 + $0xe8] sm:$0xff]
    %v4538 = vld [vmem:[%s45 + $0xf0] sm:$0xff]
    %v4539 = vld [vmem:[%s45 + $0xf8] sm:$0xff]
    %v4540 = vld [vmem:[%s45 + $0x100] sm:$0xff]
    %v4541 = vld [vmem:[%s45 + $0x108] sm:$0xff]
    %v4542 = vld [vmem:[%s45 + $0x110] sm:$0xff]
    %v4543 = vld [vmem:[%s45 + $0x118] sm:$0xff]
    %v4544 = vld [vmem:[%s45 + $0x120] sm:$0xff]
    %v4545 = vld [vmem:[%s45 + $0x128] sm:$0xff]
    %v4546 = vld [vmem:[%s45 + $0x130] sm:$0xff]
    %v4547 = vld [vmem:[%s45 + $0x138] sm:$0xff]
    %v4548 = vld [vmem:[%s45 + $0x140] sm:$0xff]
    %v4549 = vld [vmem:[%s45 + $0x148] sm:$0xff]
    %v4550 = vld [vmem:[%s45 + $0x150] sm:$0xff]
    %v4551 = vld [vmem:[%s45 + $0x158] sm:$0xff]
    %v4552 = vld [vmem:[%s45 + $0x160] sm:$0xff]
    %v4553 = vld [vmem:[%s45 + $0x168] sm:$0xff]
    %v4554 = vld [vmem:[%s45 + $0x170] sm:$0xff]
    %v4555 = vld [vmem:[%s45 + $0x178] sm:$0xff]
    %v4556 = vld [vmem:[%s47] sm:$0x1]
    %v4558 = vperm.slane %v4556, 0
    %v4562 = vrot.slane %v4315, 4
    %v4563 = vrot.slane %v4507, 4
    %4566 = vmatpush.msra.mxu0 %v4523
    %4567 = vmatpush.msra.mxu0 %v4522
    %4568 = vmatpush.msra.mxu0 %v4521
    %4569 = vmatpush.msra.mxu0 %v4520
    %4570 = vmatpush.msra.mxu0 %v4519
    %4571 = vmatpush.msra.mxu0 %v4518
    %4572 = vmatpush.msra.mxu0 %v4517
    %4573 = vmatpush.msra.mxu0 %v4516
    %4574 = vmatpush.msra.mxu0 %v4515
    %4575 = vmatpush.msra.mxu0 %v4514
    %4576 = vmatpush.msra.mxu0 %v4513
    %4577 = vmatpush.msra.mxu0 %v4512
    %4578 = vmatpush.msra.mxu0 %v4511
    %4579 = vmatpush.msra.mxu0 %v4510
    %4580 = vmatpush.msra.mxu0 %v4509
    %4581 = vmatpush.msra.mxu0 %v4508
    %4582 = vmatmul.f32.gmra.mxu0 %v2363
    %v4583 = vpop.f32.mrf.mxu0
    %v4584 = vadd.f32 %v4558, %v4583
    %4585 = vdwg.mxu0
    %4586 = vmatpush.msra.mxu0 %v4539
    %4587 = vmatpush.msra.mxu0 %v4538
    %4588 = vmatpush.msra.mxu0 %v4537
    %4589 = vmatpush.msra.mxu0 %v4536
    %4590 = vmatpush.msra.mxu0 %v4535
    %4591 = vmatpush.msra.mxu0 %v4534
    %4592 = vmatpush.msra.mxu0 %v4533
    %4593 = vmatpush.msra.mxu0 %v4532
    %4594 = vmatpush.msra.mxu0 %v4531
    %4595 = vmatpush.msra.mxu0 %v4530
    %4596 = vmatpush.msra.mxu0 %v4529
    %4597 = vmatpush.msra.mxu0 %v4528
    %4598 = vmatpush.msra.mxu0 %v4527
    %4599 = vmatpush.msra.mxu0 %v4526
    %4600 = vmatpush.msra.mxu0 %v4525
    %4601 = vmatpush.msra.mxu0 %v4524
    %4602 = vmatmul.f32.gmra.mxu0 %v4562
    %v4603 = vpop.f32.mrf.mxu0
    %v4604 = vadd.f32 %v4584, %v4603
    %4605 = vdwg.mxu0
    %4606 = vmatpush.msra.mxu0 %v4555
    %4607 = vmatpush.msra.mxu0 %v4554
    %4608 = vmatpush.msra.mxu0 %v4553
    %4609 = vmatpush.msra.mxu0 %v4552
    %4610 = vmatpush.msra.mxu0 %v4551
    %4611 = vmatpush.msra.mxu0 %v4550
    %4612 = vmatpush.msra.mxu0 %v4549
    %4613 = vmatpush.msra.mxu0 %v4548
    %4614 = vmatpush.msra.mxu0 %v4547
    %4615 = vmatpush.msra.mxu0 %v4546
    %4616 = vmatpush.msra.mxu0 %v4545
    %4617 = vmatpush.msra.mxu0 %v4544
    %4618 = vmatpush.msra.mxu0 %v4543
    %4619 = vmatpush.msra.mxu0 %v4542
    %4620 = vmatpush.msra.mxu0 %v4541
    %4621 = vmatpush.msra.mxu0 %v4540
    %4622 = vmatmul.f32.gmra.mxu0 %v4563
    %v4623 = vpop.f32.mrf.mxu0
    %v4624 = vadd.f32 %v4604, %v4623
    %4625 = vdwg.mxu0
    %v4626 = vxor.u32 %v4624, 2147483648
    %v4627 = vmul.f32 %v4626, 1.442695
    %v4628 = vpow.pop %v4627
    %v4629 = vadd.f32 %v4628, 1.0
    %v4630 = vrcp.pop %v4629
    %v4631 = vmul.f32 %v4629, %v4630
    %v4632 = vsub.f32 1.0, %v4631
    %v4633 = vmul.f32 %v4630, %v4632
    %v4634 = vadd.f32 %v4630, %v4633
    %vm4635 = vweird.f32 %v4629
    %vm4636 = vweird.f32 %v4630
    %vm4637 = vmor %vm4635, %vm4636
    %v4638 = vsel %vm4637, %v4630, %v4634
    %v4639 = vand.u32 2147483647, %v4629
    %vm4640 = vcmp.eq.f32.partialorder %v4639, 8.507059e+37
    %v4641 = vand.u32 %v4629, 2147483648
    %v4642 = vor.u32 1.1754944e-38, %v4641
    %v4643 = vsel %vm4640, %v4642, %v4638
    %v4644 = vmul.f32 1.0, %v4643
    %v4645 = vld [vmem:[#allocation8] sm:$0xff]
    %v4646 = vld [vmem:[#allocation8 + $0x8] sm:$0xff]
    %v4647 = vld [vmem:[#allocation8 + $0x10] sm:$0xff]
    %v4648 = vld [vmem:[#allocation8 + $0x18] sm:$0xff]
    %v4649 = vld [vmem:[#allocation8 + $0x20] sm:$0xff]
    %v4650 = vld [vmem:[#allocation8 + $0x28] sm:$0xff]
    %v4651 = vld [vmem:[#allocation8 + $0x30] sm:$0xff]
    %v4652 = vld [vmem:[#allocation8 + $0x38] sm:$0xff]
    %v4653 = vld [vmem:[#allocation8 + $0x40] sm:$0xff]
    %v4654 = vld [vmem:[#allocation8 + $0x48] sm:$0xff]
    %v4655 = vld [vmem:[#allocation8 + $0x50] sm:$0xff]
    %v4656 = vld [vmem:[#allocation8 + $0x58] sm:$0xff]
    %v4657 = vld [vmem:[#allocation8 + $0x60] sm:$0xff]
    %v4658 = vld [vmem:[#allocation8 + $0x68] sm:$0xff]
    %v4659 = vld [vmem:[#allocation8 + $0x70] sm:$0xff]
    %v4660 = vld [vmem:[#allocation8 + $0x78] sm:$0xff]
    %v4661 = vld [vmem:[#allocation8 + $0x80] sm:$0xff]
    %v4662 = vld [vmem:[#allocation8 + $0x88] sm:$0xff]
    %v4663 = vld [vmem:[#allocation8 + $0x90] sm:$0xff]
    %v4664 = vld [vmem:[#allocation8 + $0x98] sm:$0xff]
    %v4665 = vld [vmem:[#allocation8 + $0xa0] sm:$0xff]
    %v4666 = vld [vmem:[#allocation8 + $0xa8] sm:$0xff]
    %v4667 = vld [vmem:[#allocation8 + $0xb0] sm:$0xff]
    %v4668 = vld [vmem:[#allocation8 + $0xb8] sm:$0xff]
    %v4669 = vld [vmem:[#allocation8 + $0xc0] sm:$0xff]
    %v4670 = vld [vmem:[#allocation8 + $0xc8] sm:$0xff]
    %v4671 = vld [vmem:[#allocation8 + $0xd0] sm:$0xff]
    %v4672 = vld [vmem:[#allocation8 + $0xd8] sm:$0xff]
    %v4673 = vld [vmem:[#allocation8 + $0xe0] sm:$0xff]
    %v4674 = vld [vmem:[#allocation8 + $0xe8] sm:$0xff]
    %v4675 = vld [vmem:[#allocation8 + $0xf0] sm:$0xff]
    %v4676 = vld [vmem:[#allocation8 + $0xf8] sm:$0xff]
    %v4677 = vld [vmem:[#allocation8 + $0x100] sm:$0xff]
    %v4678 = vld [vmem:[#allocation8 + $0x108] sm:$0xff]
    %v4679 = vld [vmem:[#allocation8 + $0x110] sm:$0xff]
    %v4680 = vld [vmem:[#allocation8 + $0x118] sm:$0xff]
    %v4681 = vld [vmem:[#allocation8 + $0x120] sm:$0xff]
    %v4682 = vld [vmem:[#allocation8 + $0x128] sm:$0xff]
    %v4683 = vld [vmem:[#allocation8 + $0x130] sm:$0xff]
    %v4684 = vld [vmem:[#allocation8 + $0x138] sm:$0xff]
    %v4685 = vld [vmem:[#allocation8 + $0x140] sm:$0xff]
    %v4686 = vld [vmem:[#allocation8 + $0x148] sm:$0xff]
    %v4687 = vld [vmem:[#allocation8 + $0x150] sm:$0xff]
    %v4688 = vld [vmem:[#allocation8 + $0x158] sm:$0xff]
    %v4689 = vld [vmem:[#allocation8 + $0x160] sm:$0xff]
    %v4690 = vld [vmem:[#allocation8 + $0x168] sm:$0xff]
    %v4691 = vld [vmem:[#allocation8 + $0x170] sm:$0xff]
    %v4692 = vld [vmem:[#allocation8 + $0x178] sm:$0xff]
    %v4693 = vld [vmem:[%s51] sm:$0x1]
    %v4695 = vperm.slane %v4693, 0
    %4697 = vmatpush.msra.mxu0 %v4660
    %4698 = vmatpush.msra.mxu0 %v4659
    %4699 = vmatpush.msra.mxu0 %v4658
    %4700 = vmatpush.msra.mxu0 %v4657
    %4701 = vmatpush.msra.mxu0 %v4656
    %4702 = vmatpush.msra.mxu0 %v4655
    %4703 = vmatpush.msra.mxu0 %v4654
    %4704 = vmatpush.msra.mxu0 %v4653
    %4705 = vmatpush.msra.mxu0 %v4652
    %4706 = vmatpush.msra.mxu0 %v4651
    %4707 = vmatpush.msra.mxu0 %v4650
    %4708 = vmatpush.msra.mxu0 %v4649
    %4709 = vmatpush.msra.mxu0 %v4648
    %4710 = vmatpush.msra.mxu0 %v4647
    %4711 = vmatpush.msra.mxu0 %v4646
    %4712 = vmatpush.msra.mxu0 %v4645
    %4713 = vmatmul.f32.gmra.mxu0 %v2363
    %v4714 = vpop.f32.mrf.mxu0
    %v4715 = vadd.f32 %v4695, %v4714
    %4716 = vdwg.mxu0
    %4717 = vmatpush.msra.mxu0 %v4676
    %4718 = vmatpush.msra.mxu0 %v4675
    %4719 = vmatpush.msra.mxu0 %v4674
    %4720 = vmatpush.msra.mxu0 %v4673
    %4721 = vmatpush.msra.mxu0 %v4672
    %4722 = vmatpush.msra.mxu0 %v4671
    %4723 = vmatpush.msra.mxu0 %v4670
    %4724 = vmatpush.msra.mxu0 %v4669
    %4725 = vmatpush.msra.mxu0 %v4668
    %4726 = vmatpush.msra.mxu0 %v4667
    %4727 = vmatpush.msra.mxu0 %v4666
    %4728 = vmatpush.msra.mxu0 %v4665
    %4729 = vmatpush.msra.mxu0 %v4664
    %4730 = vmatpush.msra.mxu0 %v4663
    %4731 = vmatpush.msra.mxu0 %v4662
    %4732 = vmatpush.msra.mxu0 %v4661
    %4733 = vmatmul.f32.gmra.mxu0 %v4562
    %v4734 = vpop.f32.mrf.mxu0
    %v4735 = vadd.f32 %v4715, %v4734
    %4736 = vdwg.mxu0
    %4737 = vmatpush.msra.mxu0 %v4692
    %4738 = vmatpush.msra.mxu0 %v4691
    %4739 = vmatpush.msra.mxu0 %v4690
    %4740 = vmatpush.msra.mxu0 %v4689
    %4741 = vmatpush.msra.mxu0 %v4688
    %4742 = vmatpush.msra.mxu0 %v4687
    %4743 = vmatpush.msra.mxu0 %v4686
    %4744 = vmatpush.msra.mxu0 %v4685
    %4745 = vmatpush.msra.mxu0 %v4684
    %4746 = vmatpush.msra.mxu0 %v4683
    %4747 = vmatpush.msra.mxu0 %v4682
    %4748 = vmatpush.msra.mxu0 %v4681
    %4749 = vmatpush.msra.mxu0 %v4680
    %4750 = vmatpush.msra.mxu0 %v4679
    %4751 = vmatpush.msra.mxu0 %v4678
    %4752 = vmatpush.msra.mxu0 %v4677
    %4753 = vmatmul.f32.gmra.mxu0 %v4563
    %v4754 = vpop.f32.mrf.mxu0
    %v4755 = vadd.f32 %v4735, %v4754
    %4756 = vdwg.mxu0
    %v4757 = vtanh.pop %v4755
    %v4759 = vrot.slane %v4644, 4
    %v4761 = vmul.f32 %v2323, %v4759
    %v4762 = vsub.f32 1.0, %v4644
    %v4763 = vmul.f32 %v4762, %v4757
    %v4765 = vrot.slane %v4763, 4
    %v4767 = vadd.f32 %v4761, %v4765
    %v4768 = vld [vmem:[%s53] sm:$0xff]
    %v4769 = vld [vmem:[%s53 + $0x8] sm:$0xff]
    %v4770 = vld [vmem:[%s53 + $0x10] sm:$0xff]
    %v4771 = vld [vmem:[%s53 + $0x18] sm:$0xff]
    %v4772 = vld [vmem:[%s53 + $0x20] sm:$0xff]
    %v4773 = vld [vmem:[%s53 + $0x28] sm:$0xff]
    %v4774 = vld [vmem:[%s53 + $0x30] sm:$0xff]
    %v4775 = vld [vmem:[%s53 + $0x38] sm:$0xff]
    %v4776 = vld [vmem:[%s53 + $0x40] sm:$0xff]
    %v4777 = vld [vmem:[%s53 + $0x48] sm:$0xff]
    %v4778 = vld [vmem:[%s53 + $0x50] sm:$0xff]
    %v4779 = vld [vmem:[%s53 + $0x58] sm:$0xff]
    %v4780 = vld [vmem:[%s53 + $0x60] sm:$0xff]
    %v4781 = vld [vmem:[%s53 + $0x68] sm:$0xff]
    %v4782 = vld [vmem:[%s53 + $0x70] sm:$0xff]
    %v4783 = vld [vmem:[%s53 + $0x78] sm:$0xff]
    %v4784 = vld [vmem:[%s55] sm:$0x1]
    %v4786 = vperm.slane %v4784, 0
    %v4789 = vrot.slane %v4767, 4
    %4791 = vmatpush.msra.mxu0 %v4783
    %4792 = vmatpush.msra.mxu0 %v4782
    %4793 = vmatpush.msra.mxu0 %v4781
    %4794 = vmatpush.msra.mxu0 %v4780
    %4795 = vmatpush.msra.mxu0 %v4779
    %4796 = vmatpush.msra.mxu0 %v4778
    %4797 = vmatpush.msra.mxu0 %v4777
    %4798 = vmatpush.msra.mxu0 %v4776
    %4799 = vmatpush.msra.mxu0 %v4775
    %4800 = vmatpush.msra.mxu0 %v4774
    %4801 = vmatpush.msra.mxu0 %v4773
    %4802 = vmatpush.msra.mxu0 %v4772
    %4803 = vmatpush.msra.mxu0 %v4771
    %4804 = vmatpush.msra.mxu0 %v4770
    %4805 = vmatpush.msra.mxu0 %v4769
    %4806 = vmatpush.msra.mxu0 %v4768
    %4807 = vmatmul.f32.gmra.mxu0 %v4789
    %v4808 = vpop.f32.mrf.mxu0
    %v4809 = vadd.f32 %v4786, %v4808
    %4810 = vdwg.mxu0
    %vm4811 = vcmp.gt.f32.partialorder %v4809, 0.0
    %v4812 = vmin.f32 %v4809, 0.0
    %v4813 = vmul.f32 %v4812, 1.442695
    %v4814 = vpow.pop %v4813
    %v4815 = vsub.f32 %v4814, 1.0
    %v4816 = vmul.f32 %v4815, 1.6732632
    %v4817 = vsel %vm4811, %v4809, %v4816
    %v4818 = vmul.f32 %v4817, 1.050701
    %v4819 = vld [vmem:[%s57] sm:$0xff]
    %v4820 = vld [vmem:[%s57 + $0x8] sm:$0xff]
    %v4821 = vld [vmem:[%s57 + $0x10] sm:$0xff]
    %v4822 = vld [vmem:[%s57 + $0x18] sm:$0xff]
    %v4823 = vld [vmem:[%s57 + $0x20] sm:$0xff]
    %v4824 = vld [vmem:[%s57 + $0x28] sm:$0xff]
    %v4825 = vld [vmem:[%s57 + $0x30] sm:$0xff]
    %v4826 = vld [vmem:[%s57 + $0x38] sm:$0xff]
    %v4827 = vld [vmem:[%s59] sm:$0x1]
    %v4829 = vperm.slane %v4827, 0
    %v4832 = vsel %vm387, %v4818, 0
    %4834 = vmatpush.msra.mxu0 0.0
    %4835 = vmatpush.msra.mxu0 0.0
    %4836 = vmatpush.msra.mxu0 0.0
    %4837 = vmatpush.msra.mxu0 0.0
    %4838 = vmatpush.msra.mxu0 0.0
    %4839 = vmatpush.msra.mxu0 0.0
    %4840 = vmatpush.msra.mxu0 0.0
    %4841 = vmatpush.msra.mxu0 0.0
    %4842 = vmatpush.msra.mxu0 %v4826
    %4843 = vmatpush.msra.mxu0 %v4825
    %4844 = vmatpush.msra.mxu0 %v4824
    %4845 = vmatpush.msra.mxu0 %v4823
    %4846 = vmatpush.msra.mxu0 %v4822
    %4847 = vmatpush.msra.mxu0 %v4821
    %4848 = vmatpush.msra.mxu0 %v4820
    %4849 = vmatpush.msra.mxu0 %v4819
    %4850 = vmatmul.f32.gmra.mxu0 %v4832
    %v4851 = vpop.f32.mrf.mxu0
    %v4852 = vadd.f32 %v4829, %v4851
    %4853 = vdwg.mxu0
    %vm4854 = vcmask 76800
    %4855 = vst.msk [vmem:[%s61] sm:$0xf] %vm4854, %v4852
    %v4856 = vld [vmem:[%s5] sm:$0xf]
    %4857 = vset.pattern.permute.xlu0 0
    %4858 = vperm.xlu0 %4857, %v4856
    %v4859 = vpop.permute.xlu0 %4858
    %vm4860 = vcmp.eq.s32.totalorder %v202, %v4859
    %v4861 = vsel %vm4860, 1, 0
    %v4862 = vcvt.s32.f32 %v4861
    %v4863 = vsel %vm4854, %v4852, -inf
    %4864 = vmax.xlane.f32.xlu0 %v4863
    %v4865 = vpop.xlane.xlu0 %4864
    %v4866 = vsub.f32 %v4852, %v4865
    %v4867 = vmul.f32 %v4866, 1.442695
    %v4868 = vpow.pop %v4867
    %v4869 = vsel %vm4854, %v4868, 0.0
    %4870 = vadd.xlane.f32.xlu0 %v4869
    %v4871 = vpop.xlane.xlu0 %4870
    %v4872 = vlog2.pop %v4871
    %v4873 = vmul.f32 %v4872, 0.6931472
    %v4874 = vadd.f32 %v4873, %v4865
    %v4875 = vmul.f32 %v4852, %v4862
    %v4876 = vsel %vm4854, %v4875, 0.0
    %4877 = vadd.xlane.f32.xlu0 %v4876
    %v4878 = vpop.xlane.xlu0 %4877
    %v4879 = vsub.f32 %v4874, %v4878
    %vm4880 = vcmask 3072
    %v4881 = vsel %vm4880, %v4879, 0.0
    %4882 = vadd.xlane.f32.xlu0 %v4881
    %v4883 = vpop.xlane.xlu0 %4882
    %v4884 = vrot.slane %v4883, 4
    %v4885 = vadd.f32 %v4883, %v4884
    %v4886 = vrot.slane %v4885, 2
    %v4887 = vadd.f32 %v4885, %v4886
    %v4888 = vrot.slane %v4887, 1
    %v4889 = vadd.f32 %v4887, %v4888
    %s4890 = vtos %v4889
    %v4891 = vstv %s4890
    %v4892 = vmul.f32 %v4891, 0.25
    %v4893 = vmul.f32 %v4506, 0.1
    %v4894 = vadd.f32 %v4892, %v4893
    %vm4895 = vcmask 0
    %4896 = vst.msk [vmem:[#allocation10] sm:$0x1] %vm4895, %v4894
    // Predicated region
    $region138: #{fsnet_forward.1} parent=1 // pred_check
      _
    $region139: #{fsnet_forward.1} parent=1 // pred_check_branch
      %4898 = sbr.rel (0) target = $region141
    $region140: #{fsnet_forward.1} parent=1 // pred_region
      _
    $region141: #{fsnet_forward.1} parent=1 // pred_fallthru
      _
    // Predicated region
    $region142: #{fsnet_forward.1} parent=1 // pred_check
      _
    $region143: #{fsnet_forward.1} parent=1 // pred_check_branch
      %4900 = sbr.rel (0) target = $region145
    $region144: #{fsnet_forward.1} parent=1 // pred_region
      %4902 = vsyncadd [#allocation4], 0
      %s4904 = sshll.u32 [#allocation10], 4
      %s4905 = int_to_ptr.vmem [resolvable:$true] %s4904
      %s4906 = sshll.u32 %s63, 4
      %s4907 = int_to_ptr.hbm [resolvable:$true] %s4906
      %4909 = dma.vmem_to_hbm [thread:$0]  %s4905, 16, %s4907, [#allocation4]
    $region145: #{fsnet_forward.1} parent=1 // pred_fallthru
      _
    // Predicated region
    $region146: #{fsnet_forward.1} parent=1 // pred_check
      _
    $region147: #{fsnet_forward.1} parent=1 // pred_check_branch
      %4911 = sbr.rel (0) target = $region149
    $region148: #{fsnet_forward.1} parent=1 // pred_region
      _
    $region149: #{fsnet_forward.1} parent=1 // pred_fallthru
      _
    // Predicated region
    $region150: #{fsnet_forward.1} parent=1 // pred_check
      _
    $region151: #{fsnet_forward.1} parent=1 // pred_check_branch
      %4913 = sbr.rel (0) target = $region153
    $region152: #{fsnet_forward.1} parent=1 // pred_region
      %4915 = dma.done [#allocation4], 16
    $region153: #{fsnet_forward.1} parent=1 // pred_fallthru
      _
    %4916 = vsyncpa [#allocation3], 1
    %4917 = vsyncpa [#allocation6], 1
    %4918 = vsyncpa [#allocation9], 1
    %4919 = vsyncpa [#allocation4], 1

</llo_original>
